<compile_context>
chip_gen: v6e
topology: v6e:2x2x1
jax: 0.10.0
libtpu: 0.0.40
codegen_flags: <defaults>
</compile_context>

<pallas_src>
import numpy as np
import jax
import jax.numpy as jnp
from jax.experimental import pallas as pl
from jax.experimental.pallas import tpu as pltpu

FILTER_SIZES = (2, 4, 6, 8, 10, 12, 16, 20)
FS_MAX = max(FILTER_SIZES)


# --------------------------------------------------------------------------------------
# Fused kernel: BiGRU + packed conv bank + ReLU + max-pool + fc (one pallas_call).
# --------------------------------------------------------------------------------------
def _fused_bigru_cnn_kernel(x_ref, wih_ref, bih_ref, whh_ref, bhh_ref,
                            wconv_ref, bconv_ref, fscol_ref, wfc_ref, bfc_ref,
                            out_ref, gi_scr, text_scr):
    SB = x_ref.shape[0]                      # S * B rows (row = t * B + b)
    H2, _ = whh_ref.shape                    # (2H, 6H)
    H = H2 // 2
    H4 = 4 * H
    NFP = wconv_ref.shape[1]                 # lane-dense (multiple of 128) conv-bank width
    B = out_ref.shape[0]
    S = SB // B

    # ---- 1) hoisted GRU input projection: one (S*B, 2E) x (2E, 6H) matmul covers both
    #         directions and all timesteps.  Row block i already holds the fwd gates of x[i]
    #         and the bwd gates of x[S-1-i] in the packed (r_f r_b | z_f z_b | n_f n_b) layout.
    gi_scr[...] = (jnp.dot(x_ref[...], wih_ref[...],
                           preferred_element_type=jnp.float32) + bih_ref[...])

    # ---- 2) recurrence.  One padded state scratch; zero once so the tail rows stay zero. ----
    text_scr[...] = jnp.zeros(text_scr.shape, text_scr.dtype)
    whh = whh_ref[...]                       # (2H, 6H) bf16, block-structured per direction
    bhh = bhh_ref[...]                       # (1, 6H)  f32

    h = jnp.zeros((B, H2), jnp.float32)      # carry = [h_f | h_b]
    # Static Python loop == full unroll with static indices (S = 24).
    # TODO(synk): for much larger S, switch to lax.fori_loop with a capped unroll factor.
    for i in range(S):
        tb = S - 1 - i
        gi_t = gi_scr[i * B:(i + 1) * B, :]                               # (B, 6H)
        gh = jnp.dot(h.astype(jnp.bfloat16), whh,
                     preferred_element_type=jnp.float32) + bhh            # (B, 6H)
        su = jax.nn.sigmoid(gi_t[:, :H4] + gh[:, :H4])                    # ONE sigmoid: r_f r_b z_f z_b
        r = su[:, :H2]                                                     # [r_f | r_b]
        z = su[:, H2:H4]                                                   # [z_f | z_b]
        n = jnp.tanh(gi_t[:, H4:] + r * gh[:, H4:])                        # ONE tanh:   [n_f | n_b]
        h = (1.0 - z) * n + z * h                                          # [h_f | h_b]
        hb16 = h.astype(jnp.bfloat16)
        text_scr[i * B:(i + 1) * B, 0:H] = hb16[:, 0:H]                    # h_f belongs to time i
        text_scr[tb * B:(tb + 1) * B, H:H2] = hb16[:, H:H2]                # h_b belongs to time S-1-i

    # ---- 3) conv bank: FS_MAX accumulating dots over shifted row windows of the state
    #         scratch (same packed weights as an im2col matmul, but no lane concats). ----
    acc = jnp.dot(text_scr[0:SB, :], wconv_ref[0:H2, :],
                  preferred_element_type=jnp.float32)
    for k in range(1, FS_MAX):
        acc = acc + jnp.dot(text_scr[k * B:k * B + SB, :],
                            wconv_ref[k * H2:(k + 1) * H2, :],
                            preferred_element_type=jnp.float32)
    conv = jnp.maximum(acc + bconv_ref[...], 0.0)                          # (S*B, NFP), ReLU

    # Row r = p*B + b is a valid window for a size-fs filter iff p <= S - fs,
    # i.e. r < (S - fs + 1) * B.  Masking to 0 post-ReLU is exact for S >= max(fs).
    rows = jax.lax.broadcasted_iota(jnp.int32, (SB, NFP), 0)
    limit = (S + 1 - fscol_ref[...]) * B                                   # (1, NFP) int32
    conv = jnp.where(rows < limit, conv, 0.0)

    # Global max-pool over time: max over row groups {p*B + b, p = 0..S-1}.
    pooled = conv[0:B, :]
    for p in range(1, S):
        pooled = jnp.maximum(pooled, conv[p * B:(p + 1) * B, :])           # (B, NFP)

    # TODO(synk): nn.Dropout(0.7) is an inference-mode identity here (no RNG mask applied).
    out_ref[...] = (jnp.dot(pooled, wfc_ref[...],
                            preferred_element_type=jnp.float32) + bfc_ref[...])


# --------------------------------------------------------------------------------------
# Wrapper: one gridless pallas_call for the entire forward.
# --------------------------------------------------------------------------------------
def con_bigru_cnn_forward(params, x):
    x = x.astype(jnp.float32)                         # mirrors `x = x.float()`
    B, S, E = x.shape
    if S < FS_MAX:
        raise ValueError(f"sequence length {S} must be >= {FS_MAX} (largest conv filter)")
    H = params["whh_packed"].shape[0] // 2

    # Build the (S*B, 2E) operand for the hoisted projection: row block i is
    # [x[:, i, :] | x[:, S-1-i, :]], so one matmul yields both directions' gates per step.
    x_tm = jnp.transpose(x, (1, 0, 2))                               # (S, B, E)
    x_cat = jnp.concatenate([x_tm, x_tm[::-1]], axis=-1)             # (S, B, 2E)
    x2d = x_cat.reshape(S * B, 2 * E).astype(jnp.bfloat16)

    vmem = lambda: pl.BlockSpec(memory_space=pltpu.MemorySpace.VMEM)
    # TODO(synk): for v7x (2 TensorCores) at larger batch, add a parallel batch-tile grid.
    return pl.pallas_call(
        _fused_bigru_cnn_kernel,
        out_shape=jax.ShapeDtypeStruct((B, 2), jnp.float32),
        in_specs=[vmem() for _ in range(10)],
        out_specs=vmem(),
        scratch_shapes=[
            pltpu.VMEM((S * B, 6 * H), jnp.float32),                  # hoisted input projection
            pltpu.VMEM(((S + FS_MAX - 1) * B, 2 * H), jnp.bfloat16),  # padded BiGRU state buffer
        ],
        compiler_params=pltpu.CompilerParams(vmem_limit_bytes=32 * 1024 * 1024),
    )(x2d,
      params["wih_packed"], params["bih_packed"],
      params["whh_packed"], params["bhh_packed"],
      params["wconv_packed"], params["bconv_packed"], params["fs_col"],
      params["fc_w"], params["fc_b"])


# --------------------------------------------------------------------------------------
# Parameter init / packing (column layout: r_f r_b | z_f z_b | n_f n_b; matmul weights bf16).
# --------------------------------------------------------------------------------------
def init_params(key, gru_size, filter_num, input_size=160):
    E, H, F = input_size, gru_size, filter_num
    H2, H6 = 2 * H, 6 * H
    NF = len(FILTER_SIZES) * F
    NFP = ((NF + 127) // 128) * 128                    # lane-dense conv-bank width
    ks = iter(jax.random.split(key, 64))

    def nrm(shape, scale=0.1):
        return scale * jax.random.normal(next(ks), shape, dtype=jnp.float32)

    def pack_dir(rows, d, w_r, w_z, w_n):
        """Place one direction's (r, z, n) blocks into the packed 6H column layout."""
        out = jnp.zeros((rows, H6), jnp.float32)
        out = out.at[:, d * H:(d + 1) * H].set(w_r)
        out = out.at[:, 2 * H + d * H:2 * H + (d + 1) * H].set(w_z)
        out = out.at[:, 4 * H + d * H:4 * H + (d + 1) * H].set(w_n)
        return out

    # rows [0:E]  multiply x[t]      (forward direction)
    # rows [E:2E] multiply x[S-1-t]  (backward direction)
    wih = jnp.concatenate([pack_dir(E, 0, nrm((E, H)), nrm((E, H)), nrm((E, H))),
                           pack_dir(E, 1, nrm((E, H)), nrm((E, H)), nrm((E, H)))], axis=0)
    # rows [0:H] multiply h_f, rows [H:2H] multiply h_b
    whh = jnp.concatenate([pack_dir(H, 0, nrm((H, H)), nrm((H, H)), nrm((H, H))),
                           pack_dir(H, 1, nrm((H, H)), nrm((H, H)), nrm((H, H)))], axis=0)
    bih = (pack_dir(1, 0, nrm((1, H)), nrm((1, H)), nrm((1, H)))
           + pack_dir(1, 1, nrm((1, H)), nrm((1, H)), nrm((1, H))))
    bhh = (pack_dir(1, 0, nrm((1, H)), nrm((1, H)), nrm((1, H)))
           + pack_dir(1, 1, nrm((1, H)), nrm((1, H)), nrm((1, H))))

    # Conv2d(1, F, (fs, 2H)) repacked: row index k*2H + c (window offset k, channel c),
    # column group g*F..(g+1)*F for filter size FILTER_SIZES[g]; zero-padded to 128 columns.
    C = H2
    wconv = jnp.zeros((FS_MAX * C, NFP), jnp.float32)
    bconv = jnp.zeros((1, NFP), jnp.float32)
    fs_col = np.ones((1, NFP), np.int32)               # pad columns behave as always-valid
    for g, fs in enumerate(FILTER_SIZES):
        wconv = wconv.at[:fs * C, g * F:(g + 1) * F].set(nrm((fs * C, F)))
        bconv = bconv.at[:, g * F:(g + 1) * F].set(nrm((1, F)))
        fs_col[:, g * F:(g + 1) * F] = fs

    fc_w = jnp.zeros((NFP, 2), jnp.float32).at[:NF, :].set(nrm((NF, 2)))
    fc_b = nrm((1, 2))

    return {
        "wih_packed": wih.astype(jnp.bfloat16),
        "bih_packed": bih,
        "whh_packed": whh.astype(jnp.bfloat16),
        "bhh_packed": bhh,
        "wconv_packed": wconv.astype(jnp.bfloat16),
        "bconv_packed": bconv,
        "fs_col": jnp.asarray(fs_col),
        "fc_w": fc_w,
        "fc_b": fc_b,
    }


# --------------------------------------------------------------------------------------
# Pure-JAX reference (independent code path; same bf16 matmul-operand casts as the kernel).
# --------------------------------------------------------------------------------------
def reference_forward(params, x, filter_num):
    x = x.astype(jnp.float32)
    B, S, E = x.shape
    whh = params["whh_packed"].astype(jnp.float32)
    H = whh.shape[0] // 2
    H2 = 2 * H
    F = filter_num
    NF = len(FILTER_SIZES) * F
    bf = jnp.bfloat16

    def unpack_cols(M, d):   # packed (r_f r_b | z_f z_b | n_f n_b) -> this direction's (r|z|n)
        return jnp.concatenate([M[:, d * H:(d + 1) * H],
                                M[:, 2 * H + d * H:2 * H + (d + 1) * H],
                                M[:, 4 * H + d * H:4 * H + (d + 1) * H]], axis=-1)

    wih = params["wih_packed"].astype(jnp.float32)
    wih_f, wih_b = unpack_cols(wih[:E], 0), unpack_cols(wih[E:], 1)
    whh_f, whh_b = unpack_cols(whh[:H], 0), unpack_cols(whh[H:], 1)
    bih_f, bih_b = unpack_cols(params["bih_packed"], 0), unpack_cols(params["bih_packed"], 1)
    bhh_f, bhh_b = unpack_cols(params["bhh_packed"], 0), unpack_cols(params["bhh_packed"], 1)

    def cell(gix, ghx, h_prev):             # PyTorch GRU cell, gate order (r, z, n)
        r = jax.nn.sigmoid(gix[:, :H] + ghx[:, :H])
        z = jax.nn.sigmoid(gix[:, H:2 * H] + ghx[:, H:2 * H])
        n = jnp.tanh(gix[:, 2 * H:] + r * ghx[:, 2 * H:])
        return (1.0 - z) * n + z * h_prev

    xb = x.astype(bf)
    h_f = jnp.zeros((B, H), jnp.float32)
    h_b = jnp.zeros((B, H), jnp.float32)
    outs_f, outs_b = [None] * S, [None] * S
    for i in range(S):
        t_b = S - 1 - i
        gi_f = jnp.dot(xb[:, i], wih_f.astype(bf), preferred_element_type=jnp.float32) + bih_f
        gh_f = jnp.dot(h_f.astype(bf), whh_f.astype(bf), preferred_element_type=jnp.float32) + bhh_f
        h_f = cell(gi_f, gh_f, h_f)
        outs_f[i] = h_f
        gi_b = jnp.dot(xb[:, t_b], wih_b.astype(bf), preferred_element_type=jnp.float32) + bih_b
        gh_b = jnp.dot(h_b.astype(bf), whh_b.astype(bf), preferred_element_type=jnp.float32) + bhh_b
        h_b = cell(gi_b, gh_b, h_b)
        outs_b[t_b] = h_b
    text = jnp.stack([jnp.concatenate([outs_f[t], outs_b[t]], axis=-1) for t in range(S)],
                     axis=1).astype(bf)                               # (B, S, 2H)

    C = H2
    wconv = params["wconv_packed"]
    bconv = params["bconv_packed"]
    pooled = []
    for g, fs in enumerate(FILTER_SIZES):
        T = S - fs + 1
        w = wconv[:fs * C, g * F:(g + 1) * F]                         # (fs*C, F) bf16
        wins = jnp.concatenate([text[:, k:k + T, :] for k in range(fs)], axis=-1)  # (B, T, fs*C)
        c = jnp.einsum("btc,cf->btf", wins, w, preferred_element_type=jnp.float32)
        c = jax.nn.relu(c + bconv[:, g * F:(g + 1) * F].reshape(1, 1, F))
        pooled.append(jnp.max(c, axis=1))
    cat = jnp.concatenate(pooled, axis=-1)                            # (B, 8F)
    return jnp.dot(cat, params["fc_w"][:NF],
                   preferred_element_type=jnp.float32) + params["fc_b"]


if __name__ == "__main__":
    # GRU input size is fixed at 160 by the module; seq_len >= 20 so that the fs=20 conv
    # has at least one valid window position (same constraint as PyTorch Conv2d).
    batch, seq_len, input_size = 2, 24, 160
    gru_size, filter_num = 16, 8

    key = jax.random.PRNGKey(0)
    k_x, k_p = jax.random.split(key)
    x = jax.random.normal(k_x, (batch, seq_len, input_size), dtype=jnp.float32)
    params = init_params(k_p, gru_size, filter_num, input_size)

    fwd = jax.jit(con_bigru_cnn_forward)
    logits = fwd(params, x)
    jax.block_until_ready(logits)

    assert logits.shape == (batch, 2), logits.shape
    assert logits.dtype == jnp.float32

    ref = reference_forward(params, x, filter_num)
    max_err = float(jnp.max(jnp.abs(logits - ref)))
    assert jnp.allclose(logits, ref, atol=2e-3, rtol=2e-3), f"max abs err {max_err}"

    print("KERNEL_OK")
</pallas_src>

<mosaic_0001>
module attributes {stable_mosaic.version = 11 : i64} {
  func.func @_fused_bigru_cnn_kernel(%arg0: memref<48x320xbf16, #tpu.memory_space<vmem>>, %arg1: memref<320x96xbf16, #tpu.memory_space<vmem>>, %arg2: memref<1x96xf32, #tpu.memory_space<vmem>>, %arg3: memref<32x96xbf16, #tpu.memory_space<vmem>>, %arg4: memref<1x96xf32, #tpu.memory_space<vmem>>, %arg5: memref<640x128xbf16, #tpu.memory_space<vmem>>, %arg6: memref<1x128xf32, #tpu.memory_space<vmem>>, %arg7: memref<1x128xi32, #tpu.memory_space<vmem>>, %arg8: memref<128x2xf32, #tpu.memory_space<vmem>>, %arg9: memref<1x2xf32, #tpu.memory_space<vmem>>, %arg10: memref<2x2xf32, #tpu.memory_space<vmem>>, %arg11: memref<48x96xf32, #tpu.memory_space<vmem>>, %arg12: memref<86x32xbf16, #tpu.memory_space<vmem>>) attributes {dimension_semantics = [], scalar_prefetch = 0 : i64, scratch_operands = 2 : i64, tpu.core_type = #tpu.core_type<tc>} {
    %c0 = arith.constant 0 : index
    %c0_0 = arith.constant 0 : index
    %0 = vector.load %arg0[%c0, %c0_0] : memref<48x320xbf16, #tpu.memory_space<vmem>>, vector<48x320xbf16>
    %c0_1 = arith.constant 0 : index
    %c0_2 = arith.constant 0 : index
    %1 = vector.load %arg1[%c0_1, %c0_2] : memref<320x96xbf16, #tpu.memory_space<vmem>>, vector<320x96xbf16>
    %cst = arith.constant dense<0.000000e+00> : vector<48x96xf32>
    %2 = tpu.matmul %0, %1, %cst {dimension_numbers = #tpu.dot_dimension_numbers<[1], [0], [0], [1], [0, 0, 1, 1], [], []>} : vector<48x320xbf16>, vector<320x96xbf16>, vector<48x96xf32> -> vector<48x96xf32>
    %c0_3 = arith.constant 0 : index
    %c0_4 = arith.constant 0 : index
    %3 = vector.load %arg2[%c0_3, %c0_4] : memref<1x96xf32, #tpu.memory_space<vmem>>, vector<1x96xf32>
    %4 = vector.broadcast %3 : vector<1x96xf32> to vector<48x96xf32>
    %5 = arith.addf %2, %4 : vector<48x96xf32>
    %c0_5 = arith.constant 0 : index
    %c0_6 = arith.constant 0 : index
    %6 = vector.load %arg11[%c0_5, %c0_6] : memref<48x96xf32, #tpu.memory_space<vmem>>, vector<48x96xf32>
    tpu.vector_store %arg11[%c0_5, %c0_6], %5 {strides = array<i32>} : memref<48x96xf32, #tpu.memory_space<vmem>>, vector<48x96xf32>,
    %cst_7 = arith.constant 0.000000e+00 : bf16
    %7 = vector.broadcast %cst_7 : bf16 to vector<86x32xbf16>
    %c0_8 = arith.constant 0 : index
    %c0_9 = arith.constant 0 : index
    %8 = vector.load %arg12[%c0_8, %c0_9] : memref<86x32xbf16, #tpu.memory_space<vmem>>, vector<86x32xbf16>
    tpu.vector_store %arg12[%c0_8, %c0_9], %7 {strides = array<i32>} : memref<86x32xbf16, #tpu.memory_space<vmem>>, vector<86x32xbf16>,
    %c0_10 = arith.constant 0 : index
    %c0_11 = arith.constant 0 : index
    %9 = vector.load %arg3[%c0_10, %c0_11] : memref<32x96xbf16, #tpu.memory_space<vmem>>, vector<32x96xbf16>
    %c0_12 = arith.constant 0 : index
    %c0_13 = arith.constant 0 : index
    %10 = vector.load %arg4[%c0_12, %c0_13] : memref<1x96xf32, #tpu.memory_space<vmem>>, vector<1x96xf32>
    %cst_14 = arith.constant 0.000000e+00 : f32
    %11 = vector.broadcast %cst_14 : f32 to vector<2x32xf32>
    %c0_15 = arith.constant 0 : index
    %c0_16 = arith.constant 0 : index
    %12 = vector.load %arg11[%c0_15, %c0_16] : memref<48x96xf32, #tpu.memory_space<vmem>>, vector<2x96xf32>
    %13 = arith.truncf %11 : vector<2x32xf32> to vector<2x32xbf16>
    %cst_17 = arith.constant dense<0.000000e+00> : vector<2x96xf32>
    %14 = tpu.matmul %13, %9, %cst_17 {dimension_numbers = #tpu.dot_dimension_numbers<[1], [0], [0], [1], [0, 0, 1, 1], [], []>} : vector<2x32xbf16>, vector<32x96xbf16>, vector<2x96xf32> -> vector<2x96xf32>
    %15 = vector.broadcast %10 : vector<1x96xf32> to vector<2x96xf32>
    %16 = arith.addf %14, %15 : vector<2x96xf32>
    %17 = vector.extract_strided_slice %12 {offsets = [0, 0], sizes = [2, 64], strides = [1, 1]} : vector<2x96xf32> to vector<2x64xf32>
    %18 = vector.extract_strided_slice %16 {offsets = [0, 0], sizes = [2, 64], strides = [1, 1]} : vector<2x96xf32> to vector<2x64xf32>
    %19 = arith.addf %17, %18 : vector<2x64xf32>
    %20 = arith.negf %19 : vector<2x64xf32>
    %21 = math.exp %20 : vector<2x64xf32>
    %cst_18 = arith.constant 1.000000e+00 : f32
    %22 = vector.broadcast %cst_18 : f32 to vector<2x64xf32>
    %23 = arith.addf %22, %21 : vector<2x64xf32>
    %24 = arith.divf %22, %23 : vector<2x64xf32>
    %25 = vector.extract_strided_slice %24 {offsets = [0, 0], sizes = [2, 32], strides = [1, 1]} : vector<2x64xf32> to vector<2x32xf32>
    %26 = vector.extract_strided_slice %24 {offsets = [0, 32], sizes = [2, 32], strides = [1, 1]} : vector<2x64xf32> to vector<2x32xf32>
    %27 = vector.extract_strided_slice %12 {offsets = [0, 64], sizes = [2, 32], strides = [1, 1]} : vector<2x96xf32> to vector<2x32xf32>
    %28 = vector.extract_strided_slice %16 {offsets = [0, 64], sizes = [2, 32], strides = [1, 1]} : vector<2x96xf32> to vector<2x32xf32>
    %29 = arith.mulf %25, %28 : vector<2x32xf32>
    %30 = arith.addf %27, %29 : vector<2x32xf32>
    %31 = math.tanh %30 : vector<2x32xf32>
    %cst_19 = arith.constant 1.000000e+00 : f32
    %32 = vector.broadcast %cst_19 : f32 to vector<2x32xf32>
    %33 = arith.subf %32, %26 : vector<2x32xf32>
    %34 = arith.mulf %33, %31 : vector<2x32xf32>
    %35 = arith.mulf %26, %11 : vector<2x32xf32>
    %36 = arith.addf %34, %35 : vector<2x32xf32>
    %37 = arith.truncf %36 : vector<2x32xf32> to vector<2x32xbf16>
    %38 = vector.extract_strided_slice %37 {offsets = [0, 0], sizes = [2, 16], strides = [1, 1]} : vector<2x32xbf16> to vector<2x16xbf16>
    %c0_20 = arith.constant 0 : index
    %c0_21 = arith.constant 0 : index
    %39 = vector.load %arg12[%c0_20, %c0_21] : memref<86x32xbf16, #tpu.memory_space<vmem>>, vector<2x16xbf16>
    tpu.vector_store %arg12[%c0_20, %c0_21], %38 {strides = array<i32>} : memref<86x32xbf16, #tpu.memory_space<vmem>>, vector<2x16xbf16>,
    %40 = vector.extract_strided_slice %37 {offsets = [0, 16], sizes = [2, 16], strides = [1, 1]} : vector<2x32xbf16> to vector<2x16xbf16>
    %c46 = arith.constant 46 : index
    %c16 = arith.constant 16 : index
    %41 = vector.load %arg12[%c46, %c16] : memref<86x32xbf16, #tpu.memory_space<vmem>>, vector<2x16xbf16>
    tpu.vector_store %arg12[%c46, %c16], %40 {strides = array<i32>} : memref<86x32xbf16, #tpu.memory_space<vmem>>, vector<2x16xbf16>,
    %c2 = arith.constant 2 : index
    %c0_22 = arith.constant 0 : index
    %42 = vector.load %arg11[%c2, %c0_22] : memref<48x96xf32, #tpu.memory_space<vmem>>, vector<2x96xf32>
    %43 = arith.truncf %36 : vector<2x32xf32> to vector<2x32xbf16>
    %cst_23 = arith.constant dense<0.000000e+00> : vector<2x96xf32>
    %44 = tpu.matmul %43, %9, %cst_23 {dimension_numbers = #tpu.dot_dimension_numbers<[1], [0], [0], [1], [0, 0, 1, 1], [], []>} : vector<2x32xbf16>, vector<32x96xbf16>, vector<2x96xf32> -> vector<2x96xf32>
    %45 = vector.broadcast %10 : vector<1x96xf32> to vector<2x96xf32>
    %46 = arith.addf %44, %45 : vector<2x96xf32>
    %47 = vector.extract_strided_slice %42 {offsets = [0, 0], sizes = [2, 64], strides = [1, 1]} : vector<2x96xf32> to vector<2x64xf32>
    %48 = vector.extract_strided_slice %46 {offsets = [0, 0], sizes = [2, 64], strides = [1, 1]} : vector<2x96xf32> to vector<2x64xf32>
    %49 = arith.addf %47, %48 : vector<2x64xf32>
    %50 = arith.negf %49 : vector<2x64xf32>
    %51 = math.exp %50 : vector<2x64xf32>
    %cst_24 = arith.constant 1.000000e+00 : f32
    %52 = vector.broadcast %cst_24 : f32 to vector<2x64xf32>
    %53 = arith.addf %52, %51 : vector<2x64xf32>
    %54 = arith.divf %52, %53 : vector<2x64xf32>
    %55 = vector.extract_strided_slice %54 {offsets = [0, 0], sizes = [2, 32], strides = [1, 1]} : vector<2x64xf32> to vector<2x32xf32>
    %56 = vector.extract_strided_slice %54 {offsets = [0, 32], sizes = [2, 32], strides = [1, 1]} : vector<2x64xf32> to vector<2x32xf32>
    %57 = vector.extract_strided_slice %42 {offsets = [0, 64], sizes = [2, 32], strides = [1, 1]} : vector<2x96xf32> to vector<2x32xf32>
    %58 = vector.extract_strided_slice %46 {offsets = [0, 64], sizes = [2, 32], strides = [1, 1]} : vector<2x96xf32> to vector<2x32xf32>
    %59 = arith.mulf %55, %58 : vector<2x32xf32>
    %60 = arith.addf %57, %59 : vector<2x32xf32>
    %61 = math.tanh %60 : vector<2x32xf32>
    %cst_25 = arith.constant 1.000000e+00 : f32
    %62 = vector.broadcast %cst_25 : f32 to vector<2x32xf32>
    %63 = arith.subf %62, %56 : vector<2x32xf32>
    %64 = arith.mulf %63, %61 : vector<2x32xf32>
    %65 = arith.mulf %56, %36 : vector<2x32xf32>
    %66 = arith.addf %64, %65 : vector<2x32xf32>
    %67 = arith.truncf %66 : vector<2x32xf32> to vector<2x32xbf16>
    %68 = vector.extract_strided_slice %67 {offsets = [0, 0], sizes = [2, 16], strides = [1, 1]} : vector<2x32xbf16> to vector<2x16xbf16>
    %c2_26 = arith.constant 2 : index
    %c0_27 = arith.constant 0 : index
    %69 = vector.load %arg12[%c2_26, %c0_27] : memref<86x32xbf16, #tpu.memory_space<vmem>>, vector<2x16xbf16>
    tpu.vector_store %arg12[%c2_26, %c0_27], %68 {strides = array<i32>} : memref<86x32xbf16, #tpu.memory_space<vmem>>, vector<2x16xbf16>,
    %70 = vector.extract_strided_slice %67 {offsets = [0, 16], sizes = [2, 16], strides = [1, 1]} : vector<2x32xbf16> to vector<2x16xbf16>
    %c44 = arith.constant 44 : index
    %c16_28 = arith.constant 16 : index
    %71 = vector.load %arg12[%c44, %c16_28] : memref<86x32xbf16, #tpu.memory_space<vmem>>, vector<2x16xbf16>
    tpu.vector_store %arg12[%c44, %c16_28], %70 {strides = array<i32>} : memref<86x32xbf16, #tpu.memory_space<vmem>>, vector<2x16xbf16>,
    %c4 = arith.constant 4 : index
    %c0_29 = arith.constant 0 : index
    %72 = vector.load %arg11[%c4, %c0_29] : memref<48x96xf32, #tpu.memory_space<vmem>>, vector<2x96xf32>
    %73 = arith.truncf %66 : vector<2x32xf32> to vector<2x32xbf16>
    %cst_30 = arith.constant dense<0.000000e+00> : vector<2x96xf32>
    %74 = tpu.matmul %73, %9, %cst_30 {dimension_numbers = #tpu.dot_dimension_numbers<[1], [0], [0], [1], [0, 0, 1, 1], [], []>} : vector<2x32xbf16>, vector<32x96xbf16>, vector<2x96xf32> -> vector<2x96xf32>
    %75 = vector.broadcast %10 : vector<1x96xf32> to vector<2x96xf32>
    %76 = arith.addf %74, %75 : vector<2x96xf32>
    %77 = vector.extract_strided_slice %72 {offsets = [0, 0], sizes = [2, 64], strides = [1, 1]} : vector<2x96xf32> to vector<2x64xf32>
    %78 = vector.extract_strided_slice %76 {offsets = [0, 0], sizes = [2, 64], strides = [1, 1]} : vector<2x96xf32> to vector<2x64xf32>
    %79 = arith.addf %77, %78 : vector<2x64xf32>
    %80 = arith.negf %79 : vector<2x64xf32>
    %81 = math.exp %80 : vector<2x64xf32>
    %cst_31 = arith.constant 1.000000e+00 : f32
    %82 = vector.broadcast %cst_31 : f32 to vector<2x64xf32>
    %83 = arith.addf %82, %81 : vector<2x64xf32>
    %84 = arith.divf %82, %83 : vector<2x64xf32>
    %85 = vector.extract_strided_slice %84 {offsets = [0, 0], sizes = [2, 32], strides = [1, 1]} : vector<2x64xf32> to vector<2x32xf32>
    %86 = vector.extract_strided_slice %84 {offsets = [0, 32], sizes = [2, 32], strides = [1, 1]} : vector<2x64xf32> to vector<2x32xf32>
    %87 = vector.extract_strided_slice %72 {offsets = [0, 64], sizes = [2, 32], strides = [1, 1]} : vector<2x96xf32> to vector<2x32xf32>
    %88 = vector.extract_strided_slice %76 {offsets = [0, 64], sizes = [2, 32], strides = [1, 1]} : vector<2x96xf32> to vector<2x32xf32>
    %89 = arith.mulf %85, %88 : vector<2x32xf32>
    %90 = arith.addf %87, %89 : vector<2x32xf32>
    %91 = math.tanh %90 : vector<2x32xf32>
    %cst_32 = arith.constant 1.000000e+00 : f32
    %92 = vector.broadcast %cst_32 : f32 to vector<2x32xf32>
    %93 = arith.subf %92, %86 : vector<2x32xf32>
    %94 = arith.mulf %93, %91 : vector<2x32xf32>
    %95 = arith.mulf %86, %66 : vector<2x32xf32>
    %96 = arith.addf %94, %95 : vector<2x32xf32>
    %97 = arith.truncf %96 : vector<2x32xf32> to vector<2x32xbf16>
    %98 = vector.extract_strided_slice %97 {offsets = [0, 0], sizes = [2, 16], strides = [1, 1]} : vector<2x32xbf16> to vector<2x16xbf16>
    %c4_33 = arith.constant 4 : index
    %c0_34 = arith.constant 0 : index
    %99 = vector.load %arg12[%c4_33, %c0_34] : memref<86x32xbf16, #tpu.memory_space<vmem>>, vector<2x16xbf16>
    tpu.vector_store %arg12[%c4_33, %c0_34], %98 {strides = array<i32>} : memref<86x32xbf16, #tpu.memory_space<vmem>>, vector<2x16xbf16>,
    %100 = vector.extract_strided_slice %97 {offsets = [0, 16], sizes = [2, 16], strides = [1, 1]} : vector<2x32xbf16> to vector<2x16xbf16>
    %c42 = arith.constant 42 : index
    %c16_35 = arith.constant 16 : index
    %101 = vector.load %arg12[%c42, %c16_35] : memref<86x32xbf16, #tpu.memory_space<vmem>>, vector<2x16xbf16>
    tpu.vector_store %arg12[%c42, %c16_35], %100 {strides = array<i32>} : memref<86x32xbf16, #tpu.memory_space<vmem>>, vector<2x16xbf16>,
    %c6 = arith.constant 6 : index
    %c0_36 = arith.constant 0 : index
    %102 = vector.load %arg11[%c6, %c0_36] : memref<48x96xf32, #tpu.memory_space<vmem>>, vector<2x96xf32>
    %103 = arith.truncf %96 : vector<2x32xf32> to vector<2x32xbf16>
    %cst_37 = arith.constant dense<0.000000e+00> : vector<2x96xf32>
    %104 = tpu.matmul %103, %9, %cst_37 {dimension_numbers = #tpu.dot_dimension_numbers<[1], [0], [0], [1], [0, 0, 1, 1], [], []>} : vector<2x32xbf16>, vector<32x96xbf16>, vector<2x96xf32> -> vector<2x96xf32>
    %105 = vector.broadcast %10 : vector<1x96xf32> to vector<2x96xf32>
    %106 = arith.addf %104, %105 : vector<2x96xf32>
    %107 = vector.extract_strided_slice %102 {offsets = [0, 0], sizes = [2, 64], strides = [1, 1]} : vector<2x96xf32> to vector<2x64xf32>
    %108 = vector.extract_strided_slice %106 {offsets = [0, 0], sizes = [2, 64], strides = [1, 1]} : vector<2x96xf32> to vector<2x64xf32>
    %109 = arith.addf %107, %108 : vector<2x64xf32>
    %110 = arith.negf %109 : vector<2x64xf32>
    %111 = math.exp %110 : vector<2x64xf32>
    %cst_38 = arith.constant 1.000000e+00 : f32
    %112 = vector.broadcast %cst_38 : f32 to vector<2x64xf32>
    %113 = arith.addf %112, %111 : vector<2x64xf32>
    %114 = arith.divf %112, %113 : vector<2x64xf32>
    %115 = vector.extract_strided_slice %114 {offsets = [0, 0], sizes = [2, 32], strides = [1, 1]} : vector<2x64xf32> to vector<2x32xf32>
    %116 = vector.extract_strided_slice %114 {offsets = [0, 32], sizes = [2, 32], strides = [1, 1]} : vector<2x64xf32> to vector<2x32xf32>
    %117 = vector.extract_strided_slice %102 {offsets = [0, 64], sizes = [2, 32], strides = [1, 1]} : vector<2x96xf32> to vector<2x32xf32>
    %118 = vector.extract_strided_slice %106 {offsets = [0, 64], sizes = [2, 32], strides = [1, 1]} : vector<2x96xf32> to vector<2x32xf32>
    %119 = arith.mulf %115, %118 : vector<2x32xf32>
    %120 = arith.addf %117, %119 : vector<2x32xf32>
    %121 = math.tanh %120 : vector<2x32xf32>
    %cst_39 = arith.constant 1.000000e+00 : f32
    %122 = vector.broadcast %cst_39 : f32 to vector<2x32xf32>
    %123 = arith.subf %122, %116 : vector<2x32xf32>
    %124 = arith.mulf %123, %121 : vector<2x32xf32>
    %125 = arith.mulf %116, %96 : vector<2x32xf32>
    %126 = arith.addf %124, %125 : vector<2x32xf32>
    %127 = arith.truncf %126 : vector<2x32xf32> to vector<2x32xbf16>
    %128 = vector.extract_strided_slice %127 {offsets = [0, 0], sizes = [2, 16], strides = [1, 1]} : vector<2x32xbf16> to vector<2x16xbf16>
    %c6_40 = arith.constant 6 : index
    %c0_41 = arith.constant 0 : index
    %129 = vector.load %arg12[%c6_40, %c0_41] : memref<86x32xbf16, #tpu.memory_space<vmem>>, vector<2x16xbf16>
    tpu.vector_store %arg12[%c6_40, %c0_41], %128 {strides = array<i32>} : memref<86x32xbf16, #tpu.memory_space<vmem>>, vector<2x16xbf16>,
    %130 = vector.extract_strided_slice %127 {offsets = [0, 16], sizes = [2, 16], strides = [1, 1]} : vector<2x32xbf16> to vector<2x16xbf16>
    %c40 = arith.constant 40 : index
    %c16_42 = arith.constant 16 : index
    %131 = vector.load %arg12[%c40, %c16_42] : memref<86x32xbf16, #tpu.memory_space<vmem>>, vector<2x16xbf16>
    tpu.vector_store %arg12[%c40, %c16_42], %130 {strides = array<i32>} : memref<86x32xbf16, #tpu.memory_space<vmem>>, vector<2x16xbf16>,
    %c8 = arith.constant 8 : index
    %c0_43 = arith.constant 0 : index
    %132 = vector.load %arg11[%c8, %c0_43] : memref<48x96xf32, #tpu.memory_space<vmem>>, vector<2x96xf32>
    %133 = arith.truncf %126 : vector<2x32xf32> to vector<2x32xbf16>
    %cst_44 = arith.constant dense<0.000000e+00> : vector<2x96xf32>
    %134 = tpu.matmul %133, %9, %cst_44 {dimension_numbers = #tpu.dot_dimension_numbers<[1], [0], [0], [1], [0, 0, 1, 1], [], []>} : vector<2x32xbf16>, vector<32x96xbf16>, vector<2x96xf32> -> vector<2x96xf32>
    %135 = vector.broadcast %10 : vector<1x96xf32> to vector<2x96xf32>
    %136 = arith.addf %134, %135 : vector<2x96xf32>
    %137 = vector.extract_strided_slice %132 {offsets = [0, 0], sizes = [2, 64], strides = [1, 1]} : vector<2x96xf32> to vector<2x64xf32>
    %138 = vector.extract_strided_slice %136 {offsets = [0, 0], sizes = [2, 64], strides = [1, 1]} : vector<2x96xf32> to vector<2x64xf32>
    %139 = arith.addf %137, %138 : vector<2x64xf32>
    %140 = arith.negf %139 : vector<2x64xf32>
    %141 = math.exp %140 : vector<2x64xf32>
    %cst_45 = arith.constant 1.000000e+00 : f32
    %142 = vector.broadcast %cst_45 : f32 to vector<2x64xf32>
    %143 = arith.addf %142, %141 : vector<2x64xf32>
    %144 = arith.divf %142, %143 : vector<2x64xf32>
    %145 = vector.extract_strided_slice %144 {offsets = [0, 0], sizes = [2, 32], strides = [1, 1]} : vector<2x64xf32> to vector<2x32xf32>
    %146 = vector.extract_strided_slice %144 {offsets = [0, 32], sizes = [2, 32], strides = [1, 1]} : vector<2x64xf32> to vector<2x32xf32>
    %147 = vector.extract_strided_slice %132 {offsets = [0, 64], sizes = [2, 32], strides = [1, 1]} : vector<2x96xf32> to vector<2x32xf32>
    %148 = vector.extract_strided_slice %136 {offsets = [0, 64], sizes = [2, 32], strides = [1, 1]} : vector<2x96xf32> to vector<2x32xf32>
    %149 = arith.mulf %145, %148 : vector<2x32xf32>
    %150 = arith.addf %147, %149 : vector<2x32xf32>
    %151 = math.tanh %150 : vector<2x32xf32>
    %cst_46 = arith.constant 1.000000e+00 : f32
    %152 = vector.broadcast %cst_46 : f32 to vector<2x32xf32>
    %153 = arith.subf %152, %146 : vector<2x32xf32>
    %154 = arith.mulf %153, %151 : vector<2x32xf32>
    %155 = arith.mulf %146, %126 : vector<2x32xf32>
    %156 = arith.addf %154, %155 : vector<2x32xf32>
    %157 = arith.truncf %156 : vector<2x32xf32> to vector<2x32xbf16>
    %158 = vector.extract_strided_slice %157 {offsets = [0, 0], sizes = [2, 16], strides = [1, 1]} : vector<2x32xbf16> to vector<2x16xbf16>
    %c8_47 = arith.constant 8 : index
    %c0_48 = arith.constant 0 : index
    %159 = vector.load %arg12[%c8_47, %c0_48] : memref<86x32xbf16, #tpu.memory_space<vmem>>, vector<2x16xbf16>
    tpu.vector_store %arg12[%c8_47, %c0_48], %158 {strides = array<i32>} : memref<86x32xbf16, #tpu.memory_space<vmem>>, vector<2x16xbf16>,
    %160 = vector.extract_strided_slice %157 {offsets = [0, 16], sizes = [2, 16], strides = [1, 1]} : vector<2x32xbf16> to vector<2x16xbf16>
    %c38 = arith.constant 38 : index
    %c16_49 = arith.constant 16 : index
    %161 = vector.load %arg12[%c38, %c16_49] : memref<86x32xbf16, #tpu.memory_space<vmem>>, vector<2x16xbf16>
    tpu.vector_store %arg12[%c38, %c16_49], %160 {strides = array<i32>} : memref<86x32xbf16, #tpu.memory_space<vmem>>, vector<2x16xbf16>,
    %c10 = arith.constant 10 : index
    %c0_50 = arith.constant 0 : index
    %162 = vector.load %arg11[%c10, %c0_50] : memref<48x96xf32, #tpu.memory_space<vmem>>, vector<2x96xf32>
    %163 = arith.truncf %156 : vector<2x32xf32> to vector<2x32xbf16>
    %cst_51 = arith.constant dense<0.000000e+00> : vector<2x96xf32>
    %164 = tpu.matmul %163, %9, %cst_51 {dimension_numbers = #tpu.dot_dimension_numbers<[1], [0], [0], [1], [0, 0, 1, 1], [], []>} : vector<2x32xbf16>, vector<32x96xbf16>, vector<2x96xf32> -> vector<2x96xf32>
    %165 = vector.broadcast %10 : vector<1x96xf32> to vector<2x96xf32>
    %166 = arith.addf %164, %165 : vector<2x96xf32>
    %167 = vector.extract_strided_slice %162 {offsets = [0, 0], sizes = [2, 64], strides = [1, 1]} : vector<2x96xf32> to vector<2x64xf32>
    %168 = vector.extract_strided_slice %166 {offsets = [0, 0], sizes = [2, 64], strides = [1, 1]} : vector<2x96xf32> to vector<2x64xf32>
    %169 = arith.addf %167, %168 : vector<2x64xf32>
    %170 = arith.negf %169 : vector<2x64xf32>
    %171 = math.exp %170 : vector<2x64xf32>
    %cst_52 = arith.constant 1.000000e+00 : f32
    %172 = vector.broadcast %cst_52 : f32 to vector<2x64xf32>
    %173 = arith.addf %172, %171 : vector<2x64xf32>
    %174 = arith.divf %172, %173 : vector<2x64xf32>
    %175 = vector.extract_strided_slice %174 {offsets = [0, 0], sizes = [2, 32], strides = [1, 1]} : vector<2x64xf32> to vector<2x32xf32>
    %176 = vector.extract_strided_slice %174 {offsets = [0, 32], sizes = [2, 32], strides = [1, 1]} : vector<2x64xf32> to vector<2x32xf32>
    %177 = vector.extract_strided_slice %162 {offsets = [0, 64], sizes = [2, 32], strides = [1, 1]} : vector<2x96xf32> to vector<2x32xf32>
    %178 = vector.extract_strided_slice %166 {offsets = [0, 64], sizes = [2, 32], strides = [1, 1]} : vector<2x96xf32> to vector<2x32xf32>
    %179 = arith.mulf %175, %178 : vector<2x32xf32>
    %180 = arith.addf %177, %179 : vector<2x32xf32>
    %181 = math.tanh %180 : vector<2x32xf32>
    %cst_53 = arith.constant 1.000000e+00 : f32
    %182 = vector.broadcast %cst_53 : f32 to vector<2x32xf32>
    %183 = arith.subf %182, %176 : vector<2x32xf32>
    %184 = arith.mulf %183, %181 : vector<2x32xf32>
    %185 = arith.mulf %176, %156 : vector<2x32xf32>
    %186 = arith.addf %184, %185 : vector<2x32xf32>
    %187 = arith.truncf %186 : vector<2x32xf32> to vector<2x32xbf16>
    %188 = vector.extract_strided_slice %187 {offsets = [0, 0], sizes = [2, 16], strides = [1, 1]} : vector<2x32xbf16> to vector<2x16xbf16>
    %c10_54 = arith.constant 10 : index
    %c0_55 = arith.constant 0 : index
    %189 = vector.load %arg12[%c10_54, %c0_55] : memref<86x32xbf16, #tpu.memory_space<vmem>>, vector<2x16xbf16>
    tpu.vector_store %arg12[%c10_54, %c0_55], %188 {strides = array<i32>} : memref<86x32xbf16, #tpu.memory_space<vmem>>, vector<2x16xbf16>,
    %190 = vector.extract_strided_slice %187 {offsets = [0, 16], sizes = [2, 16], strides = [1, 1]} : vector<2x32xbf16> to vector<2x16xbf16>
    %c36 = arith.constant 36 : index
    %c16_56 = arith.constant 16 : index
    %191 = vector.load %arg12[%c36, %c16_56] : memref<86x32xbf16, #tpu.memory_space<vmem>>, vector<2x16xbf16>
    tpu.vector_store %arg12[%c36, %c16_56], %190 {strides = array<i32>} : memref<86x32xbf16, #tpu.memory_space<vmem>>, vector<2x16xbf16>,
    %c12 = arith.constant 12 : index
    %c0_57 = arith.constant 0 : index
    %192 = vector.load %arg11[%c12, %c0_57] : memref<48x96xf32, #tpu.memory_space<vmem>>, vector<2x96xf32>
    %193 = arith.truncf %186 : vector<2x32xf32> to vector<2x32xbf16>
    %cst_58 = arith.constant dense<0.000000e+00> : vector<2x96xf32>
    %194 = tpu.matmul %193, %9, %cst_58 {dimension_numbers = #tpu.dot_dimension_numbers<[1], [0], [0], [1], [0, 0, 1, 1], [], []>} : vector<2x32xbf16>, vector<32x96xbf16>, vector<2x96xf32> -> vector<2x96xf32>
    %195 = vector.broadcast %10 : vector<1x96xf32> to vector<2x96xf32>
    %196 = arith.addf %194, %195 : vector<2x96xf32>
    %197 = vector.extract_strided_slice %192 {offsets = [0, 0], sizes = [2, 64], strides = [1, 1]} : vector<2x96xf32> to vector<2x64xf32>
    %198 = vector.extract_strided_slice %196 {offsets = [0, 0], sizes = [2, 64], strides = [1, 1]} : vector<2x96xf32> to vector<2x64xf32>
    %199 = arith.addf %197, %198 : vector<2x64xf32>
    %200 = arith.negf %199 : vector<2x64xf32>
    %201 = math.exp %200 : vector<2x64xf32>
    %cst_59 = arith.constant 1.000000e+00 : f32
    %202 = vector.broadcast %cst_59 : f32 to vector<2x64xf32>
    %203 = arith.addf %202, %201 : vector<2x64xf32>
    %204 = arith.divf %202, %203 : vector<2x64xf32>
    %205 = vector.extract_strided_slice %204 {offsets = [0, 0], sizes = [2, 32], strides = [1, 1]} : vector<2x64xf32> to vector<2x32xf32>
    %206 = vector.extract_strided_slice %204 {offsets = [0, 32], sizes = [2, 32], strides = [1, 1]} : vector<2x64xf32> to vector<2x32xf32>
    %207 = vector.extract_strided_slice %192 {offsets = [0, 64], sizes = [2, 32], strides = [1, 1]} : vector<2x96xf32> to vector<2x32xf32>
    %208 = vector.extract_strided_slice %196 {offsets = [0, 64], sizes = [2, 32], strides = [1, 1]} : vector<2x96xf32> to vector<2x32xf32>
    %209 = arith.mulf %205, %208 : vector<2x32xf32>
    %210 = arith.addf %207, %209 : vector<2x32xf32>
    %211 = math.tanh %210 : vector<2x32xf32>
    %cst_60 = arith.constant 1.000000e+00 : f32
    %212 = vector.broadcast %cst_60 : f32 to vector<2x32xf32>
    %213 = arith.subf %212, %206 : vector<2x32xf32>
    %214 = arith.mulf %213, %211 : vector<2x32xf32>
    %215 = arith.mulf %206, %186 : vector<2x32xf32>
    %216 = arith.addf %214, %215 : vector<2x32xf32>
    %217 = arith.truncf %216 : vector<2x32xf32> to vector<2x32xbf16>
    %218 = vector.extract_strided_slice %217 {offsets = [0, 0], sizes = [2, 16], strides = [1, 1]} : vector<2x32xbf16> to vector<2x16xbf16>
    %c12_61 = arith.constant 12 : index
    %c0_62 = arith.constant 0 : index
    %219 = vector.load %arg12[%c12_61, %c0_62] : memref<86x32xbf16, #tpu.memory_space<vmem>>, vector<2x16xbf16>
    tpu.vector_store %arg12[%c12_61, %c0_62], %218 {strides = array<i32>} : memref<86x32xbf16, #tpu.memory_space<vmem>>, vector<2x16xbf16>,
    %220 = vector.extract_strided_slice %217 {offsets = [0, 16], sizes = [2, 16], strides = [1, 1]} : vector<2x32xbf16> to vector<2x16xbf16>
    %c34 = arith.constant 34 : index
    %c16_63 = arith.constant 16 : index
    %221 = vector.load %arg12[%c34, %c16_63] : memref<86x32xbf16, #tpu.memory_space<vmem>>, vector<2x16xbf16>
    tpu.vector_store %arg12[%c34, %c16_63], %220 {strides = array<i32>} : memref<86x32xbf16, #tpu.memory_space<vmem>>, vector<2x16xbf16>,
    %c14 = arith.constant 14 : index
    %c0_64 = arith.constant 0 : index
    %222 = vector.load %arg11[%c14, %c0_64] : memref<48x96xf32, #tpu.memory_space<vmem>>, vector<2x96xf32>
    %223 = arith.truncf %216 : vector<2x32xf32> to vector<2x32xbf16>
    %cst_65 = arith.constant dense<0.000000e+00> : vector<2x96xf32>
    %224 = tpu.matmul %223, %9, %cst_65 {dimension_numbers = #tpu.dot_dimension_numbers<[1], [0], [0], [1], [0, 0, 1, 1], [], []>} : vector<2x32xbf16>, vector<32x96xbf16>, vector<2x96xf32> -> vector<2x96xf32>
    %225 = vector.broadcast %10 : vector<1x96xf32> to vector<2x96xf32>
    %226 = arith.addf %224, %225 : vector<2x96xf32>
    %227 = vector.extract_strided_slice %222 {offsets = [0, 0], sizes = [2, 64], strides = [1, 1]} : vector<2x96xf32> to vector<2x64xf32>
    %228 = vector.extract_strided_slice %226 {offsets = [0, 0], sizes = [2, 64], strides = [1, 1]} : vector<2x96xf32> to vector<2x64xf32>
    %229 = arith.addf %227, %228 : vector<2x64xf32>
    %230 = arith.negf %229 : vector<2x64xf32>
    %231 = math.exp %230 : vector<2x64xf32>
    %cst_66 = arith.constant 1.000000e+00 : f32
    %232 = vector.broadcast %cst_66 : f32 to vector<2x64xf32>
    %233 = arith.addf %232, %231 : vector<2x64xf32>
    %234 = arith.divf %232, %233 : vector<2x64xf32>
    %235 = vector.extract_strided_slice %234 {offsets = [0, 0], sizes = [2, 32], strides = [1, 1]} : vector<2x64xf32> to vector<2x32xf32>
    %236 = vector.extract_strided_slice %234 {offsets = [0, 32], sizes = [2, 32], strides = [1, 1]} : vector<2x64xf32> to vector<2x32xf32>
    %237 = vector.extract_strided_slice %222 {offsets = [0, 64], sizes = [2, 32], strides = [1, 1]} : vector<2x96xf32> to vector<2x32xf32>
    %238 = vector.extract_strided_slice %226 {offsets = [0, 64], sizes = [2, 32], strides = [1, 1]} : vector<2x96xf32> to vector<2x32xf32>
    %239 = arith.mulf %235, %238 : vector<2x32xf32>
    %240 = arith.addf %237, %239 : vector<2x32xf32>
    %241 = math.tanh %240 : vector<2x32xf32>
    %cst_67 = arith.constant 1.000000e+00 : f32
    %242 = vector.broadcast %cst_67 : f32 to vector<2x32xf32>
    %243 = arith.subf %242, %236 : vector<2x32xf32>
    %244 = arith.mulf %243, %241 : vector<2x32xf32>
    %245 = arith.mulf %236, %216 : vector<2x32xf32>
    %246 = arith.addf %244, %245 : vector<2x32xf32>
    %247 = arith.truncf %246 : vector<2x32xf32> to vector<2x32xbf16>
    %248 = vector.extract_strided_slice %247 {offsets = [0, 0], sizes = [2, 16], strides = [1, 1]} : vector<2x32xbf16> to vector<2x16xbf16>
    %c14_68 = arith.constant 14 : index
    %c0_69 = arith.constant 0 : index
    %249 = vector.load %arg12[%c14_68, %c0_69] : memref<86x32xbf16, #tpu.memory_space<vmem>>, vector<2x16xbf16>
    tpu.vector_store %arg12[%c14_68, %c0_69], %248 {strides = array<i32>} : memref<86x32xbf16, #tpu.memory_space<vmem>>, vector<2x16xbf16>,
    %250 = vector.extract_strided_slice %247 {offsets = [0, 16], sizes = [2, 16], strides = [1, 1]} : vector<2x32xbf16> to vector<2x16xbf16>
    %c32 = arith.constant 32 : index
    %c16_70 = arith.constant 16 : index
    %251 = vector.load %arg12[%c32, %c16_70] : memref<86x32xbf16, #tpu.memory_space<vmem>>, vector<2x16xbf16>
    tpu.vector_store %arg12[%c32, %c16_70], %250 {strides = array<i32>} : memref<86x32xbf16, #tpu.memory_space<vmem>>, vector<2x16xbf16>,
    %c16_71 = arith.constant 16 : index
    %c0_72 = arith.constant 0 : index
    %252 = vector.load %arg11[%c16_71, %c0_72] : memref<48x96xf32, #tpu.memory_space<vmem>>, vector<2x96xf32>
    %253 = arith.truncf %246 : vector<2x32xf32> to vector<2x32xbf16>
    %cst_73 = arith.constant dense<0.000000e+00> : vector<2x96xf32>
    %254 = tpu.matmul %253, %9, %cst_73 {dimension_numbers = #tpu.dot_dimension_numbers<[1], [0], [0], [1], [0, 0, 1, 1], [], []>} : vector<2x32xbf16>, vector<32x96xbf16>, vector<2x96xf32> -> vector<2x96xf32>
    %255 = vector.broadcast %10 : vector<1x96xf32> to vector<2x96xf32>
    %256 = arith.addf %254, %255 : vector<2x96xf32>
    %257 = vector.extract_strided_slice %252 {offsets = [0, 0], sizes = [2, 64], strides = [1, 1]} : vector<2x96xf32> to vector<2x64xf32>
    %258 = vector.extract_strided_slice %256 {offsets = [0, 0], sizes = [2, 64], strides = [1, 1]} : vector<2x96xf32> to vector<2x64xf32>
    %259 = arith.addf %257, %258 : vector<2x64xf32>
    %260 = arith.negf %259 : vector<2x64xf32>
    %261 = math.exp %260 : vector<2x64xf32>
    %cst_74 = arith.constant 1.000000e+00 : f32
    %262 = vector.broadcast %cst_74 : f32 to vector<2x64xf32>
    %263 = arith.addf %262, %261 : vector<2x64xf32>
    %264 = arith.divf %262, %263 : vector<2x64xf32>
    %265 = vector.extract_strided_slice %264 {offsets = [0, 0], sizes = [2, 32], strides = [1, 1]} : vector<2x64xf32> to vector<2x32xf32>
    %266 = vector.extract_strided_slice %264 {offsets = [0, 32], sizes = [2, 32], strides = [1, 1]} : vector<2x64xf32> to vector<2x32xf32>
    %267 = vector.extract_strided_slice %252 {offsets = [0, 64], sizes = [2, 32], strides = [1, 1]} : vector<2x96xf32> to vector<2x32xf32>
    %268 = vector.extract_strided_slice %256 {offsets = [0, 64], sizes = [2, 32], strides = [1, 1]} : vector<2x96xf32> to vector<2x32xf32>
    %269 = arith.mulf %265, %268 : vector<2x32xf32>
    %270 = arith.addf %267, %269 : vector<2x32xf32>
    %271 = math.tanh %270 : vector<2x32xf32>
    %cst_75 = arith.constant 1.000000e+00 : f32
    %272 = vector.broadcast %cst_75 : f32 to vector<2x32xf32>
    %273 = arith.subf %272, %266 : vector<2x32xf32>
    %274 = arith.mulf %273, %271 : vector<2x32xf32>
    %275 = arith.mulf %266, %246 : vector<2x32xf32>
    %276 = arith.addf %274, %275 : vector<2x32xf32>
    %277 = arith.truncf %276 : vector<2x32xf32> to vector<2x32xbf16>
    %278 = vector.extract_strided_slice %277 {offsets = [0, 0], sizes = [2, 16], strides = [1, 1]} : vector<2x32xbf16> to vector<2x16xbf16>
    %c16_76 = arith.constant 16 : index
    %c0_77 = arith.constant 0 : index
    %279 = vector.load %arg12[%c16_76, %c0_77] : memref<86x32xbf16, #tpu.memory_space<vmem>>, vector<2x16xbf16>
    tpu.vector_store %arg12[%c16_76, %c0_77], %278 {strides = array<i32>} : memref<86x32xbf16, #tpu.memory_space<vmem>>, vector<2x16xbf16>,
    %280 = vector.extract_strided_slice %277 {offsets = [0, 16], sizes = [2, 16], strides = [1, 1]} : vector<2x32xbf16> to vector<2x16xbf16>
    %c30 = arith.constant 30 : index
    %c16_78 = arith.constant 16 : index
    %281 = vector.load %arg12[%c30, %c16_78] : memref<86x32xbf16, #tpu.memory_space<vmem>>, vector<2x16xbf16>
    tpu.vector_store %arg12[%c30, %c16_78], %280 {strides = array<i32>} : memref<86x32xbf16, #tpu.memory_space<vmem>>, vector<2x16xbf16>,
    %c18 = arith.constant 18 : index
    %c0_79 = arith.constant 0 : index
    %282 = vector.load %arg11[%c18, %c0_79] : memref<48x96xf32, #tpu.memory_space<vmem>>, vector<2x96xf32>
    %283 = arith.truncf %276 : vector<2x32xf32> to vector<2x32xbf16>
    %cst_80 = arith.constant dense<0.000000e+00> : vector<2x96xf32>
    %284 = tpu.matmul %283, %9, %cst_80 {dimension_numbers = #tpu.dot_dimension_numbers<[1], [0], [0], [1], [0, 0, 1, 1], [], []>} : vector<2x32xbf16>, vector<32x96xbf16>, vector<2x96xf32> -> vector<2x96xf32>
    %285 = vector.broadcast %10 : vector<1x96xf32> to vector<2x96xf32>
    %286 = arith.addf %284, %285 : vector<2x96xf32>
    %287 = vector.extract_strided_slice %282 {offsets = [0, 0], sizes = [2, 64], strides = [1, 1]} : vector<2x96xf32> to vector<2x64xf32>
    %288 = vector.extract_strided_slice %286 {offsets = [0, 0], sizes = [2, 64], strides = [1, 1]} : vector<2x96xf32> to vector<2x64xf32>
    %289 = arith.addf %287, %288 : vector<2x64xf32>
    %290 = arith.negf %289 : vector<2x64xf32>
    %291 = math.exp %290 : vector<2x64xf32>
    %cst_81 = arith.constant 1.000000e+00 : f32
    %292 = vector.broadcast %cst_81 : f32 to vector<2x64xf32>
    %293 = arith.addf %292, %291 : vector<2x64xf32>
    %294 = arith.divf %292, %293 : vector<2x64xf32>
    %295 = vector.extract_strided_slice %294 {offsets = [0, 0], sizes = [2, 32], strides = [1, 1]} : vector<2x64xf32> to vector<2x32xf32>
    %296 = vector.extract_strided_slice %294 {offsets = [0, 32], sizes = [2, 32], strides = [1, 1]} : vector<2x64xf32> to vector<2x32xf32>
    %297 = vector.extract_strided_slice %282 {offsets = [0, 64], sizes = [2, 32], strides = [1, 1]} : vector<2x96xf32> to vector<2x32xf32>
    %298 = vector.extract_strided_slice %286 {offsets = [0, 64], sizes = [2, 32], strides = [1, 1]} : vector<2x96xf32> to vector<2x32xf32>
    %299 = arith.mulf %295, %298 : vector<2x32xf32>
    %300 = arith.addf %297, %299 : vector<2x32xf32>
    %301 = math.tanh %300 : vector<2x32xf32>
    %cst_82 = arith.constant 1.000000e+00 : f32
    %302 = vector.broadcast %cst_82 : f32 to vector<2x32xf32>
    %303 = arith.subf %302, %296 : vector<2x32xf32>
    %304 = arith.mulf %303, %301 : vector<2x32xf32>
    %305 = arith.mulf %296, %276 : vector<2x32xf32>
    %306 = arith.addf %304, %305 : vector<2x32xf32>
    %307 = arith.truncf %306 : vector<2x32xf32> to vector<2x32xbf16>
    %308 = vector.extract_strided_slice %307 {offsets = [0, 0], sizes = [2, 16], strides = [1, 1]} : vector<2x32xbf16> to vector<2x16xbf16>
    %c18_83 = arith.constant 18 : index
    %c0_84 = arith.constant 0 : index
    %309 = vector.load %arg12[%c18_83, %c0_84] : memref<86x32xbf16, #tpu.memory_space<vmem>>, vector<2x16xbf16>
    tpu.vector_store %arg12[%c18_83, %c0_84], %308 {strides = array<i32>} : memref<86x32xbf16, #tpu.memory_space<vmem>>, vector<2x16xbf16>,
    %310 = vector.extract_strided_slice %307 {offsets = [0, 16], sizes = [2, 16], strides = [1, 1]} : vector<2x32xbf16> to vector<2x16xbf16>
    %c28 = arith.constant 28 : index
    %c16_85 = arith.constant 16 : index
    %311 = vector.load %arg12[%c28, %c16_85] : memref<86x32xbf16, #tpu.memory_space<vmem>>, vector<2x16xbf16>
    tpu.vector_store %arg12[%c28, %c16_85], %310 {strides = array<i32>} : memref<86x32xbf16, #tpu.memory_space<vmem>>, vector<2x16xbf16>,
    %c20 = arith.constant 20 : index
    %c0_86 = arith.constant 0 : index
    %312 = vector.load %arg11[%c20, %c0_86] : memref<48x96xf32, #tpu.memory_space<vmem>>, vector<2x96xf32>
    %313 = arith.truncf %306 : vector<2x32xf32> to vector<2x32xbf16>
    %cst_87 = arith.constant dense<0.000000e+00> : vector<2x96xf32>
    %314 = tpu.matmul %313, %9, %cst_87 {dimension_numbers = #tpu.dot_dimension_numbers<[1], [0], [0], [1], [0, 0, 1, 1], [], []>} : vector<2x32xbf16>, vector<32x96xbf16>, vector<2x96xf32> -> vector<2x96xf32>
    %315 = vector.broadcast %10 : vector<1x96xf32> to vector<2x96xf32>
    %316 = arith.addf %314, %315 : vector<2x96xf32>
    %317 = vector.extract_strided_slice %312 {offsets = [0, 0], sizes = [2, 64], strides = [1, 1]} : vector<2x96xf32> to vector<2x64xf32>
    %318 = vector.extract_strided_slice %316 {offsets = [0, 0], sizes = [2, 64], strides = [1, 1]} : vector<2x96xf32> to vector<2x64xf32>
    %319 = arith.addf %317, %318 : vector<2x64xf32>
    %320 = arith.negf %319 : vector<2x64xf32>
    %321 = math.exp %320 : vector<2x64xf32>
    %cst_88 = arith.constant 1.000000e+00 : f32
    %322 = vector.broadcast %cst_88 : f32 to vector<2x64xf32>
    %323 = arith.addf %322, %321 : vector<2x64xf32>
    %324 = arith.divf %322, %323 : vector<2x64xf32>
    %325 = vector.extract_strided_slice %324 {offsets = [0, 0], sizes = [2, 32], strides = [1, 1]} : vector<2x64xf32> to vector<2x32xf32>
    %326 = vector.extract_strided_slice %324 {offsets = [0, 32], sizes = [2, 32], strides = [1, 1]} : vector<2x64xf32> to vector<2x32xf32>
    %327 = vector.extract_strided_slice %312 {offsets = [0, 64], sizes = [2, 32], strides = [1, 1]} : vector<2x96xf32> to vector<2x32xf32>
    %328 = vector.extract_strided_slice %316 {offsets = [0, 64], sizes = [2, 32], strides = [1, 1]} : vector<2x96xf32> to vector<2x32xf32>
    %329 = arith.mulf %325, %328 : vector<2x32xf32>
    %330 = arith.addf %327, %329 : vector<2x32xf32>
    %331 = math.tanh %330 : vector<2x32xf32>
    %cst_89 = arith.constant 1.000000e+00 : f32
    %332 = vector.broadcast %cst_89 : f32 to vector<2x32xf32>
    %333 = arith.subf %332, %326 : vector<2x32xf32>
    %334 = arith.mulf %333, %331 : vector<2x32xf32>
    %335 = arith.mulf %326, %306 : vector<2x32xf32>
    %336 = arith.addf %334, %335 : vector<2x32xf32>
    %337 = arith.truncf %336 : vector<2x32xf32> to vector<2x32xbf16>
    %338 = vector.extract_strided_slice %337 {offsets = [0, 0], sizes = [2, 16], strides = [1, 1]} : vector<2x32xbf16> to vector<2x16xbf16>
    %c20_90 = arith.constant 20 : index
    %c0_91 = arith.constant 0 : index
    %339 = vector.load %arg12[%c20_90, %c0_91] : memref<86x32xbf16, #tpu.memory_space<vmem>>, vector<2x16xbf16>
    tpu.vector_store %arg12[%c20_90, %c0_91], %338 {strides = array<i32>} : memref<86x32xbf16, #tpu.memory_space<vmem>>, vector<2x16xbf16>,
    %340 = vector.extract_strided_slice %337 {offsets = [0, 16], sizes = [2, 16], strides = [1, 1]} : vector<2x32xbf16> to vector<2x16xbf16>
    %c26 = arith.constant 26 : index
    %c16_92 = arith.constant 16 : index
    %341 = vector.load %arg12[%c26, %c16_92] : memref<86x32xbf16, #tpu.memory_space<vmem>>, vector<2x16xbf16>
    tpu.vector_store %arg12[%c26, %c16_92], %340 {strides = array<i32>} : memref<86x32xbf16, #tpu.memory_space<vmem>>, vector<2x16xbf16>,
    %c22 = arith.constant 22 : index
    %c0_93 = arith.constant 0 : index
    %342 = vector.load %arg11[%c22, %c0_93] : memref<48x96xf32, #tpu.memory_space<vmem>>, vector<2x96xf32>
    %343 = arith.truncf %336 : vector<2x32xf32> to vector<2x32xbf16>
    %cst_94 = arith.constant dense<0.000000e+00> : vector<2x96xf32>
    %344 = tpu.matmul %343, %9, %cst_94 {dimension_numbers = #tpu.dot_dimension_numbers<[1], [0], [0], [1], [0, 0, 1, 1], [], []>} : vector<2x32xbf16>, vector<32x96xbf16>, vector<2x96xf32> -> vector<2x96xf32>
    %345 = vector.broadcast %10 : vector<1x96xf32> to vector<2x96xf32>
    %346 = arith.addf %344, %345 : vector<2x96xf32>
    %347 = vector.extract_strided_slice %342 {offsets = [0, 0], sizes = [2, 64], strides = [1, 1]} : vector<2x96xf32> to vector<2x64xf32>
    %348 = vector.extract_strided_slice %346 {offsets = [0, 0], sizes = [2, 64], strides = [1, 1]} : vector<2x96xf32> to vector<2x64xf32>
    %349 = arith.addf %347, %348 : vector<2x64xf32>
    %350 = arith.negf %349 : vector<2x64xf32>
    %351 = math.exp %350 : vector<2x64xf32>
    %cst_95 = arith.constant 1.000000e+00 : f32
    %352 = vector.broadcast %cst_95 : f32 to vector<2x64xf32>
    %353 = arith.addf %352, %351 : vector<2x64xf32>
    %354 = arith.divf %352, %353 : vector<2x64xf32>
    %355 = vector.extract_strided_slice %354 {offsets = [0, 0], sizes = [2, 32], strides = [1, 1]} : vector<2x64xf32> to vector<2x32xf32>
    %356 = vector.extract_strided_slice %354 {offsets = [0, 32], sizes = [2, 32], strides = [1, 1]} : vector<2x64xf32> to vector<2x32xf32>
    %357 = vector.extract_strided_slice %342 {offsets = [0, 64], sizes = [2, 32], strides = [1, 1]} : vector<2x96xf32> to vector<2x32xf32>
    %358 = vector.extract_strided_slice %346 {offsets = [0, 64], sizes = [2, 32], strides = [1, 1]} : vector<2x96xf32> to vector<2x32xf32>
    %359 = arith.mulf %355, %358 : vector<2x32xf32>
    %360 = arith.addf %357, %359 : vector<2x32xf32>
    %361 = math.tanh %360 : vector<2x32xf32>
    %cst_96 = arith.constant 1.000000e+00 : f32
    %362 = vector.broadcast %cst_96 : f32 to vector<2x32xf32>
    %363 = arith.subf %362, %356 : vector<2x32xf32>
    %364 = arith.mulf %363, %361 : vector<2x32xf32>
    %365 = arith.mulf %356, %336 : vector<2x32xf32>
    %366 = arith.addf %364, %365 : vector<2x32xf32>
    %367 = arith.truncf %366 : vector<2x32xf32> to vector<2x32xbf16>
    %368 = vector.extract_strided_slice %367 {offsets = [0, 0], sizes = [2, 16], strides = [1, 1]} : vector<2x32xbf16> to vector<2x16xbf16>
    %c22_97 = arith.constant 22 : index
    %c0_98 = arith.constant 0 : index
    %369 = vector.load %arg12[%c22_97, %c0_98] : memref<86x32xbf16, #tpu.memory_space<vmem>>, vector<2x16xbf16>
    tpu.vector_store %arg12[%c22_97, %c0_98], %368 {strides = array<i32>} : memref<86x32xbf16, #tpu.memory_space<vmem>>, vector<2x16xbf16>,
    %370 = vector.extract_strided_slice %367 {offsets = [0, 16], sizes = [2, 16], strides = [1, 1]} : vector<2x32xbf16> to vector<2x16xbf16>
    %c24 = arith.constant 24 : index
    %c16_99 = arith.constant 16 : index
    %371 = vector.load %arg12[%c24, %c16_99] : memref<86x32xbf16, #tpu.memory_space<vmem>>, vector<2x16xbf16>
    tpu.vector_store %arg12[%c24, %c16_99], %370 {strides = array<i32>} : memref<86x32xbf16, #tpu.memory_space<vmem>>, vector<2x16xbf16>,
    %c24_100 = arith.constant 24 : index
    %c0_101 = arith.constant 0 : index
    %372 = vector.load %arg11[%c24_100, %c0_101] : memref<48x96xf32, #tpu.memory_space<vmem>>, vector<2x96xf32>
    %373 = arith.truncf %366 : vector<2x32xf32> to vector<2x32xbf16>
    %cst_102 = arith.constant dense<0.000000e+00> : vector<2x96xf32>
    %374 = tpu.matmul %373, %9, %cst_102 {dimension_numbers = #tpu.dot_dimension_numbers<[1], [0], [0], [1], [0, 0, 1, 1], [], []>} : vector<2x32xbf16>, vector<32x96xbf16>, vector<2x96xf32> -> vector<2x96xf32>
    %375 = vector.broadcast %10 : vector<1x96xf32> to vector<2x96xf32>
    %376 = arith.addf %374, %375 : vector<2x96xf32>
    %377 = vector.extract_strided_slice %372 {offsets = [0, 0], sizes = [2, 64], strides = [1, 1]} : vector<2x96xf32> to vector<2x64xf32>
    %378 = vector.extract_strided_slice %376 {offsets = [0, 0], sizes = [2, 64], strides = [1, 1]} : vector<2x96xf32> to vector<2x64xf32>
    %379 = arith.addf %377, %378 : vector<2x64xf32>
    %380 = arith.negf %379 : vector<2x64xf32>
    %381 = math.exp %380 : vector<2x64xf32>
    %cst_103 = arith.constant 1.000000e+00 : f32
    %382 = vector.broadcast %cst_103 : f32 to vector<2x64xf32>
    %383 = arith.addf %382, %381 : vector<2x64xf32>
    %384 = arith.divf %382, %383 : vector<2x64xf32>
    %385 = vector.extract_strided_slice %384 {offsets = [0, 0], sizes = [2, 32], strides = [1, 1]} : vector<2x64xf32> to vector<2x32xf32>
    %386 = vector.extract_strided_slice %384 {offsets = [0, 32], sizes = [2, 32], strides = [1, 1]} : vector<2x64xf32> to vector<2x32xf32>
    %387 = vector.extract_strided_slice %372 {offsets = [0, 64], sizes = [2, 32], strides = [1, 1]} : vector<2x96xf32> to vector<2x32xf32>
    %388 = vector.extract_strided_slice %376 {offsets = [0, 64], sizes = [2, 32], strides = [1, 1]} : vector<2x96xf32> to vector<2x32xf32>
    %389 = arith.mulf %385, %388 : vector<2x32xf32>
    %390 = arith.addf %387, %389 : vector<2x32xf32>
    %391 = math.tanh %390 : vector<2x32xf32>
    %cst_104 = arith.constant 1.000000e+00 : f32
    %392 = vector.broadcast %cst_104 : f32 to vector<2x32xf32>
    %393 = arith.subf %392, %386 : vector<2x32xf32>
    %394 = arith.mulf %393, %391 : vector<2x32xf32>
    %395 = arith.mulf %386, %366 : vector<2x32xf32>
    %396 = arith.addf %394, %395 : vector<2x32xf32>
    %397 = arith.truncf %396 : vector<2x32xf32> to vector<2x32xbf16>
    %398 = vector.extract_strided_slice %397 {offsets = [0, 0], sizes = [2, 16], strides = [1, 1]} : vector<2x32xbf16> to vector<2x16xbf16>
    %c24_105 = arith.constant 24 : index
    %c0_106 = arith.constant 0 : index
    %399 = vector.load %arg12[%c24_105, %c0_106] : memref<86x32xbf16, #tpu.memory_space<vmem>>, vector<2x16xbf16>
    tpu.vector_store %arg12[%c24_105, %c0_106], %398 {strides = array<i32>} : memref<86x32xbf16, #tpu.memory_space<vmem>>, vector<2x16xbf16>,
    %400 = vector.extract_strided_slice %397 {offsets = [0, 16], sizes = [2, 16], strides = [1, 1]} : vector<2x32xbf16> to vector<2x16xbf16>
    %c22_107 = arith.constant 22 : index
    %c16_108 = arith.constant 16 : index
    %401 = vector.load %arg12[%c22_107, %c16_108] : memref<86x32xbf16, #tpu.memory_space<vmem>>, vector<2x16xbf16>
    tpu.vector_store %arg12[%c22_107, %c16_108], %400 {strides = array<i32>} : memref<86x32xbf16, #tpu.memory_space<vmem>>, vector<2x16xbf16>,
    %c26_109 = arith.constant 26 : index
    %c0_110 = arith.constant 0 : index
    %402 = vector.load %arg11[%c26_109, %c0_110] : memref<48x96xf32, #tpu.memory_space<vmem>>, vector<2x96xf32>
    %403 = arith.truncf %396 : vector<2x32xf32> to vector<2x32xbf16>
    %cst_111 = arith.constant dense<0.000000e+00> : vector<2x96xf32>
    %404 = tpu.matmul %403, %9, %cst_111 {dimension_numbers = #tpu.dot_dimension_numbers<[1], [0], [0], [1], [0, 0, 1, 1], [], []>} : vector<2x32xbf16>, vector<32x96xbf16>, vector<2x96xf32> -> vector<2x96xf32>
    %405 = vector.broadcast %10 : vector<1x96xf32> to vector<2x96xf32>
    %406 = arith.addf %404, %405 : vector<2x96xf32>
    %407 = vector.extract_strided_slice %402 {offsets = [0, 0], sizes = [2, 64], strides = [1, 1]} : vector<2x96xf32> to vector<2x64xf32>
    %408 = vector.extract_strided_slice %406 {offsets = [0, 0], sizes = [2, 64], strides = [1, 1]} : vector<2x96xf32> to vector<2x64xf32>
    %409 = arith.addf %407, %408 : vector<2x64xf32>
    %410 = arith.negf %409 : vector<2x64xf32>
    %411 = math.exp %410 : vector<2x64xf32>
    %cst_112 = arith.constant 1.000000e+00 : f32
    %412 = vector.broadcast %cst_112 : f32 to vector<2x64xf32>
    %413 = arith.addf %412, %411 : vector<2x64xf32>
    %414 = arith.divf %412, %413 : vector<2x64xf32>
    %415 = vector.extract_strided_slice %414 {offsets = [0, 0], sizes = [2, 32], strides = [1, 1]} : vector<2x64xf32> to vector<2x32xf32>
    %416 = vector.extract_strided_slice %414 {offsets = [0, 32], sizes = [2, 32], strides = [1, 1]} : vector<2x64xf32> to vector<2x32xf32>
    %417 = vector.extract_strided_slice %402 {offsets = [0, 64], sizes = [2, 32], strides = [1, 1]} : vector<2x96xf32> to vector<2x32xf32>
    %418 = vector.extract_strided_slice %406 {offsets = [0, 64], sizes = [2, 32], strides = [1, 1]} : vector<2x96xf32> to vector<2x32xf32>
    %419 = arith.mulf %415, %418 : vector<2x32xf32>
    %420 = arith.addf %417, %419 : vector<2x32xf32>
    %421 = math.tanh %420 : vector<2x32xf32>
    %cst_113 = arith.constant 1.000000e+00 : f32
    %422 = vector.broadcast %cst_113 : f32 to vector<2x32xf32>
    %423 = arith.subf %422, %416 : vector<2x32xf32>
    %424 = arith.mulf %423, %421 : vector<2x32xf32>
    %425 = arith.mulf %416, %396 : vector<2x32xf32>
    %426 = arith.addf %424, %425 : vector<2x32xf32>
    %427 = arith.truncf %426 : vector<2x32xf32> to vector<2x32xbf16>
    %428 = vector.extract_strided_slice %427 {offsets = [0, 0], sizes = [2, 16], strides = [1, 1]} : vector<2x32xbf16> to vector<2x16xbf16>
    %c26_114 = arith.constant 26 : index
    %c0_115 = arith.constant 0 : index
    %429 = vector.load %arg12[%c26_114, %c0_115] : memref<86x32xbf16, #tpu.memory_space<vmem>>, vector<2x16xbf16>
    tpu.vector_store %arg12[%c26_114, %c0_115], %428 {strides = array<i32>} : memref<86x32xbf16, #tpu.memory_space<vmem>>, vector<2x16xbf16>,
    %430 = vector.extract_strided_slice %427 {offsets = [0, 16], sizes = [2, 16], strides = [1, 1]} : vector<2x32xbf16> to vector<2x16xbf16>
    %c20_116 = arith.constant 20 : index
    %c16_117 = arith.constant 16 : index
    %431 = vector.load %arg12[%c20_116, %c16_117] : memref<86x32xbf16, #tpu.memory_space<vmem>>, vector<2x16xbf16>
    tpu.vector_store %arg12[%c20_116, %c16_117], %430 {strides = array<i32>} : memref<86x32xbf16, #tpu.memory_space<vmem>>, vector<2x16xbf16>,
    %c28_118 = arith.constant 28 : index
    %c0_119 = arith.constant 0 : index
    %432 = vector.load %arg11[%c28_118, %c0_119] : memref<48x96xf32, #tpu.memory_space<vmem>>, vector<2x96xf32>
    %433 = arith.truncf %426 : vector<2x32xf32> to vector<2x32xbf16>
    %cst_120 = arith.constant dense<0.000000e+00> : vector<2x96xf32>
    %434 = tpu.matmul %433, %9, %cst_120 {dimension_numbers = #tpu.dot_dimension_numbers<[1], [0], [0], [1], [0, 0, 1, 1], [], []>} : vector<2x32xbf16>, vector<32x96xbf16>, vector<2x96xf32> -> vector<2x96xf32>
    %435 = vector.broadcast %10 : vector<1x96xf32> to vector<2x96xf32>
    %436 = arith.addf %434, %435 : vector<2x96xf32>
    %437 = vector.extract_strided_slice %432 {offsets = [0, 0], sizes = [2, 64], strides = [1, 1]} : vector<2x96xf32> to vector<2x64xf32>
    %438 = vector.extract_strided_slice %436 {offsets = [0, 0], sizes = [2, 64], strides = [1, 1]} : vector<2x96xf32> to vector<2x64xf32>
    %439 = arith.addf %437, %438 : vector<2x64xf32>
    %440 = arith.negf %439 : vector<2x64xf32>
    %441 = math.exp %440 : vector<2x64xf32>
    %cst_121 = arith.constant 1.000000e+00 : f32
    %442 = vector.broadcast %cst_121 : f32 to vector<2x64xf32>
    %443 = arith.addf %442, %441 : vector<2x64xf32>
    %444 = arith.divf %442, %443 : vector<2x64xf32>
    %445 = vector.extract_strided_slice %444 {offsets = [0, 0], sizes = [2, 32], strides = [1, 1]} : vector<2x64xf32> to vector<2x32xf32>
    %446 = vector.extract_strided_slice %444 {offsets = [0, 32], sizes = [2, 32], strides = [1, 1]} : vector<2x64xf32> to vector<2x32xf32>
    %447 = vector.extract_strided_slice %432 {offsets = [0, 64], sizes = [2, 32], strides = [1, 1]} : vector<2x96xf32> to vector<2x32xf32>
    %448 = vector.extract_strided_slice %436 {offsets = [0, 64], sizes = [2, 32], strides = [1, 1]} : vector<2x96xf32> to vector<2x32xf32>
    %449 = arith.mulf %445, %448 : vector<2x32xf32>
    %450 = arith.addf %447, %449 : vector<2x32xf32>
    %451 = math.tanh %450 : vector<2x32xf32>
    %cst_122 = arith.constant 1.000000e+00 : f32
    %452 = vector.broadcast %cst_122 : f32 to vector<2x32xf32>
    %453 = arith.subf %452, %446 : vector<2x32xf32>
    %454 = arith.mulf %453, %451 : vector<2x32xf32>
    %455 = arith.mulf %446, %426 : vector<2x32xf32>
    %456 = arith.addf %454, %455 : vector<2x32xf32>
    %457 = arith.truncf %456 : vector<2x32xf32> to vector<2x32xbf16>
    %458 = vector.extract_strided_slice %457 {offsets = [0, 0], sizes = [2, 16], strides = [1, 1]} : vector<2x32xbf16> to vector<2x16xbf16>
    %c28_123 = arith.constant 28 : index
    %c0_124 = arith.constant 0 : index
    %459 = vector.load %arg12[%c28_123, %c0_124] : memref<86x32xbf16, #tpu.memory_space<vmem>>, vector<2x16xbf16>
    tpu.vector_store %arg12[%c28_123, %c0_124], %458 {strides = array<i32>} : memref<86x32xbf16, #tpu.memory_space<vmem>>, vector<2x16xbf16>,
    %460 = vector.extract_strided_slice %457 {offsets = [0, 16], sizes = [2, 16], strides = [1, 1]} : vector<2x32xbf16> to vector<2x16xbf16>
    %c18_125 = arith.constant 18 : index
    %c16_126 = arith.constant 16 : index
    %461 = vector.load %arg12[%c18_125, %c16_126] : memref<86x32xbf16, #tpu.memory_space<vmem>>, vector<2x16xbf16>
    tpu.vector_store %arg12[%c18_125, %c16_126], %460 {strides = array<i32>} : memref<86x32xbf16, #tpu.memory_space<vmem>>, vector<2x16xbf16>,
    %c30_127 = arith.constant 30 : index
    %c0_128 = arith.constant 0 : index
    %462 = vector.load %arg11[%c30_127, %c0_128] : memref<48x96xf32, #tpu.memory_space<vmem>>, vector<2x96xf32>
    %463 = arith.truncf %456 : vector<2x32xf32> to vector<2x32xbf16>
    %cst_129 = arith.constant dense<0.000000e+00> : vector<2x96xf32>
    %464 = tpu.matmul %463, %9, %cst_129 {dimension_numbers = #tpu.dot_dimension_numbers<[1], [0], [0], [1], [0, 0, 1, 1], [], []>} : vector<2x32xbf16>, vector<32x96xbf16>, vector<2x96xf32> -> vector<2x96xf32>
    %465 = vector.broadcast %10 : vector<1x96xf32> to vector<2x96xf32>
    %466 = arith.addf %464, %465 : vector<2x96xf32>
    %467 = vector.extract_strided_slice %462 {offsets = [0, 0], sizes = [2, 64], strides = [1, 1]} : vector<2x96xf32> to vector<2x64xf32>
    %468 = vector.extract_strided_slice %466 {offsets = [0, 0], sizes = [2, 64], strides = [1, 1]} : vector<2x96xf32> to vector<2x64xf32>
    %469 = arith.addf %467, %468 : vector<2x64xf32>
    %470 = arith.negf %469 : vector<2x64xf32>
    %471 = math.exp %470 : vector<2x64xf32>
    %cst_130 = arith.constant 1.000000e+00 : f32
    %472 = vector.broadcast %cst_130 : f32 to vector<2x64xf32>
    %473 = arith.addf %472, %471 : vector<2x64xf32>
    %474 = arith.divf %472, %473 : vector<2x64xf32>
    %475 = vector.extract_strided_slice %474 {offsets = [0, 0], sizes = [2, 32], strides = [1, 1]} : vector<2x64xf32> to vector<2x32xf32>
    %476 = vector.extract_strided_slice %474 {offsets = [0, 32], sizes = [2, 32], strides = [1, 1]} : vector<2x64xf32> to vector<2x32xf32>
    %477 = vector.extract_strided_slice %462 {offsets = [0, 64], sizes = [2, 32], strides = [1, 1]} : vector<2x96xf32> to vector<2x32xf32>
    %478 = vector.extract_strided_slice %466 {offsets = [0, 64], sizes = [2, 32], strides = [1, 1]} : vector<2x96xf32> to vector<2x32xf32>
    %479 = arith.mulf %475, %478 : vector<2x32xf32>
    %480 = arith.addf %477, %479 : vector<2x32xf32>
    %481 = math.tanh %480 : vector<2x32xf32>
    %cst_131 = arith.constant 1.000000e+00 : f32
    %482 = vector.broadcast %cst_131 : f32 to vector<2x32xf32>
    %483 = arith.subf %482, %476 : vector<2x32xf32>
    %484 = arith.mulf %483, %481 : vector<2x32xf32>
    %485 = arith.mulf %476, %456 : vector<2x32xf32>
    %486 = arith.addf %484, %485 : vector<2x32xf32>
    %487 = arith.truncf %486 : vector<2x32xf32> to vector<2x32xbf16>
    %488 = vector.extract_strided_slice %487 {offsets = [0, 0], sizes = [2, 16], strides = [1, 1]} : vector<2x32xbf16> to vector<2x16xbf16>
    %c30_132 = arith.constant 30 : index
    %c0_133 = arith.constant 0 : index
    %489 = vector.load %arg12[%c30_132, %c0_133] : memref<86x32xbf16, #tpu.memory_space<vmem>>, vector<2x16xbf16>
    tpu.vector_store %arg12[%c30_132, %c0_133], %488 {strides = array<i32>} : memref<86x32xbf16, #tpu.memory_space<vmem>>, vector<2x16xbf16>,
    %490 = vector.extract_strided_slice %487 {offsets = [0, 16], sizes = [2, 16], strides = [1, 1]} : vector<2x32xbf16> to vector<2x16xbf16>
    %c16_134 = arith.constant 16 : index
    %c16_135 = arith.constant 16 : index
    %491 = vector.load %arg12[%c16_134, %c16_135] : memref<86x32xbf16, #tpu.memory_space<vmem>>, vector<2x16xbf16>
    tpu.vector_store %arg12[%c16_134, %c16_135], %490 {strides = array<i32>} : memref<86x32xbf16, #tpu.memory_space<vmem>>, vector<2x16xbf16>,
    %c32_136 = arith.constant 32 : index
    %c0_137 = arith.constant 0 : index
    %492 = vector.load %arg11[%c32_136, %c0_137] : memref<48x96xf32, #tpu.memory_space<vmem>>, vector<2x96xf32>
    %493 = arith.truncf %486 : vector<2x32xf32> to vector<2x32xbf16>
    %cst_138 = arith.constant dense<0.000000e+00> : vector<2x96xf32>
    %494 = tpu.matmul %493, %9, %cst_138 {dimension_numbers = #tpu.dot_dimension_numbers<[1], [0], [0], [1], [0, 0, 1, 1], [], []>} : vector<2x32xbf16>, vector<32x96xbf16>, vector<2x96xf32> -> vector<2x96xf32>
    %495 = vector.broadcast %10 : vector<1x96xf32> to vector<2x96xf32>
    %496 = arith.addf %494, %495 : vector<2x96xf32>
    %497 = vector.extract_strided_slice %492 {offsets = [0, 0], sizes = [2, 64], strides = [1, 1]} : vector<2x96xf32> to vector<2x64xf32>
    %498 = vector.extract_strided_slice %496 {offsets = [0, 0], sizes = [2, 64], strides = [1, 1]} : vector<2x96xf32> to vector<2x64xf32>
    %499 = arith.addf %497, %498 : vector<2x64xf32>
    %500 = arith.negf %499 : vector<2x64xf32>
    %501 = math.exp %500 : vector<2x64xf32>
    %cst_139 = arith.constant 1.000000e+00 : f32
    %502 = vector.broadcast %cst_139 : f32 to vector<2x64xf32>
    %503 = arith.addf %502, %501 : vector<2x64xf32>
    %504 = arith.divf %502, %503 : vector<2x64xf32>
    %505 = vector.extract_strided_slice %504 {offsets = [0, 0], sizes = [2, 32], strides = [1, 1]} : vector<2x64xf32> to vector<2x32xf32>
    %506 = vector.extract_strided_slice %504 {offsets = [0, 32], sizes = [2, 32], strides = [1, 1]} : vector<2x64xf32> to vector<2x32xf32>
    %507 = vector.extract_strided_slice %492 {offsets = [0, 64], sizes = [2, 32], strides = [1, 1]} : vector<2x96xf32> to vector<2x32xf32>
    %508 = vector.extract_strided_slice %496 {offsets = [0, 64], sizes = [2, 32], strides = [1, 1]} : vector<2x96xf32> to vector<2x32xf32>
    %509 = arith.mulf %505, %508 : vector<2x32xf32>
    %510 = arith.addf %507, %509 : vector<2x32xf32>
    %511 = math.tanh %510 : vector<2x32xf32>
    %cst_140 = arith.constant 1.000000e+00 : f32
    %512 = vector.broadcast %cst_140 : f32 to vector<2x32xf32>
    %513 = arith.subf %512, %506 : vector<2x32xf32>
    %514 = arith.mulf %513, %511 : vector<2x32xf32>
    %515 = arith.mulf %506, %486 : vector<2x32xf32>
    %516 = arith.addf %514, %515 : vector<2x32xf32>
    %517 = arith.truncf %516 : vector<2x32xf32> to vector<2x32xbf16>
    %518 = vector.extract_strided_slice %517 {offsets = [0, 0], sizes = [2, 16], strides = [1, 1]} : vector<2x32xbf16> to vector<2x16xbf16>
    %c32_141 = arith.constant 32 : index
    %c0_142 = arith.constant 0 : index
    %519 = vector.load %arg12[%c32_141, %c0_142] : memref<86x32xbf16, #tpu.memory_space<vmem>>, vector<2x16xbf16>
    tpu.vector_store %arg12[%c32_141, %c0_142], %518 {strides = array<i32>} : memref<86x32xbf16, #tpu.memory_space<vmem>>, vector<2x16xbf16>,
    %520 = vector.extract_strided_slice %517 {offsets = [0, 16], sizes = [2, 16], strides = [1, 1]} : vector<2x32xbf16> to vector<2x16xbf16>
    %c14_143 = arith.constant 14 : index
    %c16_144 = arith.constant 16 : index
    %521 = vector.load %arg12[%c14_143, %c16_144] : memref<86x32xbf16, #tpu.memory_space<vmem>>, vector<2x16xbf16>
    tpu.vector_store %arg12[%c14_143, %c16_144], %520 {strides = array<i32>} : memref<86x32xbf16, #tpu.memory_space<vmem>>, vector<2x16xbf16>,
    %c34_145 = arith.constant 34 : index
    %c0_146 = arith.constant 0 : index
    %522 = vector.load %arg11[%c34_145, %c0_146] : memref<48x96xf32, #tpu.memory_space<vmem>>, vector<2x96xf32>
    %523 = arith.truncf %516 : vector<2x32xf32> to vector<2x32xbf16>
    %cst_147 = arith.constant dense<0.000000e+00> : vector<2x96xf32>
    %524 = tpu.matmul %523, %9, %cst_147 {dimension_numbers = #tpu.dot_dimension_numbers<[1], [0], [0], [1], [0, 0, 1, 1], [], []>} : vector<2x32xbf16>, vector<32x96xbf16>, vector<2x96xf32> -> vector<2x96xf32>
    %525 = vector.broadcast %10 : vector<1x96xf32> to vector<2x96xf32>
    %526 = arith.addf %524, %525 : vector<2x96xf32>
    %527 = vector.extract_strided_slice %522 {offsets = [0, 0], sizes = [2, 64], strides = [1, 1]} : vector<2x96xf32> to vector<2x64xf32>
    %528 = vector.extract_strided_slice %526 {offsets = [0, 0], sizes = [2, 64], strides = [1, 1]} : vector<2x96xf32> to vector<2x64xf32>
    %529 = arith.addf %527, %528 : vector<2x64xf32>
    %530 = arith.negf %529 : vector<2x64xf32>
    %531 = math.exp %530 : vector<2x64xf32>
    %cst_148 = arith.constant 1.000000e+00 : f32
    %532 = vector.broadcast %cst_148 : f32 to vector<2x64xf32>
    %533 = arith.addf %532, %531 : vector<2x64xf32>
    %534 = arith.divf %532, %533 : vector<2x64xf32>
    %535 = vector.extract_strided_slice %534 {offsets = [0, 0], sizes = [2, 32], strides = [1, 1]} : vector<2x64xf32> to vector<2x32xf32>
    %536 = vector.extract_strided_slice %534 {offsets = [0, 32], sizes = [2, 32], strides = [1, 1]} : vector<2x64xf32> to vector<2x32xf32>
    %537 = vector.extract_strided_slice %522 {offsets = [0, 64], sizes = [2, 32], strides = [1, 1]} : vector<2x96xf32> to vector<2x32xf32>
    %538 = vector.extract_strided_slice %526 {offsets = [0, 64], sizes = [2, 32], strides = [1, 1]} : vector<2x96xf32> to vector<2x32xf32>
    %539 = arith.mulf %535, %538 : vector<2x32xf32>
    %540 = arith.addf %537, %539 : vector<2x32xf32>
    %541 = math.tanh %540 : vector<2x32xf32>
    %cst_149 = arith.constant 1.000000e+00 : f32
    %542 = vector.broadcast %cst_149 : f32 to vector<2x32xf32>
    %543 = arith.subf %542, %536 : vector<2x32xf32>
    %544 = arith.mulf %543, %541 : vector<2x32xf32>
    %545 = arith.mulf %536, %516 : vector<2x32xf32>
    %546 = arith.addf %544, %545 : vector<2x32xf32>
    %547 = arith.truncf %546 : vector<2x32xf32> to vector<2x32xbf16>
    %548 = vector.extract_strided_slice %547 {offsets = [0, 0], sizes = [2, 16], strides = [1, 1]} : vector<2x32xbf16> to vector<2x16xbf16>
    %c34_150 = arith.constant 34 : index
    %c0_151 = arith.constant 0 : index
    %549 = vector.load %arg12[%c34_150, %c0_151] : memref<86x32xbf16, #tpu.memory_space<vmem>>, vector<2x16xbf16>
    tpu.vector_store %arg12[%c34_150, %c0_151], %548 {strides = array<i32>} : memref<86x32xbf16, #tpu.memory_space<vmem>>, vector<2x16xbf16>,
    %550 = vector.extract_strided_slice %547 {offsets = [0, 16], sizes = [2, 16], strides = [1, 1]} : vector<2x32xbf16> to vector<2x16xbf16>
    %c12_152 = arith.constant 12 : index
    %c16_153 = arith.constant 16 : index
    %551 = vector.load %arg12[%c12_152, %c16_153] : memref<86x32xbf16, #tpu.memory_space<vmem>>, vector<2x16xbf16>
    tpu.vector_store %arg12[%c12_152, %c16_153], %550 {strides = array<i32>} : memref<86x32xbf16, #tpu.memory_space<vmem>>, vector<2x16xbf16>,
    %c36_154 = arith.constant 36 : index
    %c0_155 = arith.constant 0 : index
    %552 = vector.load %arg11[%c36_154, %c0_155] : memref<48x96xf32, #tpu.memory_space<vmem>>, vector<2x96xf32>
    %553 = arith.truncf %546 : vector<2x32xf32> to vector<2x32xbf16>
    %cst_156 = arith.constant dense<0.000000e+00> : vector<2x96xf32>
    %554 = tpu.matmul %553, %9, %cst_156 {dimension_numbers = #tpu.dot_dimension_numbers<[1], [0], [0], [1], [0, 0, 1, 1], [], []>} : vector<2x32xbf16>, vector<32x96xbf16>, vector<2x96xf32> -> vector<2x96xf32>
    %555 = vector.broadcast %10 : vector<1x96xf32> to vector<2x96xf32>
    %556 = arith.addf %554, %555 : vector<2x96xf32>
    %557 = vector.extract_strided_slice %552 {offsets = [0, 0], sizes = [2, 64], strides = [1, 1]} : vector<2x96xf32> to vector<2x64xf32>
    %558 = vector.extract_strided_slice %556 {offsets = [0, 0], sizes = [2, 64], strides = [1, 1]} : vector<2x96xf32> to vector<2x64xf32>
    %559 = arith.addf %557, %558 : vector<2x64xf32>
    %560 = arith.negf %559 : vector<2x64xf32>
    %561 = math.exp %560 : vector<2x64xf32>
    %cst_157 = arith.constant 1.000000e+00 : f32
    %562 = vector.broadcast %cst_157 : f32 to vector<2x64xf32>
    %563 = arith.addf %562, %561 : vector<2x64xf32>
    %564 = arith.divf %562, %563 : vector<2x64xf32>
    %565 = vector.extract_strided_slice %564 {offsets = [0, 0], sizes = [2, 32], strides = [1, 1]} : vector<2x64xf32> to vector<2x32xf32>
    %566 = vector.extract_strided_slice %564 {offsets = [0, 32], sizes = [2, 32], strides = [1, 1]} : vector<2x64xf32> to vector<2x32xf32>
    %567 = vector.extract_strided_slice %552 {offsets = [0, 64], sizes = [2, 32], strides = [1, 1]} : vector<2x96xf32> to vector<2x32xf32>
    %568 = vector.extract_strided_slice %556 {offsets = [0, 64], sizes = [2, 32], strides = [1, 1]} : vector<2x96xf32> to vector<2x32xf32>
    %569 = arith.mulf %565, %568 : vector<2x32xf32>
    %570 = arith.addf %567, %569 : vector<2x32xf32>
    %571 = math.tanh %570 : vector<2x32xf32>
    %cst_158 = arith.constant 1.000000e+00 : f32
    %572 = vector.broadcast %cst_158 : f32 to vector<2x32xf32>
    %573 = arith.subf %572, %566 : vector<2x32xf32>
    %574 = arith.mulf %573, %571 : vector<2x32xf32>
    %575 = arith.mulf %566, %546 : vector<2x32xf32>
    %576 = arith.addf %574, %575 : vector<2x32xf32>
    %577 = arith.truncf %576 : vector<2x32xf32> to vector<2x32xbf16>
    %578 = vector.extract_strided_slice %577 {offsets = [0, 0], sizes = [2, 16], strides = [1, 1]} : vector<2x32xbf16> to vector<2x16xbf16>
    %c36_159 = arith.constant 36 : index
    %c0_160 = arith.constant 0 : index
    %579 = vector.load %arg12[%c36_159, %c0_160] : memref<86x32xbf16, #tpu.memory_space<vmem>>, vector<2x16xbf16>
    tpu.vector_store %arg12[%c36_159, %c0_160], %578 {strides = array<i32>} : memref<86x32xbf16, #tpu.memory_space<vmem>>, vector<2x16xbf16>,
    %580 = vector.extract_strided_slice %577 {offsets = [0, 16], sizes = [2, 16], strides = [1, 1]} : vector<2x32xbf16> to vector<2x16xbf16>
    %c10_161 = arith.constant 10 : index
    %c16_162 = arith.constant 16 : index
    %581 = vector.load %arg12[%c10_161, %c16_162] : memref<86x32xbf16, #tpu.memory_space<vmem>>, vector<2x16xbf16>
    tpu.vector_store %arg12[%c10_161, %c16_162], %580 {strides = array<i32>} : memref<86x32xbf16, #tpu.memory_space<vmem>>, vector<2x16xbf16>,
    %c38_163 = arith.constant 38 : index
    %c0_164 = arith.constant 0 : index
    %582 = vector.load %arg11[%c38_163, %c0_164] : memref<48x96xf32, #tpu.memory_space<vmem>>, vector<2x96xf32>
    %583 = arith.truncf %576 : vector<2x32xf32> to vector<2x32xbf16>
    %cst_165 = arith.constant dense<0.000000e+00> : vector<2x96xf32>
    %584 = tpu.matmul %583, %9, %cst_165 {dimension_numbers = #tpu.dot_dimension_numbers<[1], [0], [0], [1], [0, 0, 1, 1], [], []>} : vector<2x32xbf16>, vector<32x96xbf16>, vector<2x96xf32> -> vector<2x96xf32>
    %585 = vector.broadcast %10 : vector<1x96xf32> to vector<2x96xf32>
    %586 = arith.addf %584, %585 : vector<2x96xf32>
    %587 = vector.extract_strided_slice %582 {offsets = [0, 0], sizes = [2, 64], strides = [1, 1]} : vector<2x96xf32> to vector<2x64xf32>
    %588 = vector.extract_strided_slice %586 {offsets = [0, 0], sizes = [2, 64], strides = [1, 1]} : vector<2x96xf32> to vector<2x64xf32>
    %589 = arith.addf %587, %588 : vector<2x64xf32>
    %590 = arith.negf %589 : vector<2x64xf32>
    %591 = math.exp %590 : vector<2x64xf32>
    %cst_166 = arith.constant 1.000000e+00 : f32
    %592 = vector.broadcast %cst_166 : f32 to vector<2x64xf32>
    %593 = arith.addf %592, %591 : vector<2x64xf32>
    %594 = arith.divf %592, %593 : vector<2x64xf32>
    %595 = vector.extract_strided_slice %594 {offsets = [0, 0], sizes = [2, 32], strides = [1, 1]} : vector<2x64xf32> to vector<2x32xf32>
    %596 = vector.extract_strided_slice %594 {offsets = [0, 32], sizes = [2, 32], strides = [1, 1]} : vector<2x64xf32> to vector<2x32xf32>
    %597 = vector.extract_strided_slice %582 {offsets = [0, 64], sizes = [2, 32], strides = [1, 1]} : vector<2x96xf32> to vector<2x32xf32>
    %598 = vector.extract_strided_slice %586 {offsets = [0, 64], sizes = [2, 32], strides = [1, 1]} : vector<2x96xf32> to vector<2x32xf32>
    %599 = arith.mulf %595, %598 : vector<2x32xf32>
    %600 = arith.addf %597, %599 : vector<2x32xf32>
    %601 = math.tanh %600 : vector<2x32xf32>
    %cst_167 = arith.constant 1.000000e+00 : f32
    %602 = vector.broadcast %cst_167 : f32 to vector<2x32xf32>
    %603 = arith.subf %602, %596 : vector<2x32xf32>
    %604 = arith.mulf %603, %601 : vector<2x32xf32>
    %605 = arith.mulf %596, %576 : vector<2x32xf32>
    %606 = arith.addf %604, %605 : vector<2x32xf32>
    %607 = arith.truncf %606 : vector<2x32xf32> to vector<2x32xbf16>
    %608 = vector.extract_strided_slice %607 {offsets = [0, 0], sizes = [2, 16], strides = [1, 1]} : vector<2x32xbf16> to vector<2x16xbf16>
    %c38_168 = arith.constant 38 : index
    %c0_169 = arith.constant 0 : index
    %609 = vector.load %arg12[%c38_168, %c0_169] : memref<86x32xbf16, #tpu.memory_space<vmem>>, vector<2x16xbf16>
    tpu.vector_store %arg12[%c38_168, %c0_169], %608 {strides = array<i32>} : memref<86x32xbf16, #tpu.memory_space<vmem>>, vector<2x16xbf16>,
    %610 = vector.extract_strided_slice %607 {offsets = [0, 16], sizes = [2, 16], strides = [1, 1]} : vector<2x32xbf16> to vector<2x16xbf16>
    %c8_170 = arith.constant 8 : index
    %c16_171 = arith.constant 16 : index
    %611 = vector.load %arg12[%c8_170, %c16_171] : memref<86x32xbf16, #tpu.memory_space<vmem>>, vector<2x16xbf16>
    tpu.vector_store %arg12[%c8_170, %c16_171], %610 {strides = array<i32>} : memref<86x32xbf16, #tpu.memory_space<vmem>>, vector<2x16xbf16>,
    %c40_172 = arith.constant 40 : index
    %c0_173 = arith.constant 0 : index
    %612 = vector.load %arg11[%c40_172, %c0_173] : memref<48x96xf32, #tpu.memory_space<vmem>>, vector<2x96xf32>
    %613 = arith.truncf %606 : vector<2x32xf32> to vector<2x32xbf16>
    %cst_174 = arith.constant dense<0.000000e+00> : vector<2x96xf32>
    %614 = tpu.matmul %613, %9, %cst_174 {dimension_numbers = #tpu.dot_dimension_numbers<[1], [0], [0], [1], [0, 0, 1, 1], [], []>} : vector<2x32xbf16>, vector<32x96xbf16>, vector<2x96xf32> -> vector<2x96xf32>
    %615 = vector.broadcast %10 : vector<1x96xf32> to vector<2x96xf32>
    %616 = arith.addf %614, %615 : vector<2x96xf32>
    %617 = vector.extract_strided_slice %612 {offsets = [0, 0], sizes = [2, 64], strides = [1, 1]} : vector<2x96xf32> to vector<2x64xf32>
    %618 = vector.extract_strided_slice %616 {offsets = [0, 0], sizes = [2, 64], strides = [1, 1]} : vector<2x96xf32> to vector<2x64xf32>
    %619 = arith.addf %617, %618 : vector<2x64xf32>
    %620 = arith.negf %619 : vector<2x64xf32>
    %621 = math.exp %620 : vector<2x64xf32>
    %cst_175 = arith.constant 1.000000e+00 : f32
    %622 = vector.broadcast %cst_175 : f32 to vector<2x64xf32>
    %623 = arith.addf %622, %621 : vector<2x64xf32>
    %624 = arith.divf %622, %623 : vector<2x64xf32>
    %625 = vector.extract_strided_slice %624 {offsets = [0, 0], sizes = [2, 32], strides = [1, 1]} : vector<2x64xf32> to vector<2x32xf32>
    %626 = vector.extract_strided_slice %624 {offsets = [0, 32], sizes = [2, 32], strides = [1, 1]} : vector<2x64xf32> to vector<2x32xf32>
    %627 = vector.extract_strided_slice %612 {offsets = [0, 64], sizes = [2, 32], strides = [1, 1]} : vector<2x96xf32> to vector<2x32xf32>
    %628 = vector.extract_strided_slice %616 {offsets = [0, 64], sizes = [2, 32], strides = [1, 1]} : vector<2x96xf32> to vector<2x32xf32>
    %629 = arith.mulf %625, %628 : vector<2x32xf32>
    %630 = arith.addf %627, %629 : vector<2x32xf32>
    %631 = math.tanh %630 : vector<2x32xf32>
    %cst_176 = arith.constant 1.000000e+00 : f32
    %632 = vector.broadcast %cst_176 : f32 to vector<2x32xf32>
    %633 = arith.subf %632, %626 : vector<2x32xf32>
    %634 = arith.mulf %633, %631 : vector<2x32xf32>
    %635 = arith.mulf %626, %606 : vector<2x32xf32>
    %636 = arith.addf %634, %635 : vector<2x32xf32>
    %637 = arith.truncf %636 : vector<2x32xf32> to vector<2x32xbf16>
    %638 = vector.extract_strided_slice %637 {offsets = [0, 0], sizes = [2, 16], strides = [1, 1]} : vector<2x32xbf16> to vector<2x16xbf16>
    %c40_177 = arith.constant 40 : index
    %c0_178 = arith.constant 0 : index
    %639 = vector.load %arg12[%c40_177, %c0_178] : memref<86x32xbf16, #tpu.memory_space<vmem>>, vector<2x16xbf16>
    tpu.vector_store %arg12[%c40_177, %c0_178], %638 {strides = array<i32>} : memref<86x32xbf16, #tpu.memory_space<vmem>>, vector<2x16xbf16>,
    %640 = vector.extract_strided_slice %637 {offsets = [0, 16], sizes = [2, 16], strides = [1, 1]} : vector<2x32xbf16> to vector<2x16xbf16>
    %c6_179 = arith.constant 6 : index
    %c16_180 = arith.constant 16 : index
    %641 = vector.load %arg12[%c6_179, %c16_180] : memref<86x32xbf16, #tpu.memory_space<vmem>>, vector<2x16xbf16>
    tpu.vector_store %arg12[%c6_179, %c16_180], %640 {strides = array<i32>} : memref<86x32xbf16, #tpu.memory_space<vmem>>, vector<2x16xbf16>,
    %c42_181 = arith.constant 42 : index
    %c0_182 = arith.constant 0 : index
    %642 = vector.load %arg11[%c42_181, %c0_182] : memref<48x96xf32, #tpu.memory_space<vmem>>, vector<2x96xf32>
    %643 = arith.truncf %636 : vector<2x32xf32> to vector<2x32xbf16>
    %cst_183 = arith.constant dense<0.000000e+00> : vector<2x96xf32>
    %644 = tpu.matmul %643, %9, %cst_183 {dimension_numbers = #tpu.dot_dimension_numbers<[1], [0], [0], [1], [0, 0, 1, 1], [], []>} : vector<2x32xbf16>, vector<32x96xbf16>, vector<2x96xf32> -> vector<2x96xf32>
    %645 = vector.broadcast %10 : vector<1x96xf32> to vector<2x96xf32>
    %646 = arith.addf %644, %645 : vector<2x96xf32>
    %647 = vector.extract_strided_slice %642 {offsets = [0, 0], sizes = [2, 64], strides = [1, 1]} : vector<2x96xf32> to vector<2x64xf32>
    %648 = vector.extract_strided_slice %646 {offsets = [0, 0], sizes = [2, 64], strides = [1, 1]} : vector<2x96xf32> to vector<2x64xf32>
    %649 = arith.addf %647, %648 : vector<2x64xf32>
    %650 = arith.negf %649 : vector<2x64xf32>
    %651 = math.exp %650 : vector<2x64xf32>
    %cst_184 = arith.constant 1.000000e+00 : f32
    %652 = vector.broadcast %cst_184 : f32 to vector<2x64xf32>
    %653 = arith.addf %652, %651 : vector<2x64xf32>
    %654 = arith.divf %652, %653 : vector<2x64xf32>
    %655 = vector.extract_strided_slice %654 {offsets = [0, 0], sizes = [2, 32], strides = [1, 1]} : vector<2x64xf32> to vector<2x32xf32>
    %656 = vector.extract_strided_slice %654 {offsets = [0, 32], sizes = [2, 32], strides = [1, 1]} : vector<2x64xf32> to vector<2x32xf32>
    %657 = vector.extract_strided_slice %642 {offsets = [0, 64], sizes = [2, 32], strides = [1, 1]} : vector<2x96xf32> to vector<2x32xf32>
    %658 = vector.extract_strided_slice %646 {offsets = [0, 64], sizes = [2, 32], strides = [1, 1]} : vector<2x96xf32> to vector<2x32xf32>
    %659 = arith.mulf %655, %658 : vector<2x32xf32>
    %660 = arith.addf %657, %659 : vector<2x32xf32>
    %661 = math.tanh %660 : vector<2x32xf32>
    %cst_185 = arith.constant 1.000000e+00 : f32
    %662 = vector.broadcast %cst_185 : f32 to vector<2x32xf32>
    %663 = arith.subf %662, %656 : vector<2x32xf32>
    %664 = arith.mulf %663, %661 : vector<2x32xf32>
    %665 = arith.mulf %656, %636 : vector<2x32xf32>
    %666 = arith.addf %664, %665 : vector<2x32xf32>
    %667 = arith.truncf %666 : vector<2x32xf32> to vector<2x32xbf16>
    %668 = vector.extract_strided_slice %667 {offsets = [0, 0], sizes = [2, 16], strides = [1, 1]} : vector<2x32xbf16> to vector<2x16xbf16>
    %c42_186 = arith.constant 42 : index
    %c0_187 = arith.constant 0 : index
    %669 = vector.load %arg12[%c42_186, %c0_187] : memref<86x32xbf16, #tpu.memory_space<vmem>>, vector<2x16xbf16>
    tpu.vector_store %arg12[%c42_186, %c0_187], %668 {strides = array<i32>} : memref<86x32xbf16, #tpu.memory_space<vmem>>, vector<2x16xbf16>,
    %670 = vector.extract_strided_slice %667 {offsets = [0, 16], sizes = [2, 16], strides = [1, 1]} : vector<2x32xbf16> to vector<2x16xbf16>
    %c4_188 = arith.constant 4 : index
    %c16_189 = arith.constant 16 : index
    %671 = vector.load %arg12[%c4_188, %c16_189] : memref<86x32xbf16, #tpu.memory_space<vmem>>, vector<2x16xbf16>
    tpu.vector_store %arg12[%c4_188, %c16_189], %670 {strides = array<i32>} : memref<86x32xbf16, #tpu.memory_space<vmem>>, vector<2x16xbf16>,
    %c44_190 = arith.constant 44 : index
    %c0_191 = arith.constant 0 : index
    %672 = vector.load %arg11[%c44_190, %c0_191] : memref<48x96xf32, #tpu.memory_space<vmem>>, vector<2x96xf32>
    %673 = arith.truncf %666 : vector<2x32xf32> to vector<2x32xbf16>
    %cst_192 = arith.constant dense<0.000000e+00> : vector<2x96xf32>
    %674 = tpu.matmul %673, %9, %cst_192 {dimension_numbers = #tpu.dot_dimension_numbers<[1], [0], [0], [1], [0, 0, 1, 1], [], []>} : vector<2x32xbf16>, vector<32x96xbf16>, vector<2x96xf32> -> vector<2x96xf32>
    %675 = vector.broadcast %10 : vector<1x96xf32> to vector<2x96xf32>
    %676 = arith.addf %674, %675 : vector<2x96xf32>
    %677 = vector.extract_strided_slice %672 {offsets = [0, 0], sizes = [2, 64], strides = [1, 1]} : vector<2x96xf32> to vector<2x64xf32>
    %678 = vector.extract_strided_slice %676 {offsets = [0, 0], sizes = [2, 64], strides = [1, 1]} : vector<2x96xf32> to vector<2x64xf32>
    %679 = arith.addf %677, %678 : vector<2x64xf32>
    %680 = arith.negf %679 : vector<2x64xf32>
    %681 = math.exp %680 : vector<2x64xf32>
    %cst_193 = arith.constant 1.000000e+00 : f32
    %682 = vector.broadcast %cst_193 : f32 to vector<2x64xf32>
    %683 = arith.addf %682, %681 : vector<2x64xf32>
    %684 = arith.divf %682, %683 : vector<2x64xf32>
    %685 = vector.extract_strided_slice %684 {offsets = [0, 0], sizes = [2, 32], strides = [1, 1]} : vector<2x64xf32> to vector<2x32xf32>
    %686 = vector.extract_strided_slice %684 {offsets = [0, 32], sizes = [2, 32], strides = [1, 1]} : vector<2x64xf32> to vector<2x32xf32>
    %687 = vector.extract_strided_slice %672 {offsets = [0, 64], sizes = [2, 32], strides = [1, 1]} : vector<2x96xf32> to vector<2x32xf32>
    %688 = vector.extract_strided_slice %676 {offsets = [0, 64], sizes = [2, 32], strides = [1, 1]} : vector<2x96xf32> to vector<2x32xf32>
    %689 = arith.mulf %685, %688 : vector<2x32xf32>
    %690 = arith.addf %687, %689 : vector<2x32xf32>
    %691 = math.tanh %690 : vector<2x32xf32>
    %cst_194 = arith.constant 1.000000e+00 : f32
    %692 = vector.broadcast %cst_194 : f32 to vector<2x32xf32>
    %693 = arith.subf %692, %686 : vector<2x32xf32>
    %694 = arith.mulf %693, %691 : vector<2x32xf32>
    %695 = arith.mulf %686, %666 : vector<2x32xf32>
    %696 = arith.addf %694, %695 : vector<2x32xf32>
    %697 = arith.truncf %696 : vector<2x32xf32> to vector<2x32xbf16>
    %698 = vector.extract_strided_slice %697 {offsets = [0, 0], sizes = [2, 16], strides = [1, 1]} : vector<2x32xbf16> to vector<2x16xbf16>
    %c44_195 = arith.constant 44 : index
    %c0_196 = arith.constant 0 : index
    %699 = vector.load %arg12[%c44_195, %c0_196] : memref<86x32xbf16, #tpu.memory_space<vmem>>, vector<2x16xbf16>
    tpu.vector_store %arg12[%c44_195, %c0_196], %698 {strides = array<i32>} : memref<86x32xbf16, #tpu.memory_space<vmem>>, vector<2x16xbf16>,
    %700 = vector.extract_strided_slice %697 {offsets = [0, 16], sizes = [2, 16], strides = [1, 1]} : vector<2x32xbf16> to vector<2x16xbf16>
    %c2_197 = arith.constant 2 : index
    %c16_198 = arith.constant 16 : index
    %701 = vector.load %arg12[%c2_197, %c16_198] : memref<86x32xbf16, #tpu.memory_space<vmem>>, vector<2x16xbf16>
    tpu.vector_store %arg12[%c2_197, %c16_198], %700 {strides = array<i32>} : memref<86x32xbf16, #tpu.memory_space<vmem>>, vector<2x16xbf16>,
    %c46_199 = arith.constant 46 : index
    %c0_200 = arith.constant 0 : index
    %702 = vector.load %arg11[%c46_199, %c0_200] : memref<48x96xf32, #tpu.memory_space<vmem>>, vector<2x96xf32>
    %703 = arith.truncf %696 : vector<2x32xf32> to vector<2x32xbf16>
    %cst_201 = arith.constant dense<0.000000e+00> : vector<2x96xf32>
    %704 = tpu.matmul %703, %9, %cst_201 {dimension_numbers = #tpu.dot_dimension_numbers<[1], [0], [0], [1], [0, 0, 1, 1], [], []>} : vector<2x32xbf16>, vector<32x96xbf16>, vector<2x96xf32> -> vector<2x96xf32>
    %705 = vector.broadcast %10 : vector<1x96xf32> to vector<2x96xf32>
    %706 = arith.addf %704, %705 : vector<2x96xf32>
    %707 = vector.extract_strided_slice %702 {offsets = [0, 0], sizes = [2, 64], strides = [1, 1]} : vector<2x96xf32> to vector<2x64xf32>
    %708 = vector.extract_strided_slice %706 {offsets = [0, 0], sizes = [2, 64], strides = [1, 1]} : vector<2x96xf32> to vector<2x64xf32>
    %709 = arith.addf %707, %708 : vector<2x64xf32>
    %710 = arith.negf %709 : vector<2x64xf32>
    %711 = math.exp %710 : vector<2x64xf32>
    %cst_202 = arith.constant 1.000000e+00 : f32
    %712 = vector.broadcast %cst_202 : f32 to vector<2x64xf32>
    %713 = arith.addf %712, %711 : vector<2x64xf32>
    %714 = arith.divf %712, %713 : vector<2x64xf32>
    %715 = vector.extract_strided_slice %714 {offsets = [0, 0], sizes = [2, 32], strides = [1, 1]} : vector<2x64xf32> to vector<2x32xf32>
    %716 = vector.extract_strided_slice %714 {offsets = [0, 32], sizes = [2, 32], strides = [1, 1]} : vector<2x64xf32> to vector<2x32xf32>
    %717 = vector.extract_strided_slice %702 {offsets = [0, 64], sizes = [2, 32], strides = [1, 1]} : vector<2x96xf32> to vector<2x32xf32>
    %718 = vector.extract_strided_slice %706 {offsets = [0, 64], sizes = [2, 32], strides = [1, 1]} : vector<2x96xf32> to vector<2x32xf32>
    %719 = arith.mulf %715, %718 : vector<2x32xf32>
    %720 = arith.addf %717, %719 : vector<2x32xf32>
    %721 = math.tanh %720 : vector<2x32xf32>
    %cst_203 = arith.constant 1.000000e+00 : f32
    %722 = vector.broadcast %cst_203 : f32 to vector<2x32xf32>
    %723 = arith.subf %722, %716 : vector<2x32xf32>
    %724 = arith.mulf %723, %721 : vector<2x32xf32>
    %725 = arith.mulf %716, %696 : vector<2x32xf32>
    %726 = arith.addf %724, %725 : vector<2x32xf32>
    %727 = arith.truncf %726 : vector<2x32xf32> to vector<2x32xbf16>
    %728 = vector.extract_strided_slice %727 {offsets = [0, 0], sizes = [2, 16], strides = [1, 1]} : vector<2x32xbf16> to vector<2x16xbf16>
    %c46_204 = arith.constant 46 : index
    %c0_205 = arith.constant 0 : index
    %729 = vector.load %arg12[%c46_204, %c0_205] : memref<86x32xbf16, #tpu.memory_space<vmem>>, vector<2x16xbf16>
    tpu.vector_store %arg12[%c46_204, %c0_205], %728 {strides = array<i32>} : memref<86x32xbf16, #tpu.memory_space<vmem>>, vector<2x16xbf16>,
    %730 = vector.extract_strided_slice %727 {offsets = [0, 16], sizes = [2, 16], strides = [1, 1]} : vector<2x32xbf16> to vector<2x16xbf16>
    %c0_206 = arith.constant 0 : index
    %c16_207 = arith.constant 16 : index
    %731 = vector.load %arg12[%c0_206, %c16_207] : memref<86x32xbf16, #tpu.memory_space<vmem>>, vector<2x16xbf16>
    tpu.vector_store %arg12[%c0_206, %c16_207], %730 {strides = array<i32>} : memref<86x32xbf16, #tpu.memory_space<vmem>>, vector<2x16xbf16>,
    %c0_208 = arith.constant 0 : index
    %c0_209 = arith.constant 0 : index
    %732 = vector.load %arg12[%c0_208, %c0_209] : memref<86x32xbf16, #tpu.memory_space<vmem>>, vector<48x32xbf16>
    %c0_210 = arith.constant 0 : index
    %c0_211 = arith.constant 0 : index
    %733 = vector.load %arg5[%c0_210, %c0_211] : memref<640x128xbf16, #tpu.memory_space<vmem>>, vector<32x128xbf16>
    %cst_212 = arith.constant dense<0.000000e+00> : vector<48x128xf32>
    %734 = tpu.matmul %732, %733, %cst_212 {dimension_numbers = #tpu.dot_dimension_numbers<[1], [0], [0], [1], [0, 0, 1, 1], [], []>} : vector<48x32xbf16>, vector<32x128xbf16>, vector<48x128xf32> -> vector<48x128xf32>
    %c2_213 = arith.constant 2 : index
    %c0_214 = arith.constant 0 : index
    %735 = vector.load %arg12[%c2_213, %c0_214] : memref<86x32xbf16, #tpu.memory_space<vmem>>, vector<48x32xbf16>
    %c32_215 = arith.constant 32 : index
    %c0_216 = arith.constant 0 : index
    %736 = vector.load %arg5[%c32_215, %c0_216] : memref<640x128xbf16, #tpu.memory_space<vmem>>, vector<32x128xbf16>
    %cst_217 = arith.constant dense<0.000000e+00> : vector<48x128xf32>
    %737 = tpu.matmul %735, %736, %cst_217 {dimension_numbers = #tpu.dot_dimension_numbers<[1], [0], [0], [1], [0, 0, 1, 1], [], []>} : vector<48x32xbf16>, vector<32x128xbf16>, vector<48x128xf32> -> vector<48x128xf32>
    %738 = arith.addf %734, %737 : vector<48x128xf32>
    %c4_218 = arith.constant 4 : index
    %c0_219 = arith.constant 0 : index
    %739 = vector.load %arg12[%c4_218, %c0_219] : memref<86x32xbf16, #tpu.memory_space<vmem>>, vector<48x32xbf16>
    %c64 = arith.constant 64 : index
    %c0_220 = arith.constant 0 : index
    %740 = vector.load %arg5[%c64, %c0_220] : memref<640x128xbf16, #tpu.memory_space<vmem>>, vector<32x128xbf16>
    %cst_221 = arith.constant dense<0.000000e+00> : vector<48x128xf32>
    %741 = tpu.matmul %739, %740, %cst_221 {dimension_numbers = #tpu.dot_dimension_numbers<[1], [0], [0], [1], [0, 0, 1, 1], [], []>} : vector<48x32xbf16>, vector<32x128xbf16>, vector<48x128xf32> -> vector<48x128xf32>
    %742 = arith.addf %738, %741 : vector<48x128xf32>
    %c6_222 = arith.constant 6 : index
    %c0_223 = arith.constant 0 : index
    %743 = vector.load %arg12[%c6_222, %c0_223] : memref<86x32xbf16, #tpu.memory_space<vmem>>, vector<48x32xbf16>
    %c96 = arith.constant 96 : index
    %c0_224 = arith.constant 0 : index
    %744 = vector.load %arg5[%c96, %c0_224] : memref<640x128xbf16, #tpu.memory_space<vmem>>, vector<32x128xbf16>
    %cst_225 = arith.constant dense<0.000000e+00> : vector<48x128xf32>
    %745 = tpu.matmul %743, %744, %cst_225 {dimension_numbers = #tpu.dot_dimension_numbers<[1], [0], [0], [1], [0, 0, 1, 1], [], []>} : vector<48x32xbf16>, vector<32x128xbf16>, vector<48x128xf32> -> vector<48x128xf32>
    %746 = arith.addf %742, %745 : vector<48x128xf32>
    %c8_226 = arith.constant 8 : index
    %c0_227 = arith.constant 0 : index
    %747 = vector.load %arg12[%c8_226, %c0_227] : memref<86x32xbf16, #tpu.memory_space<vmem>>, vector<48x32xbf16>
    %c128 = arith.constant 128 : index
    %c0_228 = arith.constant 0 : index
    %748 = vector.load %arg5[%c128, %c0_228] : memref<640x128xbf16, #tpu.memory_space<vmem>>, vector<32x128xbf16>
    %cst_229 = arith.constant dense<0.000000e+00> : vector<48x128xf32>
    %749 = tpu.matmul %747, %748, %cst_229 {dimension_numbers = #tpu.dot_dimension_numbers<[1], [0], [0], [1], [0, 0, 1, 1], [], []>} : vector<48x32xbf16>, vector<32x128xbf16>, vector<48x128xf32> -> vector<48x128xf32>
    %750 = arith.addf %746, %749 : vector<48x128xf32>
    %c10_230 = arith.constant 10 : index
    %c0_231 = arith.constant 0 : index
    %751 = vector.load %arg12[%c10_230, %c0_231] : memref<86x32xbf16, #tpu.memory_space<vmem>>, vector<48x32xbf16>
    %c160 = arith.constant 160 : index
    %c0_232 = arith.constant 0 : index
    %752 = vector.load %arg5[%c160, %c0_232] : memref<640x128xbf16, #tpu.memory_space<vmem>>, vector<32x128xbf16>
    %cst_233 = arith.constant dense<0.000000e+00> : vector<48x128xf32>
    %753 = tpu.matmul %751, %752, %cst_233 {dimension_numbers = #tpu.dot_dimension_numbers<[1], [0], [0], [1], [0, 0, 1, 1], [], []>} : vector<48x32xbf16>, vector<32x128xbf16>, vector<48x128xf32> -> vector<48x128xf32>
    %754 = arith.addf %750, %753 : vector<48x128xf32>
    %c12_234 = arith.constant 12 : index
    %c0_235 = arith.constant 0 : index
    %755 = vector.load %arg12[%c12_234, %c0_235] : memref<86x32xbf16, #tpu.memory_space<vmem>>, vector<48x32xbf16>
    %c192 = arith.constant 192 : index
    %c0_236 = arith.constant 0 : index
    %756 = vector.load %arg5[%c192, %c0_236] : memref<640x128xbf16, #tpu.memory_space<vmem>>, vector<32x128xbf16>
    %cst_237 = arith.constant dense<0.000000e+00> : vector<48x128xf32>
    %757 = tpu.matmul %755, %756, %cst_237 {dimension_numbers = #tpu.dot_dimension_numbers<[1], [0], [0], [1], [0, 0, 1, 1], [], []>} : vector<48x32xbf16>, vector<32x128xbf16>, vector<48x128xf32> -> vector<48x128xf32>
    %758 = arith.addf %754, %757 : vector<48x128xf32>
    %c14_238 = arith.constant 14 : index
    %c0_239 = arith.constant 0 : index
    %759 = vector.load %arg12[%c14_238, %c0_239] : memref<86x32xbf16, #tpu.memory_space<vmem>>, vector<48x32xbf16>
    %c224 = arith.constant 224 : index
    %c0_240 = arith.constant 0 : index
    %760 = vector.load %arg5[%c224, %c0_240] : memref<640x128xbf16, #tpu.memory_space<vmem>>, vector<32x128xbf16>
    %cst_241 = arith.constant dense<0.000000e+00> : vector<48x128xf32>
    %761 = tpu.matmul %759, %760, %cst_241 {dimension_numbers = #tpu.dot_dimension_numbers<[1], [0], [0], [1], [0, 0, 1, 1], [], []>} : vector<48x32xbf16>, vector<32x128xbf16>, vector<48x128xf32> -> vector<48x128xf32>
    %762 = arith.addf %758, %761 : vector<48x128xf32>
    %c16_242 = arith.constant 16 : index
    %c0_243 = arith.constant 0 : index
    %763 = vector.load %arg12[%c16_242, %c0_243] : memref<86x32xbf16, #tpu.memory_space<vmem>>, vector<48x32xbf16>
    %c256 = arith.constant 256 : index
    %c0_244 = arith.constant 0 : index
    %764 = vector.load %arg5[%c256, %c0_244] : memref<640x128xbf16, #tpu.memory_space<vmem>>, vector<32x128xbf16>
    %cst_245 = arith.constant dense<0.000000e+00> : vector<48x128xf32>
    %765 = tpu.matmul %763, %764, %cst_245 {dimension_numbers = #tpu.dot_dimension_numbers<[1], [0], [0], [1], [0, 0, 1, 1], [], []>} : vector<48x32xbf16>, vector<32x128xbf16>, vector<48x128xf32> -> vector<48x128xf32>
    %766 = arith.addf %762, %765 : vector<48x128xf32>
    %c18_246 = arith.constant 18 : index
    %c0_247 = arith.constant 0 : index
    %767 = vector.load %arg12[%c18_246, %c0_247] : memref<86x32xbf16, #tpu.memory_space<vmem>>, vector<48x32xbf16>
    %c288 = arith.constant 288 : index
    %c0_248 = arith.constant 0 : index
    %768 = vector.load %arg5[%c288, %c0_248] : memref<640x128xbf16, #tpu.memory_space<vmem>>, vector<32x128xbf16>
    %cst_249 = arith.constant dense<0.000000e+00> : vector<48x128xf32>
    %769 = tpu.matmul %767, %768, %cst_249 {dimension_numbers = #tpu.dot_dimension_numbers<[1], [0], [0], [1], [0, 0, 1, 1], [], []>} : vector<48x32xbf16>, vector<32x128xbf16>, vector<48x128xf32> -> vector<48x128xf32>
    %770 = arith.addf %766, %769 : vector<48x128xf32>
    %c20_250 = arith.constant 20 : index
    %c0_251 = arith.constant 0 : index
    %771 = vector.load %arg12[%c20_250, %c0_251] : memref<86x32xbf16, #tpu.memory_space<vmem>>, vector<48x32xbf16>
    %c320 = arith.constant 320 : index
    %c0_252 = arith.constant 0 : index
    %772 = vector.load %arg5[%c320, %c0_252] : memref<640x128xbf16, #tpu.memory_space<vmem>>, vector<32x128xbf16>
    %cst_253 = arith.constant dense<0.000000e+00> : vector<48x128xf32>
    %773 = tpu.matmul %771, %772, %cst_253 {dimension_numbers = #tpu.dot_dimension_numbers<[1], [0], [0], [1], [0, 0, 1, 1], [], []>} : vector<48x32xbf16>, vector<32x128xbf16>, vector<48x128xf32> -> vector<48x128xf32>
    %774 = arith.addf %770, %773 : vector<48x128xf32>
    %c22_254 = arith.constant 22 : index
    %c0_255 = arith.constant 0 : index
    %775 = vector.load %arg12[%c22_254, %c0_255] : memref<86x32xbf16, #tpu.memory_space<vmem>>, vector<48x32xbf16>
    %c352 = arith.constant 352 : index
    %c0_256 = arith.constant 0 : index
    %776 = vector.load %arg5[%c352, %c0_256] : memref<640x128xbf16, #tpu.memory_space<vmem>>, vector<32x128xbf16>
    %cst_257 = arith.constant dense<0.000000e+00> : vector<48x128xf32>
    %777 = tpu.matmul %775, %776, %cst_257 {dimension_numbers = #tpu.dot_dimension_numbers<[1], [0], [0], [1], [0, 0, 1, 1], [], []>} : vector<48x32xbf16>, vector<32x128xbf16>, vector<48x128xf32> -> vector<48x128xf32>
    %778 = arith.addf %774, %777 : vector<48x128xf32>
    %c24_258 = arith.constant 24 : index
    %c0_259 = arith.constant 0 : index
    %779 = vector.load %arg12[%c24_258, %c0_259] : memref<86x32xbf16, #tpu.memory_space<vmem>>, vector<48x32xbf16>
    %c384 = arith.constant 384 : index
    %c0_260 = arith.constant 0 : index
    %780 = vector.load %arg5[%c384, %c0_260] : memref<640x128xbf16, #tpu.memory_space<vmem>>, vector<32x128xbf16>
    %cst_261 = arith.constant dense<0.000000e+00> : vector<48x128xf32>
    %781 = tpu.matmul %779, %780, %cst_261 {dimension_numbers = #tpu.dot_dimension_numbers<[1], [0], [0], [1], [0, 0, 1, 1], [], []>} : vector<48x32xbf16>, vector<32x128xbf16>, vector<48x128xf32> -> vector<48x128xf32>
    %782 = arith.addf %778, %781 : vector<48x128xf32>
    %c26_262 = arith.constant 26 : index
    %c0_263 = arith.constant 0 : index
    %783 = vector.load %arg12[%c26_262, %c0_263] : memref<86x32xbf16, #tpu.memory_space<vmem>>, vector<48x32xbf16>
    %c416 = arith.constant 416 : index
    %c0_264 = arith.constant 0 : index
    %784 = vector.load %arg5[%c416, %c0_264] : memref<640x128xbf16, #tpu.memory_space<vmem>>, vector<32x128xbf16>
    %cst_265 = arith.constant dense<0.000000e+00> : vector<48x128xf32>
    %785 = tpu.matmul %783, %784, %cst_265 {dimension_numbers = #tpu.dot_dimension_numbers<[1], [0], [0], [1], [0, 0, 1, 1], [], []>} : vector<48x32xbf16>, vector<32x128xbf16>, vector<48x128xf32> -> vector<48x128xf32>
    %786 = arith.addf %782, %785 : vector<48x128xf32>
    %c28_266 = arith.constant 28 : index
    %c0_267 = arith.constant 0 : index
    %787 = vector.load %arg12[%c28_266, %c0_267] : memref<86x32xbf16, #tpu.memory_space<vmem>>, vector<48x32xbf16>
    %c448 = arith.constant 448 : index
    %c0_268 = arith.constant 0 : index
    %788 = vector.load %arg5[%c448, %c0_268] : memref<640x128xbf16, #tpu.memory_space<vmem>>, vector<32x128xbf16>
    %cst_269 = arith.constant dense<0.000000e+00> : vector<48x128xf32>
    %789 = tpu.matmul %787, %788, %cst_269 {dimension_numbers = #tpu.dot_dimension_numbers<[1], [0], [0], [1], [0, 0, 1, 1], [], []>} : vector<48x32xbf16>, vector<32x128xbf16>, vector<48x128xf32> -> vector<48x128xf32>
    %790 = arith.addf %786, %789 : vector<48x128xf32>
    %c30_270 = arith.constant 30 : index
    %c0_271 = arith.constant 0 : index
    %791 = vector.load %arg12[%c30_270, %c0_271] : memref<86x32xbf16, #tpu.memory_space<vmem>>, vector<48x32xbf16>
    %c480 = arith.constant 480 : index
    %c0_272 = arith.constant 0 : index
    %792 = vector.load %arg5[%c480, %c0_272] : memref<640x128xbf16, #tpu.memory_space<vmem>>, vector<32x128xbf16>
    %cst_273 = arith.constant dense<0.000000e+00> : vector<48x128xf32>
    %793 = tpu.matmul %791, %792, %cst_273 {dimension_numbers = #tpu.dot_dimension_numbers<[1], [0], [0], [1], [0, 0, 1, 1], [], []>} : vector<48x32xbf16>, vector<32x128xbf16>, vector<48x128xf32> -> vector<48x128xf32>
    %794 = arith.addf %790, %793 : vector<48x128xf32>
    %c32_274 = arith.constant 32 : index
    %c0_275 = arith.constant 0 : index
    %795 = vector.load %arg12[%c32_274, %c0_275] : memref<86x32xbf16, #tpu.memory_space<vmem>>, vector<48x32xbf16>
    %c512 = arith.constant 512 : index
    %c0_276 = arith.constant 0 : index
    %796 = vector.load %arg5[%c512, %c0_276] : memref<640x128xbf16, #tpu.memory_space<vmem>>, vector<32x128xbf16>
    %cst_277 = arith.constant dense<0.000000e+00> : vector<48x128xf32>
    %797 = tpu.matmul %795, %796, %cst_277 {dimension_numbers = #tpu.dot_dimension_numbers<[1], [0], [0], [1], [0, 0, 1, 1], [], []>} : vector<48x32xbf16>, vector<32x128xbf16>, vector<48x128xf32> -> vector<48x128xf32>
    %798 = arith.addf %794, %797 : vector<48x128xf32>
    %c34_278 = arith.constant 34 : index
    %c0_279 = arith.constant 0 : index
    %799 = vector.load %arg12[%c34_278, %c0_279] : memref<86x32xbf16, #tpu.memory_space<vmem>>, vector<48x32xbf16>
    %c544 = arith.constant 544 : index
    %c0_280 = arith.constant 0 : index
    %800 = vector.load %arg5[%c544, %c0_280] : memref<640x128xbf16, #tpu.memory_space<vmem>>, vector<32x128xbf16>
    %cst_281 = arith.constant dense<0.000000e+00> : vector<48x128xf32>
    %801 = tpu.matmul %799, %800, %cst_281 {dimension_numbers = #tpu.dot_dimension_numbers<[1], [0], [0], [1], [0, 0, 1, 1], [], []>} : vector<48x32xbf16>, vector<32x128xbf16>, vector<48x128xf32> -> vector<48x128xf32>
    %802 = arith.addf %798, %801 : vector<48x128xf32>
    %c36_282 = arith.constant 36 : index
    %c0_283 = arith.constant 0 : index
    %803 = vector.load %arg12[%c36_282, %c0_283] : memref<86x32xbf16, #tpu.memory_space<vmem>>, vector<48x32xbf16>
    %c576 = arith.constant 576 : index
    %c0_284 = arith.constant 0 : index
    %804 = vector.load %arg5[%c576, %c0_284] : memref<640x128xbf16, #tpu.memory_space<vmem>>, vector<32x128xbf16>
    %cst_285 = arith.constant dense<0.000000e+00> : vector<48x128xf32>
    %805 = tpu.matmul %803, %804, %cst_285 {dimension_numbers = #tpu.dot_dimension_numbers<[1], [0], [0], [1], [0, 0, 1, 1], [], []>} : vector<48x32xbf16>, vector<32x128xbf16>, vector<48x128xf32> -> vector<48x128xf32>
    %806 = arith.addf %802, %805 : vector<48x128xf32>
    %c38_286 = arith.constant 38 : index
    %c0_287 = arith.constant 0 : index
    %807 = vector.load %arg12[%c38_286, %c0_287] : memref<86x32xbf16, #tpu.memory_space<vmem>>, vector<48x32xbf16>
    %c608 = arith.constant 608 : index
    %c0_288 = arith.constant 0 : index
    %808 = vector.load %arg5[%c608, %c0_288] : memref<640x128xbf16, #tpu.memory_space<vmem>>, vector<32x128xbf16>
    %cst_289 = arith.constant dense<0.000000e+00> : vector<48x128xf32>
    %809 = tpu.matmul %807, %808, %cst_289 {dimension_numbers = #tpu.dot_dimension_numbers<[1], [0], [0], [1], [0, 0, 1, 1], [], []>} : vector<48x32xbf16>, vector<32x128xbf16>, vector<48x128xf32> -> vector<48x128xf32>
    %810 = arith.addf %806, %809 : vector<48x128xf32>
    %c0_290 = arith.constant 0 : index
    %c0_291 = arith.constant 0 : index
    %811 = vector.load %arg6[%c0_290, %c0_291] : memref<1x128xf32, #tpu.memory_space<vmem>>, vector<1x128xf32>
    %812 = vector.broadcast %811 : vector<1x128xf32> to vector<48x128xf32>
    %813 = arith.addf %810, %812 : vector<48x128xf32>
    %cst_292 = arith.constant 0.000000e+00 : f32
    %814 = vector.broadcast %cst_292 : f32 to vector<48x128xf32>
    %815 = arith.maximumf %813, %814 : vector<48x128xf32>
    %816 = tpu.iota {dimensions = array<i32: 0>} : vector<48x128xi32>
    %c0_293 = arith.constant 0 : index
    %c0_294 = arith.constant 0 : index
    %817 = vector.load %arg7[%c0_293, %c0_294] : memref<1x128xi32, #tpu.memory_space<vmem>>, vector<1x128xi32>
    %c25_i32 = arith.constant 25 : i32
    %818 = vector.broadcast %c25_i32 : i32 to vector<1x128xi32>
    %819 = arith.subi %818, %817 : vector<1x128xi32>
    %c2_i32 = arith.constant 2 : i32
    %820 = vector.broadcast %c2_i32 : i32 to vector<1x128xi32>
    %821 = arith.muli %819, %820 : vector<1x128xi32>
    %822 = vector.broadcast %821 : vector<1x128xi32> to vector<48x128xi32>
    %823 = arith.cmpi slt, %816, %822 : vector<48x128xi32>
    %cst_295 = arith.constant 0.000000e+00 : f32
    %824 = vector.broadcast %cst_295 : f32 to vector<48x128xf32>
    %825 = arith.select %823, %815, %824 : vector<48x128xi1>, vector<48x128xf32>
    %826 = vector.extract_strided_slice %825 {offsets = [0, 0], sizes = [2, 128], strides = [1, 1]} : vector<48x128xf32> to vector<2x128xf32>
    %827 = vector.extract_strided_slice %825 {offsets = [2, 0], sizes = [2, 128], strides = [1, 1]} : vector<48x128xf32> to vector<2x128xf32>
    %828 = arith.maximumf %826, %827 : vector<2x128xf32>
    %829 = vector.extract_strided_slice %825 {offsets = [4, 0], sizes = [2, 128], strides = [1, 1]} : vector<48x128xf32> to vector<2x128xf32>
    %830 = arith.maximumf %828, %829 : vector<2x128xf32>
    %831 = vector.extract_strided_slice %825 {offsets = [6, 0], sizes = [2, 128], strides = [1, 1]} : vector<48x128xf32> to vector<2x128xf32>
    %832 = arith.maximumf %830, %831 : vector<2x128xf32>
    %833 = vector.extract_strided_slice %825 {offsets = [8, 0], sizes = [2, 128], strides = [1, 1]} : vector<48x128xf32> to vector<2x128xf32>
    %834 = arith.maximumf %832, %833 : vector<2x128xf32>
    %835 = vector.extract_strided_slice %825 {offsets = [10, 0], sizes = [2, 128], strides = [1, 1]} : vector<48x128xf32> to vector<2x128xf32>
    %836 = arith.maximumf %834, %835 : vector<2x128xf32>
    %837 = vector.extract_strided_slice %825 {offsets = [12, 0], sizes = [2, 128], strides = [1, 1]} : vector<48x128xf32> to vector<2x128xf32>
    %838 = arith.maximumf %836, %837 : vector<2x128xf32>
    %839 = vector.extract_strided_slice %825 {offsets = [14, 0], sizes = [2, 128], strides = [1, 1]} : vector<48x128xf32> to vector<2x128xf32>
    %840 = arith.maximumf %838, %839 : vector<2x128xf32>
    %841 = vector.extract_strided_slice %825 {offsets = [16, 0], sizes = [2, 128], strides = [1, 1]} : vector<48x128xf32> to vector<2x128xf32>
    %842 = arith.maximumf %840, %841 : vector<2x128xf32>
    %843 = vector.extract_strided_slice %825 {offsets = [18, 0], sizes = [2, 128], strides = [1, 1]} : vector<48x128xf32> to vector<2x128xf32>
    %844 = arith.maximumf %842, %843 : vector<2x128xf32>
    %845 = vector.extract_strided_slice %825 {offsets = [20, 0], sizes = [2, 128], strides = [1, 1]} : vector<48x128xf32> to vector<2x128xf32>
    %846 = arith.maximumf %844, %845 : vector<2x128xf32>
    %847 = vector.extract_strided_slice %825 {offsets = [22, 0], sizes = [2, 128], strides = [1, 1]} : vector<48x128xf32> to vector<2x128xf32>
    %848 = arith.maximumf %846, %847 : vector<2x128xf32>
    %849 = vector.extract_strided_slice %825 {offsets = [24, 0], sizes = [2, 128], strides = [1, 1]} : vector<48x128xf32> to vector<2x128xf32>
    %850 = arith.maximumf %848, %849 : vector<2x128xf32>
    %851 = vector.extract_strided_slice %825 {offsets = [26, 0], sizes = [2, 128], strides = [1, 1]} : vector<48x128xf32> to vector<2x128xf32>
    %852 = arith.maximumf %850, %851 : vector<2x128xf32>
    %853 = vector.extract_strided_slice %825 {offsets = [28, 0], sizes = [2, 128], strides = [1, 1]} : vector<48x128xf32> to vector<2x128xf32>
    %854 = arith.maximumf %852, %853 : vector<2x128xf32>
    %855 = vector.extract_strided_slice %825 {offsets = [30, 0], sizes = [2, 128], strides = [1, 1]} : vector<48x128xf32> to vector<2x128xf32>
    %856 = arith.maximumf %854, %855 : vector<2x128xf32>
    %857 = vector.extract_strided_slice %825 {offsets = [32, 0], sizes = [2, 128], strides = [1, 1]} : vector<48x128xf32> to vector<2x128xf32>
    %858 = arith.maximumf %856, %857 : vector<2x128xf32>
    %859 = vector.extract_strided_slice %825 {offsets = [34, 0], sizes = [2, 128], strides = [1, 1]} : vector<48x128xf32> to vector<2x128xf32>
    %860 = arith.maximumf %858, %859 : vector<2x128xf32>
    %861 = vector.extract_strided_slice %825 {offsets = [36, 0], sizes = [2, 128], strides = [1, 1]} : vector<48x128xf32> to vector<2x128xf32>
    %862 = arith.maximumf %860, %861 : vector<2x128xf32>
    %863 = vector.extract_strided_slice %825 {offsets = [38, 0], sizes = [2, 128], strides = [1, 1]} : vector<48x128xf32> to vector<2x128xf32>
    %864 = arith.maximumf %862, %863 : vector<2x128xf32>
    %865 = vector.extract_strided_slice %825 {offsets = [40, 0], sizes = [2, 128], strides = [1, 1]} : vector<48x128xf32> to vector<2x128xf32>
    %866 = arith.maximumf %864, %865 : vector<2x128xf32>
    %867 = vector.extract_strided_slice %825 {offsets = [42, 0], sizes = [2, 128], strides = [1, 1]} : vector<48x128xf32> to vector<2x128xf32>
    %868 = arith.maximumf %866, %867 : vector<2x128xf32>
    %869 = vector.extract_strided_slice %825 {offsets = [44, 0], sizes = [2, 128], strides = [1, 1]} : vector<48x128xf32> to vector<2x128xf32>
    %870 = arith.maximumf %868, %869 : vector<2x128xf32>
    %871 = vector.extract_strided_slice %825 {offsets = [46, 0], sizes = [2, 128], strides = [1, 1]} : vector<48x128xf32> to vector<2x128xf32>
    %872 = arith.maximumf %870, %871 : vector<2x128xf32>
    %c0_296 = arith.constant 0 : index
    %c0_297 = arith.constant 0 : index
    %873 = vector.load %arg8[%c0_296, %c0_297] : memref<128x2xf32, #tpu.memory_space<vmem>>, vector<128x2xf32>
    %cst_298 = arith.constant dense<0.000000e+00> : vector<2x2xf32>
    %874 = tpu.matmul %872, %873, %cst_298 {dimension_numbers = #tpu.dot_dimension_numbers<[1], [0], [0], [1], [0, 0, 1, 1], [], []>} : vector<2x128xf32>, vector<128x2xf32>, vector<2x2xf32> -> vector<2x2xf32>
    %c0_299 = arith.constant 0 : index
    %c0_300 = arith.constant 0 : index
    %875 = vector.load %arg9[%c0_299, %c0_300] : memref<1x2xf32, #tpu.memory_space<vmem>>, vector<1x2xf32>
    %876 = vector.broadcast %875 : vector<1x2xf32> to vector<2x2xf32>
    %877 = arith.addf %874, %876 : vector<2x2xf32>
    %c0_301 = arith.constant 0 : index
    %c0_302 = arith.constant 0 : index
    %878 = vector.load %arg10[%c0_301, %c0_302] : memref<2x2xf32, #tpu.memory_space<vmem>>, vector<2x2xf32>
    tpu.vector_store %arg10[%c0_301, %c0_302], %877 {strides = array<i32>} : memref<2x2xf32, #tpu.memory_space<vmem>>, vector<2x2xf32>,
    return
  }
}

</mosaic_0001>

<llo_original>
// kernel: con_bigru_cnn_forward.1
$region0: #{con_bigru_cnn_forward.1}
  #allocation0 [shape = 'u32[]', space=smem, size = 0x4, offset = 0x4, fixed_abs, tag = 'smem constant byte address 0x4 - core index']
  #allocation1 [shape = 'u32[144,128]{1,0:T(1,128)}', space=vmem, size = 0x12000, scoped, tag = 'internal scratch']
  #allocation2 [shape = 'f32[48,96]{1,0:T(8,128)}', space=vmem, size = 0x6000, scoped, tag = 'scratch operand']
  #allocation3 [shape = 'bf16[86,32]{1,0:T(8,128)(2,1)}', space=vmem, size = 0x5800, scoped, tag = 'scratch operand']
  %s0 = inlined_call_operand.vmem [shape: bf16[48,320], index: 0, kind: input, shape index: {}]
  %s1 = inlined_call_operand.vmem [shape: bf16[320,96], index: 1, kind: input, shape index: {}]
  %s2 = inlined_call_operand.vmem [shape: f32[1,96], index: 2, kind: input, shape index: {}]
  %s3 = inlined_call_operand.vmem [shape: bf16[32,96], index: 3, kind: input, shape index: {}]
  %s4 = inlined_call_operand.vmem [shape: f32[1,96], index: 4, kind: input, shape index: {}]
  %s5 = inlined_call_operand.vmem [shape: bf16[640,128], index: 5, kind: input, shape index: {}]
  %s6 = inlined_call_operand.vmem [shape: f32[1,128], index: 6, kind: input, shape index: {}]
  %s7 = inlined_call_operand.vmem [shape: s32[1,128], index: 7, kind: input, shape index: {}]
  %s8 = inlined_call_operand.vmem [shape: f32[128,2], index: 8, kind: input, shape index: {}]
  %s9 = inlined_call_operand.vmem [shape: f32[1,2], index: 9, kind: input, shape index: {}]
  %s10 = inlined_call_operand.hbm [shape: f32[2,2], index: 10, kind: output, shape index: {}]
  %s11 = sld [smem:[#allocation0]]
  $region50: #{con_bigru_cnn_forward.1} parent=0
    _
  %s13 = ssub.s32 1, %s11
  %s14 = scalar_select 0, %s13, %s11
  $region1: #{con_bigru_cnn_forward.1} parent=0
    #allocation4 [shape = 'u8[1024]{0}', space=vmem, size = 0x400, scoped, tag = 'output window, operand 0, single buffered']
    #allocation5 [shape = 's32[1]{0}', space=sflag, size = 0x4, scoped, tag = 'scoped memory for con_bigru_cnn_forward.1']
    %15 = vsyncpa [#allocation5], 0
    // Predicated region
    $region2: #{con_bigru_cnn_forward.1} parent=1 // pred_check
      _
    $region3: #{con_bigru_cnn_forward.1} parent=1 // pred_check_branch
      %17 = sbr.rel (0) target = $region5
    $region4: #{con_bigru_cnn_forward.1} parent=1 // pred_region
      _
    $region5: #{con_bigru_cnn_forward.1} parent=1 // pred_fallthru
      _
    // Predicated region
    $region6: #{con_bigru_cnn_forward.1} parent=1 // pred_check
      _
    $region7: #{con_bigru_cnn_forward.1} parent=1 // pred_check_branch
      %19 = sbr.rel (0) target = $region9
    $region8: #{con_bigru_cnn_forward.1} parent=1 // pred_region
      _
    $region9: #{con_bigru_cnn_forward.1} parent=1 // pred_fallthru
      _
    // Predicated region
    $region10: #{con_bigru_cnn_forward.1} parent=1 // pred_check
      _
    $region11: #{con_bigru_cnn_forward.1} parent=1 // pred_check_branch
      %21 = sbr.rel (0) target = $region13
    $region12: #{con_bigru_cnn_forward.1} parent=1 // pred_region
      _
    $region13: #{con_bigru_cnn_forward.1} parent=1 // pred_fallthru
      _
    // Predicated region
    $region14: #{con_bigru_cnn_forward.1} parent=1 // pred_check
      _
    $region15: #{con_bigru_cnn_forward.1} parent=1 // pred_check_branch
      %23 = sbr.rel (0) target = $region17
    $region16: #{con_bigru_cnn_forward.1} parent=1 // pred_region
      _
    $region17: #{con_bigru_cnn_forward.1} parent=1 // pred_fallthru
      _
    // Predicated region
    $region18: #{con_bigru_cnn_forward.1} parent=1 // pred_check
      _
    $region19: #{con_bigru_cnn_forward.1} parent=1 // pred_check_branch
      %25 = sbr.rel (0) target = $region21
    $region20: #{con_bigru_cnn_forward.1} parent=1 // pred_region
      _
    $region21: #{con_bigru_cnn_forward.1} parent=1 // pred_fallthru
      _
    // Predicated region
    $region22: #{con_bigru_cnn_forward.1} parent=1 // pred_check
      _
    $region23: #{con_bigru_cnn_forward.1} parent=1 // pred_check_branch
      %27 = sbr.rel (0) target = $region25
    $region24: #{con_bigru_cnn_forward.1} parent=1 // pred_region
      _
    $region25: #{con_bigru_cnn_forward.1} parent=1 // pred_fallthru
      _
    // Predicated region
    $region26: #{con_bigru_cnn_forward.1} parent=1 // pred_check
      _
    $region27: #{con_bigru_cnn_forward.1} parent=1 // pred_check_branch
      %29 = sbr.rel (0) target = $region29
    $region28: #{con_bigru_cnn_forward.1} parent=1 // pred_region
      _
    $region29: #{con_bigru_cnn_forward.1} parent=1 // pred_fallthru
      _
    // Predicated region
    $region30: #{con_bigru_cnn_forward.1} parent=1 // pred_check
      _
    $region31: #{con_bigru_cnn_forward.1} parent=1 // pred_check_branch
      %31 = sbr.rel (0) target = $region33
    $region32: #{con_bigru_cnn_forward.1} parent=1 // pred_region
      _
    $region33: #{con_bigru_cnn_forward.1} parent=1 // pred_fallthru
      _
    // Predicated region
    $region34: #{con_bigru_cnn_forward.1} parent=1 // pred_check
      _
    $region35: #{con_bigru_cnn_forward.1} parent=1 // pred_check_branch
      %33 = sbr.rel (0) target = $region37
    $region36: #{con_bigru_cnn_forward.1} parent=1 // pred_region
      _
    $region37: #{con_bigru_cnn_forward.1} parent=1 // pred_fallthru
      _
    // Predicated region
    $region38: #{con_bigru_cnn_forward.1} parent=1 // pred_check
      _
    $region39: #{con_bigru_cnn_forward.1} parent=1 // pred_check_branch
      %35 = sbr.rel (0) target = $region41
    $region40: #{con_bigru_cnn_forward.1} parent=1 // pred_region
      _
    $region41: #{con_bigru_cnn_forward.1} parent=1 // pred_fallthru
      _
    %v37 = vld [vmem:[%s0] sm:$0xff]
    %v38 = vld [vmem:[%s0 + $0x8] sm:$0xf]
    %v39 = vld [vmem:[%s0 + $0xc] sm:$0xff]
    %v40 = vld [vmem:[%s0 + $0x14] sm:$0xf]
    %v41 = vld [vmem:[%s0 + $0x18] sm:$0xff]
    %v42 = vld [vmem:[%s0 + $0x20] sm:$0xf]
    %v43 = vld [vmem:[%s0 + $0x24] sm:$0xff]
    %v44 = vld [vmem:[%s0 + $0x2c] sm:$0xf]
    %v45 = vld [vmem:[%s0 + $0x30] sm:$0xff]
    %v46 = vld [vmem:[%s0 + $0x38] sm:$0xf]
    %v47 = vld [vmem:[%s0 + $0x3c] sm:$0xff]
    %v48 = vld [vmem:[%s0 + $0x44] sm:$0xf]
    %v49 = vld [vmem:[%s1] sm:$0xf]
    %v50 = vld [vmem:[%s1 + $0x4] sm:$0xf]
    %v51 = vld [vmem:[%s1 + $0x8] sm:$0xf]
    %v52 = vld [vmem:[%s1 + $0xc] sm:$0xf]
    %v53 = vld [vmem:[%s1 + $0x10] sm:$0xf]
    %v54 = vld [vmem:[%s1 + $0x14] sm:$0xf]
    %v55 = vld [vmem:[%s1 + $0x18] sm:$0xf]
    %v56 = vld [vmem:[%s1 + $0x1c] sm:$0xf]
    %v57 = vld [vmem:[%s1 + $0x20] sm:$0xf]
    %v58 = vld [vmem:[%s1 + $0x24] sm:$0xf]
    %v59 = vld [vmem:[%s1 + $0x28] sm:$0xf]
    %v60 = vld [vmem:[%s1 + $0x2c] sm:$0xf]
    %v61 = vld [vmem:[%s1 + $0x30] sm:$0xf]
    %v62 = vld [vmem:[%s1 + $0x34] sm:$0xf]
    %v63 = vld [vmem:[%s1 + $0x38] sm:$0xf]
    %v64 = vld [vmem:[%s1 + $0x3c] sm:$0xf]
    %v65 = vld [vmem:[%s1 + $0x40] sm:$0xf]
    %v66 = vld [vmem:[%s1 + $0x44] sm:$0xf]
    %v67 = vld [vmem:[%s1 + $0x48] sm:$0xf]
    %v68 = vld [vmem:[%s1 + $0x4c] sm:$0xf]
    %v69 = vld [vmem:[%s1 + $0x50] sm:$0xf]
    %v70 = vld [vmem:[%s1 + $0x54] sm:$0xf]
    %v71 = vld [vmem:[%s1 + $0x58] sm:$0xf]
    %v72 = vld [vmem:[%s1 + $0x5c] sm:$0xf]
    %v73 = vld [vmem:[%s1 + $0x60] sm:$0xf]
    %v74 = vld [vmem:[%s1 + $0x64] sm:$0xf]
    %v75 = vld [vmem:[%s1 + $0x68] sm:$0xf]
    %v76 = vld [vmem:[%s1 + $0x6c] sm:$0xf]
    %v77 = vld [vmem:[%s1 + $0x70] sm:$0xf]
    %v78 = vld [vmem:[%s1 + $0x74] sm:$0xf]
    %v79 = vld [vmem:[%s1 + $0x78] sm:$0xf]
    %v80 = vld [vmem:[%s1 + $0x7c] sm:$0xf]
    %v81 = vld [vmem:[%s1 + $0x80] sm:$0xf]
    %v82 = vld [vmem:[%s1 + $0x84] sm:$0xf]
    %v83 = vld [vmem:[%s1 + $0x88] sm:$0xf]
    %v84 = vld [vmem:[%s1 + $0x8c] sm:$0xf]
    %v85 = vld [vmem:[%s1 + $0x90] sm:$0xf]
    %v86 = vld [vmem:[%s1 + $0x94] sm:$0xf]
    %v87 = vld [vmem:[%s1 + $0x98] sm:$0xf]
    %v88 = vld [vmem:[%s1 + $0x9c] sm:$0xf]
    %v89 = vld [vmem:[%s2] sm:$0x1]
    %v91 = vlaneseq
    %v92 = vshrl.u32 %v91, 7
    %v93 = vsub.s32 0, %v92
    %v94 = vrot.slane %v89, %v93
    %v108 = vunpack.c.l.b16 %v37
    %v109 = vunpack.c.h.b16 %v37
    %v110 = vunpack.c.l.b16 %v38
    %v111 = vunpack.c.l.b16 %v39
    %v112 = vunpack.c.h.b16 %v39
    %v113 = vunpack.c.l.b16 %v40
    %v114 = vunpack.c.l.b16 %v41
    %v115 = vunpack.c.h.b16 %v41
    %v116 = vunpack.c.l.b16 %v42
    %v117 = vunpack.c.l.b16 %v43
    %v118 = vunpack.c.h.b16 %v43
    %v119 = vunpack.c.l.b16 %v44
    %v120 = vunpack.c.l.b16 %v45
    %v121 = vunpack.c.h.b16 %v45
    %v122 = vunpack.c.l.b16 %v46
    %v123 = vunpack.c.l.b16 %v47
    %v124 = vunpack.c.h.b16 %v47
    %v125 = vunpack.c.l.b16 %v48
    %v126 = vpack.c.b16 %v111, %v108
    %v127 = vpack.c.b16 %v112, %v109
    %v128 = vpack.c.b16 %v113, %v110
    %v129 = vpack.c.b16 %v117, %v114
    %v130 = vpack.c.b16 %v118, %v115
    %v131 = vpack.c.b16 %v119, %v116
    %v132 = vpack.c.b16 %v123, %v120
    %v133 = vpack.c.b16 %v124, %v121
    %v134 = vpack.c.b16 %v125, %v122
    %v181 = vunpack.c.l.b16 %v49
    %v182 = vunpack.c.l.b16 %v50
    %v183 = vunpack.c.l.b16 %v51
    %v184 = vunpack.c.l.b16 %v52
    %v185 = vunpack.c.l.b16 %v53
    %v186 = vunpack.c.l.b16 %v54
    %v187 = vunpack.c.l.b16 %v55
    %v188 = vunpack.c.l.b16 %v56
    %v189 = vunpack.c.l.b16 %v57
    %v190 = vunpack.c.l.b16 %v58
    %v191 = vunpack.c.l.b16 %v59
    %v192 = vunpack.c.l.b16 %v60
    %v193 = vunpack.c.l.b16 %v61
    %v194 = vunpack.c.l.b16 %v62
    %v195 = vunpack.c.l.b16 %v63
    %v196 = vunpack.c.l.b16 %v64
    %v197 = vunpack.c.l.b16 %v65
    %v198 = vunpack.c.l.b16 %v66
    %v199 = vunpack.c.l.b16 %v67
    %v200 = vunpack.c.l.b16 %v68
    %v201 = vunpack.c.l.b16 %v69
    %v202 = vunpack.c.l.b16 %v70
    %v203 = vunpack.c.l.b16 %v71
    %v204 = vunpack.c.l.b16 %v72
    %v205 = vunpack.c.l.b16 %v73
    %v206 = vunpack.c.l.b16 %v74
    %v207 = vunpack.c.l.b16 %v75
    %v208 = vunpack.c.l.b16 %v76
    %v209 = vunpack.c.l.b16 %v77
    %v210 = vunpack.c.l.b16 %v78
    %v211 = vunpack.c.l.b16 %v79
    %v212 = vunpack.c.l.b16 %v80
    %v213 = vunpack.c.l.b16 %v81
    %v214 = vunpack.c.l.b16 %v82
    %v215 = vunpack.c.l.b16 %v83
    %v216 = vunpack.c.l.b16 %v84
    %v217 = vunpack.c.l.b16 %v85
    %v218 = vunpack.c.l.b16 %v86
    %v219 = vunpack.c.l.b16 %v87
    %v220 = vunpack.c.l.b16 %v88
    %v221 = vpack.c.b16 %v182, %v181
    %v222 = vpack.c.b16 %v184, %v183
    %v223 = vpack.c.b16 %v186, %v185
    %v224 = vpack.c.b16 %v188, %v187
    %v225 = vpack.c.b16 %v190, %v189
    %v226 = vpack.c.b16 %v192, %v191
    %v227 = vpack.c.b16 %v194, %v193
    %v228 = vpack.c.b16 %v196, %v195
    %v229 = vpack.c.b16 %v198, %v197
    %v230 = vpack.c.b16 %v200, %v199
    %v231 = vpack.c.b16 %v202, %v201
    %v232 = vpack.c.b16 %v204, %v203
    %v233 = vpack.c.b16 %v206, %v205
    %v234 = vpack.c.b16 %v208, %v207
    %v235 = vpack.c.b16 %v210, %v209
    %v236 = vpack.c.b16 %v212, %v211
    %v237 = vpack.c.b16 %v214, %v213
    %v238 = vpack.c.b16 %v216, %v215
    %v239 = vpack.c.b16 %v218, %v217
    %v240 = vpack.c.b16 %v220, %v219
    %vm261 = vcmask 523264
    %v263 = vsel %vm261, %v128, 0
    %v266 = vsel %vm261, %v131, 0
    %v269 = vsel %vm261, %v134, 0
    %271 = vmatprep.subr.bf16.mxu0 0
    %272 = vmatpush1.bf16.msra.mxu0 %v228
    %273 = vmatprep.subr.bf16.mxu0 0
    %274 = vmatpush1.bf16.msra.mxu0 %v227
    %275 = vmatprep.subr.bf16.mxu0 0
    %276 = vmatpush1.bf16.msra.mxu0 %v226
    %277 = vmatprep.subr.bf16.mxu0 0
    %278 = vmatpush1.bf16.msra.mxu0 %v225
    %279 = vmatprep.subr.bf16.mxu0 0
    %280 = vmatpush1.bf16.msra.mxu0 %v224
    %281 = vmatprep.subr.bf16.mxu0 0
    %282 = vmatpush1.bf16.msra.mxu0 %v223
    %283 = vmatprep.subr.bf16.mxu0 0
    %284 = vmatpush1.bf16.msra.mxu0 %v222
    %285 = vmatprep.subr.bf16.mxu0 0
    %286 = vmatpush1.bf16.msra.mxu0 %v221
    %287 = vmatprep.subr.bf16.mxu0 0
    %288 = vmatpush2.bf16.msra.mxu0 %v236
    %289 = vmatprep.subr.bf16.mxu0 0
    %290 = vmatpush2.bf16.msra.mxu0 %v235
    %291 = vmatprep.subr.bf16.mxu0 0
    %292 = vmatpush2.bf16.msra.mxu0 %v234
    %293 = vmatprep.subr.bf16.mxu0 0
    %294 = vmatpush2.bf16.msra.mxu0 %v233
    %295 = vmatprep.subr.bf16.mxu0 0
    %296 = vmatpush2.bf16.msra.mxu0 %v232
    %297 = vmatprep.subr.bf16.mxu0 0
    %298 = vmatpush2.bf16.msra.mxu0 %v231
    %299 = vmatprep.subr.bf16.mxu0 0
    %300 = vmatpush2.bf16.msra.mxu0 %v230
    %301 = vmatprep.subr.bf16.mxu0 0
    %302 = vmatpush2.bf16.msra.mxu0 %v229
    %303 = vmatprep.mubr.bf16.mxu0 %v127
    %304 = vmatmul.mubr.bf16.gmra.mxu0 %v126
    %v305 = vpop.f32.mrf.mxu0
    %v306 = vadd.f32 %v94, %v305
    %v307 = vpop.f32.mrf.mxu0
    %v308 = vpop.f32.mrf.mxu0
    %v309 = vadd.f32 %v94, %v308
    %v310 = vpop.f32.mrf.mxu0
    %311 = vmatprep.mubr.bf16.mxu0 %v130
    %312 = vmatmul.mubr.bf16.gmra.mxu0 %v129
    %v313 = vpop.f32.mrf.mxu0
    %v314 = vadd.f32 %v94, %v313
    %v315 = vpop.f32.mrf.mxu0
    %v316 = vpop.f32.mrf.mxu0
    %v317 = vadd.f32 %v94, %v316
    %v318 = vpop.f32.mrf.mxu0
    %319 = vmatprep.mubr.bf16.mxu0 %v133
    %320 = vmatmul.mubr.bf16.gmra.mxu0 %v132
    %v321 = vpop.f32.mrf.mxu0
    %v322 = vadd.f32 %v94, %v321
    %v323 = vpop.f32.mrf.mxu0
    %v324 = vpop.f32.mrf.mxu0
    %v325 = vadd.f32 %v94, %v324
    %v326 = vpop.f32.mrf.mxu0
    %327 = vdwg.mxu0
    %328 = vmatprep.subr.bf16.mxu0 0
    %329 = vmatpush1.bf16.msra.mxu0 0
    %330 = vmatprep.subr.bf16.mxu0 0
    %331 = vmatpush1.bf16.msra.mxu0 0
    %332 = vmatprep.subr.bf16.mxu0 0
    %333 = vmatpush1.bf16.msra.mxu0 0
    %334 = vmatprep.subr.bf16.mxu0 0
    %335 = vmatpush1.bf16.msra.mxu0 0
    %336 = vmatprep.subr.bf16.mxu0 0
    %337 = vmatpush1.bf16.msra.mxu0 %v240
    %338 = vmatprep.subr.bf16.mxu0 0
    %339 = vmatpush1.bf16.msra.mxu0 %v239
    %340 = vmatprep.subr.bf16.mxu0 0
    %341 = vmatpush1.bf16.msra.mxu0 %v238
    %342 = vmatprep.subr.bf16.mxu0 0
    %343 = vmatpush1.bf16.msra.mxu0 %v237
    %344 = vmatprep.subr.bf16.mxu0 0
    %345 = vmatpush2.bf16.msra.mxu0 0
    %346 = vmatprep.subr.bf16.mxu0 0
    %347 = vmatpush2.bf16.msra.mxu0 0
    %348 = vmatprep.subr.bf16.mxu0 0
    %349 = vmatpush2.bf16.msra.mxu0 0
    %350 = vmatprep.subr.bf16.mxu0 0
    %351 = vmatpush2.bf16.msra.mxu0 0
    %352 = vmatprep.subr.bf16.mxu0 0
    %353 = vmatpush2.bf16.msra.mxu0 0
    %354 = vmatprep.subr.bf16.mxu0 0
    %355 = vmatpush2.bf16.msra.mxu0 0
    %356 = vmatprep.subr.bf16.mxu0 0
    %357 = vmatpush2.bf16.msra.mxu0 0
    %358 = vmatprep.subr.bf16.mxu0 0
    %359 = vmatpush2.bf16.msra.mxu0 0
    %360 = vmatprep.mubr.bf16.mxu0 0
    %361 = vmatmul.mubr.bf16.gmra.mxu0 %v263
    %v362 = vpop.f32.mrf.mxu0
    %v363 = vadd.f32 %v306, %v362
    %v364 = vpop.f32.mrf.mxu0
    %v365 = vpop.f32.mrf.mxu0
    %v366 = vadd.f32 %v309, %v365
    %v367 = vpop.f32.mrf.mxu0
    %368 = vmatprep.mubr.bf16.mxu0 0
    %369 = vmatmul.mubr.bf16.gmra.mxu0 %v266
    %v370 = vpop.f32.mrf.mxu0
    %v371 = vadd.f32 %v314, %v370
    %v372 = vpop.f32.mrf.mxu0
    %v373 = vpop.f32.mrf.mxu0
    %v374 = vadd.f32 %v317, %v373
    %v375 = vpop.f32.mrf.mxu0
    %376 = vmatprep.mubr.bf16.mxu0 0
    %377 = vmatmul.mubr.bf16.gmra.mxu0 %v269
    %v378 = vpop.f32.mrf.mxu0
    %v379 = vadd.f32 %v322, %v378
    %v380 = vpop.f32.mrf.mxu0
    %v381 = vpop.f32.mrf.mxu0
    %v382 = vadd.f32 %v325, %v381
    %v383 = vpop.f32.mrf.mxu0
    %384 = vdwg.mxu0
    %vm385 = vcmask 785408
    %386 = vst.msk [vmem:[#allocation2] sm:$0xff] %vm385, %v363
    %387 = vst.msk [vmem:[#allocation2 + $0x8] sm:$0xff] %vm385, %v366
    %388 = vst.msk [vmem:[#allocation2 + $0x10] sm:$0xff] %vm385, %v371
    %389 = vst.msk [vmem:[#allocation2 + $0x18] sm:$0xff] %vm385, %v374
    %390 = vst.msk [vmem:[#allocation2 + $0x20] sm:$0xff] %vm385, %v379
    %391 = vst.msk [vmem:[#allocation2 + $0x28] sm:$0xff] %vm385, %v382
    %vm392 = vcmask 257024
    %393 = vst.msk [vmem:[#allocation3] sm:$0xf] %vm392, 0
    %394 = vst.msk [vmem:[#allocation3 + $0x4] sm:$0xf] %vm392, 0
    %395 = vst.msk [vmem:[#allocation3 + $0x8] sm:$0xf] %vm392, 0
    %396 = vst.msk [vmem:[#allocation3 + $0xc] sm:$0xf] %vm392, 0
    %397 = vst.msk [vmem:[#allocation3 + $0x10] sm:$0xf] %vm392, 0
    %398 = vst.msk [vmem:[#allocation3 + $0x14] sm:$0xf] %vm392, 0
    %399 = vst.msk [vmem:[#allocation3 + $0x18] sm:$0xf] %vm392, 0
    %400 = vst.msk [vmem:[#allocation3 + $0x1c] sm:$0xf] %vm392, 0
    %401 = vst.msk [vmem:[#allocation3 + $0x20] sm:$0xf] %vm392, 0
    %402 = vst.msk [vmem:[#allocation3 + $0x24] sm:$0xf] %vm392, 0
    %vm403 = vcmask 256000
    %404 = vst.msk [vmem:[#allocation3 + $0x28] sm:$0x7] %vm403, 0
    %v405 = vld [vmem:[%s3] sm:$0xf]
    %v406 = vld [vmem:[%s3 + $0x4] sm:$0xf]
    %v407 = vld [vmem:[%s3 + $0x8] sm:$0xf]
    %v408 = vld [vmem:[%s3 + $0xc] sm:$0xf]
    %v409 = vld [vmem:[%s4] sm:$0x1]
    %v410 = vld [vmem:[#allocation2] sm:$0x3]
    %v412 = vlaneseq
    %v413 = vshrl.u32 %v412, 7
    %v414 = vsub.s32 0, %v413
    %v415 = vrot.slane %v409, %v414
    %v421 = vunpack.c.l.b16 %v405
    %v422 = vunpack.c.l.b16 %v406
    %v423 = vunpack.c.l.b16 %v407
    %v424 = vunpack.c.l.b16 %v408
    %v425 = vpack.c.b16 %v422, %v421
    %v426 = vpack.c.b16 %v424, %v423
    %vm429 = vcmask 261120
    %v431 = vsel %vm429, 0, 0
    %433 = vmatprep.subr.bf16.mxu0 0
    %434 = vmatpush1.bf16.msra.mxu0 0
    %435 = vmatprep.subr.bf16.mxu0 0
    %436 = vmatpush1.bf16.msra.mxu0 0
    %437 = vmatprep.subr.bf16.mxu0 0
    %438 = vmatpush1.bf16.msra.mxu0 0
    %439 = vmatprep.subr.bf16.mxu0 0
    %440 = vmatpush1.bf16.msra.mxu0 0
    %441 = vmatprep.subr.bf16.mxu0 0
    %442 = vmatpush1.bf16.msra.mxu0 0
    %443 = vmatprep.subr.bf16.mxu0 0
    %444 = vmatpush1.bf16.msra.mxu0 0
    %445 = vmatprep.subr.bf16.mxu0 0
    %446 = vmatpush1.bf16.msra.mxu0 %v426
    %447 = vmatprep.subr.bf16.mxu0 0
    %448 = vmatpush1.bf16.msra.mxu0 %v425
    %449 = vmatprep.subr.bf16.mxu0 0
    %450 = vmatpush2.bf16.msra.mxu0 0
    %451 = vmatprep.subr.bf16.mxu0 0
    %452 = vmatpush2.bf16.msra.mxu0 0
    %453 = vmatprep.subr.bf16.mxu0 0
    %454 = vmatpush2.bf16.msra.mxu0 0
    %455 = vmatprep.subr.bf16.mxu0 0
    %456 = vmatpush2.bf16.msra.mxu0 0
    %457 = vmatprep.subr.bf16.mxu0 0
    %458 = vmatpush2.bf16.msra.mxu0 0
    %459 = vmatprep.subr.bf16.mxu0 0
    %460 = vmatpush2.bf16.msra.mxu0 0
    %461 = vmatprep.subr.bf16.mxu0 0
    %462 = vmatpush2.bf16.msra.mxu0 0
    %463 = vmatprep.subr.bf16.mxu0 0
    %464 = vmatpush2.bf16.msra.mxu0 0
    %465 = vmatprep.mubr.bf16.mxu0 0
    %466 = vmatmul.mubr.bf16.gmra.mxu0 %v431
    %v467 = vpop.f32.mrf.mxu0
    %v468 = vadd.f32 %v415, %v467
    %v469 = vpop.f32.mrf.mxu0
    %v470 = vpop.f32.mrf.mxu0
    %v471 = vpop.f32.mrf.mxu0
    %472 = vdwg.mxu0
    %v473 = vadd.f32 %v410, %v468
    %v474 = vxor.u32 %v473, 2147483648
    %v475 = vmul.f32 %v474, 1.442695
    %v476 = vpow.pop %v475
    %v477 = vadd.f32 %v476, 1.0
    %v478 = vrcp.pop %v477
    %v479 = vmul.f32 1.0, %v478
    %481 = vrot.lane.b32.xlu0 %v468, 64
    %v482 = vpop.permute.xlu0 %481
    %v484 = vmul.f32 %v479, %v482
    %486 = vrot.lane.b32.xlu0 %v484, 64
    %v487 = vpop.permute.xlu0 %486
    %v489 = vadd.f32 %v410, %v487
    %v490 = vtanh.pop %v489
    %v491 = vsub.f32 1.0, %v479
    %493 = vrot.lane.b32.xlu0 %v490, 96
    %v494 = vpop.permute.xlu0 %493
    %v496 = vmul.f32 %v491, %v494
    %v497 = vmul.f32 %v479, 0.0
    %v498 = vadd.f32 %v496, %v497
    %v499 = vpack.c.bf16 %v498, %v498
    %v501 = vunpack.c.l.b16 %v499
    %v502 = vpack.c.b16 %v501, %v501
    %503 = vrot.lane.b32.xlu0 %v502, 96
    %v504 = vpop.permute.xlu0 %503
    %vm506 = vcmask 122880
    %507 = vst.msk [vmem:[#allocation3] sm:$0x1] %vm506, %v504
    %v508 = vrot.slane %v502, 5
    %509 = vrot.lane.b32.xlu0 %v508, 96
    %v510 = vpop.permute.xlu0 %509
    %vm512 = vcmask 257155
    %513 = vst.msk [vmem:[#allocation3 + $0x14] sm:$0x8] %vm512, %v510
    %v514 = vld [vmem:[#allocation2 + $0x2] sm:$0x3]
    %515 = vrot.lane.b32.xlu0 %v499, 96
    %v516 = vpop.permute.xlu0 %515
    %v518 = vsel %vm429, %v516, 0
    %520 = vmatprep.subr.bf16.mxu0 0
    %521 = vmatpush1.bf16.msra.mxu0 0
    %522 = vmatprep.subr.bf16.mxu0 0
    %523 = vmatpush1.bf16.msra.mxu0 0
    %524 = vmatprep.subr.bf16.mxu0 0
    %525 = vmatpush1.bf16.msra.mxu0 0
    %526 = vmatprep.subr.bf16.mxu0 0
    %527 = vmatpush1.bf16.msra.mxu0 0
    %528 = vmatprep.subr.bf16.mxu0 0
    %529 = vmatpush1.bf16.msra.mxu0 0
    %530 = vmatprep.subr.bf16.mxu0 0
    %531 = vmatpush1.bf16.msra.mxu0 0
    %532 = vmatprep.subr.bf16.mxu0 0
    %533 = vmatpush1.bf16.msra.mxu0 %v426
    %534 = vmatprep.subr.bf16.mxu0 0
    %535 = vmatpush1.bf16.msra.mxu0 %v425
    %536 = vmatprep.subr.bf16.mxu0 0
    %537 = vmatpush2.bf16.msra.mxu0 0
    %538 = vmatprep.subr.bf16.mxu0 0
    %539 = vmatpush2.bf16.msra.mxu0 0
    %540 = vmatprep.subr.bf16.mxu0 0
    %541 = vmatpush2.bf16.msra.mxu0 0
    %542 = vmatprep.subr.bf16.mxu0 0
    %543 = vmatpush2.bf16.msra.mxu0 0
    %544 = vmatprep.subr.bf16.mxu0 0
    %545 = vmatpush2.bf16.msra.mxu0 0
    %546 = vmatprep.subr.bf16.mxu0 0
    %547 = vmatpush2.bf16.msra.mxu0 0
    %548 = vmatprep.subr.bf16.mxu0 0
    %549 = vmatpush2.bf16.msra.mxu0 0
    %550 = vmatprep.subr.bf16.mxu0 0
    %551 = vmatpush2.bf16.msra.mxu0 0
    %552 = vmatprep.mubr.bf16.mxu0 0
    %553 = vmatmul.mubr.bf16.gmra.mxu0 %v518
    %v554 = vpop.f32.mrf.mxu0
    %v555 = vadd.f32 %v415, %v554
    %v556 = vpop.f32.mrf.mxu0
    %v557 = vpop.f32.mrf.mxu0
    %v558 = vpop.f32.mrf.mxu0
    %559 = vdwg.mxu0
    %v560 = vadd.f32 %v514, %v555
    %v561 = vxor.u32 %v560, 2147483648
    %v562 = vmul.f32 %v561, 1.442695
    %v563 = vpow.pop %v562
    %v564 = vadd.f32 %v563, 1.0
    %v565 = vrcp.pop %v564
    %v566 = vmul.f32 1.0, %v565
    %568 = vrot.lane.b32.xlu0 %v555, 64
    %v569 = vpop.permute.xlu0 %568
    %v571 = vmul.f32 %v566, %v569
    %573 = vrot.lane.b32.xlu0 %v571, 64
    %v574 = vpop.permute.xlu0 %573
    %v576 = vadd.f32 %v514, %v574
    %v577 = vtanh.pop %v576
    %v578 = vsub.f32 1.0, %v566
    %580 = vrot.lane.b32.xlu0 %v577, 96
    %v581 = vpop.permute.xlu0 %580
    %v583 = vmul.f32 %v578, %v581
    %v584 = vmul.f32 %v566, %v498
    %v585 = vadd.f32 %v583, %v584
    %v586 = vpack.c.bf16 %v585, %v585
    %v588 = vunpack.c.l.b16 %v586
    %v589 = vpack.c.b16 %v588, %v588
    %v590 = vrot.slane %v589, 7
    %591 = vrot.lane.b32.xlu0 %v590, 96
    %v592 = vpop.permute.xlu0 %591
    %vm594 = vcmask 123905
    %595 = vst.msk [vmem:[#allocation3] sm:$0x2] %vm594, %v592
    %v596 = vrot.slane %v589, 6
    %597 = vrot.lane.b32.xlu0 %v596, 96
    %v598 = vpop.permute.xlu0 %597
    %vm600 = vcmask 256130
    %601 = vst.msk [vmem:[#allocation3 + $0x14] sm:$0x4] %vm600, %v598
    %v602 = vld [vmem:[#allocation2 + $0x4] sm:$0x3]
    %603 = vrot.lane.b32.xlu0 %v586, 96
    %v604 = vpop.permute.xlu0 %603
    %v606 = vsel %vm429, %v604, 0
    %608 = vmatprep.subr.bf16.mxu0 0
    %609 = vmatpush1.bf16.msra.mxu0 0
    %610 = vmatprep.subr.bf16.mxu0 0
    %611 = vmatpush1.bf16.msra.mxu0 0
    %612 = vmatprep.subr.bf16.mxu0 0
    %613 = vmatpush1.bf16.msra.mxu0 0
    %614 = vmatprep.subr.bf16.mxu0 0
    %615 = vmatpush1.bf16.msra.mxu0 0
    %616 = vmatprep.subr.bf16.mxu0 0
    %617 = vmatpush1.bf16.msra.mxu0 0
    %618 = vmatprep.subr.bf16.mxu0 0
    %619 = vmatpush1.bf16.msra.mxu0 0
    %620 = vmatprep.subr.bf16.mxu0 0
    %621 = vmatpush1.bf16.msra.mxu0 %v426
    %622 = vmatprep.subr.bf16.mxu0 0
    %623 = vmatpush1.bf16.msra.mxu0 %v425
    %624 = vmatprep.subr.bf16.mxu0 0
    %625 = vmatpush2.bf16.msra.mxu0 0
    %626 = vmatprep.subr.bf16.mxu0 0
    %627 = vmatpush2.bf16.msra.mxu0 0
    %628 = vmatprep.subr.bf16.mxu0 0
    %629 = vmatpush2.bf16.msra.mxu0 0
    %630 = vmatprep.subr.bf16.mxu0 0
    %631 = vmatpush2.bf16.msra.mxu0 0
    %632 = vmatprep.subr.bf16.mxu0 0
    %633 = vmatpush2.bf16.msra.mxu0 0
    %634 = vmatprep.subr.bf16.mxu0 0
    %635 = vmatpush2.bf16.msra.mxu0 0
    %636 = vmatprep.subr.bf16.mxu0 0
    %637 = vmatpush2.bf16.msra.mxu0 0
    %638 = vmatprep.subr.bf16.mxu0 0
    %639 = vmatpush2.bf16.msra.mxu0 0
    %640 = vmatprep.mubr.bf16.mxu0 0
    %641 = vmatmul.mubr.bf16.gmra.mxu0 %v606
    %v642 = vpop.f32.mrf.mxu0
    %v643 = vadd.f32 %v415, %v642
    %v644 = vpop.f32.mrf.mxu0
    %v645 = vpop.f32.mrf.mxu0
    %v646 = vpop.f32.mrf.mxu0
    %647 = vdwg.mxu0
    %v648 = vadd.f32 %v602, %v643
    %v649 = vxor.u32 %v648, 2147483648
    %v650 = vmul.f32 %v649, 1.442695
    %v651 = vpow.pop %v650
    %v652 = vadd.f32 %v651, 1.0
    %v653 = vrcp.pop %v652
    %v654 = vmul.f32 1.0, %v653
    %656 = vrot.lane.b32.xlu0 %v643, 64
    %v657 = vpop.permute.xlu0 %656
    %v659 = vmul.f32 %v654, %v657
    %661 = vrot.lane.b32.xlu0 %v659, 64
    %v662 = vpop.permute.xlu0 %661
    %v664 = vadd.f32 %v602, %v662
    %v665 = vtanh.pop %v664
    %v666 = vsub.f32 1.0, %v654
    %668 = vrot.lane.b32.xlu0 %v665, 96
    %v669 = vpop.permute.xlu0 %668
    %v671 = vmul.f32 %v666, %v669
    %v672 = vmul.f32 %v654, %v585
    %v673 = vadd.f32 %v671, %v672
    %v674 = vpack.c.bf16 %v673, %v673
    %v676 = vunpack.c.l.b16 %v674
    %v677 = vpack.c.b16 %v676, %v676
    %v678 = vrot.slane %v677, 6
    %679 = vrot.lane.b32.xlu0 %v678, 96
    %v680 = vpop.permute.xlu0 %679
    %vm682 = vcmask 124930
    %683 = vst.msk [vmem:[#allocation3] sm:$0x4] %vm682, %v680
    %v684 = vrot.slane %v677, 7
    %685 = vrot.lane.b32.xlu0 %v684, 96
    %v686 = vpop.permute.xlu0 %685
    %vm688 = vcmask 255105
    %689 = vst.msk [vmem:[#allocation3 + $0x14] sm:$0x2] %vm688, %v686
    %v690 = vld [vmem:[#allocation2 + $0x6] sm:$0x3]
    %691 = vrot.lane.b32.xlu0 %v674, 96
    %v692 = vpop.permute.xlu0 %691
    %v694 = vsel %vm429, %v692, 0
    %696 = vmatprep.subr.bf16.mxu0 0
    %697 = vmatpush1.bf16.msra.mxu0 0
    %698 = vmatprep.subr.bf16.mxu0 0
    %699 = vmatpush1.bf16.msra.mxu0 0
    %700 = vmatprep.subr.bf16.mxu0 0
    %701 = vmatpush1.bf16.msra.mxu0 0
    %702 = vmatprep.subr.bf16.mxu0 0
    %703 = vmatpush1.bf16.msra.mxu0 0
    %704 = vmatprep.subr.bf16.mxu0 0
    %705 = vmatpush1.bf16.msra.mxu0 0
    %706 = vmatprep.subr.bf16.mxu0 0
    %707 = vmatpush1.bf16.msra.mxu0 0
    %708 = vmatprep.subr.bf16.mxu0 0
    %709 = vmatpush1.bf16.msra.mxu0 %v426
    %710 = vmatprep.subr.bf16.mxu0 0
    %711 = vmatpush1.bf16.msra.mxu0 %v425
    %712 = vmatprep.subr.bf16.mxu0 0
    %713 = vmatpush2.bf16.msra.mxu0 0
    %714 = vmatprep.subr.bf16.mxu0 0
    %715 = vmatpush2.bf16.msra.mxu0 0
    %716 = vmatprep.subr.bf16.mxu0 0
    %717 = vmatpush2.bf16.msra.mxu0 0
    %718 = vmatprep.subr.bf16.mxu0 0
    %719 = vmatpush2.bf16.msra.mxu0 0
    %720 = vmatprep.subr.bf16.mxu0 0
    %721 = vmatpush2.bf16.msra.mxu0 0
    %722 = vmatprep.subr.bf16.mxu0 0
    %723 = vmatpush2.bf16.msra.mxu0 0
    %724 = vmatprep.subr.bf16.mxu0 0
    %725 = vmatpush2.bf16.msra.mxu0 0
    %726 = vmatprep.subr.bf16.mxu0 0
    %727 = vmatpush2.bf16.msra.mxu0 0
    %728 = vmatprep.mubr.bf16.mxu0 0
    %729 = vmatmul.mubr.bf16.gmra.mxu0 %v694
    %v730 = vpop.f32.mrf.mxu0
    %v731 = vadd.f32 %v415, %v730
    %v732 = vpop.f32.mrf.mxu0
    %v733 = vpop.f32.mrf.mxu0
    %v734 = vpop.f32.mrf.mxu0
    %735 = vdwg.mxu0
    %v736 = vadd.f32 %v690, %v731
    %v737 = vxor.u32 %v736, 2147483648
    %v738 = vmul.f32 %v737, 1.442695
    %v739 = vpow.pop %v738
    %v740 = vadd.f32 %v739, 1.0
    %v741 = vrcp.pop %v740
    %v742 = vmul.f32 1.0, %v741
    %744 = vrot.lane.b32.xlu0 %v731, 64
    %v745 = vpop.permute.xlu0 %744
    %v747 = vmul.f32 %v742, %v745
    %749 = vrot.lane.b32.xlu0 %v747, 64
    %v750 = vpop.permute.xlu0 %749
    %v752 = vadd.f32 %v690, %v750
    %v753 = vtanh.pop %v752
    %v754 = vsub.f32 1.0, %v742
    %756 = vrot.lane.b32.xlu0 %v753, 96
    %v757 = vpop.permute.xlu0 %756
    %v759 = vmul.f32 %v754, %v757
    %v760 = vmul.f32 %v742, %v673
    %v761 = vadd.f32 %v759, %v760
    %v762 = vpack.c.bf16 %v761, %v761
    %v764 = vunpack.c.l.b16 %v762
    %v765 = vpack.c.b16 %v764, %v764
    %v766 = vrot.slane %v765, 5
    %767 = vrot.lane.b32.xlu0 %v766, 96
    %v768 = vpop.permute.xlu0 %767
    %vm770 = vcmask 125955
    %771 = vst.msk [vmem:[#allocation3] sm:$0x8] %vm770, %v768
    %772 = vrot.lane.b32.xlu0 %v765, 96
    %v773 = vpop.permute.xlu0 %772
    %vm775 = vcmask 254080
    %776 = vst.msk [vmem:[#allocation3 + $0x14] sm:$0x1] %vm775, %v773
    %v777 = vld [vmem:[#allocation2 + $0x8] sm:$0x3]
    %778 = vrot.lane.b32.xlu0 %v762, 96
    %v779 = vpop.permute.xlu0 %778
    %v781 = vsel %vm429, %v779, 0
    %783 = vmatprep.subr.bf16.mxu0 0
    %784 = vmatpush1.bf16.msra.mxu0 0
    %785 = vmatprep.subr.bf16.mxu0 0
    %786 = vmatpush1.bf16.msra.mxu0 0
    %787 = vmatprep.subr.bf16.mxu0 0
    %788 = vmatpush1.bf16.msra.mxu0 0
    %789 = vmatprep.subr.bf16.mxu0 0
    %790 = vmatpush1.bf16.msra.mxu0 0
    %791 = vmatprep.subr.bf16.mxu0 0
    %792 = vmatpush1.bf16.msra.mxu0 0
    %793 = vmatprep.subr.bf16.mxu0 0
    %794 = vmatpush1.bf16.msra.mxu0 0
    %795 = vmatprep.subr.bf16.mxu0 0
    %796 = vmatpush1.bf16.msra.mxu0 %v426
    %797 = vmatprep.subr.bf16.mxu0 0
    %798 = vmatpush1.bf16.msra.mxu0 %v425
    %799 = vmatprep.subr.bf16.mxu0 0
    %800 = vmatpush2.bf16.msra.mxu0 0
    %801 = vmatprep.subr.bf16.mxu0 0
    %802 = vmatpush2.bf16.msra.mxu0 0
    %803 = vmatprep.subr.bf16.mxu0 0
    %804 = vmatpush2.bf16.msra.mxu0 0
    %805 = vmatprep.subr.bf16.mxu0 0
    %806 = vmatpush2.bf16.msra.mxu0 0
    %807 = vmatprep.subr.bf16.mxu0 0
    %808 = vmatpush2.bf16.msra.mxu0 0
    %809 = vmatprep.subr.bf16.mxu0 0
    %810 = vmatpush2.bf16.msra.mxu0 0
    %811 = vmatprep.subr.bf16.mxu0 0
    %812 = vmatpush2.bf16.msra.mxu0 0
    %813 = vmatprep.subr.bf16.mxu0 0
    %814 = vmatpush2.bf16.msra.mxu0 0
    %815 = vmatprep.mubr.bf16.mxu0 0
    %816 = vmatmul.mubr.bf16.gmra.mxu0 %v781
    %v817 = vpop.f32.mrf.mxu0
    %v818 = vadd.f32 %v415, %v817
    %v819 = vpop.f32.mrf.mxu0
    %v820 = vpop.f32.mrf.mxu0
    %v821 = vpop.f32.mrf.mxu0
    %822 = vdwg.mxu0
    %v823 = vadd.f32 %v777, %v818
    %v824 = vxor.u32 %v823, 2147483648
    %v825 = vmul.f32 %v824, 1.442695
    %v826 = vpow.pop %v825
    %v827 = vadd.f32 %v826, 1.0
    %v828 = vrcp.pop %v827
    %v829 = vmul.f32 1.0, %v828
    %831 = vrot.lane.b32.xlu0 %v818, 64
    %v832 = vpop.permute.xlu0 %831
    %v834 = vmul.f32 %v829, %v832
    %836 = vrot.lane.b32.xlu0 %v834, 64
    %v837 = vpop.permute.xlu0 %836
    %v839 = vadd.f32 %v777, %v837
    %v840 = vtanh.pop %v839
    %v841 = vsub.f32 1.0, %v829
    %843 = vrot.lane.b32.xlu0 %v840, 96
    %v844 = vpop.permute.xlu0 %843
    %v846 = vmul.f32 %v841, %v844
    %v847 = vmul.f32 %v829, %v761
    %v848 = vadd.f32 %v846, %v847
    %v849 = vpack.c.bf16 %v848, %v848
    %v851 = vunpack.c.l.b16 %v849
    %v852 = vpack.c.b16 %v851, %v851
    %853 = vrot.lane.b32.xlu0 %v852, 96
    %v854 = vpop.permute.xlu0 %853
    %856 = vst.msk [vmem:[#allocation3 + $0x4] sm:$0x1] %vm506, %v854
    %v857 = vrot.slane %v852, 5
    %858 = vrot.lane.b32.xlu0 %v857, 96
    %v859 = vpop.permute.xlu0 %858
    %861 = vst.msk [vmem:[#allocation3 + $0x10] sm:$0x8] %vm512, %v859
    %v862 = vld [vmem:[#allocation2 + $0xa] sm:$0x3]
    %863 = vrot.lane.b32.xlu0 %v849, 96
    %v864 = vpop.permute.xlu0 %863
    %v866 = vsel %vm429, %v864, 0
    %868 = vmatprep.subr.bf16.mxu0 0
    %869 = vmatpush1.bf16.msra.mxu0 0
    %870 = vmatprep.subr.bf16.mxu0 0
    %871 = vmatpush1.bf16.msra.mxu0 0
    %872 = vmatprep.subr.bf16.mxu0 0
    %873 = vmatpush1.bf16.msra.mxu0 0
    %874 = vmatprep.subr.bf16.mxu0 0
    %875 = vmatpush1.bf16.msra.mxu0 0
    %876 = vmatprep.subr.bf16.mxu0 0
    %877 = vmatpush1.bf16.msra.mxu0 0
    %878 = vmatprep.subr.bf16.mxu0 0
    %879 = vmatpush1.bf16.msra.mxu0 0
    %880 = vmatprep.subr.bf16.mxu0 0
    %881 = vmatpush1.bf16.msra.mxu0 %v426
    %882 = vmatprep.subr.bf16.mxu0 0
    %883 = vmatpush1.bf16.msra.mxu0 %v425
    %884 = vmatprep.subr.bf16.mxu0 0
    %885 = vmatpush2.bf16.msra.mxu0 0
    %886 = vmatprep.subr.bf16.mxu0 0
    %887 = vmatpush2.bf16.msra.mxu0 0
    %888 = vmatprep.subr.bf16.mxu0 0
    %889 = vmatpush2.bf16.msra.mxu0 0
    %890 = vmatprep.subr.bf16.mxu0 0
    %891 = vmatpush2.bf16.msra.mxu0 0
    %892 = vmatprep.subr.bf16.mxu0 0
    %893 = vmatpush2.bf16.msra.mxu0 0
    %894 = vmatprep.subr.bf16.mxu0 0
    %895 = vmatpush2.bf16.msra.mxu0 0
    %896 = vmatprep.subr.bf16.mxu0 0
    %897 = vmatpush2.bf16.msra.mxu0 0
    %898 = vmatprep.subr.bf16.mxu0 0
    %899 = vmatpush2.bf16.msra.mxu0 0
    %900 = vmatprep.mubr.bf16.mxu0 0
    %901 = vmatmul.mubr.bf16.gmra.mxu0 %v866
    %v902 = vpop.f32.mrf.mxu0
    %v903 = vadd.f32 %v415, %v902
    %v904 = vpop.f32.mrf.mxu0
    %v905 = vpop.f32.mrf.mxu0
    %v906 = vpop.f32.mrf.mxu0
    %907 = vdwg.mxu0
    %v908 = vadd.f32 %v862, %v903
    %v909 = vxor.u32 %v908, 2147483648
    %v910 = vmul.f32 %v909, 1.442695
    %v911 = vpow.pop %v910
    %v912 = vadd.f32 %v911, 1.0
    %v913 = vrcp.pop %v912
    %v914 = vmul.f32 1.0, %v913
    %916 = vrot.lane.b32.xlu0 %v903, 64
    %v917 = vpop.permute.xlu0 %916
    %v919 = vmul.f32 %v914, %v917
    %921 = vrot.lane.b32.xlu0 %v919, 64
    %v922 = vpop.permute.xlu0 %921
    %v924 = vadd.f32 %v862, %v922
    %v925 = vtanh.pop %v924
    %v926 = vsub.f32 1.0, %v914
    %928 = vrot.lane.b32.xlu0 %v925, 96
    %v929 = vpop.permute.xlu0 %928
    %v931 = vmul.f32 %v926, %v929
    %v932 = vmul.f32 %v914, %v848
    %v933 = vadd.f32 %v931, %v932
    %v934 = vpack.c.bf16 %v933, %v933
    %v936 = vunpack.c.l.b16 %v934
    %v937 = vpack.c.b16 %v936, %v936
    %v938 = vrot.slane %v937, 7
    %939 = vrot.lane.b32.xlu0 %v938, 96
    %v940 = vpop.permute.xlu0 %939
    %942 = vst.msk [vmem:[#allocation3 + $0x4] sm:$0x2] %vm594, %v940
    %v943 = vrot.slane %v937, 6
    %944 = vrot.lane.b32.xlu0 %v943, 96
    %v945 = vpop.permute.xlu0 %944
    %947 = vst.msk [vmem:[#allocation3 + $0x10] sm:$0x4] %vm600, %v945
    %v948 = vld [vmem:[#allocation2 + $0xc] sm:$0x3]
    %949 = vrot.lane.b32.xlu0 %v934, 96
    %v950 = vpop.permute.xlu0 %949
    %v952 = vsel %vm429, %v950, 0
    %954 = vmatprep.subr.bf16.mxu0 0
    %955 = vmatpush1.bf16.msra.mxu0 0
    %956 = vmatprep.subr.bf16.mxu0 0
    %957 = vmatpush1.bf16.msra.mxu0 0
    %958 = vmatprep.subr.bf16.mxu0 0
    %959 = vmatpush1.bf16.msra.mxu0 0
    %960 = vmatprep.subr.bf16.mxu0 0
    %961 = vmatpush1.bf16.msra.mxu0 0
    %962 = vmatprep.subr.bf16.mxu0 0
    %963 = vmatpush1.bf16.msra.mxu0 0
    %964 = vmatprep.subr.bf16.mxu0 0
    %965 = vmatpush1.bf16.msra.mxu0 0
    %966 = vmatprep.subr.bf16.mxu0 0
    %967 = vmatpush1.bf16.msra.mxu0 %v426
    %968 = vmatprep.subr.bf16.mxu0 0
    %969 = vmatpush1.bf16.msra.mxu0 %v425
    %970 = vmatprep.subr.bf16.mxu0 0
    %971 = vmatpush2.bf16.msra.mxu0 0
    %972 = vmatprep.subr.bf16.mxu0 0
    %973 = vmatpush2.bf16.msra.mxu0 0
    %974 = vmatprep.subr.bf16.mxu0 0
    %975 = vmatpush2.bf16.msra.mxu0 0
    %976 = vmatprep.subr.bf16.mxu0 0
    %977 = vmatpush2.bf16.msra.mxu0 0
    %978 = vmatprep.subr.bf16.mxu0 0
    %979 = vmatpush2.bf16.msra.mxu0 0
    %980 = vmatprep.subr.bf16.mxu0 0
    %981 = vmatpush2.bf16.msra.mxu0 0
    %982 = vmatprep.subr.bf16.mxu0 0
    %983 = vmatpush2.bf16.msra.mxu0 0
    %984 = vmatprep.subr.bf16.mxu0 0
    %985 = vmatpush2.bf16.msra.mxu0 0
    %986 = vmatprep.mubr.bf16.mxu0 0
    %987 = vmatmul.mubr.bf16.gmra.mxu0 %v952
    %v988 = vpop.f32.mrf.mxu0
    %v989 = vadd.f32 %v415, %v988
    %v990 = vpop.f32.mrf.mxu0
    %v991 = vpop.f32.mrf.mxu0
    %v992 = vpop.f32.mrf.mxu0
    %993 = vdwg.mxu0
    %v994 = vadd.f32 %v948, %v989
    %v995 = vxor.u32 %v994, 2147483648
    %v996 = vmul.f32 %v995, 1.442695
    %v997 = vpow.pop %v996
    %v998 = vadd.f32 %v997, 1.0
    %v999 = vrcp.pop %v998
    %v1000 = vmul.f32 1.0, %v999
    %1002 = vrot.lane.b32.xlu0 %v989, 64
    %v1003 = vpop.permute.xlu0 %1002
    %v1005 = vmul.f32 %v1000, %v1003
    %1007 = vrot.lane.b32.xlu0 %v1005, 64
    %v1008 = vpop.permute.xlu0 %1007
    %v1010 = vadd.f32 %v948, %v1008
    %v1011 = vtanh.pop %v1010
    %v1012 = vsub.f32 1.0, %v1000
    %1014 = vrot.lane.b32.xlu0 %v1011, 96
    %v1015 = vpop.permute.xlu0 %1014
    %v1017 = vmul.f32 %v1012, %v1015
    %v1018 = vmul.f32 %v1000, %v933
    %v1019 = vadd.f32 %v1017, %v1018
    %v1020 = vpack.c.bf16 %v1019, %v1019
    %v1022 = vunpack.c.l.b16 %v1020
    %v1023 = vpack.c.b16 %v1022, %v1022
    %v1024 = vrot.slane %v1023, 6
    %1025 = vrot.lane.b32.xlu0 %v1024, 96
    %v1026 = vpop.permute.xlu0 %1025
    %1028 = vst.msk [vmem:[#allocation3 + $0x4] sm:$0x4] %vm682, %v1026
    %v1029 = vrot.slane %v1023, 7
    %1030 = vrot.lane.b32.xlu0 %v1029, 96
    %v1031 = vpop.permute.xlu0 %1030
    %1033 = vst.msk [vmem:[#allocation3 + $0x10] sm:$0x2] %vm688, %v1031
    %v1034 = vld [vmem:[#allocation2 + $0xe] sm:$0x3]
    %1035 = vrot.lane.b32.xlu0 %v1020, 96
    %v1036 = vpop.permute.xlu0 %1035
    %v1038 = vsel %vm429, %v1036, 0
    %1040 = vmatprep.subr.bf16.mxu0 0
    %1041 = vmatpush1.bf16.msra.mxu0 0
    %1042 = vmatprep.subr.bf16.mxu0 0
    %1043 = vmatpush1.bf16.msra.mxu0 0
    %1044 = vmatprep.subr.bf16.mxu0 0
    %1045 = vmatpush1.bf16.msra.mxu0 0
    %1046 = vmatprep.subr.bf16.mxu0 0
    %1047 = vmatpush1.bf16.msra.mxu0 0
    %1048 = vmatprep.subr.bf16.mxu0 0
    %1049 = vmatpush1.bf16.msra.mxu0 0
    %1050 = vmatprep.subr.bf16.mxu0 0
    %1051 = vmatpush1.bf16.msra.mxu0 0
    %1052 = vmatprep.subr.bf16.mxu0 0
    %1053 = vmatpush1.bf16.msra.mxu0 %v426
    %1054 = vmatprep.subr.bf16.mxu0 0
    %1055 = vmatpush1.bf16.msra.mxu0 %v425
    %1056 = vmatprep.subr.bf16.mxu0 0
    %1057 = vmatpush2.bf16.msra.mxu0 0
    %1058 = vmatprep.subr.bf16.mxu0 0
    %1059 = vmatpush2.bf16.msra.mxu0 0
    %1060 = vmatprep.subr.bf16.mxu0 0
    %1061 = vmatpush2.bf16.msra.mxu0 0
    %1062 = vmatprep.subr.bf16.mxu0 0
    %1063 = vmatpush2.bf16.msra.mxu0 0
    %1064 = vmatprep.subr.bf16.mxu0 0
    %1065 = vmatpush2.bf16.msra.mxu0 0
    %1066 = vmatprep.subr.bf16.mxu0 0
    %1067 = vmatpush2.bf16.msra.mxu0 0
    %1068 = vmatprep.subr.bf16.mxu0 0
    %1069 = vmatpush2.bf16.msra.mxu0 0
    %1070 = vmatprep.subr.bf16.mxu0 0
    %1071 = vmatpush2.bf16.msra.mxu0 0
    %1072 = vmatprep.mubr.bf16.mxu0 0
    %1073 = vmatmul.mubr.bf16.gmra.mxu0 %v1038
    %v1074 = vpop.f32.mrf.mxu0
    %v1075 = vadd.f32 %v415, %v1074
    %v1076 = vpop.f32.mrf.mxu0
    %v1077 = vpop.f32.mrf.mxu0
    %v1078 = vpop.f32.mrf.mxu0
    %1079 = vdwg.mxu0
    %v1080 = vadd.f32 %v1034, %v1075
    %v1081 = vxor.u32 %v1080, 2147483648
    %v1082 = vmul.f32 %v1081, 1.442695
    %v1083 = vpow.pop %v1082
    %v1084 = vadd.f32 %v1083, 1.0
    %v1085 = vrcp.pop %v1084
    %v1086 = vmul.f32 1.0, %v1085
    %1088 = vrot.lane.b32.xlu0 %v1075, 64
    %v1089 = vpop.permute.xlu0 %1088
    %v1091 = vmul.f32 %v1086, %v1089
    %1093 = vrot.lane.b32.xlu0 %v1091, 64
    %v1094 = vpop.permute.xlu0 %1093
    %v1096 = vadd.f32 %v1034, %v1094
    %v1097 = vtanh.pop %v1096
    %v1098 = vsub.f32 1.0, %v1086
    %1100 = vrot.lane.b32.xlu0 %v1097, 96
    %v1101 = vpop.permute.xlu0 %1100
    %v1103 = vmul.f32 %v1098, %v1101
    %v1104 = vmul.f32 %v1086, %v1019
    %v1105 = vadd.f32 %v1103, %v1104
    %v1106 = vpack.c.bf16 %v1105, %v1105
    %v1108 = vunpack.c.l.b16 %v1106
    %v1109 = vpack.c.b16 %v1108, %v1108
    %v1110 = vrot.slane %v1109, 5
    %1111 = vrot.lane.b32.xlu0 %v1110, 96
    %v1112 = vpop.permute.xlu0 %1111
    %1114 = vst.msk [vmem:[#allocation3 + $0x4] sm:$0x8] %vm770, %v1112
    %1115 = vrot.lane.b32.xlu0 %v1109, 96
    %v1116 = vpop.permute.xlu0 %1115
    %1118 = vst.msk [vmem:[#allocation3 + $0x10] sm:$0x1] %vm775, %v1116
    %v1119 = vld [vmem:[#allocation2 + $0x10] sm:$0x3]
    %1120 = vrot.lane.b32.xlu0 %v1106, 96
    %v1121 = vpop.permute.xlu0 %1120
    %v1123 = vsel %vm429, %v1121, 0
    %1125 = vmatprep.subr.bf16.mxu0 0
    %1126 = vmatpush1.bf16.msra.mxu0 0
    %1127 = vmatprep.subr.bf16.mxu0 0
    %1128 = vmatpush1.bf16.msra.mxu0 0
    %1129 = vmatprep.subr.bf16.mxu0 0
    %1130 = vmatpush1.bf16.msra.mxu0 0
    %1131 = vmatprep.subr.bf16.mxu0 0
    %1132 = vmatpush1.bf16.msra.mxu0 0
    %1133 = vmatprep.subr.bf16.mxu0 0
    %1134 = vmatpush1.bf16.msra.mxu0 0
    %1135 = vmatprep.subr.bf16.mxu0 0
    %1136 = vmatpush1.bf16.msra.mxu0 0
    %1137 = vmatprep.subr.bf16.mxu0 0
    %1138 = vmatpush1.bf16.msra.mxu0 %v426
    %1139 = vmatprep.subr.bf16.mxu0 0
    %1140 = vmatpush1.bf16.msra.mxu0 %v425
    %1141 = vmatprep.subr.bf16.mxu0 0
    %1142 = vmatpush2.bf16.msra.mxu0 0
    %1143 = vmatprep.subr.bf16.mxu0 0
    %1144 = vmatpush2.bf16.msra.mxu0 0
    %1145 = vmatprep.subr.bf16.mxu0 0
    %1146 = vmatpush2.bf16.msra.mxu0 0
    %1147 = vmatprep.subr.bf16.mxu0 0
    %1148 = vmatpush2.bf16.msra.mxu0 0
    %1149 = vmatprep.subr.bf16.mxu0 0
    %1150 = vmatpush2.bf16.msra.mxu0 0
    %1151 = vmatprep.subr.bf16.mxu0 0
    %1152 = vmatpush2.bf16.msra.mxu0 0
    %1153 = vmatprep.subr.bf16.mxu0 0
    %1154 = vmatpush2.bf16.msra.mxu0 0
    %1155 = vmatprep.subr.bf16.mxu0 0
    %1156 = vmatpush2.bf16.msra.mxu0 0
    %1157 = vmatprep.mubr.bf16.mxu0 0
    %1158 = vmatmul.mubr.bf16.gmra.mxu0 %v1123
    %v1159 = vpop.f32.mrf.mxu0
    %v1160 = vadd.f32 %v415, %v1159
    %v1161 = vpop.f32.mrf.mxu0
    %v1162 = vpop.f32.mrf.mxu0
    %v1163 = vpop.f32.mrf.mxu0
    %1164 = vdwg.mxu0
    %v1165 = vadd.f32 %v1119, %v1160
    %v1166 = vxor.u32 %v1165, 2147483648
    %v1167 = vmul.f32 %v1166, 1.442695
    %v1168 = vpow.pop %v1167
    %v1169 = vadd.f32 %v1168, 1.0
    %v1170 = vrcp.pop %v1169
    %v1171 = vmul.f32 1.0, %v1170
    %1173 = vrot.lane.b32.xlu0 %v1160, 64
    %v1174 = vpop.permute.xlu0 %1173
    %v1176 = vmul.f32 %v1171, %v1174
    %1178 = vrot.lane.b32.xlu0 %v1176, 64
    %v1179 = vpop.permute.xlu0 %1178
    %v1181 = vadd.f32 %v1119, %v1179
    %v1182 = vtanh.pop %v1181
    %v1183 = vsub.f32 1.0, %v1171
    %1185 = vrot.lane.b32.xlu0 %v1182, 96
    %v1186 = vpop.permute.xlu0 %1185
    %v1188 = vmul.f32 %v1183, %v1186
    %v1189 = vmul.f32 %v1171, %v1105
    %v1190 = vadd.f32 %v1188, %v1189
    %v1191 = vpack.c.bf16 %v1190, %v1190
    %v1193 = vunpack.c.l.b16 %v1191
    %v1194 = vpack.c.b16 %v1193, %v1193
    %1195 = vrot.lane.b32.xlu0 %v1194, 96
    %v1196 = vpop.permute.xlu0 %1195
    %1198 = vst.msk [vmem:[#allocation3 + $0x8] sm:$0x1] %vm506, %v1196
    %v1199 = vrot.slane %v1194, 5
    %1200 = vrot.lane.b32.xlu0 %v1199, 96
    %v1201 = vpop.permute.xlu0 %1200
    %1203 = vst.msk [vmem:[#allocation3 + $0xc] sm:$0x8] %vm512, %v1201
    %v1204 = vld [vmem:[#allocation2 + $0x12] sm:$0x3]
    %1205 = vrot.lane.b32.xlu0 %v1191, 96
    %v1206 = vpop.permute.xlu0 %1205
    %v1208 = vsel %vm429, %v1206, 0
    %1210 = vmatprep.subr.bf16.mxu0 0
    %1211 = vmatpush1.bf16.msra.mxu0 0
    %1212 = vmatprep.subr.bf16.mxu0 0
    %1213 = vmatpush1.bf16.msra.mxu0 0
    %1214 = vmatprep.subr.bf16.mxu0 0
    %1215 = vmatpush1.bf16.msra.mxu0 0
    %1216 = vmatprep.subr.bf16.mxu0 0
    %1217 = vmatpush1.bf16.msra.mxu0 0
    %1218 = vmatprep.subr.bf16.mxu0 0
    %1219 = vmatpush1.bf16.msra.mxu0 0
    %1220 = vmatprep.subr.bf16.mxu0 0
    %1221 = vmatpush1.bf16.msra.mxu0 0
    %1222 = vmatprep.subr.bf16.mxu0 0
    %1223 = vmatpush1.bf16.msra.mxu0 %v426
    %1224 = vmatprep.subr.bf16.mxu0 0
    %1225 = vmatpush1.bf16.msra.mxu0 %v425
    %1226 = vmatprep.subr.bf16.mxu0 0
    %1227 = vmatpush2.bf16.msra.mxu0 0
    %1228 = vmatprep.subr.bf16.mxu0 0
    %1229 = vmatpush2.bf16.msra.mxu0 0
    %1230 = vmatprep.subr.bf16.mxu0 0
    %1231 = vmatpush2.bf16.msra.mxu0 0
    %1232 = vmatprep.subr.bf16.mxu0 0
    %1233 = vmatpush2.bf16.msra.mxu0 0
    %1234 = vmatprep.subr.bf16.mxu0 0
    %1235 = vmatpush2.bf16.msra.mxu0 0
    %1236 = vmatprep.subr.bf16.mxu0 0
    %1237 = vmatpush2.bf16.msra.mxu0 0
    %1238 = vmatprep.subr.bf16.mxu0 0
    %1239 = vmatpush2.bf16.msra.mxu0 0
    %1240 = vmatprep.subr.bf16.mxu0 0
    %1241 = vmatpush2.bf16.msra.mxu0 0
    %1242 = vmatprep.mubr.bf16.mxu0 0
    %1243 = vmatmul.mubr.bf16.gmra.mxu0 %v1208
    %v1244 = vpop.f32.mrf.mxu0
    %v1245 = vadd.f32 %v415, %v1244
    %v1246 = vpop.f32.mrf.mxu0
    %v1247 = vpop.f32.mrf.mxu0
    %v1248 = vpop.f32.mrf.mxu0
    %1249 = vdwg.mxu0
    %v1250 = vadd.f32 %v1204, %v1245
    %v1251 = vxor.u32 %v1250, 2147483648
    %v1252 = vmul.f32 %v1251, 1.442695
    %v1253 = vpow.pop %v1252
    %v1254 = vadd.f32 %v1253, 1.0
    %v1255 = vrcp.pop %v1254
    %v1256 = vmul.f32 1.0, %v1255
    %1258 = vrot.lane.b32.xlu0 %v1245, 64
    %v1259 = vpop.permute.xlu0 %1258
    %v1261 = vmul.f32 %v1256, %v1259
    %1263 = vrot.lane.b32.xlu0 %v1261, 64
    %v1264 = vpop.permute.xlu0 %1263
    %v1266 = vadd.f32 %v1204, %v1264
    %v1267 = vtanh.pop %v1266
    %v1268 = vsub.f32 1.0, %v1256
    %1270 = vrot.lane.b32.xlu0 %v1267, 96
    %v1271 = vpop.permute.xlu0 %1270
    %v1273 = vmul.f32 %v1268, %v1271
    %v1274 = vmul.f32 %v1256, %v1190
    %v1275 = vadd.f32 %v1273, %v1274
    %v1276 = vpack.c.bf16 %v1275, %v1275
    %v1278 = vunpack.c.l.b16 %v1276
    %v1279 = vpack.c.b16 %v1278, %v1278
    %v1280 = vrot.slane %v1279, 7
    %1281 = vrot.lane.b32.xlu0 %v1280, 96
    %v1282 = vpop.permute.xlu0 %1281
    %1284 = vst.msk [vmem:[#allocation3 + $0x8] sm:$0x2] %vm594, %v1282
    %v1285 = vrot.slane %v1279, 6
    %1286 = vrot.lane.b32.xlu0 %v1285, 96
    %v1287 = vpop.permute.xlu0 %1286
    %1289 = vst.msk [vmem:[#allocation3 + $0xc] sm:$0x4] %vm600, %v1287
    %v1290 = vld [vmem:[#allocation2 + $0x14] sm:$0x3]
    %1291 = vrot.lane.b32.xlu0 %v1276, 96
    %v1292 = vpop.permute.xlu0 %1291
    %v1294 = vsel %vm429, %v1292, 0
    %1296 = vmatprep.subr.bf16.mxu0 0
    %1297 = vmatpush1.bf16.msra.mxu0 0
    %1298 = vmatprep.subr.bf16.mxu0 0
    %1299 = vmatpush1.bf16.msra.mxu0 0
    %1300 = vmatprep.subr.bf16.mxu0 0
    %1301 = vmatpush1.bf16.msra.mxu0 0
    %1302 = vmatprep.subr.bf16.mxu0 0
    %1303 = vmatpush1.bf16.msra.mxu0 0
    %1304 = vmatprep.subr.bf16.mxu0 0
    %1305 = vmatpush1.bf16.msra.mxu0 0
    %1306 = vmatprep.subr.bf16.mxu0 0
    %1307 = vmatpush1.bf16.msra.mxu0 0
    %1308 = vmatprep.subr.bf16.mxu0 0
    %1309 = vmatpush1.bf16.msra.mxu0 %v426
    %1310 = vmatprep.subr.bf16.mxu0 0
    %1311 = vmatpush1.bf16.msra.mxu0 %v425
    %1312 = vmatprep.subr.bf16.mxu0 0
    %1313 = vmatpush2.bf16.msra.mxu0 0
    %1314 = vmatprep.subr.bf16.mxu0 0
    %1315 = vmatpush2.bf16.msra.mxu0 0
    %1316 = vmatprep.subr.bf16.mxu0 0
    %1317 = vmatpush2.bf16.msra.mxu0 0
    %1318 = vmatprep.subr.bf16.mxu0 0
    %1319 = vmatpush2.bf16.msra.mxu0 0
    %1320 = vmatprep.subr.bf16.mxu0 0
    %1321 = vmatpush2.bf16.msra.mxu0 0
    %1322 = vmatprep.subr.bf16.mxu0 0
    %1323 = vmatpush2.bf16.msra.mxu0 0
    %1324 = vmatprep.subr.bf16.mxu0 0
    %1325 = vmatpush2.bf16.msra.mxu0 0
    %1326 = vmatprep.subr.bf16.mxu0 0
    %1327 = vmatpush2.bf16.msra.mxu0 0
    %1328 = vmatprep.mubr.bf16.mxu0 0
    %1329 = vmatmul.mubr.bf16.gmra.mxu0 %v1294
    %v1330 = vpop.f32.mrf.mxu0
    %v1331 = vadd.f32 %v415, %v1330
    %v1332 = vpop.f32.mrf.mxu0
    %v1333 = vpop.f32.mrf.mxu0
    %v1334 = vpop.f32.mrf.mxu0
    %1335 = vdwg.mxu0
    %v1336 = vadd.f32 %v1290, %v1331
    %v1337 = vxor.u32 %v1336, 2147483648
    %v1338 = vmul.f32 %v1337, 1.442695
    %v1339 = vpow.pop %v1338
    %v1340 = vadd.f32 %v1339, 1.0
    %v1341 = vrcp.pop %v1340
    %v1342 = vmul.f32 1.0, %v1341
    %1344 = vrot.lane.b32.xlu0 %v1331, 64
    %v1345 = vpop.permute.xlu0 %1344
    %v1347 = vmul.f32 %v1342, %v1345
    %1349 = vrot.lane.b32.xlu0 %v1347, 64
    %v1350 = vpop.permute.xlu0 %1349
    %v1352 = vadd.f32 %v1290, %v1350
    %v1353 = vtanh.pop %v1352
    %v1354 = vsub.f32 1.0, %v1342
    %1356 = vrot.lane.b32.xlu0 %v1353, 96
    %v1357 = vpop.permute.xlu0 %1356
    %v1359 = vmul.f32 %v1354, %v1357
    %v1360 = vmul.f32 %v1342, %v1275
    %v1361 = vadd.f32 %v1359, %v1360
    %v1362 = vpack.c.bf16 %v1361, %v1361
    %v1364 = vunpack.c.l.b16 %v1362
    %v1365 = vpack.c.b16 %v1364, %v1364
    %v1366 = vrot.slane %v1365, 6
    %1367 = vrot.lane.b32.xlu0 %v1366, 96
    %v1368 = vpop.permute.xlu0 %1367
    %1370 = vst.msk [vmem:[#allocation3 + $0x8] sm:$0x4] %vm682, %v1368
    %v1371 = vrot.slane %v1365, 7
    %1372 = vrot.lane.b32.xlu0 %v1371, 96
    %v1373 = vpop.permute.xlu0 %1372
    %1375 = vst.msk [vmem:[#allocation3 + $0xc] sm:$0x2] %vm688, %v1373
    %v1376 = vld [vmem:[#allocation2 + $0x16] sm:$0x3]
    %1377 = vrot.lane.b32.xlu0 %v1362, 96
    %v1378 = vpop.permute.xlu0 %1377
    %v1380 = vsel %vm429, %v1378, 0
    %1382 = vmatprep.subr.bf16.mxu0 0
    %1383 = vmatpush1.bf16.msra.mxu0 0
    %1384 = vmatprep.subr.bf16.mxu0 0
    %1385 = vmatpush1.bf16.msra.mxu0 0
    %1386 = vmatprep.subr.bf16.mxu0 0
    %1387 = vmatpush1.bf16.msra.mxu0 0
    %1388 = vmatprep.subr.bf16.mxu0 0
    %1389 = vmatpush1.bf16.msra.mxu0 0
    %1390 = vmatprep.subr.bf16.mxu0 0
    %1391 = vmatpush1.bf16.msra.mxu0 0
    %1392 = vmatprep.subr.bf16.mxu0 0
    %1393 = vmatpush1.bf16.msra.mxu0 0
    %1394 = vmatprep.subr.bf16.mxu0 0
    %1395 = vmatpush1.bf16.msra.mxu0 %v426
    %1396 = vmatprep.subr.bf16.mxu0 0
    %1397 = vmatpush1.bf16.msra.mxu0 %v425
    %1398 = vmatprep.subr.bf16.mxu0 0
    %1399 = vmatpush2.bf16.msra.mxu0 0
    %1400 = vmatprep.subr.bf16.mxu0 0
    %1401 = vmatpush2.bf16.msra.mxu0 0
    %1402 = vmatprep.subr.bf16.mxu0 0
    %1403 = vmatpush2.bf16.msra.mxu0 0
    %1404 = vmatprep.subr.bf16.mxu0 0
    %1405 = vmatpush2.bf16.msra.mxu0 0
    %1406 = vmatprep.subr.bf16.mxu0 0
    %1407 = vmatpush2.bf16.msra.mxu0 0
    %1408 = vmatprep.subr.bf16.mxu0 0
    %1409 = vmatpush2.bf16.msra.mxu0 0
    %1410 = vmatprep.subr.bf16.mxu0 0
    %1411 = vmatpush2.bf16.msra.mxu0 0
    %1412 = vmatprep.subr.bf16.mxu0 0
    %1413 = vmatpush2.bf16.msra.mxu0 0
    %1414 = vmatprep.mubr.bf16.mxu0 0
    %1415 = vmatmul.mubr.bf16.gmra.mxu0 %v1380
    %v1416 = vpop.f32.mrf.mxu0
    %v1417 = vadd.f32 %v415, %v1416
    %v1418 = vpop.f32.mrf.mxu0
    %v1419 = vpop.f32.mrf.mxu0
    %v1420 = vpop.f32.mrf.mxu0
    %1421 = vdwg.mxu0
    %v1422 = vadd.f32 %v1376, %v1417
    %v1423 = vxor.u32 %v1422, 2147483648
    %v1424 = vmul.f32 %v1423, 1.442695
    %v1425 = vpow.pop %v1424
    %v1426 = vadd.f32 %v1425, 1.0
    %v1427 = vrcp.pop %v1426
    %v1428 = vmul.f32 1.0, %v1427
    %1430 = vrot.lane.b32.xlu0 %v1417, 64
    %v1431 = vpop.permute.xlu0 %1430
    %v1433 = vmul.f32 %v1428, %v1431
    %1435 = vrot.lane.b32.xlu0 %v1433, 64
    %v1436 = vpop.permute.xlu0 %1435
    %v1438 = vadd.f32 %v1376, %v1436
    %v1439 = vtanh.pop %v1438
    %v1440 = vsub.f32 1.0, %v1428
    %1442 = vrot.lane.b32.xlu0 %v1439, 96
    %v1443 = vpop.permute.xlu0 %1442
    %v1445 = vmul.f32 %v1440, %v1443
    %v1446 = vmul.f32 %v1428, %v1361
    %v1447 = vadd.f32 %v1445, %v1446
    %v1448 = vpack.c.bf16 %v1447, %v1447
    %v1450 = vunpack.c.l.b16 %v1448
    %v1451 = vpack.c.b16 %v1450, %v1450
    %v1452 = vrot.slane %v1451, 5
    %1453 = vrot.lane.b32.xlu0 %v1452, 96
    %v1454 = vpop.permute.xlu0 %1453
    %1456 = vst.msk [vmem:[#allocation3 + $0x8] sm:$0x8] %vm770, %v1454
    %1457 = vrot.lane.b32.xlu0 %v1451, 96
    %v1458 = vpop.permute.xlu0 %1457
    %1460 = vst.msk [vmem:[#allocation3 + $0xc] sm:$0x1] %vm775, %v1458
    %v1461 = vld [vmem:[#allocation2 + $0x18] sm:$0x3]
    %1462 = vrot.lane.b32.xlu0 %v1448, 96
    %v1463 = vpop.permute.xlu0 %1462
    %v1465 = vsel %vm429, %v1463, 0
    %1467 = vmatprep.subr.bf16.mxu0 0
    %1468 = vmatpush1.bf16.msra.mxu0 0
    %1469 = vmatprep.subr.bf16.mxu0 0
    %1470 = vmatpush1.bf16.msra.mxu0 0
    %1471 = vmatprep.subr.bf16.mxu0 0
    %1472 = vmatpush1.bf16.msra.mxu0 0
    %1473 = vmatprep.subr.bf16.mxu0 0
    %1474 = vmatpush1.bf16.msra.mxu0 0
    %1475 = vmatprep.subr.bf16.mxu0 0
    %1476 = vmatpush1.bf16.msra.mxu0 0
    %1477 = vmatprep.subr.bf16.mxu0 0
    %1478 = vmatpush1.bf16.msra.mxu0 0
    %1479 = vmatprep.subr.bf16.mxu0 0
    %1480 = vmatpush1.bf16.msra.mxu0 %v426
    %1481 = vmatprep.subr.bf16.mxu0 0
    %1482 = vmatpush1.bf16.msra.mxu0 %v425
    %1483 = vmatprep.subr.bf16.mxu0 0
    %1484 = vmatpush2.bf16.msra.mxu0 0
    %1485 = vmatprep.subr.bf16.mxu0 0
    %1486 = vmatpush2.bf16.msra.mxu0 0
    %1487 = vmatprep.subr.bf16.mxu0 0
    %1488 = vmatpush2.bf16.msra.mxu0 0
    %1489 = vmatprep.subr.bf16.mxu0 0
    %1490 = vmatpush2.bf16.msra.mxu0 0
    %1491 = vmatprep.subr.bf16.mxu0 0
    %1492 = vmatpush2.bf16.msra.mxu0 0
    %1493 = vmatprep.subr.bf16.mxu0 0
    %1494 = vmatpush2.bf16.msra.mxu0 0
    %1495 = vmatprep.subr.bf16.mxu0 0
    %1496 = vmatpush2.bf16.msra.mxu0 0
    %1497 = vmatprep.subr.bf16.mxu0 0
    %1498 = vmatpush2.bf16.msra.mxu0 0
    %1499 = vmatprep.mubr.bf16.mxu0 0
    %1500 = vmatmul.mubr.bf16.gmra.mxu0 %v1465
    %v1501 = vpop.f32.mrf.mxu0
    %v1502 = vadd.f32 %v415, %v1501
    %v1503 = vpop.f32.mrf.mxu0
    %v1504 = vpop.f32.mrf.mxu0
    %v1505 = vpop.f32.mrf.mxu0
    %1506 = vdwg.mxu0
    %v1507 = vadd.f32 %v1461, %v1502
    %v1508 = vxor.u32 %v1507, 2147483648
    %v1509 = vmul.f32 %v1508, 1.442695
    %v1510 = vpow.pop %v1509
    %v1511 = vadd.f32 %v1510, 1.0
    %v1512 = vrcp.pop %v1511
    %v1513 = vmul.f32 1.0, %v1512
    %1515 = vrot.lane.b32.xlu0 %v1502, 64
    %v1516 = vpop.permute.xlu0 %1515
    %v1518 = vmul.f32 %v1513, %v1516
    %1520 = vrot.lane.b32.xlu0 %v1518, 64
    %v1521 = vpop.permute.xlu0 %1520
    %v1523 = vadd.f32 %v1461, %v1521
    %v1524 = vtanh.pop %v1523
    %v1525 = vsub.f32 1.0, %v1513
    %1527 = vrot.lane.b32.xlu0 %v1524, 96
    %v1528 = vpop.permute.xlu0 %1527
    %v1530 = vmul.f32 %v1525, %v1528
    %v1531 = vmul.f32 %v1513, %v1447
    %v1532 = vadd.f32 %v1530, %v1531
    %v1533 = vpack.c.bf16 %v1532, %v1532
    %v1535 = vunpack.c.l.b16 %v1533
    %v1536 = vpack.c.b16 %v1535, %v1535
    %1537 = vrot.lane.b32.xlu0 %v1536, 96
    %v1538 = vpop.permute.xlu0 %1537
    %1540 = vst.msk [vmem:[#allocation3 + $0xc] sm:$0x1] %vm506, %v1538
    %v1541 = vrot.slane %v1536, 5
    %1542 = vrot.lane.b32.xlu0 %v1541, 96
    %v1543 = vpop.permute.xlu0 %1542
    %1545 = vst.msk [vmem:[#allocation3 + $0x8] sm:$0x8] %vm512, %v1543
    %v1546 = vld [vmem:[#allocation2 + $0x1a] sm:$0x3]
    %1547 = vrot.lane.b32.xlu0 %v1533, 96
    %v1548 = vpop.permute.xlu0 %1547
    %v1550 = vsel %vm429, %v1548, 0
    %1552 = vmatprep.subr.bf16.mxu0 0
    %1553 = vmatpush1.bf16.msra.mxu0 0
    %1554 = vmatprep.subr.bf16.mxu0 0
    %1555 = vmatpush1.bf16.msra.mxu0 0
    %1556 = vmatprep.subr.bf16.mxu0 0
    %1557 = vmatpush1.bf16.msra.mxu0 0
    %1558 = vmatprep.subr.bf16.mxu0 0
    %1559 = vmatpush1.bf16.msra.mxu0 0
    %1560 = vmatprep.subr.bf16.mxu0 0
    %1561 = vmatpush1.bf16.msra.mxu0 0
    %1562 = vmatprep.subr.bf16.mxu0 0
    %1563 = vmatpush1.bf16.msra.mxu0 0
    %1564 = vmatprep.subr.bf16.mxu0 0
    %1565 = vmatpush1.bf16.msra.mxu0 %v426
    %1566 = vmatprep.subr.bf16.mxu0 0
    %1567 = vmatpush1.bf16.msra.mxu0 %v425
    %1568 = vmatprep.subr.bf16.mxu0 0
    %1569 = vmatpush2.bf16.msra.mxu0 0
    %1570 = vmatprep.subr.bf16.mxu0 0
    %1571 = vmatpush2.bf16.msra.mxu0 0
    %1572 = vmatprep.subr.bf16.mxu0 0
    %1573 = vmatpush2.bf16.msra.mxu0 0
    %1574 = vmatprep.subr.bf16.mxu0 0
    %1575 = vmatpush2.bf16.msra.mxu0 0
    %1576 = vmatprep.subr.bf16.mxu0 0
    %1577 = vmatpush2.bf16.msra.mxu0 0
    %1578 = vmatprep.subr.bf16.mxu0 0
    %1579 = vmatpush2.bf16.msra.mxu0 0
    %1580 = vmatprep.subr.bf16.mxu0 0
    %1581 = vmatpush2.bf16.msra.mxu0 0
    %1582 = vmatprep.subr.bf16.mxu0 0
    %1583 = vmatpush2.bf16.msra.mxu0 0
    %1584 = vmatprep.mubr.bf16.mxu0 0
    %1585 = vmatmul.mubr.bf16.gmra.mxu0 %v1550
    %v1586 = vpop.f32.mrf.mxu0
    %v1587 = vadd.f32 %v415, %v1586
    %v1588 = vpop.f32.mrf.mxu0
    %v1589 = vpop.f32.mrf.mxu0
    %v1590 = vpop.f32.mrf.mxu0
    %1591 = vdwg.mxu0
    %v1592 = vadd.f32 %v1546, %v1587
    %v1593 = vxor.u32 %v1592, 2147483648
    %v1594 = vmul.f32 %v1593, 1.442695
    %v1595 = vpow.pop %v1594
    %v1596 = vadd.f32 %v1595, 1.0
    %v1597 = vrcp.pop %v1596
    %v1598 = vmul.f32 1.0, %v1597
    %1600 = vrot.lane.b32.xlu0 %v1587, 64
    %v1601 = vpop.permute.xlu0 %1600
    %v1603 = vmul.f32 %v1598, %v1601
    %1605 = vrot.lane.b32.xlu0 %v1603, 64
    %v1606 = vpop.permute.xlu0 %1605
    %v1608 = vadd.f32 %v1546, %v1606
    %v1609 = vtanh.pop %v1608
    %v1610 = vsub.f32 1.0, %v1598
    %1612 = vrot.lane.b32.xlu0 %v1609, 96
    %v1613 = vpop.permute.xlu0 %1612
    %v1615 = vmul.f32 %v1610, %v1613
    %v1616 = vmul.f32 %v1598, %v1532
    %v1617 = vadd.f32 %v1615, %v1616
    %v1618 = vpack.c.bf16 %v1617, %v1617
    %v1620 = vunpack.c.l.b16 %v1618
    %v1621 = vpack.c.b16 %v1620, %v1620
    %v1622 = vrot.slane %v1621, 7
    %1623 = vrot.lane.b32.xlu0 %v1622, 96
    %v1624 = vpop.permute.xlu0 %1623
    %1626 = vst.msk [vmem:[#allocation3 + $0xc] sm:$0x2] %vm594, %v1624
    %v1627 = vrot.slane %v1621, 6
    %1628 = vrot.lane.b32.xlu0 %v1627, 96
    %v1629 = vpop.permute.xlu0 %1628
    %1631 = vst.msk [vmem:[#allocation3 + $0x8] sm:$0x4] %vm600, %v1629
    %v1632 = vld [vmem:[#allocation2 + $0x1c] sm:$0x3]
    %1633 = vrot.lane.b32.xlu0 %v1618, 96
    %v1634 = vpop.permute.xlu0 %1633
    %v1636 = vsel %vm429, %v1634, 0
    %1638 = vmatprep.subr.bf16.mxu0 0
    %1639 = vmatpush1.bf16.msra.mxu0 0
    %1640 = vmatprep.subr.bf16.mxu0 0
    %1641 = vmatpush1.bf16.msra.mxu0 0
    %1642 = vmatprep.subr.bf16.mxu0 0
    %1643 = vmatpush1.bf16.msra.mxu0 0
    %1644 = vmatprep.subr.bf16.mxu0 0
    %1645 = vmatpush1.bf16.msra.mxu0 0
    %1646 = vmatprep.subr.bf16.mxu0 0
    %1647 = vmatpush1.bf16.msra.mxu0 0
    %1648 = vmatprep.subr.bf16.mxu0 0
    %1649 = vmatpush1.bf16.msra.mxu0 0
    %1650 = vmatprep.subr.bf16.mxu0 0
    %1651 = vmatpush1.bf16.msra.mxu0 %v426
    %1652 = vmatprep.subr.bf16.mxu0 0
    %1653 = vmatpush1.bf16.msra.mxu0 %v425
    %1654 = vmatprep.subr.bf16.mxu0 0
    %1655 = vmatpush2.bf16.msra.mxu0 0
    %1656 = vmatprep.subr.bf16.mxu0 0
    %1657 = vmatpush2.bf16.msra.mxu0 0
    %1658 = vmatprep.subr.bf16.mxu0 0
    %1659 = vmatpush2.bf16.msra.mxu0 0
    %1660 = vmatprep.subr.bf16.mxu0 0
    %1661 = vmatpush2.bf16.msra.mxu0 0
    %1662 = vmatprep.subr.bf16.mxu0 0
    %1663 = vmatpush2.bf16.msra.mxu0 0
    %1664 = vmatprep.subr.bf16.mxu0 0
    %1665 = vmatpush2.bf16.msra.mxu0 0
    %1666 = vmatprep.subr.bf16.mxu0 0
    %1667 = vmatpush2.bf16.msra.mxu0 0
    %1668 = vmatprep.subr.bf16.mxu0 0
    %1669 = vmatpush2.bf16.msra.mxu0 0
    %1670 = vmatprep.mubr.bf16.mxu0 0
    %1671 = vmatmul.mubr.bf16.gmra.mxu0 %v1636
    %v1672 = vpop.f32.mrf.mxu0
    %v1673 = vadd.f32 %v415, %v1672
    %v1674 = vpop.f32.mrf.mxu0
    %v1675 = vpop.f32.mrf.mxu0
    %v1676 = vpop.f32.mrf.mxu0
    %1677 = vdwg.mxu0
    %v1678 = vadd.f32 %v1632, %v1673
    %v1679 = vxor.u32 %v1678, 2147483648
    %v1680 = vmul.f32 %v1679, 1.442695
    %v1681 = vpow.pop %v1680
    %v1682 = vadd.f32 %v1681, 1.0
    %v1683 = vrcp.pop %v1682
    %v1684 = vmul.f32 1.0, %v1683
    %1686 = vrot.lane.b32.xlu0 %v1673, 64
    %v1687 = vpop.permute.xlu0 %1686
    %v1689 = vmul.f32 %v1684, %v1687
    %1691 = vrot.lane.b32.xlu0 %v1689, 64
    %v1692 = vpop.permute.xlu0 %1691
    %v1694 = vadd.f32 %v1632, %v1692
    %v1695 = vtanh.pop %v1694
    %v1696 = vsub.f32 1.0, %v1684
    %1698 = vrot.lane.b32.xlu0 %v1695, 96
    %v1699 = vpop.permute.xlu0 %1698
    %v1701 = vmul.f32 %v1696, %v1699
    %v1702 = vmul.f32 %v1684, %v1617
    %v1703 = vadd.f32 %v1701, %v1702
    %v1704 = vpack.c.bf16 %v1703, %v1703
    %v1706 = vunpack.c.l.b16 %v1704
    %v1707 = vpack.c.b16 %v1706, %v1706
    %v1708 = vrot.slane %v1707, 6
    %1709 = vrot.lane.b32.xlu0 %v1708, 96
    %v1710 = vpop.permute.xlu0 %1709
    %1712 = vst.msk [vmem:[#allocation3 + $0xc] sm:$0x4] %vm682, %v1710
    %v1713 = vrot.slane %v1707, 7
    %1714 = vrot.lane.b32.xlu0 %v1713, 96
    %v1715 = vpop.permute.xlu0 %1714
    %1717 = vst.msk [vmem:[#allocation3 + $0x8] sm:$0x2] %vm688, %v1715
    %v1718 = vld [vmem:[#allocation2 + $0x1e] sm:$0x3]
    %1719 = vrot.lane.b32.xlu0 %v1704, 96
    %v1720 = vpop.permute.xlu0 %1719
    %v1722 = vsel %vm429, %v1720, 0
    %1724 = vmatprep.subr.bf16.mxu0 0
    %1725 = vmatpush1.bf16.msra.mxu0 0
    %1726 = vmatprep.subr.bf16.mxu0 0
    %1727 = vmatpush1.bf16.msra.mxu0 0
    %1728 = vmatprep.subr.bf16.mxu0 0
    %1729 = vmatpush1.bf16.msra.mxu0 0
    %1730 = vmatprep.subr.bf16.mxu0 0
    %1731 = vmatpush1.bf16.msra.mxu0 0
    %1732 = vmatprep.subr.bf16.mxu0 0
    %1733 = vmatpush1.bf16.msra.mxu0 0
    %1734 = vmatprep.subr.bf16.mxu0 0
    %1735 = vmatpush1.bf16.msra.mxu0 0
    %1736 = vmatprep.subr.bf16.mxu0 0
    %1737 = vmatpush1.bf16.msra.mxu0 %v426
    %1738 = vmatprep.subr.bf16.mxu0 0
    %1739 = vmatpush1.bf16.msra.mxu0 %v425
    %1740 = vmatprep.subr.bf16.mxu0 0
    %1741 = vmatpush2.bf16.msra.mxu0 0
    %1742 = vmatprep.subr.bf16.mxu0 0
    %1743 = vmatpush2.bf16.msra.mxu0 0
    %1744 = vmatprep.subr.bf16.mxu0 0
    %1745 = vmatpush2.bf16.msra.mxu0 0
    %1746 = vmatprep.subr.bf16.mxu0 0
    %1747 = vmatpush2.bf16.msra.mxu0 0
    %1748 = vmatprep.subr.bf16.mxu0 0
    %1749 = vmatpush2.bf16.msra.mxu0 0
    %1750 = vmatprep.subr.bf16.mxu0 0
    %1751 = vmatpush2.bf16.msra.mxu0 0
    %1752 = vmatprep.subr.bf16.mxu0 0
    %1753 = vmatpush2.bf16.msra.mxu0 0
    %1754 = vmatprep.subr.bf16.mxu0 0
    %1755 = vmatpush2.bf16.msra.mxu0 0
    %1756 = vmatprep.mubr.bf16.mxu0 0
    %1757 = vmatmul.mubr.bf16.gmra.mxu0 %v1722
    %v1758 = vpop.f32.mrf.mxu0
    %v1759 = vadd.f32 %v415, %v1758
    %v1760 = vpop.f32.mrf.mxu0
    %v1761 = vpop.f32.mrf.mxu0
    %v1762 = vpop.f32.mrf.mxu0
    %1763 = vdwg.mxu0
    %v1764 = vadd.f32 %v1718, %v1759
    %v1765 = vxor.u32 %v1764, 2147483648
    %v1766 = vmul.f32 %v1765, 1.442695
    %v1767 = vpow.pop %v1766
    %v1768 = vadd.f32 %v1767, 1.0
    %v1769 = vrcp.pop %v1768
    %v1770 = vmul.f32 1.0, %v1769
    %1772 = vrot.lane.b32.xlu0 %v1759, 64
    %v1773 = vpop.permute.xlu0 %1772
    %v1775 = vmul.f32 %v1770, %v1773
    %1777 = vrot.lane.b32.xlu0 %v1775, 64
    %v1778 = vpop.permute.xlu0 %1777
    %v1780 = vadd.f32 %v1718, %v1778
    %v1781 = vtanh.pop %v1780
    %v1782 = vsub.f32 1.0, %v1770
    %1784 = vrot.lane.b32.xlu0 %v1781, 96
    %v1785 = vpop.permute.xlu0 %1784
    %v1787 = vmul.f32 %v1782, %v1785
    %v1788 = vmul.f32 %v1770, %v1703
    %v1789 = vadd.f32 %v1787, %v1788
    %v1790 = vpack.c.bf16 %v1789, %v1789
    %v1792 = vunpack.c.l.b16 %v1790
    %v1793 = vpack.c.b16 %v1792, %v1792
    %v1794 = vrot.slane %v1793, 5
    %1795 = vrot.lane.b32.xlu0 %v1794, 96
    %v1796 = vpop.permute.xlu0 %1795
    %1798 = vst.msk [vmem:[#allocation3 + $0xc] sm:$0x8] %vm770, %v1796
    %1799 = vrot.lane.b32.xlu0 %v1793, 96
    %v1800 = vpop.permute.xlu0 %1799
    %1802 = vst.msk [vmem:[#allocation3 + $0x8] sm:$0x1] %vm775, %v1800
    %v1803 = vld [vmem:[#allocation2 + $0x20] sm:$0x3]
    %1804 = vrot.lane.b32.xlu0 %v1790, 96
    %v1805 = vpop.permute.xlu0 %1804
    %v1807 = vsel %vm429, %v1805, 0
    %1809 = vmatprep.subr.bf16.mxu0 0
    %1810 = vmatpush1.bf16.msra.mxu0 0
    %1811 = vmatprep.subr.bf16.mxu0 0
    %1812 = vmatpush1.bf16.msra.mxu0 0
    %1813 = vmatprep.subr.bf16.mxu0 0
    %1814 = vmatpush1.bf16.msra.mxu0 0
    %1815 = vmatprep.subr.bf16.mxu0 0
    %1816 = vmatpush1.bf16.msra.mxu0 0
    %1817 = vmatprep.subr.bf16.mxu0 0
    %1818 = vmatpush1.bf16.msra.mxu0 0
    %1819 = vmatprep.subr.bf16.mxu0 0
    %1820 = vmatpush1.bf16.msra.mxu0 0
    %1821 = vmatprep.subr.bf16.mxu0 0
    %1822 = vmatpush1.bf16.msra.mxu0 %v426
    %1823 = vmatprep.subr.bf16.mxu0 0
    %1824 = vmatpush1.bf16.msra.mxu0 %v425
    %1825 = vmatprep.subr.bf16.mxu0 0
    %1826 = vmatpush2.bf16.msra.mxu0 0
    %1827 = vmatprep.subr.bf16.mxu0 0
    %1828 = vmatpush2.bf16.msra.mxu0 0
    %1829 = vmatprep.subr.bf16.mxu0 0
    %1830 = vmatpush2.bf16.msra.mxu0 0
    %1831 = vmatprep.subr.bf16.mxu0 0
    %1832 = vmatpush2.bf16.msra.mxu0 0
    %1833 = vmatprep.subr.bf16.mxu0 0
    %1834 = vmatpush2.bf16.msra.mxu0 0
    %1835 = vmatprep.subr.bf16.mxu0 0
    %1836 = vmatpush2.bf16.msra.mxu0 0
    %1837 = vmatprep.subr.bf16.mxu0 0
    %1838 = vmatpush2.bf16.msra.mxu0 0
    %1839 = vmatprep.subr.bf16.mxu0 0
    %1840 = vmatpush2.bf16.msra.mxu0 0
    %1841 = vmatprep.mubr.bf16.mxu0 0
    %1842 = vmatmul.mubr.bf16.gmra.mxu0 %v1807
    %v1843 = vpop.f32.mrf.mxu0
    %v1844 = vadd.f32 %v415, %v1843
    %v1845 = vpop.f32.mrf.mxu0
    %v1846 = vpop.f32.mrf.mxu0
    %v1847 = vpop.f32.mrf.mxu0
    %1848 = vdwg.mxu0
    %v1849 = vadd.f32 %v1803, %v1844
    %v1850 = vxor.u32 %v1849, 2147483648
    %v1851 = vmul.f32 %v1850, 1.442695
    %v1852 = vpow.pop %v1851
    %v1853 = vadd.f32 %v1852, 1.0
    %v1854 = vrcp.pop %v1853
    %v1855 = vmul.f32 1.0, %v1854
    %1857 = vrot.lane.b32.xlu0 %v1844, 64
    %v1858 = vpop.permute.xlu0 %1857
    %v1860 = vmul.f32 %v1855, %v1858
    %1862 = vrot.lane.b32.xlu0 %v1860, 64
    %v1863 = vpop.permute.xlu0 %1862
    %v1865 = vadd.f32 %v1803, %v1863
    %v1866 = vtanh.pop %v1865
    %v1867 = vsub.f32 1.0, %v1855
    %1869 = vrot.lane.b32.xlu0 %v1866, 96
    %v1870 = vpop.permute.xlu0 %1869
    %v1872 = vmul.f32 %v1867, %v1870
    %v1873 = vmul.f32 %v1855, %v1789
    %v1874 = vadd.f32 %v1872, %v1873
    %v1875 = vpack.c.bf16 %v1874, %v1874
    %v1877 = vunpack.c.l.b16 %v1875
    %v1878 = vpack.c.b16 %v1877, %v1877
    %1879 = vrot.lane.b32.xlu0 %v1878, 96
    %v1880 = vpop.permute.xlu0 %1879
    %1882 = vst.msk [vmem:[#allocation3 + $0x10] sm:$0x1] %vm506, %v1880
    %v1883 = vrot.slane %v1878, 5
    %1884 = vrot.lane.b32.xlu0 %v1883, 96
    %v1885 = vpop.permute.xlu0 %1884
    %1887 = vst.msk [vmem:[#allocation3 + $0x4] sm:$0x8] %vm512, %v1885
    %v1888 = vld [vmem:[#allocation2 + $0x22] sm:$0x3]
    %1889 = vrot.lane.b32.xlu0 %v1875, 96
    %v1890 = vpop.permute.xlu0 %1889
    %v1892 = vsel %vm429, %v1890, 0
    %1894 = vmatprep.subr.bf16.mxu0 0
    %1895 = vmatpush1.bf16.msra.mxu0 0
    %1896 = vmatprep.subr.bf16.mxu0 0
    %1897 = vmatpush1.bf16.msra.mxu0 0
    %1898 = vmatprep.subr.bf16.mxu0 0
    %1899 = vmatpush1.bf16.msra.mxu0 0
    %1900 = vmatprep.subr.bf16.mxu0 0
    %1901 = vmatpush1.bf16.msra.mxu0 0
    %1902 = vmatprep.subr.bf16.mxu0 0
    %1903 = vmatpush1.bf16.msra.mxu0 0
    %1904 = vmatprep.subr.bf16.mxu0 0
    %1905 = vmatpush1.bf16.msra.mxu0 0
    %1906 = vmatprep.subr.bf16.mxu0 0
    %1907 = vmatpush1.bf16.msra.mxu0 %v426
    %1908 = vmatprep.subr.bf16.mxu0 0
    %1909 = vmatpush1.bf16.msra.mxu0 %v425
    %1910 = vmatprep.subr.bf16.mxu0 0
    %1911 = vmatpush2.bf16.msra.mxu0 0
    %1912 = vmatprep.subr.bf16.mxu0 0
    %1913 = vmatpush2.bf16.msra.mxu0 0
    %1914 = vmatprep.subr.bf16.mxu0 0
    %1915 = vmatpush2.bf16.msra.mxu0 0
    %1916 = vmatprep.subr.bf16.mxu0 0
    %1917 = vmatpush2.bf16.msra.mxu0 0
    %1918 = vmatprep.subr.bf16.mxu0 0
    %1919 = vmatpush2.bf16.msra.mxu0 0
    %1920 = vmatprep.subr.bf16.mxu0 0
    %1921 = vmatpush2.bf16.msra.mxu0 0
    %1922 = vmatprep.subr.bf16.mxu0 0
    %1923 = vmatpush2.bf16.msra.mxu0 0
    %1924 = vmatprep.subr.bf16.mxu0 0
    %1925 = vmatpush2.bf16.msra.mxu0 0
    %1926 = vmatprep.mubr.bf16.mxu0 0
    %1927 = vmatmul.mubr.bf16.gmra.mxu0 %v1892
    %v1928 = vpop.f32.mrf.mxu0
    %v1929 = vadd.f32 %v415, %v1928
    %v1930 = vpop.f32.mrf.mxu0
    %v1931 = vpop.f32.mrf.mxu0
    %v1932 = vpop.f32.mrf.mxu0
    %1933 = vdwg.mxu0
    %v1934 = vadd.f32 %v1888, %v1929
    %v1935 = vxor.u32 %v1934, 2147483648
    %v1936 = vmul.f32 %v1935, 1.442695
    %v1937 = vpow.pop %v1936
    %v1938 = vadd.f32 %v1937, 1.0
    %v1939 = vrcp.pop %v1938
    %v1940 = vmul.f32 1.0, %v1939
    %1942 = vrot.lane.b32.xlu0 %v1929, 64
    %v1943 = vpop.permute.xlu0 %1942
    %v1945 = vmul.f32 %v1940, %v1943
    %1947 = vrot.lane.b32.xlu0 %v1945, 64
    %v1948 = vpop.permute.xlu0 %1947
    %v1950 = vadd.f32 %v1888, %v1948
    %v1951 = vtanh.pop %v1950
    %v1952 = vsub.f32 1.0, %v1940
    %1954 = vrot.lane.b32.xlu0 %v1951, 96
    %v1955 = vpop.permute.xlu0 %1954
    %v1957 = vmul.f32 %v1952, %v1955
    %v1958 = vmul.f32 %v1940, %v1874
    %v1959 = vadd.f32 %v1957, %v1958
    %v1960 = vpack.c.bf16 %v1959, %v1959
    %v1962 = vunpack.c.l.b16 %v1960
    %v1963 = vpack.c.b16 %v1962, %v1962
    %v1964 = vrot.slane %v1963, 7
    %1965 = vrot.lane.b32.xlu0 %v1964, 96
    %v1966 = vpop.permute.xlu0 %1965
    %1968 = vst.msk [vmem:[#allocation3 + $0x10] sm:$0x2] %vm594, %v1966
    %v1969 = vrot.slane %v1963, 6
    %1970 = vrot.lane.b32.xlu0 %v1969, 96
    %v1971 = vpop.permute.xlu0 %1970
    %1973 = vst.msk [vmem:[#allocation3 + $0x4] sm:$0x4] %vm600, %v1971
    %v1974 = vld [vmem:[#allocation2 + $0x24] sm:$0x3]
    %1975 = vrot.lane.b32.xlu0 %v1960, 96
    %v1976 = vpop.permute.xlu0 %1975
    %v1978 = vsel %vm429, %v1976, 0
    %1980 = vmatprep.subr.bf16.mxu0 0
    %1981 = vmatpush1.bf16.msra.mxu0 0
    %1982 = vmatprep.subr.bf16.mxu0 0
    %1983 = vmatpush1.bf16.msra.mxu0 0
    %1984 = vmatprep.subr.bf16.mxu0 0
    %1985 = vmatpush1.bf16.msra.mxu0 0
    %1986 = vmatprep.subr.bf16.mxu0 0
    %1987 = vmatpush1.bf16.msra.mxu0 0
    %1988 = vmatprep.subr.bf16.mxu0 0
    %1989 = vmatpush1.bf16.msra.mxu0 0
    %1990 = vmatprep.subr.bf16.mxu0 0
    %1991 = vmatpush1.bf16.msra.mxu0 0
    %1992 = vmatprep.subr.bf16.mxu0 0
    %1993 = vmatpush1.bf16.msra.mxu0 %v426
    %1994 = vmatprep.subr.bf16.mxu0 0
    %1995 = vmatpush1.bf16.msra.mxu0 %v425
    %1996 = vmatprep.subr.bf16.mxu0 0
    %1997 = vmatpush2.bf16.msra.mxu0 0
    %1998 = vmatprep.subr.bf16.mxu0 0
    %1999 = vmatpush2.bf16.msra.mxu0 0
    %2000 = vmatprep.subr.bf16.mxu0 0
    %2001 = vmatpush2.bf16.msra.mxu0 0
    %2002 = vmatprep.subr.bf16.mxu0 0
    %2003 = vmatpush2.bf16.msra.mxu0 0
    %2004 = vmatprep.subr.bf16.mxu0 0
    %2005 = vmatpush2.bf16.msra.mxu0 0
    %2006 = vmatprep.subr.bf16.mxu0 0
    %2007 = vmatpush2.bf16.msra.mxu0 0
    %2008 = vmatprep.subr.bf16.mxu0 0
    %2009 = vmatpush2.bf16.msra.mxu0 0
    %2010 = vmatprep.subr.bf16.mxu0 0
    %2011 = vmatpush2.bf16.msra.mxu0 0
    %2012 = vmatprep.mubr.bf16.mxu0 0
    %2013 = vmatmul.mubr.bf16.gmra.mxu0 %v1978
    %v2014 = vpop.f32.mrf.mxu0
    %v2015 = vadd.f32 %v415, %v2014
    %v2016 = vpop.f32.mrf.mxu0
    %v2017 = vpop.f32.mrf.mxu0
    %v2018 = vpop.f32.mrf.mxu0
    %2019 = vdwg.mxu0
    %v2020 = vadd.f32 %v1974, %v2015
    %v2021 = vxor.u32 %v2020, 2147483648
    %v2022 = vmul.f32 %v2021, 1.442695
    %v2023 = vpow.pop %v2022
    %v2024 = vadd.f32 %v2023, 1.0
    %v2025 = vrcp.pop %v2024
    %v2026 = vmul.f32 1.0, %v2025
    %2028 = vrot.lane.b32.xlu0 %v2015, 64
    %v2029 = vpop.permute.xlu0 %2028
    %v2031 = vmul.f32 %v2026, %v2029
    %2033 = vrot.lane.b32.xlu0 %v2031, 64
    %v2034 = vpop.permute.xlu0 %2033
    %v2036 = vadd.f32 %v1974, %v2034
    %v2037 = vtanh.pop %v2036
    %v2038 = vsub.f32 1.0, %v2026
    %2040 = vrot.lane.b32.xlu0 %v2037, 96
    %v2041 = vpop.permute.xlu0 %2040
    %v2043 = vmul.f32 %v2038, %v2041
    %v2044 = vmul.f32 %v2026, %v1959
    %v2045 = vadd.f32 %v2043, %v2044
    %v2046 = vpack.c.bf16 %v2045, %v2045
    %v2048 = vunpack.c.l.b16 %v2046
    %v2049 = vpack.c.b16 %v2048, %v2048
    %v2050 = vrot.slane %v2049, 6
    %2051 = vrot.lane.b32.xlu0 %v2050, 96
    %v2052 = vpop.permute.xlu0 %2051
    %2054 = vst.msk [vmem:[#allocation3 + $0x10] sm:$0x4] %vm682, %v2052
    %v2055 = vrot.slane %v2049, 7
    %2056 = vrot.lane.b32.xlu0 %v2055, 96
    %v2057 = vpop.permute.xlu0 %2056
    %2059 = vst.msk [vmem:[#allocation3 + $0x4] sm:$0x2] %vm688, %v2057
    %v2060 = vld [vmem:[#allocation2 + $0x26] sm:$0x3]
    %2061 = vrot.lane.b32.xlu0 %v2046, 96
    %v2062 = vpop.permute.xlu0 %2061
    %v2064 = vsel %vm429, %v2062, 0
    %2066 = vmatprep.subr.bf16.mxu0 0
    %2067 = vmatpush1.bf16.msra.mxu0 0
    %2068 = vmatprep.subr.bf16.mxu0 0
    %2069 = vmatpush1.bf16.msra.mxu0 0
    %2070 = vmatprep.subr.bf16.mxu0 0
    %2071 = vmatpush1.bf16.msra.mxu0 0
    %2072 = vmatprep.subr.bf16.mxu0 0
    %2073 = vmatpush1.bf16.msra.mxu0 0
    %2074 = vmatprep.subr.bf16.mxu0 0
    %2075 = vmatpush1.bf16.msra.mxu0 0
    %2076 = vmatprep.subr.bf16.mxu0 0
    %2077 = vmatpush1.bf16.msra.mxu0 0
    %2078 = vmatprep.subr.bf16.mxu0 0
    %2079 = vmatpush1.bf16.msra.mxu0 %v426
    %2080 = vmatprep.subr.bf16.mxu0 0
    %2081 = vmatpush1.bf16.msra.mxu0 %v425
    %2082 = vmatprep.subr.bf16.mxu0 0
    %2083 = vmatpush2.bf16.msra.mxu0 0
    %2084 = vmatprep.subr.bf16.mxu0 0
    %2085 = vmatpush2.bf16.msra.mxu0 0
    %2086 = vmatprep.subr.bf16.mxu0 0
    %2087 = vmatpush2.bf16.msra.mxu0 0
    %2088 = vmatprep.subr.bf16.mxu0 0
    %2089 = vmatpush2.bf16.msra.mxu0 0
    %2090 = vmatprep.subr.bf16.mxu0 0
    %2091 = vmatpush2.bf16.msra.mxu0 0
    %2092 = vmatprep.subr.bf16.mxu0 0
    %2093 = vmatpush2.bf16.msra.mxu0 0
    %2094 = vmatprep.subr.bf16.mxu0 0
    %2095 = vmatpush2.bf16.msra.mxu0 0
    %2096 = vmatprep.subr.bf16.mxu0 0
    %2097 = vmatpush2.bf16.msra.mxu0 0
    %2098 = vmatprep.mubr.bf16.mxu0 0
    %2099 = vmatmul.mubr.bf16.gmra.mxu0 %v2064
    %v2100 = vpop.f32.mrf.mxu0
    %v2101 = vadd.f32 %v415, %v2100
    %v2102 = vpop.f32.mrf.mxu0
    %v2103 = vpop.f32.mrf.mxu0
    %v2104 = vpop.f32.mrf.mxu0
    %2105 = vdwg.mxu0
    %v2106 = vadd.f32 %v2060, %v2101
    %v2107 = vxor.u32 %v2106, 2147483648
    %v2108 = vmul.f32 %v2107, 1.442695
    %v2109 = vpow.pop %v2108
    %v2110 = vadd.f32 %v2109, 1.0
    %v2111 = vrcp.pop %v2110
    %v2112 = vmul.f32 1.0, %v2111
    %2114 = vrot.lane.b32.xlu0 %v2101, 64
    %v2115 = vpop.permute.xlu0 %2114
    %v2117 = vmul.f32 %v2112, %v2115
    %2119 = vrot.lane.b32.xlu0 %v2117, 64
    %v2120 = vpop.permute.xlu0 %2119
    %v2122 = vadd.f32 %v2060, %v2120
    %v2123 = vtanh.pop %v2122
    %v2124 = vsub.f32 1.0, %v2112
    %2126 = vrot.lane.b32.xlu0 %v2123, 96
    %v2127 = vpop.permute.xlu0 %2126
    %v2129 = vmul.f32 %v2124, %v2127
    %v2130 = vmul.f32 %v2112, %v2045
    %v2131 = vadd.f32 %v2129, %v2130
    %v2132 = vpack.c.bf16 %v2131, %v2131
    %v2134 = vunpack.c.l.b16 %v2132
    %v2135 = vpack.c.b16 %v2134, %v2134
    %v2136 = vrot.slane %v2135, 5
    %2137 = vrot.lane.b32.xlu0 %v2136, 96
    %v2138 = vpop.permute.xlu0 %2137
    %2140 = vst.msk [vmem:[#allocation3 + $0x10] sm:$0x8] %vm770, %v2138
    %2141 = vrot.lane.b32.xlu0 %v2135, 96
    %v2142 = vpop.permute.xlu0 %2141
    %2144 = vst.msk [vmem:[#allocation3 + $0x4] sm:$0x1] %vm775, %v2142
    %v2145 = vld [vmem:[#allocation2 + $0x28] sm:$0x3]
    %2146 = vrot.lane.b32.xlu0 %v2132, 96
    %v2147 = vpop.permute.xlu0 %2146
    %v2149 = vsel %vm429, %v2147, 0
    %2151 = vmatprep.subr.bf16.mxu0 0
    %2152 = vmatpush1.bf16.msra.mxu0 0
    %2153 = vmatprep.subr.bf16.mxu0 0
    %2154 = vmatpush1.bf16.msra.mxu0 0
    %2155 = vmatprep.subr.bf16.mxu0 0
    %2156 = vmatpush1.bf16.msra.mxu0 0
    %2157 = vmatprep.subr.bf16.mxu0 0
    %2158 = vmatpush1.bf16.msra.mxu0 0
    %2159 = vmatprep.subr.bf16.mxu0 0
    %2160 = vmatpush1.bf16.msra.mxu0 0
    %2161 = vmatprep.subr.bf16.mxu0 0
    %2162 = vmatpush1.bf16.msra.mxu0 0
    %2163 = vmatprep.subr.bf16.mxu0 0
    %2164 = vmatpush1.bf16.msra.mxu0 %v426
    %2165 = vmatprep.subr.bf16.mxu0 0
    %2166 = vmatpush1.bf16.msra.mxu0 %v425
    %2167 = vmatprep.subr.bf16.mxu0 0
    %2168 = vmatpush2.bf16.msra.mxu0 0
    %2169 = vmatprep.subr.bf16.mxu0 0
    %2170 = vmatpush2.bf16.msra.mxu0 0
    %2171 = vmatprep.subr.bf16.mxu0 0
    %2172 = vmatpush2.bf16.msra.mxu0 0
    %2173 = vmatprep.subr.bf16.mxu0 0
    %2174 = vmatpush2.bf16.msra.mxu0 0
    %2175 = vmatprep.subr.bf16.mxu0 0
    %2176 = vmatpush2.bf16.msra.mxu0 0
    %2177 = vmatprep.subr.bf16.mxu0 0
    %2178 = vmatpush2.bf16.msra.mxu0 0
    %2179 = vmatprep.subr.bf16.mxu0 0
    %2180 = vmatpush2.bf16.msra.mxu0 0
    %2181 = vmatprep.subr.bf16.mxu0 0
    %2182 = vmatpush2.bf16.msra.mxu0 0
    %2183 = vmatprep.mubr.bf16.mxu0 0
    %2184 = vmatmul.mubr.bf16.gmra.mxu0 %v2149
    %v2185 = vpop.f32.mrf.mxu0
    %v2186 = vadd.f32 %v415, %v2185
    %v2187 = vpop.f32.mrf.mxu0
    %v2188 = vpop.f32.mrf.mxu0
    %v2189 = vpop.f32.mrf.mxu0
    %2190 = vdwg.mxu0
    %v2191 = vadd.f32 %v2145, %v2186
    %v2192 = vxor.u32 %v2191, 2147483648
    %v2193 = vmul.f32 %v2192, 1.442695
    %v2194 = vpow.pop %v2193
    %v2195 = vadd.f32 %v2194, 1.0
    %v2196 = vrcp.pop %v2195
    %v2197 = vmul.f32 1.0, %v2196
    %2199 = vrot.lane.b32.xlu0 %v2186, 64
    %v2200 = vpop.permute.xlu0 %2199
    %v2202 = vmul.f32 %v2197, %v2200
    %2204 = vrot.lane.b32.xlu0 %v2202, 64
    %v2205 = vpop.permute.xlu0 %2204
    %v2207 = vadd.f32 %v2145, %v2205
    %v2208 = vtanh.pop %v2207
    %v2209 = vsub.f32 1.0, %v2197
    %2211 = vrot.lane.b32.xlu0 %v2208, 96
    %v2212 = vpop.permute.xlu0 %2211
    %v2214 = vmul.f32 %v2209, %v2212
    %v2215 = vmul.f32 %v2197, %v2131
    %v2216 = vadd.f32 %v2214, %v2215
    %v2217 = vpack.c.bf16 %v2216, %v2216
    %v2219 = vunpack.c.l.b16 %v2217
    %v2220 = vpack.c.b16 %v2219, %v2219
    %2221 = vrot.lane.b32.xlu0 %v2220, 96
    %v2222 = vpop.permute.xlu0 %2221
    %2224 = vst.msk [vmem:[#allocation3 + $0x14] sm:$0x1] %vm506, %v2222
    %v2225 = vrot.slane %v2220, 5
    %2226 = vrot.lane.b32.xlu0 %v2225, 96
    %v2227 = vpop.permute.xlu0 %2226
    %2229 = vst.msk [vmem:[#allocation3] sm:$0x8] %vm512, %v2227
    %v2230 = vld [vmem:[#allocation2 + $0x2a] sm:$0x3]
    %2231 = vrot.lane.b32.xlu0 %v2217, 96
    %v2232 = vpop.permute.xlu0 %2231
    %v2234 = vsel %vm429, %v2232, 0
    %2236 = vmatprep.subr.bf16.mxu0 0
    %2237 = vmatpush1.bf16.msra.mxu0 0
    %2238 = vmatprep.subr.bf16.mxu0 0
    %2239 = vmatpush1.bf16.msra.mxu0 0
    %2240 = vmatprep.subr.bf16.mxu0 0
    %2241 = vmatpush1.bf16.msra.mxu0 0
    %2242 = vmatprep.subr.bf16.mxu0 0
    %2243 = vmatpush1.bf16.msra.mxu0 0
    %2244 = vmatprep.subr.bf16.mxu0 0
    %2245 = vmatpush1.bf16.msra.mxu0 0
    %2246 = vmatprep.subr.bf16.mxu0 0
    %2247 = vmatpush1.bf16.msra.mxu0 0
    %2248 = vmatprep.subr.bf16.mxu0 0
    %2249 = vmatpush1.bf16.msra.mxu0 %v426
    %2250 = vmatprep.subr.bf16.mxu0 0
    %2251 = vmatpush1.bf16.msra.mxu0 %v425
    %2252 = vmatprep.subr.bf16.mxu0 0
    %2253 = vmatpush2.bf16.msra.mxu0 0
    %2254 = vmatprep.subr.bf16.mxu0 0
    %2255 = vmatpush2.bf16.msra.mxu0 0
    %2256 = vmatprep.subr.bf16.mxu0 0
    %2257 = vmatpush2.bf16.msra.mxu0 0
    %2258 = vmatprep.subr.bf16.mxu0 0
    %2259 = vmatpush2.bf16.msra.mxu0 0
    %2260 = vmatprep.subr.bf16.mxu0 0
    %2261 = vmatpush2.bf16.msra.mxu0 0
    %2262 = vmatprep.subr.bf16.mxu0 0
    %2263 = vmatpush2.bf16.msra.mxu0 0
    %2264 = vmatprep.subr.bf16.mxu0 0
    %2265 = vmatpush2.bf16.msra.mxu0 0
    %2266 = vmatprep.subr.bf16.mxu0 0
    %2267 = vmatpush2.bf16.msra.mxu0 0
    %2268 = vmatprep.mubr.bf16.mxu0 0
    %2269 = vmatmul.mubr.bf16.gmra.mxu0 %v2234
    %v2270 = vpop.f32.mrf.mxu0
    %v2271 = vadd.f32 %v415, %v2270
    %v2272 = vpop.f32.mrf.mxu0
    %v2273 = vpop.f32.mrf.mxu0
    %v2274 = vpop.f32.mrf.mxu0
    %2275 = vdwg.mxu0
    %v2276 = vadd.f32 %v2230, %v2271
    %v2277 = vxor.u32 %v2276, 2147483648
    %v2278 = vmul.f32 %v2277, 1.442695
    %v2279 = vpow.pop %v2278
    %v2280 = vadd.f32 %v2279, 1.0
    %v2281 = vrcp.pop %v2280
    %v2282 = vmul.f32 1.0, %v2281
    %2284 = vrot.lane.b32.xlu0 %v2271, 64
    %v2285 = vpop.permute.xlu0 %2284
    %v2287 = vmul.f32 %v2282, %v2285
    %2289 = vrot.lane.b32.xlu0 %v2287, 64
    %v2290 = vpop.permute.xlu0 %2289
    %v2292 = vadd.f32 %v2230, %v2290
    %v2293 = vtanh.pop %v2292
    %v2294 = vsub.f32 1.0, %v2282
    %2296 = vrot.lane.b32.xlu0 %v2293, 96
    %v2297 = vpop.permute.xlu0 %2296
    %v2299 = vmul.f32 %v2294, %v2297
    %v2300 = vmul.f32 %v2282, %v2216
    %v2301 = vadd.f32 %v2299, %v2300
    %v2302 = vpack.c.bf16 %v2301, %v2301
    %v2304 = vunpack.c.l.b16 %v2302
    %v2305 = vpack.c.b16 %v2304, %v2304
    %v2306 = vrot.slane %v2305, 7
    %2307 = vrot.lane.b32.xlu0 %v2306, 96
    %v2308 = vpop.permute.xlu0 %2307
    %2310 = vst.msk [vmem:[#allocation3 + $0x14] sm:$0x2] %vm594, %v2308
    %v2311 = vrot.slane %v2305, 6
    %2312 = vrot.lane.b32.xlu0 %v2311, 96
    %v2313 = vpop.permute.xlu0 %2312
    %2315 = vst.msk [vmem:[#allocation3] sm:$0x4] %vm600, %v2313
    %v2316 = vld [vmem:[#allocation2 + $0x2c] sm:$0x3]
    %2317 = vrot.lane.b32.xlu0 %v2302, 96
    %v2318 = vpop.permute.xlu0 %2317
    %v2320 = vsel %vm429, %v2318, 0
    %2322 = vmatprep.subr.bf16.mxu0 0
    %2323 = vmatpush1.bf16.msra.mxu0 0
    %2324 = vmatprep.subr.bf16.mxu0 0
    %2325 = vmatpush1.bf16.msra.mxu0 0
    %2326 = vmatprep.subr.bf16.mxu0 0
    %2327 = vmatpush1.bf16.msra.mxu0 0
    %2328 = vmatprep.subr.bf16.mxu0 0
    %2329 = vmatpush1.bf16.msra.mxu0 0
    %2330 = vmatprep.subr.bf16.mxu0 0
    %2331 = vmatpush1.bf16.msra.mxu0 0
    %2332 = vmatprep.subr.bf16.mxu0 0
    %2333 = vmatpush1.bf16.msra.mxu0 0
    %2334 = vmatprep.subr.bf16.mxu0 0
    %2335 = vmatpush1.bf16.msra.mxu0 %v426
    %2336 = vmatprep.subr.bf16.mxu0 0
    %2337 = vmatpush1.bf16.msra.mxu0 %v425
    %2338 = vmatprep.subr.bf16.mxu0 0
    %2339 = vmatpush2.bf16.msra.mxu0 0
    %2340 = vmatprep.subr.bf16.mxu0 0
    %2341 = vmatpush2.bf16.msra.mxu0 0
    %2342 = vmatprep.subr.bf16.mxu0 0
    %2343 = vmatpush2.bf16.msra.mxu0 0
    %2344 = vmatprep.subr.bf16.mxu0 0
    %2345 = vmatpush2.bf16.msra.mxu0 0
    %2346 = vmatprep.subr.bf16.mxu0 0
    %2347 = vmatpush2.bf16.msra.mxu0 0
    %2348 = vmatprep.subr.bf16.mxu0 0
    %2349 = vmatpush2.bf16.msra.mxu0 0
    %2350 = vmatprep.subr.bf16.mxu0 0
    %2351 = vmatpush2.bf16.msra.mxu0 0
    %2352 = vmatprep.subr.bf16.mxu0 0
    %2353 = vmatpush2.bf16.msra.mxu0 0
    %2354 = vmatprep.mubr.bf16.mxu0 0
    %2355 = vmatmul.mubr.bf16.gmra.mxu0 %v2320
    %v2356 = vpop.f32.mrf.mxu0
    %v2357 = vadd.f32 %v415, %v2356
    %v2358 = vpop.f32.mrf.mxu0
    %v2359 = vpop.f32.mrf.mxu0
    %v2360 = vpop.f32.mrf.mxu0
    %2361 = vdwg.mxu0
    %v2362 = vadd.f32 %v2316, %v2357
    %v2363 = vxor.u32 %v2362, 2147483648
    %v2364 = vmul.f32 %v2363, 1.442695
    %v2365 = vpow.pop %v2364
    %v2366 = vadd.f32 %v2365, 1.0
    %v2367 = vrcp.pop %v2366
    %v2368 = vmul.f32 1.0, %v2367
    %2370 = vrot.lane.b32.xlu0 %v2357, 64
    %v2371 = vpop.permute.xlu0 %2370
    %v2373 = vmul.f32 %v2368, %v2371
    %2375 = vrot.lane.b32.xlu0 %v2373, 64
    %v2376 = vpop.permute.xlu0 %2375
    %v2378 = vadd.f32 %v2316, %v2376
    %v2379 = vtanh.pop %v2378
    %v2380 = vsub.f32 1.0, %v2368
    %2382 = vrot.lane.b32.xlu0 %v2379, 96
    %v2383 = vpop.permute.xlu0 %2382
    %v2385 = vmul.f32 %v2380, %v2383
    %v2386 = vmul.f32 %v2368, %v2301
    %v2387 = vadd.f32 %v2385, %v2386
    %v2388 = vpack.c.bf16 %v2387, %v2387
    %v2390 = vunpack.c.l.b16 %v2388
    %v2391 = vpack.c.b16 %v2390, %v2390
    %v2392 = vrot.slane %v2391, 6
    %2393 = vrot.lane.b32.xlu0 %v2392, 96
    %v2394 = vpop.permute.xlu0 %2393
    %2396 = vst.msk [vmem:[#allocation3 + $0x14] sm:$0x4] %vm682, %v2394
    %v2397 = vrot.slane %v2391, 7
    %2398 = vrot.lane.b32.xlu0 %v2397, 96
    %v2399 = vpop.permute.xlu0 %2398
    %2401 = vst.msk [vmem:[#allocation3] sm:$0x2] %vm688, %v2399
    %v2402 = vld [vmem:[#allocation2 + $0x2e] sm:$0x3]
    %2403 = vrot.lane.b32.xlu0 %v2388, 96
    %v2404 = vpop.permute.xlu0 %2403
    %v2406 = vsel %vm429, %v2404, 0
    %2408 = vmatprep.subr.bf16.mxu0 0
    %2409 = vmatpush1.bf16.msra.mxu0 0
    %2410 = vmatprep.subr.bf16.mxu0 0
    %2411 = vmatpush1.bf16.msra.mxu0 0
    %2412 = vmatprep.subr.bf16.mxu0 0
    %2413 = vmatpush1.bf16.msra.mxu0 0
    %2414 = vmatprep.subr.bf16.mxu0 0
    %2415 = vmatpush1.bf16.msra.mxu0 0
    %2416 = vmatprep.subr.bf16.mxu0 0
    %2417 = vmatpush1.bf16.msra.mxu0 0
    %2418 = vmatprep.subr.bf16.mxu0 0
    %2419 = vmatpush1.bf16.msra.mxu0 0
    %2420 = vmatprep.subr.bf16.mxu0 0
    %2421 = vmatpush1.bf16.msra.mxu0 %v426
    %2422 = vmatprep.subr.bf16.mxu0 0
    %2423 = vmatpush1.bf16.msra.mxu0 %v425
    %2424 = vmatprep.subr.bf16.mxu0 0
    %2425 = vmatpush2.bf16.msra.mxu0 0
    %2426 = vmatprep.subr.bf16.mxu0 0
    %2427 = vmatpush2.bf16.msra.mxu0 0
    %2428 = vmatprep.subr.bf16.mxu0 0
    %2429 = vmatpush2.bf16.msra.mxu0 0
    %2430 = vmatprep.subr.bf16.mxu0 0
    %2431 = vmatpush2.bf16.msra.mxu0 0
    %2432 = vmatprep.subr.bf16.mxu0 0
    %2433 = vmatpush2.bf16.msra.mxu0 0
    %2434 = vmatprep.subr.bf16.mxu0 0
    %2435 = vmatpush2.bf16.msra.mxu0 0
    %2436 = vmatprep.subr.bf16.mxu0 0
    %2437 = vmatpush2.bf16.msra.mxu0 0
    %2438 = vmatprep.subr.bf16.mxu0 0
    %2439 = vmatpush2.bf16.msra.mxu0 0
    %2440 = vmatprep.mubr.bf16.mxu0 0
    %2441 = vmatmul.mubr.bf16.gmra.mxu0 %v2406
    %v2442 = vpop.f32.mrf.mxu0
    %v2443 = vadd.f32 %v415, %v2442
    %v2444 = vpop.f32.mrf.mxu0
    %v2445 = vpop.f32.mrf.mxu0
    %v2446 = vpop.f32.mrf.mxu0
    %2447 = vdwg.mxu0
    %v2448 = vadd.f32 %v2402, %v2443
    %v2449 = vxor.u32 %v2448, 2147483648
    %v2450 = vmul.f32 %v2449, 1.442695
    %v2451 = vpow.pop %v2450
    %v2452 = vadd.f32 %v2451, 1.0
    %v2453 = vrcp.pop %v2452
    %v2454 = vmul.f32 1.0, %v2453
    %2456 = vrot.lane.b32.xlu0 %v2443, 64
    %v2457 = vpop.permute.xlu0 %2456
    %v2459 = vmul.f32 %v2454, %v2457
    %2461 = vrot.lane.b32.xlu0 %v2459, 64
    %v2462 = vpop.permute.xlu0 %2461
    %v2464 = vadd.f32 %v2402, %v2462
    %v2465 = vtanh.pop %v2464
    %v2466 = vsub.f32 1.0, %v2454
    %2468 = vrot.lane.b32.xlu0 %v2465, 96
    %v2469 = vpop.permute.xlu0 %2468
    %v2471 = vmul.f32 %v2466, %v2469
    %v2472 = vmul.f32 %v2454, %v2387
    %v2473 = vadd.f32 %v2471, %v2472
    %v2474 = vpack.c.bf16 %v2473, %v2473
    %v2476 = vunpack.c.l.b16 %v2474
    %v2477 = vpack.c.b16 %v2476, %v2476
    %v2478 = vrot.slane %v2477, 5
    %2479 = vrot.lane.b32.xlu0 %v2478, 96
    %v2480 = vpop.permute.xlu0 %2479
    %2482 = vst.msk [vmem:[#allocation3 + $0x14] sm:$0x8] %vm770, %v2480
    %2483 = vrot.lane.b32.xlu0 %v2477, 96
    %v2484 = vpop.permute.xlu0 %2483
    %2486 = vst.msk [vmem:[#allocation3] sm:$0x1] %vm775, %v2484
    %v2487 = vld [vmem:[#allocation3] sm:$0xf]
    %v2488 = vld [vmem:[#allocation3 + $0x4] sm:$0xf]
    %v2489 = vld [vmem:[#allocation3 + $0x8] sm:$0xf]
    %v2490 = vld [vmem:[#allocation3 + $0xc] sm:$0xf]
    %v2491 = vld [vmem:[#allocation3 + $0x10] sm:$0xf]
    %v2492 = vld [vmem:[#allocation3 + $0x14] sm:$0xf]
    %v2493 = vld [vmem:[%s5] sm:$0xf]
    %v2494 = vld [vmem:[%s5 + $0x4] sm:$0xf]
    %v2495 = vld [vmem:[%s5 + $0x8] sm:$0xf]
    %v2496 = vld [vmem:[%s5 + $0xc] sm:$0xf]
    %v2497 = vld [vmem:[#allocation3] sm:$0xe]
    %v2498 = vld [vmem:[#allocation3 + $0x18] sm:$0x1]
    %v2499 = vld [vmem:[%s5 + $0x10] sm:$0xf]
    %v2500 = vld [vmem:[%s5 + $0x14] sm:$0xf]
    %v2501 = vld [vmem:[%s5 + $0x18] sm:$0xf]
    %v2502 = vld [vmem:[%s5 + $0x1c] sm:$0xf]
    %v2510 = vunpack.c.l.b16 %v2497
    %v2511 = vunpack.c.l.b16 %v2488
    %v2512 = vunpack.c.l.b16 %v2489
    %v2513 = vunpack.c.l.b16 %v2490
    %v2514 = vunpack.c.l.b16 %v2491
    %v2515 = vunpack.c.l.b16 %v2492
    %v2516 = vunpack.c.l.b16 %v2498
    %v2517 = vpack.c.b16 %v2511, %v2510
    %v2518 = vpack.c.b16 %v2513, %v2512
    %v2519 = vpack.c.b16 %v2515, %v2514
    %v2520 = vpack.c.b16 %v2516, %v2516
    %vm2521 = vcmask 1046528
    %v2522 = vrot.slane %v2517, 1
    %v2523 = vrot.slane %v2518, 1
    %v2524 = vsel %vm2521, %v2522, %v2523
    %v2525 = vrot.slane %v2519, 1
    %v2526 = vsel %vm2521, %v2523, %v2525
    %v2527 = vrot.slane %v2520, 1
    %v2528 = vsel %vm2521, %v2525, %v2527
    %v2533 = vunpack.c.l.b16 %v2499
    %v2534 = vunpack.c.l.b16 %v2500
    %v2535 = vunpack.c.l.b16 %v2501
    %v2536 = vunpack.c.l.b16 %v2502
    %v2537 = vpack.c.b16 %v2534, %v2533
    %v2538 = vpack.c.b16 %v2536, %v2535
    %v2542 = vsel %vm429, %v2524, 0
    %v2545 = vsel %vm429, %v2526, 0
    %v2548 = vsel %vm429, %v2528, 0
    %2550 = vmatprep.subr.bf16.mxu0 0
    %2551 = vmatpush1.bf16.msra.mxu0 0
    %2552 = vmatprep.subr.bf16.mxu0 0
    %2553 = vmatpush1.bf16.msra.mxu0 0
    %2554 = vmatprep.subr.bf16.mxu0 0
    %2555 = vmatpush1.bf16.msra.mxu0 0
    %2556 = vmatprep.subr.bf16.mxu0 0
    %2557 = vmatpush1.bf16.msra.mxu0 0
    %2558 = vmatprep.subr.bf16.mxu0 0
    %2559 = vmatpush1.bf16.msra.mxu0 0
    %2560 = vmatprep.subr.bf16.mxu0 0
    %2561 = vmatpush1.bf16.msra.mxu0 0
    %2562 = vmatprep.subr.bf16.mxu0 0
    %2563 = vmatpush1.bf16.msra.mxu0 %v2538
    %2564 = vmatprep.subr.bf16.mxu0 0
    %2565 = vmatpush1.bf16.msra.mxu0 %v2537
    %2566 = vmatprep.subr.bf16.mxu0 0
    %2567 = vmatpush2.bf16.msra.mxu0 0
    %2568 = vmatprep.subr.bf16.mxu0 0
    %2569 = vmatpush2.bf16.msra.mxu0 0
    %2570 = vmatprep.subr.bf16.mxu0 0
    %2571 = vmatpush2.bf16.msra.mxu0 0
    %2572 = vmatprep.subr.bf16.mxu0 0
    %2573 = vmatpush2.bf16.msra.mxu0 0
    %2574 = vmatprep.subr.bf16.mxu0 0
    %2575 = vmatpush2.bf16.msra.mxu0 0
    %2576 = vmatprep.subr.bf16.mxu0 0
    %2577 = vmatpush2.bf16.msra.mxu0 0
    %2578 = vmatprep.subr.bf16.mxu0 0
    %2579 = vmatpush2.bf16.msra.mxu0 0
    %2580 = vmatprep.subr.bf16.mxu0 0
    %2581 = vmatpush2.bf16.msra.mxu0 0
    %2582 = vmatprep.mubr.bf16.mxu0 0
    %2583 = vmatmul.mubr.bf16.gmra.mxu0 %v2542
    %v2584 = vpop.f32.mrf.mxu0
    %v2585 = vadd.f32 0.0, %v2584
    %v2586 = vpop.f32.mrf.mxu0
    %v2587 = vpop.f32.mrf.mxu0
    %v2588 = vadd.f32 0.0, %v2587
    %v2589 = vpop.f32.mrf.mxu0
    %2590 = vmatprep.mubr.bf16.mxu0 0
    %2591 = vmatmul.mubr.bf16.gmra.mxu0 %v2545
    %v2592 = vpop.f32.mrf.mxu0
    %v2593 = vadd.f32 0.0, %v2592
    %v2594 = vpop.f32.mrf.mxu0
    %v2595 = vpop.f32.mrf.mxu0
    %v2596 = vadd.f32 0.0, %v2595
    %v2597 = vpop.f32.mrf.mxu0
    %2598 = vmatprep.mubr.bf16.mxu0 0
    %2599 = vmatmul.mubr.bf16.gmra.mxu0 %v2548
    %v2600 = vpop.f32.mrf.mxu0
    %v2601 = vadd.f32 0.0, %v2600
    %v2602 = vpop.f32.mrf.mxu0
    %v2603 = vpop.f32.mrf.mxu0
    %v2604 = vadd.f32 0.0, %v2603
    %v2605 = vpop.f32.mrf.mxu0
    %2606 = vdwg.mxu0
    %v2608 = vunpack.c.l.b16 %v2487
    %v2609 = vpack.c.b16 %v2511, %v2608
    %v2614 = vunpack.c.l.b16 %v2493
    %v2615 = vunpack.c.l.b16 %v2494
    %v2616 = vunpack.c.l.b16 %v2495
    %v2617 = vunpack.c.l.b16 %v2496
    %v2618 = vpack.c.b16 %v2615, %v2614
    %v2619 = vpack.c.b16 %v2617, %v2616
    %v2623 = vsel %vm429, %v2609, 0
    %v2626 = vsel %vm429, %v2518, 0
    %v2629 = vsel %vm429, %v2519, 0
    %2631 = vmatprep.subr.bf16.mxu0 0
    %2632 = vmatpush1.bf16.msra.mxu0 0
    %2633 = vmatprep.subr.bf16.mxu0 0
    %2634 = vmatpush1.bf16.msra.mxu0 0
    %2635 = vmatprep.subr.bf16.mxu0 0
    %2636 = vmatpush1.bf16.msra.mxu0 0
    %2637 = vmatprep.subr.bf16.mxu0 0
    %2638 = vmatpush1.bf16.msra.mxu0 0
    %2639 = vmatprep.subr.bf16.mxu0 0
    %2640 = vmatpush1.bf16.msra.mxu0 0
    %2641 = vmatprep.subr.bf16.mxu0 0
    %2642 = vmatpush1.bf16.msra.mxu0 0
    %2643 = vmatprep.subr.bf16.mxu0 0
    %2644 = vmatpush1.bf16.msra.mxu0 %v2619
    %2645 = vmatprep.subr.bf16.mxu0 0
    %2646 = vmatpush1.bf16.msra.mxu0 %v2618
    %2647 = vmatprep.subr.bf16.mxu0 0
    %2648 = vmatpush2.bf16.msra.mxu0 0
    %2649 = vmatprep.subr.bf16.mxu0 0
    %2650 = vmatpush2.bf16.msra.mxu0 0
    %2651 = vmatprep.subr.bf16.mxu0 0
    %2652 = vmatpush2.bf16.msra.mxu0 0
    %2653 = vmatprep.subr.bf16.mxu0 0
    %2654 = vmatpush2.bf16.msra.mxu0 0
    %2655 = vmatprep.subr.bf16.mxu0 0
    %2656 = vmatpush2.bf16.msra.mxu0 0
    %2657 = vmatprep.subr.bf16.mxu0 0
    %2658 = vmatpush2.bf16.msra.mxu0 0
    %2659 = vmatprep.subr.bf16.mxu0 0
    %2660 = vmatpush2.bf16.msra.mxu0 0
    %2661 = vmatprep.subr.bf16.mxu0 0
    %2662 = vmatpush2.bf16.msra.mxu0 0
    %2663 = vmatprep.mubr.bf16.mxu0 0
    %2664 = vmatmul.mubr.bf16.gmra.mxu0 %v2623
    %v2665 = vpop.f32.mrf.mxu0
    %v2666 = vadd.f32 %v2585, %v2665
    %v2667 = vpop.f32.mrf.mxu0
    %v2668 = vpop.f32.mrf.mxu0
    %v2669 = vadd.f32 %v2588, %v2668
    %v2670 = vpop.f32.mrf.mxu0
    %2671 = vmatprep.mubr.bf16.mxu0 0
    %2672 = vmatmul.mubr.bf16.gmra.mxu0 %v2626
    %v2673 = vpop.f32.mrf.mxu0
    %v2674 = vadd.f32 %v2593, %v2673
    %v2675 = vpop.f32.mrf.mxu0
    %v2676 = vpop.f32.mrf.mxu0
    %v2677 = vadd.f32 %v2596, %v2676
    %v2678 = vpop.f32.mrf.mxu0
    %2679 = vmatprep.mubr.bf16.mxu0 0
    %2680 = vmatmul.mubr.bf16.gmra.mxu0 %v2629
    %v2681 = vpop.f32.mrf.mxu0
    %v2682 = vadd.f32 %v2601, %v2681
    %v2683 = vpop.f32.mrf.mxu0
    %v2684 = vpop.f32.mrf.mxu0
    %v2685 = vadd.f32 %v2604, %v2684
    %v2686 = vpop.f32.mrf.mxu0
    %2687 = vdwg.mxu0
    %v2688 = vld [vmem:[#allocation3] sm:$0xc]
    %v2689 = vld [vmem:[#allocation3 + $0x18] sm:$0x3]
    %v2690 = vld [vmem:[%s5 + $0x20] sm:$0xf]
    %v2691 = vld [vmem:[%s5 + $0x24] sm:$0xf]
    %v2692 = vld [vmem:[%s5 + $0x28] sm:$0xf]
    %v2693 = vld [vmem:[%s5 + $0x2c] sm:$0xf]
    %v2696 = vunpack.c.l.b16 %v2688
    %v2697 = vunpack.c.l.b16 %v2689
    %v2698 = vpack.c.b16 %v2511, %v2696
    %v2699 = vpack.c.b16 %v2697, %v2697
    %vm2700 = vcmask 1045504
    %v2701 = vrot.slane %v2698, 2
    %v2702 = vrot.slane %v2518, 2
    %v2703 = vsel %vm2700, %v2701, %v2702
    %v2704 = vrot.slane %v2519, 2
    %v2705 = vsel %vm2700, %v2702, %v2704
    %v2706 = vrot.slane %v2699, 2
    %v2707 = vsel %vm2700, %v2704, %v2706
    %v2712 = vunpack.c.l.b16 %v2690
    %v2713 = vunpack.c.l.b16 %v2691
    %v2714 = vunpack.c.l.b16 %v2692
    %v2715 = vunpack.c.l.b16 %v2693
    %v2716 = vpack.c.b16 %v2713, %v2712
    %v2717 = vpack.c.b16 %v2715, %v2714
    %v2721 = vsel %vm429, %v2703, 0
    %v2724 = vsel %vm429, %v2705, 0
    %v2727 = vsel %vm429, %v2707, 0
    %2729 = vmatprep.subr.bf16.mxu0 0
    %2730 = vmatpush1.bf16.msra.mxu0 0
    %2731 = vmatprep.subr.bf16.mxu0 0
    %2732 = vmatpush1.bf16.msra.mxu0 0
    %2733 = vmatprep.subr.bf16.mxu0 0
    %2734 = vmatpush1.bf16.msra.mxu0 0
    %2735 = vmatprep.subr.bf16.mxu0 0
    %2736 = vmatpush1.bf16.msra.mxu0 0
    %2737 = vmatprep.subr.bf16.mxu0 0
    %2738 = vmatpush1.bf16.msra.mxu0 0
    %2739 = vmatprep.subr.bf16.mxu0 0
    %2740 = vmatpush1.bf16.msra.mxu0 0
    %2741 = vmatprep.subr.bf16.mxu0 0
    %2742 = vmatpush1.bf16.msra.mxu0 %v2717
    %2743 = vmatprep.subr.bf16.mxu0 0
    %2744 = vmatpush1.bf16.msra.mxu0 %v2716
    %2745 = vmatprep.subr.bf16.mxu0 0
    %2746 = vmatpush2.bf16.msra.mxu0 0
    %2747 = vmatprep.subr.bf16.mxu0 0
    %2748 = vmatpush2.bf16.msra.mxu0 0
    %2749 = vmatprep.subr.bf16.mxu0 0
    %2750 = vmatpush2.bf16.msra.mxu0 0
    %2751 = vmatprep.subr.bf16.mxu0 0
    %2752 = vmatpush2.bf16.msra.mxu0 0
    %2753 = vmatprep.subr.bf16.mxu0 0
    %2754 = vmatpush2.bf16.msra.mxu0 0
    %2755 = vmatprep.subr.bf16.mxu0 0
    %2756 = vmatpush2.bf16.msra.mxu0 0
    %2757 = vmatprep.subr.bf16.mxu0 0
    %2758 = vmatpush2.bf16.msra.mxu0 0
    %2759 = vmatprep.subr.bf16.mxu0 0
    %2760 = vmatpush2.bf16.msra.mxu0 0
    %2761 = vmatprep.mubr.bf16.mxu0 0
    %2762 = vmatmul.mubr.bf16.gmra.mxu0 %v2721
    %v2763 = vpop.f32.mrf.mxu0
    %v2764 = vadd.f32 0.0, %v2763
    %v2765 = vpop.f32.mrf.mxu0
    %v2766 = vpop.f32.mrf.mxu0
    %v2767 = vadd.f32 0.0, %v2766
    %v2768 = vpop.f32.mrf.mxu0
    %2769 = vmatprep.mubr.bf16.mxu0 0
    %2770 = vmatmul.mubr.bf16.gmra.mxu0 %v2724
    %v2771 = vpop.f32.mrf.mxu0
    %v2772 = vadd.f32 0.0, %v2771
    %v2773 = vpop.f32.mrf.mxu0
    %v2774 = vpop.f32.mrf.mxu0
    %v2775 = vadd.f32 0.0, %v2774
    %v2776 = vpop.f32.mrf.mxu0
    %2777 = vmatprep.mubr.bf16.mxu0 0
    %2778 = vmatmul.mubr.bf16.gmra.mxu0 %v2727
    %v2779 = vpop.f32.mrf.mxu0
    %v2780 = vadd.f32 0.0, %v2779
    %v2781 = vpop.f32.mrf.mxu0
    %v2782 = vpop.f32.mrf.mxu0
    %v2783 = vadd.f32 0.0, %v2782
    %v2784 = vpop.f32.mrf.mxu0
    %2785 = vdwg.mxu0
    %v2786 = vadd.f32 %v2666, %v2764
    %v2787 = vadd.f32 %v2669, %v2767
    %v2788 = vadd.f32 %v2674, %v2772
    %v2789 = vadd.f32 %v2677, %v2775
    %v2790 = vadd.f32 %v2682, %v2780
    %v2791 = vadd.f32 %v2685, %v2783
    %v2792 = vld [vmem:[#allocation3] sm:$0x8]
    %v2793 = vld [vmem:[#allocation3 + $0x18] sm:$0x7]
    %v2794 = vld [vmem:[%s5 + $0x30] sm:$0xf]
    %v2795 = vld [vmem:[%s5 + $0x34] sm:$0xf]
    %v2796 = vld [vmem:[%s5 + $0x38] sm:$0xf]
    %v2797 = vld [vmem:[%s5 + $0x3c] sm:$0xf]
    %v2800 = vunpack.c.l.b16 %v2792
    %v2801 = vunpack.c.l.b16 %v2793
    %v2802 = vpack.c.b16 %v2511, %v2800
    %v2803 = vpack.c.b16 %v2801, %v2801
    %vm2804 = vcmask 1044480
    %v2805 = vrot.slane %v2802, 3
    %v2806 = vrot.slane %v2518, 3
    %v2807 = vsel %vm2804, %v2805, %v2806
    %v2808 = vrot.slane %v2519, 3
    %v2809 = vsel %vm2804, %v2806, %v2808
    %v2810 = vrot.slane %v2803, 3
    %v2811 = vsel %vm2804, %v2808, %v2810
    %v2816 = vunpack.c.l.b16 %v2794
    %v2817 = vunpack.c.l.b16 %v2795
    %v2818 = vunpack.c.l.b16 %v2796
    %v2819 = vunpack.c.l.b16 %v2797
    %v2820 = vpack.c.b16 %v2817, %v2816
    %v2821 = vpack.c.b16 %v2819, %v2818
    %v2825 = vsel %vm429, %v2807, 0
    %v2828 = vsel %vm429, %v2809, 0
    %v2831 = vsel %vm429, %v2811, 0
    %2833 = vmatprep.subr.bf16.mxu0 0
    %2834 = vmatpush1.bf16.msra.mxu0 0
    %2835 = vmatprep.subr.bf16.mxu0 0
    %2836 = vmatpush1.bf16.msra.mxu0 0
    %2837 = vmatprep.subr.bf16.mxu0 0
    %2838 = vmatpush1.bf16.msra.mxu0 0
    %2839 = vmatprep.subr.bf16.mxu0 0
    %2840 = vmatpush1.bf16.msra.mxu0 0
    %2841 = vmatprep.subr.bf16.mxu0 0
    %2842 = vmatpush1.bf16.msra.mxu0 0
    %2843 = vmatprep.subr.bf16.mxu0 0
    %2844 = vmatpush1.bf16.msra.mxu0 0
    %2845 = vmatprep.subr.bf16.mxu0 0
    %2846 = vmatpush1.bf16.msra.mxu0 %v2821
    %2847 = vmatprep.subr.bf16.mxu0 0
    %2848 = vmatpush1.bf16.msra.mxu0 %v2820
    %2849 = vmatprep.subr.bf16.mxu0 0
    %2850 = vmatpush2.bf16.msra.mxu0 0
    %2851 = vmatprep.subr.bf16.mxu0 0
    %2852 = vmatpush2.bf16.msra.mxu0 0
    %2853 = vmatprep.subr.bf16.mxu0 0
    %2854 = vmatpush2.bf16.msra.mxu0 0
    %2855 = vmatprep.subr.bf16.mxu0 0
    %2856 = vmatpush2.bf16.msra.mxu0 0
    %2857 = vmatprep.subr.bf16.mxu0 0
    %2858 = vmatpush2.bf16.msra.mxu0 0
    %2859 = vmatprep.subr.bf16.mxu0 0
    %2860 = vmatpush2.bf16.msra.mxu0 0
    %2861 = vmatprep.subr.bf16.mxu0 0
    %2862 = vmatpush2.bf16.msra.mxu0 0
    %2863 = vmatprep.subr.bf16.mxu0 0
    %2864 = vmatpush2.bf16.msra.mxu0 0
    %2865 = vmatprep.mubr.bf16.mxu0 0
    %2866 = vmatmul.mubr.bf16.gmra.mxu0 %v2825
    %v2867 = vpop.f32.mrf.mxu0
    %v2868 = vadd.f32 0.0, %v2867
    %v2869 = vpop.f32.mrf.mxu0
    %v2870 = vpop.f32.mrf.mxu0
    %v2871 = vadd.f32 0.0, %v2870
    %v2872 = vpop.f32.mrf.mxu0
    %2873 = vmatprep.mubr.bf16.mxu0 0
    %2874 = vmatmul.mubr.bf16.gmra.mxu0 %v2828
    %v2875 = vpop.f32.mrf.mxu0
    %v2876 = vadd.f32 0.0, %v2875
    %v2877 = vpop.f32.mrf.mxu0
    %v2878 = vpop.f32.mrf.mxu0
    %v2879 = vadd.f32 0.0, %v2878
    %v2880 = vpop.f32.mrf.mxu0
    %2881 = vmatprep.mubr.bf16.mxu0 0
    %2882 = vmatmul.mubr.bf16.gmra.mxu0 %v2831
    %v2883 = vpop.f32.mrf.mxu0
    %v2884 = vadd.f32 0.0, %v2883
    %v2885 = vpop.f32.mrf.mxu0
    %v2886 = vpop.f32.mrf.mxu0
    %v2887 = vadd.f32 0.0, %v2886
    %v2888 = vpop.f32.mrf.mxu0
    %2889 = vdwg.mxu0
    %v2890 = vadd.f32 %v2786, %v2868
    %v2891 = vadd.f32 %v2787, %v2871
    %v2892 = vadd.f32 %v2788, %v2876
    %v2893 = vadd.f32 %v2789, %v2879
    %v2894 = vadd.f32 %v2790, %v2884
    %v2895 = vadd.f32 %v2791, %v2887
    %v2896 = vld [vmem:[#allocation3 + $0x18] sm:$0xf]
    %v2897 = vld [vmem:[%s5 + $0x40] sm:$0xf]
    %v2898 = vld [vmem:[%s5 + $0x44] sm:$0xf]
    %v2899 = vld [vmem:[%s5 + $0x48] sm:$0xf]
    %v2900 = vld [vmem:[%s5 + $0x4c] sm:$0xf]
    %v2902 = vunpack.c.l.b16 %v2896
    %v2903 = vpack.c.b16 %v2512, %v2511
    %v2904 = vpack.c.b16 %v2514, %v2513
    %v2905 = vpack.c.b16 %v2902, %v2515
    %v2910 = vunpack.c.l.b16 %v2897
    %v2911 = vunpack.c.l.b16 %v2898
    %v2912 = vunpack.c.l.b16 %v2899
    %v2913 = vunpack.c.l.b16 %v2900
    %v2914 = vpack.c.b16 %v2911, %v2910
    %v2915 = vpack.c.b16 %v2913, %v2912
    %v2919 = vsel %vm429, %v2903, 0
    %v2922 = vsel %vm429, %v2904, 0
    %v2925 = vsel %vm429, %v2905, 0
    %2927 = vmatprep.subr.bf16.mxu0 0
    %2928 = vmatpush1.bf16.msra.mxu0 0
    %2929 = vmatprep.subr.bf16.mxu0 0
    %2930 = vmatpush1.bf16.msra.mxu0 0
    %2931 = vmatprep.subr.bf16.mxu0 0
    %2932 = vmatpush1.bf16.msra.mxu0 0
    %2933 = vmatprep.subr.bf16.mxu0 0
    %2934 = vmatpush1.bf16.msra.mxu0 0
    %2935 = vmatprep.subr.bf16.mxu0 0
    %2936 = vmatpush1.bf16.msra.mxu0 0
    %2937 = vmatprep.subr.bf16.mxu0 0
    %2938 = vmatpush1.bf16.msra.mxu0 0
    %2939 = vmatprep.subr.bf16.mxu0 0
    %2940 = vmatpush1.bf16.msra.mxu0 %v2915
    %2941 = vmatprep.subr.bf16.mxu0 0
    %2942 = vmatpush1.bf16.msra.mxu0 %v2914
    %2943 = vmatprep.subr.bf16.mxu0 0
    %2944 = vmatpush2.bf16.msra.mxu0 0
    %2945 = vmatprep.subr.bf16.mxu0 0
    %2946 = vmatpush2.bf16.msra.mxu0 0
    %2947 = vmatprep.subr.bf16.mxu0 0
    %2948 = vmatpush2.bf16.msra.mxu0 0
    %2949 = vmatprep.subr.bf16.mxu0 0
    %2950 = vmatpush2.bf16.msra.mxu0 0
    %2951 = vmatprep.subr.bf16.mxu0 0
    %2952 = vmatpush2.bf16.msra.mxu0 0
    %2953 = vmatprep.subr.bf16.mxu0 0
    %2954 = vmatpush2.bf16.msra.mxu0 0
    %2955 = vmatprep.subr.bf16.mxu0 0
    %2956 = vmatpush2.bf16.msra.mxu0 0
    %2957 = vmatprep.subr.bf16.mxu0 0
    %2958 = vmatpush2.bf16.msra.mxu0 0
    %2959 = vmatprep.mubr.bf16.mxu0 0
    %2960 = vmatmul.mubr.bf16.gmra.mxu0 %v2919
    %v2961 = vpop.f32.mrf.mxu0
    %v2962 = vadd.f32 0.0, %v2961
    %v2963 = vpop.f32.mrf.mxu0
    %v2964 = vpop.f32.mrf.mxu0
    %v2965 = vadd.f32 0.0, %v2964
    %v2966 = vpop.f32.mrf.mxu0
    %2967 = vmatprep.mubr.bf16.mxu0 0
    %2968 = vmatmul.mubr.bf16.gmra.mxu0 %v2922
    %v2969 = vpop.f32.mrf.mxu0
    %v2970 = vadd.f32 0.0, %v2969
    %v2971 = vpop.f32.mrf.mxu0
    %v2972 = vpop.f32.mrf.mxu0
    %v2973 = vadd.f32 0.0, %v2972
    %v2974 = vpop.f32.mrf.mxu0
    %2975 = vmatprep.mubr.bf16.mxu0 0
    %2976 = vmatmul.mubr.bf16.gmra.mxu0 %v2925
    %v2977 = vpop.f32.mrf.mxu0
    %v2978 = vadd.f32 0.0, %v2977
    %v2979 = vpop.f32.mrf.mxu0
    %v2980 = vpop.f32.mrf.mxu0
    %v2981 = vadd.f32 0.0, %v2980
    %v2982 = vpop.f32.mrf.mxu0
    %2983 = vdwg.mxu0
    %v2984 = vadd.f32 %v2890, %v2962
    %v2985 = vadd.f32 %v2891, %v2965
    %v2986 = vadd.f32 %v2892, %v2970
    %v2987 = vadd.f32 %v2893, %v2973
    %v2988 = vadd.f32 %v2894, %v2978
    %v2989 = vadd.f32 %v2895, %v2981
    %v2990 = vld [vmem:[#allocation3 + $0x4] sm:$0xe]
    %v2991 = vld [vmem:[#allocation3 + $0x8] sm:$0xf]
    %v2992 = vld [vmem:[#allocation3 + $0xc] sm:$0xf]
    %v2993 = vld [vmem:[#allocation3 + $0x10] sm:$0xf]
    %v2994 = vld [vmem:[#allocation3 + $0x14] sm:$0xf]
    %v2995 = vld [vmem:[#allocation3 + $0x18] sm:$0xf]
    %v2996 = vld [vmem:[#allocation3 + $0x1c] sm:$0x1]
    %v2997 = vld [vmem:[%s5 + $0x50] sm:$0xf]
    %v2998 = vld [vmem:[%s5 + $0x54] sm:$0xf]
    %v2999 = vld [vmem:[%s5 + $0x58] sm:$0xf]
    %v3000 = vld [vmem:[%s5 + $0x5c] sm:$0xf]
    %v3008 = vunpack.c.l.b16 %v2990
    %v3009 = vunpack.c.l.b16 %v2991
    %v3010 = vunpack.c.l.b16 %v2992
    %v3011 = vunpack.c.l.b16 %v2993
    %v3012 = vunpack.c.l.b16 %v2994
    %v3013 = vunpack.c.l.b16 %v2995
    %v3014 = vunpack.c.l.b16 %v2996
    %v3015 = vpack.c.b16 %v3009, %v3008
    %v3016 = vpack.c.b16 %v3011, %v3010
    %v3017 = vpack.c.b16 %v3013, %v3012
    %v3018 = vpack.c.b16 %v3014, %v3014
    %v3019 = vrot.slane %v3015, 1
    %v3020 = vrot.slane %v3016, 1
    %v3021 = vsel %vm2521, %v3019, %v3020
    %v3022 = vrot.slane %v3017, 1
    %v3023 = vsel %vm2521, %v3020, %v3022
    %v3024 = vrot.slane %v3018, 1
    %v3025 = vsel %vm2521, %v3022, %v3024
    %v3030 = vunpack.c.l.b16 %v2997
    %v3031 = vunpack.c.l.b16 %v2998
    %v3032 = vunpack.c.l.b16 %v2999
    %v3033 = vunpack.c.l.b16 %v3000
    %v3034 = vpack.c.b16 %v3031, %v3030
    %v3035 = vpack.c.b16 %v3033, %v3032
    %v3039 = vsel %vm429, %v3021, 0
    %v3042 = vsel %vm429, %v3023, 0
    %v3045 = vsel %vm429, %v3025, 0
    %3047 = vmatprep.subr.bf16.mxu0 0
    %3048 = vmatpush1.bf16.msra.mxu0 0
    %3049 = vmatprep.subr.bf16.mxu0 0
    %3050 = vmatpush1.bf16.msra.mxu0 0
    %3051 = vmatprep.subr.bf16.mxu0 0
    %3052 = vmatpush1.bf16.msra.mxu0 0
    %3053 = vmatprep.subr.bf16.mxu0 0
    %3054 = vmatpush1.bf16.msra.mxu0 0
    %3055 = vmatprep.subr.bf16.mxu0 0
    %3056 = vmatpush1.bf16.msra.mxu0 0
    %3057 = vmatprep.subr.bf16.mxu0 0
    %3058 = vmatpush1.bf16.msra.mxu0 0
    %3059 = vmatprep.subr.bf16.mxu0 0
    %3060 = vmatpush1.bf16.msra.mxu0 %v3035
    %3061 = vmatprep.subr.bf16.mxu0 0
    %3062 = vmatpush1.bf16.msra.mxu0 %v3034
    %3063 = vmatprep.subr.bf16.mxu0 0
    %3064 = vmatpush2.bf16.msra.mxu0 0
    %3065 = vmatprep.subr.bf16.mxu0 0
    %3066 = vmatpush2.bf16.msra.mxu0 0
    %3067 = vmatprep.subr.bf16.mxu0 0
    %3068 = vmatpush2.bf16.msra.mxu0 0
    %3069 = vmatprep.subr.bf16.mxu0 0
    %3070 = vmatpush2.bf16.msra.mxu0 0
    %3071 = vmatprep.subr.bf16.mxu0 0
    %3072 = vmatpush2.bf16.msra.mxu0 0
    %3073 = vmatprep.subr.bf16.mxu0 0
    %3074 = vmatpush2.bf16.msra.mxu0 0
    %3075 = vmatprep.subr.bf16.mxu0 0
    %3076 = vmatpush2.bf16.msra.mxu0 0
    %3077 = vmatprep.subr.bf16.mxu0 0
    %3078 = vmatpush2.bf16.msra.mxu0 0
    %3079 = vmatprep.mubr.bf16.mxu0 0
    %3080 = vmatmul.mubr.bf16.gmra.mxu0 %v3039
    %v3081 = vpop.f32.mrf.mxu0
    %v3082 = vadd.f32 0.0, %v3081
    %v3083 = vpop.f32.mrf.mxu0
    %v3084 = vpop.f32.mrf.mxu0
    %v3085 = vadd.f32 0.0, %v3084
    %v3086 = vpop.f32.mrf.mxu0
    %3087 = vmatprep.mubr.bf16.mxu0 0
    %3088 = vmatmul.mubr.bf16.gmra.mxu0 %v3042
    %v3089 = vpop.f32.mrf.mxu0
    %v3090 = vadd.f32 0.0, %v3089
    %v3091 = vpop.f32.mrf.mxu0
    %v3092 = vpop.f32.mrf.mxu0
    %v3093 = vadd.f32 0.0, %v3092
    %v3094 = vpop.f32.mrf.mxu0
    %3095 = vmatprep.mubr.bf16.mxu0 0
    %3096 = vmatmul.mubr.bf16.gmra.mxu0 %v3045
    %v3097 = vpop.f32.mrf.mxu0
    %v3098 = vadd.f32 0.0, %v3097
    %v3099 = vpop.f32.mrf.mxu0
    %v3100 = vpop.f32.mrf.mxu0
    %v3101 = vadd.f32 0.0, %v3100
    %v3102 = vpop.f32.mrf.mxu0
    %3103 = vdwg.mxu0
    %v3104 = vadd.f32 %v2984, %v3082
    %v3105 = vadd.f32 %v2985, %v3085
    %v3106 = vadd.f32 %v2986, %v3090
    %v3107 = vadd.f32 %v2987, %v3093
    %v3108 = vadd.f32 %v2988, %v3098
    %v3109 = vadd.f32 %v2989, %v3101
    %v3110 = vld [vmem:[#allocation3 + $0x4] sm:$0xc]
    %v3111 = vld [vmem:[#allocation3 + $0x1c] sm:$0x3]
    %v3112 = vld [vmem:[%s5 + $0x60] sm:$0xf]
    %v3113 = vld [vmem:[%s5 + $0x64] sm:$0xf]
    %v3114 = vld [vmem:[%s5 + $0x68] sm:$0xf]
    %v3115 = vld [vmem:[%s5 + $0x6c] sm:$0xf]
    %v3118 = vunpack.c.l.b16 %v3110
    %v3119 = vunpack.c.l.b16 %v3111
    %v3120 = vpack.c.b16 %v3009, %v3118
    %v3121 = vpack.c.b16 %v3119, %v3119
    %v3122 = vrot.slane %v3120, 2
    %v3123 = vrot.slane %v3016, 2
    %v3124 = vsel %vm2700, %v3122, %v3123
    %v3125 = vrot.slane %v3017, 2
    %v3126 = vsel %vm2700, %v3123, %v3125
    %v3127 = vrot.slane %v3121, 2
    %v3128 = vsel %vm2700, %v3125, %v3127
    %v3133 = vunpack.c.l.b16 %v3112
    %v3134 = vunpack.c.l.b16 %v3113
    %v3135 = vunpack.c.l.b16 %v3114
    %v3136 = vunpack.c.l.b16 %v3115
    %v3137 = vpack.c.b16 %v3134, %v3133
    %v3138 = vpack.c.b16 %v3136, %v3135
    %v3142 = vsel %vm429, %v3124, 0
    %v3145 = vsel %vm429, %v3126, 0
    %v3148 = vsel %vm429, %v3128, 0
    %3150 = vmatprep.subr.bf16.mxu0 0
    %3151 = vmatpush1.bf16.msra.mxu0 0
    %3152 = vmatprep.subr.bf16.mxu0 0
    %3153 = vmatpush1.bf16.msra.mxu0 0
    %3154 = vmatprep.subr.bf16.mxu0 0
    %3155 = vmatpush1.bf16.msra.mxu0 0
    %3156 = vmatprep.subr.bf16.mxu0 0
    %3157 = vmatpush1.bf16.msra.mxu0 0
    %3158 = vmatprep.subr.bf16.mxu0 0
    %3159 = vmatpush1.bf16.msra.mxu0 0
    %3160 = vmatprep.subr.bf16.mxu0 0
    %3161 = vmatpush1.bf16.msra.mxu0 0
    %3162 = vmatprep.subr.bf16.mxu0 0
    %3163 = vmatpush1.bf16.msra.mxu0 %v3138
    %3164 = vmatprep.subr.bf16.mxu0 0
    %3165 = vmatpush1.bf16.msra.mxu0 %v3137
    %3166 = vmatprep.subr.bf16.mxu0 0
    %3167 = vmatpush2.bf16.msra.mxu0 0
    %3168 = vmatprep.subr.bf16.mxu0 0
    %3169 = vmatpush2.bf16.msra.mxu0 0
    %3170 = vmatprep.subr.bf16.mxu0 0
    %3171 = vmatpush2.bf16.msra.mxu0 0
    %3172 = vmatprep.subr.bf16.mxu0 0
    %3173 = vmatpush2.bf16.msra.mxu0 0
    %3174 = vmatprep.subr.bf16.mxu0 0
    %3175 = vmatpush2.bf16.msra.mxu0 0
    %3176 = vmatprep.subr.bf16.mxu0 0
    %3177 = vmatpush2.bf16.msra.mxu0 0
    %3178 = vmatprep.subr.bf16.mxu0 0
    %3179 = vmatpush2.bf16.msra.mxu0 0
    %3180 = vmatprep.subr.bf16.mxu0 0
    %3181 = vmatpush2.bf16.msra.mxu0 0
    %3182 = vmatprep.mubr.bf16.mxu0 0
    %3183 = vmatmul.mubr.bf16.gmra.mxu0 %v3142
    %v3184 = vpop.f32.mrf.mxu0
    %v3185 = vadd.f32 0.0, %v3184
    %v3186 = vpop.f32.mrf.mxu0
    %v3187 = vpop.f32.mrf.mxu0
    %v3188 = vadd.f32 0.0, %v3187
    %v3189 = vpop.f32.mrf.mxu0
    %3190 = vmatprep.mubr.bf16.mxu0 0
    %3191 = vmatmul.mubr.bf16.gmra.mxu0 %v3145
    %v3192 = vpop.f32.mrf.mxu0
    %v3193 = vadd.f32 0.0, %v3192
    %v3194 = vpop.f32.mrf.mxu0
    %v3195 = vpop.f32.mrf.mxu0
    %v3196 = vadd.f32 0.0, %v3195
    %v3197 = vpop.f32.mrf.mxu0
    %3198 = vmatprep.mubr.bf16.mxu0 0
    %3199 = vmatmul.mubr.bf16.gmra.mxu0 %v3148
    %v3200 = vpop.f32.mrf.mxu0
    %v3201 = vadd.f32 0.0, %v3200
    %v3202 = vpop.f32.mrf.mxu0
    %v3203 = vpop.f32.mrf.mxu0
    %v3204 = vadd.f32 0.0, %v3203
    %v3205 = vpop.f32.mrf.mxu0
    %3206 = vdwg.mxu0
    %v3207 = vadd.f32 %v3104, %v3185
    %v3208 = vadd.f32 %v3105, %v3188
    %v3209 = vadd.f32 %v3106, %v3193
    %v3210 = vadd.f32 %v3107, %v3196
    %v3211 = vadd.f32 %v3108, %v3201
    %v3212 = vadd.f32 %v3109, %v3204
    %v3213 = vld [vmem:[#allocation3 + $0x4] sm:$0x8]
    %v3214 = vld [vmem:[#allocation3 + $0x1c] sm:$0x7]
    %v3215 = vld [vmem:[%s5 + $0x70] sm:$0xf]
    %v3216 = vld [vmem:[%s5 + $0x74] sm:$0xf]
    %v3217 = vld [vmem:[%s5 + $0x78] sm:$0xf]
    %v3218 = vld [vmem:[%s5 + $0x7c] sm:$0xf]
    %v3221 = vunpack.c.l.b16 %v3213
    %v3222 = vunpack.c.l.b16 %v3214
    %v3223 = vpack.c.b16 %v3009, %v3221
    %v3224 = vpack.c.b16 %v3222, %v3222
    %v3225 = vrot.slane %v3223, 3
    %v3226 = vrot.slane %v3016, 3
    %v3227 = vsel %vm2804, %v3225, %v3226
    %v3228 = vrot.slane %v3017, 3
    %v3229 = vsel %vm2804, %v3226, %v3228
    %v3230 = vrot.slane %v3224, 3
    %v3231 = vsel %vm2804, %v3228, %v3230
    %v3236 = vunpack.c.l.b16 %v3215
    %v3237 = vunpack.c.l.b16 %v3216
    %v3238 = vunpack.c.l.b16 %v3217
    %v3239 = vunpack.c.l.b16 %v3218
    %v3240 = vpack.c.b16 %v3237, %v3236
    %v3241 = vpack.c.b16 %v3239, %v3238
    %v3245 = vsel %vm429, %v3227, 0
    %v3248 = vsel %vm429, %v3229, 0
    %v3251 = vsel %vm429, %v3231, 0
    %3253 = vmatprep.subr.bf16.mxu0 0
    %3254 = vmatpush1.bf16.msra.mxu0 0
    %3255 = vmatprep.subr.bf16.mxu0 0
    %3256 = vmatpush1.bf16.msra.mxu0 0
    %3257 = vmatprep.subr.bf16.mxu0 0
    %3258 = vmatpush1.bf16.msra.mxu0 0
    %3259 = vmatprep.subr.bf16.mxu0 0
    %3260 = vmatpush1.bf16.msra.mxu0 0
    %3261 = vmatprep.subr.bf16.mxu0 0
    %3262 = vmatpush1.bf16.msra.mxu0 0
    %3263 = vmatprep.subr.bf16.mxu0 0
    %3264 = vmatpush1.bf16.msra.mxu0 0
    %3265 = vmatprep.subr.bf16.mxu0 0
    %3266 = vmatpush1.bf16.msra.mxu0 %v3241
    %3267 = vmatprep.subr.bf16.mxu0 0
    %3268 = vmatpush1.bf16.msra.mxu0 %v3240
    %3269 = vmatprep.subr.bf16.mxu0 0
    %3270 = vmatpush2.bf16.msra.mxu0 0
    %3271 = vmatprep.subr.bf16.mxu0 0
    %3272 = vmatpush2.bf16.msra.mxu0 0
    %3273 = vmatprep.subr.bf16.mxu0 0
    %3274 = vmatpush2.bf16.msra.mxu0 0
    %3275 = vmatprep.subr.bf16.mxu0 0
    %3276 = vmatpush2.bf16.msra.mxu0 0
    %3277 = vmatprep.subr.bf16.mxu0 0
    %3278 = vmatpush2.bf16.msra.mxu0 0
    %3279 = vmatprep.subr.bf16.mxu0 0
    %3280 = vmatpush2.bf16.msra.mxu0 0
    %3281 = vmatprep.subr.bf16.mxu0 0
    %3282 = vmatpush2.bf16.msra.mxu0 0
    %3283 = vmatprep.subr.bf16.mxu0 0
    %3284 = vmatpush2.bf16.msra.mxu0 0
    %3285 = vmatprep.mubr.bf16.mxu0 0
    %3286 = vmatmul.mubr.bf16.gmra.mxu0 %v3245
    %v3287 = vpop.f32.mrf.mxu0
    %v3288 = vadd.f32 0.0, %v3287
    %v3289 = vpop.f32.mrf.mxu0
    %v3290 = vpop.f32.mrf.mxu0
    %v3291 = vadd.f32 0.0, %v3290
    %v3292 = vpop.f32.mrf.mxu0
    %3293 = vmatprep.mubr.bf16.mxu0 0
    %3294 = vmatmul.mubr.bf16.gmra.mxu0 %v3248
    %v3295 = vpop.f32.mrf.mxu0
    %v3296 = vadd.f32 0.0, %v3295
    %v3297 = vpop.f32.mrf.mxu0
    %v3298 = vpop.f32.mrf.mxu0
    %v3299 = vadd.f32 0.0, %v3298
    %v3300 = vpop.f32.mrf.mxu0
    %3301 = vmatprep.mubr.bf16.mxu0 0
    %3302 = vmatmul.mubr.bf16.gmra.mxu0 %v3251
    %v3303 = vpop.f32.mrf.mxu0
    %v3304 = vadd.f32 0.0, %v3303
    %v3305 = vpop.f32.mrf.mxu0
    %v3306 = vpop.f32.mrf.mxu0
    %v3307 = vadd.f32 0.0, %v3306
    %v3308 = vpop.f32.mrf.mxu0
    %3309 = vdwg.mxu0
    %v3310 = vadd.f32 %v3207, %v3288
    %v3311 = vadd.f32 %v3208, %v3291
    %v3312 = vadd.f32 %v3209, %v3296
    %v3313 = vadd.f32 %v3210, %v3299
    %v3314 = vadd.f32 %v3211, %v3304
    %v3315 = vadd.f32 %v3212, %v3307
    %v3316 = vld [vmem:[#allocation3 + $0x1c] sm:$0xf]
    %v3317 = vld [vmem:[%s5 + $0x80] sm:$0xf]
    %v3318 = vld [vmem:[%s5 + $0x84] sm:$0xf]
    %v3319 = vld [vmem:[%s5 + $0x88] sm:$0xf]
    %v3320 = vld [vmem:[%s5 + $0x8c] sm:$0xf]
    %v3322 = vunpack.c.l.b16 %v3316
    %v3323 = vpack.c.b16 %v3010, %v3009
    %v3324 = vpack.c.b16 %v3012, %v3011
    %v3325 = vpack.c.b16 %v3322, %v3013
    %v3330 = vunpack.c.l.b16 %v3317
    %v3331 = vunpack.c.l.b16 %v3318
    %v3332 = vunpack.c.l.b16 %v3319
    %v3333 = vunpack.c.l.b16 %v3320
    %v3334 = vpack.c.b16 %v3331, %v3330
    %v3335 = vpack.c.b16 %v3333, %v3332
    %v3339 = vsel %vm429, %v3323, 0
    %v3342 = vsel %vm429, %v3324, 0
    %v3345 = vsel %vm429, %v3325, 0
    %3347 = vmatprep.subr.bf16.mxu0 0
    %3348 = vmatpush1.bf16.msra.mxu0 0
    %3349 = vmatprep.subr.bf16.mxu0 0
    %3350 = vmatpush1.bf16.msra.mxu0 0
    %3351 = vmatprep.subr.bf16.mxu0 0
    %3352 = vmatpush1.bf16.msra.mxu0 0
    %3353 = vmatprep.subr.bf16.mxu0 0
    %3354 = vmatpush1.bf16.msra.mxu0 0
    %3355 = vmatprep.subr.bf16.mxu0 0
    %3356 = vmatpush1.bf16.msra.mxu0 0
    %3357 = vmatprep.subr.bf16.mxu0 0
    %3358 = vmatpush1.bf16.msra.mxu0 0
    %3359 = vmatprep.subr.bf16.mxu0 0
    %3360 = vmatpush1.bf16.msra.mxu0 %v3335
    %3361 = vmatprep.subr.bf16.mxu0 0
    %3362 = vmatpush1.bf16.msra.mxu0 %v3334
    %3363 = vmatprep.subr.bf16.mxu0 0
    %3364 = vmatpush2.bf16.msra.mxu0 0
    %3365 = vmatprep.subr.bf16.mxu0 0
    %3366 = vmatpush2.bf16.msra.mxu0 0
    %3367 = vmatprep.subr.bf16.mxu0 0
    %3368 = vmatpush2.bf16.msra.mxu0 0
    %3369 = vmatprep.subr.bf16.mxu0 0
    %3370 = vmatpush2.bf16.msra.mxu0 0
    %3371 = vmatprep.subr.bf16.mxu0 0
    %3372 = vmatpush2.bf16.msra.mxu0 0
    %3373 = vmatprep.subr.bf16.mxu0 0
    %3374 = vmatpush2.bf16.msra.mxu0 0
    %3375 = vmatprep.subr.bf16.mxu0 0
    %3376 = vmatpush2.bf16.msra.mxu0 0
    %3377 = vmatprep.subr.bf16.mxu0 0
    %3378 = vmatpush2.bf16.msra.mxu0 0
    %3379 = vmatprep.mubr.bf16.mxu0 0
    %3380 = vmatmul.mubr.bf16.gmra.mxu0 %v3339
    %v3381 = vpop.f32.mrf.mxu0
    %v3382 = vadd.f32 0.0, %v3381
    %v3383 = vpop.f32.mrf.mxu0
    %v3384 = vpop.f32.mrf.mxu0
    %v3385 = vadd.f32 0.0, %v3384
    %v3386 = vpop.f32.mrf.mxu0
    %3387 = vmatprep.mubr.bf16.mxu0 0
    %3388 = vmatmul.mubr.bf16.gmra.mxu0 %v3342
    %v3389 = vpop.f32.mrf.mxu0
    %v3390 = vadd.f32 0.0, %v3389
    %v3391 = vpop.f32.mrf.mxu0
    %v3392 = vpop.f32.mrf.mxu0
    %v3393 = vadd.f32 0.0, %v3392
    %v3394 = vpop.f32.mrf.mxu0
    %3395 = vmatprep.mubr.bf16.mxu0 0
    %3396 = vmatmul.mubr.bf16.gmra.mxu0 %v3345
    %v3397 = vpop.f32.mrf.mxu0
    %v3398 = vadd.f32 0.0, %v3397
    %v3399 = vpop.f32.mrf.mxu0
    %v3400 = vpop.f32.mrf.mxu0
    %v3401 = vadd.f32 0.0, %v3400
    %v3402 = vpop.f32.mrf.mxu0
    %3403 = vdwg.mxu0
    %v3404 = vadd.f32 %v3310, %v3382
    %v3405 = vadd.f32 %v3311, %v3385
    %v3406 = vadd.f32 %v3312, %v3390
    %v3407 = vadd.f32 %v3313, %v3393
    %v3408 = vadd.f32 %v3314, %v3398
    %v3409 = vadd.f32 %v3315, %v3401
    %v3410 = vld [vmem:[#allocation3 + $0x8] sm:$0xe]
    %v3411 = vld [vmem:[#allocation3 + $0xc] sm:$0xf]
    %v3412 = vld [vmem:[#allocation3 + $0x10] sm:$0xf]
    %v3413 = vld [vmem:[#allocation3 + $0x14] sm:$0xf]
    %v3414 = vld [vmem:[#allocation3 + $0x18] sm:$0xf]
    %v3415 = vld [vmem:[#allocation3 + $0x1c] sm:$0xf]
    %v3416 = vld [vmem:[#allocation3 + $0x20] sm:$0x1]
    %v3417 = vld [vmem:[%s5 + $0x90] sm:$0xf]
    %v3418 = vld [vmem:[%s5 + $0x94] sm:$0xf]
    %v3419 = vld [vmem:[%s5 + $0x98] sm:$0xf]
    %v3420 = vld [vmem:[%s5 + $0x9c] sm:$0xf]
    %v3428 = vunpack.c.l.b16 %v3410
    %v3429 = vunpack.c.l.b16 %v3411
    %v3430 = vunpack.c.l.b16 %v3412
    %v3431 = vunpack.c.l.b16 %v3413
    %v3432 = vunpack.c.l.b16 %v3414
    %v3433 = vunpack.c.l.b16 %v3415
    %v3434 = vunpack.c.l.b16 %v3416
    %v3435 = vpack.c.b16 %v3429, %v3428
    %v3436 = vpack.c.b16 %v3431, %v3430
    %v3437 = vpack.c.b16 %v3433, %v3432
    %v3438 = vpack.c.b16 %v3434, %v3434
    %v3439 = vrot.slane %v3435, 1
    %v3440 = vrot.slane %v3436, 1
    %v3441 = vsel %vm2521, %v3439, %v3440
    %v3442 = vrot.slane %v3437, 1
    %v3443 = vsel %vm2521, %v3440, %v3442
    %v3444 = vrot.slane %v3438, 1
    %v3445 = vsel %vm2521, %v3442, %v3444
    %v3450 = vunpack.c.l.b16 %v3417
    %v3451 = vunpack.c.l.b16 %v3418
    %v3452 = vunpack.c.l.b16 %v3419
    %v3453 = vunpack.c.l.b16 %v3420
    %v3454 = vpack.c.b16 %v3451, %v3450
    %v3455 = vpack.c.b16 %v3453, %v3452
    %v3459 = vsel %vm429, %v3441, 0
    %v3462 = vsel %vm429, %v3443, 0
    %v3465 = vsel %vm429, %v3445, 0
    %3467 = vmatprep.subr.bf16.mxu0 0
    %3468 = vmatpush1.bf16.msra.mxu0 0
    %3469 = vmatprep.subr.bf16.mxu0 0
    %3470 = vmatpush1.bf16.msra.mxu0 0
    %3471 = vmatprep.subr.bf16.mxu0 0
    %3472 = vmatpush1.bf16.msra.mxu0 0
    %3473 = vmatprep.subr.bf16.mxu0 0
    %3474 = vmatpush1.bf16.msra.mxu0 0
    %3475 = vmatprep.subr.bf16.mxu0 0
    %3476 = vmatpush1.bf16.msra.mxu0 0
    %3477 = vmatprep.subr.bf16.mxu0 0
    %3478 = vmatpush1.bf16.msra.mxu0 0
    %3479 = vmatprep.subr.bf16.mxu0 0
    %3480 = vmatpush1.bf16.msra.mxu0 %v3455
    %3481 = vmatprep.subr.bf16.mxu0 0
    %3482 = vmatpush1.bf16.msra.mxu0 %v3454
    %3483 = vmatprep.subr.bf16.mxu0 0
    %3484 = vmatpush2.bf16.msra.mxu0 0
    %3485 = vmatprep.subr.bf16.mxu0 0
    %3486 = vmatpush2.bf16.msra.mxu0 0
    %3487 = vmatprep.subr.bf16.mxu0 0
    %3488 = vmatpush2.bf16.msra.mxu0 0
    %3489 = vmatprep.subr.bf16.mxu0 0
    %3490 = vmatpush2.bf16.msra.mxu0 0
    %3491 = vmatprep.subr.bf16.mxu0 0
    %3492 = vmatpush2.bf16.msra.mxu0 0
    %3493 = vmatprep.subr.bf16.mxu0 0
    %3494 = vmatpush2.bf16.msra.mxu0 0
    %3495 = vmatprep.subr.bf16.mxu0 0
    %3496 = vmatpush2.bf16.msra.mxu0 0
    %3497 = vmatprep.subr.bf16.mxu0 0
    %3498 = vmatpush2.bf16.msra.mxu0 0
    %3499 = vmatprep.mubr.bf16.mxu0 0
    %3500 = vmatmul.mubr.bf16.gmra.mxu0 %v3459
    %v3501 = vpop.f32.mrf.mxu0
    %v3502 = vadd.f32 0.0, %v3501
    %v3503 = vpop.f32.mrf.mxu0
    %v3504 = vpop.f32.mrf.mxu0
    %v3505 = vadd.f32 0.0, %v3504
    %v3506 = vpop.f32.mrf.mxu0
    %3507 = vmatprep.mubr.bf16.mxu0 0
    %3508 = vmatmul.mubr.bf16.gmra.mxu0 %v3462
    %v3509 = vpop.f32.mrf.mxu0
    %v3510 = vadd.f32 0.0, %v3509
    %v3511 = vpop.f32.mrf.mxu0
    %v3512 = vpop.f32.mrf.mxu0
    %v3513 = vadd.f32 0.0, %v3512
    %v3514 = vpop.f32.mrf.mxu0
    %3515 = vmatprep.mubr.bf16.mxu0 0
    %3516 = vmatmul.mubr.bf16.gmra.mxu0 %v3465
    %v3517 = vpop.f32.mrf.mxu0
    %v3518 = vadd.f32 0.0, %v3517
    %v3519 = vpop.f32.mrf.mxu0
    %v3520 = vpop.f32.mrf.mxu0
    %v3521 = vadd.f32 0.0, %v3520
    %v3522 = vpop.f32.mrf.mxu0
    %3523 = vdwg.mxu0
    %v3524 = vadd.f32 %v3404, %v3502
    %v3525 = vadd.f32 %v3405, %v3505
    %v3526 = vadd.f32 %v3406, %v3510
    %v3527 = vadd.f32 %v3407, %v3513
    %v3528 = vadd.f32 %v3408, %v3518
    %v3529 = vadd.f32 %v3409, %v3521
    %v3530 = vld [vmem:[#allocation3 + $0x8] sm:$0xc]
    %v3531 = vld [vmem:[#allocation3 + $0x20] sm:$0x3]
    %v3532 = vld [vmem:[%s5 + $0xa0] sm:$0xf]
    %v3533 = vld [vmem:[%s5 + $0xa4] sm:$0xf]
    %v3534 = vld [vmem:[%s5 + $0xa8] sm:$0xf]
    %v3535 = vld [vmem:[%s5 + $0xac] sm:$0xf]
    %v3538 = vunpack.c.l.b16 %v3530
    %v3539 = vunpack.c.l.b16 %v3531
    %v3540 = vpack.c.b16 %v3429, %v3538
    %v3541 = vpack.c.b16 %v3539, %v3539
    %v3542 = vrot.slane %v3540, 2
    %v3543 = vrot.slane %v3436, 2
    %v3544 = vsel %vm2700, %v3542, %v3543
    %v3545 = vrot.slane %v3437, 2
    %v3546 = vsel %vm2700, %v3543, %v3545
    %v3547 = vrot.slane %v3541, 2
    %v3548 = vsel %vm2700, %v3545, %v3547
    %v3553 = vunpack.c.l.b16 %v3532
    %v3554 = vunpack.c.l.b16 %v3533
    %v3555 = vunpack.c.l.b16 %v3534
    %v3556 = vunpack.c.l.b16 %v3535
    %v3557 = vpack.c.b16 %v3554, %v3553
    %v3558 = vpack.c.b16 %v3556, %v3555
    %v3562 = vsel %vm429, %v3544, 0
    %v3565 = vsel %vm429, %v3546, 0
    %v3568 = vsel %vm429, %v3548, 0
    %3570 = vmatprep.subr.bf16.mxu0 0
    %3571 = vmatpush1.bf16.msra.mxu0 0
    %3572 = vmatprep.subr.bf16.mxu0 0
    %3573 = vmatpush1.bf16.msra.mxu0 0
    %3574 = vmatprep.subr.bf16.mxu0 0
    %3575 = vmatpush1.bf16.msra.mxu0 0
    %3576 = vmatprep.subr.bf16.mxu0 0
    %3577 = vmatpush1.bf16.msra.mxu0 0
    %3578 = vmatprep.subr.bf16.mxu0 0
    %3579 = vmatpush1.bf16.msra.mxu0 0
    %3580 = vmatprep.subr.bf16.mxu0 0
    %3581 = vmatpush1.bf16.msra.mxu0 0
    %3582 = vmatprep.subr.bf16.mxu0 0
    %3583 = vmatpush1.bf16.msra.mxu0 %v3558
    %3584 = vmatprep.subr.bf16.mxu0 0
    %3585 = vmatpush1.bf16.msra.mxu0 %v3557
    %3586 = vmatprep.subr.bf16.mxu0 0
    %3587 = vmatpush2.bf16.msra.mxu0 0
    %3588 = vmatprep.subr.bf16.mxu0 0
    %3589 = vmatpush2.bf16.msra.mxu0 0
    %3590 = vmatprep.subr.bf16.mxu0 0
    %3591 = vmatpush2.bf16.msra.mxu0 0
    %3592 = vmatprep.subr.bf16.mxu0 0
    %3593 = vmatpush2.bf16.msra.mxu0 0
    %3594 = vmatprep.subr.bf16.mxu0 0
    %3595 = vmatpush2.bf16.msra.mxu0 0
    %3596 = vmatprep.subr.bf16.mxu0 0
    %3597 = vmatpush2.bf16.msra.mxu0 0
    %3598 = vmatprep.subr.bf16.mxu0 0
    %3599 = vmatpush2.bf16.msra.mxu0 0
    %3600 = vmatprep.subr.bf16.mxu0 0
    %3601 = vmatpush2.bf16.msra.mxu0 0
    %3602 = vmatprep.mubr.bf16.mxu0 0
    %3603 = vmatmul.mubr.bf16.gmra.mxu0 %v3562
    %v3604 = vpop.f32.mrf.mxu0
    %v3605 = vadd.f32 0.0, %v3604
    %v3606 = vpop.f32.mrf.mxu0
    %v3607 = vpop.f32.mrf.mxu0
    %v3608 = vadd.f32 0.0, %v3607
    %v3609 = vpop.f32.mrf.mxu0
    %3610 = vmatprep.mubr.bf16.mxu0 0
    %3611 = vmatmul.mubr.bf16.gmra.mxu0 %v3565
    %v3612 = vpop.f32.mrf.mxu0
    %v3613 = vadd.f32 0.0, %v3612
    %v3614 = vpop.f32.mrf.mxu0
    %v3615 = vpop.f32.mrf.mxu0
    %v3616 = vadd.f32 0.0, %v3615
    %v3617 = vpop.f32.mrf.mxu0
    %3618 = vmatprep.mubr.bf16.mxu0 0
    %3619 = vmatmul.mubr.bf16.gmra.mxu0 %v3568
    %v3620 = vpop.f32.mrf.mxu0
    %v3621 = vadd.f32 0.0, %v3620
    %v3622 = vpop.f32.mrf.mxu0
    %v3623 = vpop.f32.mrf.mxu0
    %v3624 = vadd.f32 0.0, %v3623
    %v3625 = vpop.f32.mrf.mxu0
    %3626 = vdwg.mxu0
    %v3627 = vadd.f32 %v3524, %v3605
    %v3628 = vadd.f32 %v3525, %v3608
    %v3629 = vadd.f32 %v3526, %v3613
    %v3630 = vadd.f32 %v3527, %v3616
    %v3631 = vadd.f32 %v3528, %v3621
    %v3632 = vadd.f32 %v3529, %v3624
    %v3633 = vld [vmem:[#allocation3 + $0x8] sm:$0x8]
    %v3634 = vld [vmem:[#allocation3 + $0x20] sm:$0x7]
    %v3635 = vld [vmem:[%s5 + $0xb0] sm:$0xf]
    %v3636 = vld [vmem:[%s5 + $0xb4] sm:$0xf]
    %v3637 = vld [vmem:[%s5 + $0xb8] sm:$0xf]
    %v3638 = vld [vmem:[%s5 + $0xbc] sm:$0xf]
    %v3641 = vunpack.c.l.b16 %v3633
    %v3642 = vunpack.c.l.b16 %v3634
    %v3643 = vpack.c.b16 %v3429, %v3641
    %v3644 = vpack.c.b16 %v3642, %v3642
    %v3645 = vrot.slane %v3643, 3
    %v3646 = vrot.slane %v3436, 3
    %v3647 = vsel %vm2804, %v3645, %v3646
    %v3648 = vrot.slane %v3437, 3
    %v3649 = vsel %vm2804, %v3646, %v3648
    %v3650 = vrot.slane %v3644, 3
    %v3651 = vsel %vm2804, %v3648, %v3650
    %v3656 = vunpack.c.l.b16 %v3635
    %v3657 = vunpack.c.l.b16 %v3636
    %v3658 = vunpack.c.l.b16 %v3637
    %v3659 = vunpack.c.l.b16 %v3638
    %v3660 = vpack.c.b16 %v3657, %v3656
    %v3661 = vpack.c.b16 %v3659, %v3658
    %v3665 = vsel %vm429, %v3647, 0
    %v3668 = vsel %vm429, %v3649, 0
    %v3671 = vsel %vm429, %v3651, 0
    %3673 = vmatprep.subr.bf16.mxu0 0
    %3674 = vmatpush1.bf16.msra.mxu0 0
    %3675 = vmatprep.subr.bf16.mxu0 0
    %3676 = vmatpush1.bf16.msra.mxu0 0
    %3677 = vmatprep.subr.bf16.mxu0 0
    %3678 = vmatpush1.bf16.msra.mxu0 0
    %3679 = vmatprep.subr.bf16.mxu0 0
    %3680 = vmatpush1.bf16.msra.mxu0 0
    %3681 = vmatprep.subr.bf16.mxu0 0
    %3682 = vmatpush1.bf16.msra.mxu0 0
    %3683 = vmatprep.subr.bf16.mxu0 0
    %3684 = vmatpush1.bf16.msra.mxu0 0
    %3685 = vmatprep.subr.bf16.mxu0 0
    %3686 = vmatpush1.bf16.msra.mxu0 %v3661
    %3687 = vmatprep.subr.bf16.mxu0 0
    %3688 = vmatpush1.bf16.msra.mxu0 %v3660
    %3689 = vmatprep.subr.bf16.mxu0 0
    %3690 = vmatpush2.bf16.msra.mxu0 0
    %3691 = vmatprep.subr.bf16.mxu0 0
    %3692 = vmatpush2.bf16.msra.mxu0 0
    %3693 = vmatprep.subr.bf16.mxu0 0
    %3694 = vmatpush2.bf16.msra.mxu0 0
    %3695 = vmatprep.subr.bf16.mxu0 0
    %3696 = vmatpush2.bf16.msra.mxu0 0
    %3697 = vmatprep.subr.bf16.mxu0 0
    %3698 = vmatpush2.bf16.msra.mxu0 0
    %3699 = vmatprep.subr.bf16.mxu0 0
    %3700 = vmatpush2.bf16.msra.mxu0 0
    %3701 = vmatprep.subr.bf16.mxu0 0
    %3702 = vmatpush2.bf16.msra.mxu0 0
    %3703 = vmatprep.subr.bf16.mxu0 0
    %3704 = vmatpush2.bf16.msra.mxu0 0
    %3705 = vmatprep.mubr.bf16.mxu0 0
    %3706 = vmatmul.mubr.bf16.gmra.mxu0 %v3665
    %v3707 = vpop.f32.mrf.mxu0
    %v3708 = vadd.f32 0.0, %v3707
    %v3709 = vpop.f32.mrf.mxu0
    %v3710 = vpop.f32.mrf.mxu0
    %v3711 = vadd.f32 0.0, %v3710
    %v3712 = vpop.f32.mrf.mxu0
    %3713 = vmatprep.mubr.bf16.mxu0 0
    %3714 = vmatmul.mubr.bf16.gmra.mxu0 %v3668
    %v3715 = vpop.f32.mrf.mxu0
    %v3716 = vadd.f32 0.0, %v3715
    %v3717 = vpop.f32.mrf.mxu0
    %v3718 = vpop.f32.mrf.mxu0
    %v3719 = vadd.f32 0.0, %v3718
    %v3720 = vpop.f32.mrf.mxu0
    %3721 = vmatprep.mubr.bf16.mxu0 0
    %3722 = vmatmul.mubr.bf16.gmra.mxu0 %v3671
    %v3723 = vpop.f32.mrf.mxu0
    %v3724 = vadd.f32 0.0, %v3723
    %v3725 = vpop.f32.mrf.mxu0
    %v3726 = vpop.f32.mrf.mxu0
    %v3727 = vadd.f32 0.0, %v3726
    %v3728 = vpop.f32.mrf.mxu0
    %3729 = vdwg.mxu0
    %v3730 = vadd.f32 %v3627, %v3708
    %v3731 = vadd.f32 %v3628, %v3711
    %v3732 = vadd.f32 %v3629, %v3716
    %v3733 = vadd.f32 %v3630, %v3719
    %v3734 = vadd.f32 %v3631, %v3724
    %v3735 = vadd.f32 %v3632, %v3727
    %v3736 = vld [vmem:[#allocation3 + $0x20] sm:$0xf]
    %v3737 = vld [vmem:[%s5 + $0xc0] sm:$0xf]
    %v3738 = vld [vmem:[%s5 + $0xc4] sm:$0xf]
    %v3739 = vld [vmem:[%s5 + $0xc8] sm:$0xf]
    %v3740 = vld [vmem:[%s5 + $0xcc] sm:$0xf]
    %v3742 = vunpack.c.l.b16 %v3736
    %v3743 = vpack.c.b16 %v3430, %v3429
    %v3744 = vpack.c.b16 %v3432, %v3431
    %v3745 = vpack.c.b16 %v3742, %v3433
    %v3750 = vunpack.c.l.b16 %v3737
    %v3751 = vunpack.c.l.b16 %v3738
    %v3752 = vunpack.c.l.b16 %v3739
    %v3753 = vunpack.c.l.b16 %v3740
    %v3754 = vpack.c.b16 %v3751, %v3750
    %v3755 = vpack.c.b16 %v3753, %v3752
    %v3759 = vsel %vm429, %v3743, 0
    %v3762 = vsel %vm429, %v3744, 0
    %v3765 = vsel %vm429, %v3745, 0
    %3767 = vmatprep.subr.bf16.mxu0 0
    %3768 = vmatpush1.bf16.msra.mxu0 0
    %3769 = vmatprep.subr.bf16.mxu0 0
    %3770 = vmatpush1.bf16.msra.mxu0 0
    %3771 = vmatprep.subr.bf16.mxu0 0
    %3772 = vmatpush1.bf16.msra.mxu0 0
    %3773 = vmatprep.subr.bf16.mxu0 0
    %3774 = vmatpush1.bf16.msra.mxu0 0
    %3775 = vmatprep.subr.bf16.mxu0 0
    %3776 = vmatpush1.bf16.msra.mxu0 0
    %3777 = vmatprep.subr.bf16.mxu0 0
    %3778 = vmatpush1.bf16.msra.mxu0 0
    %3779 = vmatprep.subr.bf16.mxu0 0
    %3780 = vmatpush1.bf16.msra.mxu0 %v3755
    %3781 = vmatprep.subr.bf16.mxu0 0
    %3782 = vmatpush1.bf16.msra.mxu0 %v3754
    %3783 = vmatprep.subr.bf16.mxu0 0
    %3784 = vmatpush2.bf16.msra.mxu0 0
    %3785 = vmatprep.subr.bf16.mxu0 0
    %3786 = vmatpush2.bf16.msra.mxu0 0
    %3787 = vmatprep.subr.bf16.mxu0 0
    %3788 = vmatpush2.bf16.msra.mxu0 0
    %3789 = vmatprep.subr.bf16.mxu0 0
    %3790 = vmatpush2.bf16.msra.mxu0 0
    %3791 = vmatprep.subr.bf16.mxu0 0
    %3792 = vmatpush2.bf16.msra.mxu0 0
    %3793 = vmatprep.subr.bf16.mxu0 0
    %3794 = vmatpush2.bf16.msra.mxu0 0
    %3795 = vmatprep.subr.bf16.mxu0 0
    %3796 = vmatpush2.bf16.msra.mxu0 0
    %3797 = vmatprep.subr.bf16.mxu0 0
    %3798 = vmatpush2.bf16.msra.mxu0 0
    %3799 = vmatprep.mubr.bf16.mxu0 0
    %3800 = vmatmul.mubr.bf16.gmra.mxu0 %v3759
    %v3801 = vpop.f32.mrf.mxu0
    %v3802 = vadd.f32 0.0, %v3801
    %v3803 = vpop.f32.mrf.mxu0
    %v3804 = vpop.f32.mrf.mxu0
    %v3805 = vadd.f32 0.0, %v3804
    %v3806 = vpop.f32.mrf.mxu0
    %3807 = vmatprep.mubr.bf16.mxu0 0
    %3808 = vmatmul.mubr.bf16.gmra.mxu0 %v3762
    %v3809 = vpop.f32.mrf.mxu0
    %v3810 = vadd.f32 0.0, %v3809
    %v3811 = vpop.f32.mrf.mxu0
    %v3812 = vpop.f32.mrf.mxu0
    %v3813 = vadd.f32 0.0, %v3812
    %v3814 = vpop.f32.mrf.mxu0
    %3815 = vmatprep.mubr.bf16.mxu0 0
    %3816 = vmatmul.mubr.bf16.gmra.mxu0 %v3765
    %v3817 = vpop.f32.mrf.mxu0
    %v3818 = vadd.f32 0.0, %v3817
    %v3819 = vpop.f32.mrf.mxu0
    %v3820 = vpop.f32.mrf.mxu0
    %v3821 = vadd.f32 0.0, %v3820
    %v3822 = vpop.f32.mrf.mxu0
    %3823 = vdwg.mxu0
    %v3824 = vadd.f32 %v3730, %v3802
    %v3825 = vadd.f32 %v3731, %v3805
    %v3826 = vadd.f32 %v3732, %v3810
    %v3827 = vadd.f32 %v3733, %v3813
    %v3828 = vadd.f32 %v3734, %v3818
    %v3829 = vadd.f32 %v3735, %v3821
    %v3830 = vld [vmem:[#allocation3 + $0xc] sm:$0xe]
    %v3831 = vld [vmem:[#allocation3 + $0x10] sm:$0xf]
    %v3832 = vld [vmem:[#allocation3 + $0x14] sm:$0xf]
    %v3833 = vld [vmem:[#allocation3 + $0x18] sm:$0xf]
    %v3834 = vld [vmem:[#allocation3 + $0x1c] sm:$0xf]
    %v3835 = vld [vmem:[#allocation3 + $0x20] sm:$0xf]
    %v3836 = vld [vmem:[#allocation3 + $0x24] sm:$0x1]
    %v3837 = vld [vmem:[%s5 + $0xd0] sm:$0xf]
    %v3838 = vld [vmem:[%s5 + $0xd4] sm:$0xf]
    %v3839 = vld [vmem:[%s5 + $0xd8] sm:$0xf]
    %v3840 = vld [vmem:[%s5 + $0xdc] sm:$0xf]
    %v3848 = vunpack.c.l.b16 %v3830
    %v3849 = vunpack.c.l.b16 %v3831
    %v3850 = vunpack.c.l.b16 %v3832
    %v3851 = vunpack.c.l.b16 %v3833
    %v3852 = vunpack.c.l.b16 %v3834
    %v3853 = vunpack.c.l.b16 %v3835
    %v3854 = vunpack.c.l.b16 %v3836
    %v3855 = vpack.c.b16 %v3849, %v3848
    %v3856 = vpack.c.b16 %v3851, %v3850
    %v3857 = vpack.c.b16 %v3853, %v3852
    %v3858 = vpack.c.b16 %v3854, %v3854
    %v3859 = vrot.slane %v3855, 1
    %v3860 = vrot.slane %v3856, 1
    %v3861 = vsel %vm2521, %v3859, %v3860
    %v3862 = vrot.slane %v3857, 1
    %v3863 = vsel %vm2521, %v3860, %v3862
    %v3864 = vrot.slane %v3858, 1
    %v3865 = vsel %vm2521, %v3862, %v3864
    %v3870 = vunpack.c.l.b16 %v3837
    %v3871 = vunpack.c.l.b16 %v3838
    %v3872 = vunpack.c.l.b16 %v3839
    %v3873 = vunpack.c.l.b16 %v3840
    %v3874 = vpack.c.b16 %v3871, %v3870
    %v3875 = vpack.c.b16 %v3873, %v3872
    %v3879 = vsel %vm429, %v3861, 0
    %v3882 = vsel %vm429, %v3863, 0
    %v3885 = vsel %vm429, %v3865, 0
    %3887 = vmatprep.subr.bf16.mxu0 0
    %3888 = vmatpush1.bf16.msra.mxu0 0
    %3889 = vmatprep.subr.bf16.mxu0 0
    %3890 = vmatpush1.bf16.msra.mxu0 0
    %3891 = vmatprep.subr.bf16.mxu0 0
    %3892 = vmatpush1.bf16.msra.mxu0 0
    %3893 = vmatprep.subr.bf16.mxu0 0
    %3894 = vmatpush1.bf16.msra.mxu0 0
    %3895 = vmatprep.subr.bf16.mxu0 0
    %3896 = vmatpush1.bf16.msra.mxu0 0
    %3897 = vmatprep.subr.bf16.mxu0 0
    %3898 = vmatpush1.bf16.msra.mxu0 0
    %3899 = vmatprep.subr.bf16.mxu0 0
    %3900 = vmatpush1.bf16.msra.mxu0 %v3875
    %3901 = vmatprep.subr.bf16.mxu0 0
    %3902 = vmatpush1.bf16.msra.mxu0 %v3874
    %3903 = vmatprep.subr.bf16.mxu0 0
    %3904 = vmatpush2.bf16.msra.mxu0 0
    %3905 = vmatprep.subr.bf16.mxu0 0
    %3906 = vmatpush2.bf16.msra.mxu0 0
    %3907 = vmatprep.subr.bf16.mxu0 0
    %3908 = vmatpush2.bf16.msra.mxu0 0
    %3909 = vmatprep.subr.bf16.mxu0 0
    %3910 = vmatpush2.bf16.msra.mxu0 0
    %3911 = vmatprep.subr.bf16.mxu0 0
    %3912 = vmatpush2.bf16.msra.mxu0 0
    %3913 = vmatprep.subr.bf16.mxu0 0
    %3914 = vmatpush2.bf16.msra.mxu0 0
    %3915 = vmatprep.subr.bf16.mxu0 0
    %3916 = vmatpush2.bf16.msra.mxu0 0
    %3917 = vmatprep.subr.bf16.mxu0 0
    %3918 = vmatpush2.bf16.msra.mxu0 0
    %3919 = vmatprep.mubr.bf16.mxu0 0
    %3920 = vmatmul.mubr.bf16.gmra.mxu0 %v3879
    %v3921 = vpop.f32.mrf.mxu0
    %v3922 = vadd.f32 0.0, %v3921
    %v3923 = vpop.f32.mrf.mxu0
    %v3924 = vpop.f32.mrf.mxu0
    %v3925 = vadd.f32 0.0, %v3924
    %v3926 = vpop.f32.mrf.mxu0
    %3927 = vmatprep.mubr.bf16.mxu0 0
    %3928 = vmatmul.mubr.bf16.gmra.mxu0 %v3882
    %v3929 = vpop.f32.mrf.mxu0
    %v3930 = vadd.f32 0.0, %v3929
    %v3931 = vpop.f32.mrf.mxu0
    %v3932 = vpop.f32.mrf.mxu0
    %v3933 = vadd.f32 0.0, %v3932
    %v3934 = vpop.f32.mrf.mxu0
    %3935 = vmatprep.mubr.bf16.mxu0 0
    %3936 = vmatmul.mubr.bf16.gmra.mxu0 %v3885
    %v3937 = vpop.f32.mrf.mxu0
    %v3938 = vadd.f32 0.0, %v3937
    %v3939 = vpop.f32.mrf.mxu0
    %v3940 = vpop.f32.mrf.mxu0
    %v3941 = vadd.f32 0.0, %v3940
    %v3942 = vpop.f32.mrf.mxu0
    %3943 = vdwg.mxu0
    %v3944 = vadd.f32 %v3824, %v3922
    %v3945 = vadd.f32 %v3825, %v3925
    %v3946 = vadd.f32 %v3826, %v3930
    %v3947 = vadd.f32 %v3827, %v3933
    %v3948 = vadd.f32 %v3828, %v3938
    %v3949 = vadd.f32 %v3829, %v3941
    %v3950 = vld [vmem:[#allocation3 + $0xc] sm:$0xc]
    %v3951 = vld [vmem:[#allocation3 + $0x24] sm:$0x3]
    %v3952 = vld [vmem:[%s5 + $0xe0] sm:$0xf]
    %v3953 = vld [vmem:[%s5 + $0xe4] sm:$0xf]
    %v3954 = vld [vmem:[%s5 + $0xe8] sm:$0xf]
    %v3955 = vld [vmem:[%s5 + $0xec] sm:$0xf]
    %v3958 = vunpack.c.l.b16 %v3950
    %v3959 = vunpack.c.l.b16 %v3951
    %v3960 = vpack.c.b16 %v3849, %v3958
    %v3961 = vpack.c.b16 %v3959, %v3959
    %v3962 = vrot.slane %v3960, 2
    %v3963 = vrot.slane %v3856, 2
    %v3964 = vsel %vm2700, %v3962, %v3963
    %v3965 = vrot.slane %v3857, 2
    %v3966 = vsel %vm2700, %v3963, %v3965
    %v3967 = vrot.slane %v3961, 2
    %v3968 = vsel %vm2700, %v3965, %v3967
    %v3973 = vunpack.c.l.b16 %v3952
    %v3974 = vunpack.c.l.b16 %v3953
    %v3975 = vunpack.c.l.b16 %v3954
    %v3976 = vunpack.c.l.b16 %v3955
    %v3977 = vpack.c.b16 %v3974, %v3973
    %v3978 = vpack.c.b16 %v3976, %v3975
    %v3982 = vsel %vm429, %v3964, 0
    %v3985 = vsel %vm429, %v3966, 0
    %v3988 = vsel %vm429, %v3968, 0
    %3990 = vmatprep.subr.bf16.mxu0 0
    %3991 = vmatpush1.bf16.msra.mxu0 0
    %3992 = vmatprep.subr.bf16.mxu0 0
    %3993 = vmatpush1.bf16.msra.mxu0 0
    %3994 = vmatprep.subr.bf16.mxu0 0
    %3995 = vmatpush1.bf16.msra.mxu0 0
    %3996 = vmatprep.subr.bf16.mxu0 0
    %3997 = vmatpush1.bf16.msra.mxu0 0
    %3998 = vmatprep.subr.bf16.mxu0 0
    %3999 = vmatpush1.bf16.msra.mxu0 0
    %4000 = vmatprep.subr.bf16.mxu0 0
    %4001 = vmatpush1.bf16.msra.mxu0 0
    %4002 = vmatprep.subr.bf16.mxu0 0
    %4003 = vmatpush1.bf16.msra.mxu0 %v3978
    %4004 = vmatprep.subr.bf16.mxu0 0
    %4005 = vmatpush1.bf16.msra.mxu0 %v3977
    %4006 = vmatprep.subr.bf16.mxu0 0
    %4007 = vmatpush2.bf16.msra.mxu0 0
    %4008 = vmatprep.subr.bf16.mxu0 0
    %4009 = vmatpush2.bf16.msra.mxu0 0
    %4010 = vmatprep.subr.bf16.mxu0 0
    %4011 = vmatpush2.bf16.msra.mxu0 0
    %4012 = vmatprep.subr.bf16.mxu0 0
    %4013 = vmatpush2.bf16.msra.mxu0 0
    %4014 = vmatprep.subr.bf16.mxu0 0
    %4015 = vmatpush2.bf16.msra.mxu0 0
    %4016 = vmatprep.subr.bf16.mxu0 0
    %4017 = vmatpush2.bf16.msra.mxu0 0
    %4018 = vmatprep.subr.bf16.mxu0 0
    %4019 = vmatpush2.bf16.msra.mxu0 0
    %4020 = vmatprep.subr.bf16.mxu0 0
    %4021 = vmatpush2.bf16.msra.mxu0 0
    %4022 = vmatprep.mubr.bf16.mxu0 0
    %4023 = vmatmul.mubr.bf16.gmra.mxu0 %v3982
    %v4024 = vpop.f32.mrf.mxu0
    %v4025 = vadd.f32 0.0, %v4024
    %v4026 = vpop.f32.mrf.mxu0
    %v4027 = vpop.f32.mrf.mxu0
    %v4028 = vadd.f32 0.0, %v4027
    %v4029 = vpop.f32.mrf.mxu0
    %4030 = vmatprep.mubr.bf16.mxu0 0
    %4031 = vmatmul.mubr.bf16.gmra.mxu0 %v3985
    %v4032 = vpop.f32.mrf.mxu0
    %v4033 = vadd.f32 0.0, %v4032
    %v4034 = vpop.f32.mrf.mxu0
    %v4035 = vpop.f32.mrf.mxu0
    %v4036 = vadd.f32 0.0, %v4035
    %v4037 = vpop.f32.mrf.mxu0
    %4038 = vmatprep.mubr.bf16.mxu0 0
    %4039 = vmatmul.mubr.bf16.gmra.mxu0 %v3988
    %v4040 = vpop.f32.mrf.mxu0
    %v4041 = vadd.f32 0.0, %v4040
    %v4042 = vpop.f32.mrf.mxu0
    %v4043 = vpop.f32.mrf.mxu0
    %v4044 = vadd.f32 0.0, %v4043
    %v4045 = vpop.f32.mrf.mxu0
    %4046 = vdwg.mxu0
    %v4047 = vadd.f32 %v3944, %v4025
    %v4048 = vadd.f32 %v3945, %v4028
    %v4049 = vadd.f32 %v3946, %v4033
    %v4050 = vadd.f32 %v3947, %v4036
    %v4051 = vadd.f32 %v3948, %v4041
    %v4052 = vadd.f32 %v3949, %v4044
    %v4053 = vld [vmem:[#allocation3 + $0xc] sm:$0x8]
    %v4054 = vld [vmem:[#allocation3 + $0x24] sm:$0x7]
    %v4055 = vld [vmem:[%s5 + $0xf0] sm:$0xf]
    %v4056 = vld [vmem:[%s5 + $0xf4] sm:$0xf]
    %v4057 = vld [vmem:[%s5 + $0xf8] sm:$0xf]
    %v4058 = vld [vmem:[%s5 + $0xfc] sm:$0xf]
    %v4061 = vunpack.c.l.b16 %v4053
    %v4062 = vunpack.c.l.b16 %v4054
    %v4063 = vpack.c.b16 %v3849, %v4061
    %v4064 = vpack.c.b16 %v4062, %v4062
    %v4065 = vrot.slane %v4063, 3
    %v4066 = vrot.slane %v3856, 3
    %v4067 = vsel %vm2804, %v4065, %v4066
    %v4068 = vrot.slane %v3857, 3
    %v4069 = vsel %vm2804, %v4066, %v4068
    %v4070 = vrot.slane %v4064, 3
    %v4071 = vsel %vm2804, %v4068, %v4070
    %v4076 = vunpack.c.l.b16 %v4055
    %v4077 = vunpack.c.l.b16 %v4056
    %v4078 = vunpack.c.l.b16 %v4057
    %v4079 = vunpack.c.l.b16 %v4058
    %v4080 = vpack.c.b16 %v4077, %v4076
    %v4081 = vpack.c.b16 %v4079, %v4078
    %v4085 = vsel %vm429, %v4067, 0
    %v4088 = vsel %vm429, %v4069, 0
    %v4091 = vsel %vm429, %v4071, 0
    %4093 = vmatprep.subr.bf16.mxu0 0
    %4094 = vmatpush1.bf16.msra.mxu0 0
    %4095 = vmatprep.subr.bf16.mxu0 0
    %4096 = vmatpush1.bf16.msra.mxu0 0
    %4097 = vmatprep.subr.bf16.mxu0 0
    %4098 = vmatpush1.bf16.msra.mxu0 0
    %4099 = vmatprep.subr.bf16.mxu0 0
    %4100 = vmatpush1.bf16.msra.mxu0 0
    %4101 = vmatprep.subr.bf16.mxu0 0
    %4102 = vmatpush1.bf16.msra.mxu0 0
    %4103 = vmatprep.subr.bf16.mxu0 0
    %4104 = vmatpush1.bf16.msra.mxu0 0
    %4105 = vmatprep.subr.bf16.mxu0 0
    %4106 = vmatpush1.bf16.msra.mxu0 %v4081
    %4107 = vmatprep.subr.bf16.mxu0 0
    %4108 = vmatpush1.bf16.msra.mxu0 %v4080
    %4109 = vmatprep.subr.bf16.mxu0 0
    %4110 = vmatpush2.bf16.msra.mxu0 0
    %4111 = vmatprep.subr.bf16.mxu0 0
    %4112 = vmatpush2.bf16.msra.mxu0 0
    %4113 = vmatprep.subr.bf16.mxu0 0
    %4114 = vmatpush2.bf16.msra.mxu0 0
    %4115 = vmatprep.subr.bf16.mxu0 0
    %4116 = vmatpush2.bf16.msra.mxu0 0
    %4117 = vmatprep.subr.bf16.mxu0 0
    %4118 = vmatpush2.bf16.msra.mxu0 0
    %4119 = vmatprep.subr.bf16.mxu0 0
    %4120 = vmatpush2.bf16.msra.mxu0 0
    %4121 = vmatprep.subr.bf16.mxu0 0
    %4122 = vmatpush2.bf16.msra.mxu0 0
    %4123 = vmatprep.subr.bf16.mxu0 0
    %4124 = vmatpush2.bf16.msra.mxu0 0
    %4125 = vmatprep.mubr.bf16.mxu0 0
    %4126 = vmatmul.mubr.bf16.gmra.mxu0 %v4085
    %v4127 = vpop.f32.mrf.mxu0
    %v4128 = vadd.f32 0.0, %v4127
    %v4129 = vpop.f32.mrf.mxu0
    %v4130 = vpop.f32.mrf.mxu0
    %v4131 = vadd.f32 0.0, %v4130
    %v4132 = vpop.f32.mrf.mxu0
    %4133 = vmatprep.mubr.bf16.mxu0 0
    %4134 = vmatmul.mubr.bf16.gmra.mxu0 %v4088
    %v4135 = vpop.f32.mrf.mxu0
    %v4136 = vadd.f32 0.0, %v4135
    %v4137 = vpop.f32.mrf.mxu0
    %v4138 = vpop.f32.mrf.mxu0
    %v4139 = vadd.f32 0.0, %v4138
    %v4140 = vpop.f32.mrf.mxu0
    %4141 = vmatprep.mubr.bf16.mxu0 0
    %4142 = vmatmul.mubr.bf16.gmra.mxu0 %v4091
    %v4143 = vpop.f32.mrf.mxu0
    %v4144 = vadd.f32 0.0, %v4143
    %v4145 = vpop.f32.mrf.mxu0
    %v4146 = vpop.f32.mrf.mxu0
    %v4147 = vadd.f32 0.0, %v4146
    %v4148 = vpop.f32.mrf.mxu0
    %4149 = vdwg.mxu0
    %v4150 = vadd.f32 %v4047, %v4128
    %v4151 = vadd.f32 %v4048, %v4131
    %v4152 = vadd.f32 %v4049, %v4136
    %v4153 = vadd.f32 %v4050, %v4139
    %v4154 = vadd.f32 %v4051, %v4144
    %v4155 = vadd.f32 %v4052, %v4147
    %v4156 = vld [vmem:[#allocation3 + $0x24] sm:$0xf]
    %v4157 = vld [vmem:[%s5 + $0x100] sm:$0xf]
    %v4158 = vld [vmem:[%s5 + $0x104] sm:$0xf]
    %v4159 = vld [vmem:[%s5 + $0x108] sm:$0xf]
    %v4160 = vld [vmem:[%s5 + $0x10c] sm:$0xf]
    %v4162 = vunpack.c.l.b16 %v4156
    %v4163 = vpack.c.b16 %v3850, %v3849
    %v4164 = vpack.c.b16 %v3852, %v3851
    %v4165 = vpack.c.b16 %v4162, %v3853
    %v4170 = vunpack.c.l.b16 %v4157
    %v4171 = vunpack.c.l.b16 %v4158
    %v4172 = vunpack.c.l.b16 %v4159
    %v4173 = vunpack.c.l.b16 %v4160
    %v4174 = vpack.c.b16 %v4171, %v4170
    %v4175 = vpack.c.b16 %v4173, %v4172
    %v4179 = vsel %vm429, %v4163, 0
    %v4182 = vsel %vm429, %v4164, 0
    %v4185 = vsel %vm429, %v4165, 0
    %4187 = vmatprep.subr.bf16.mxu0 0
    %4188 = vmatpush1.bf16.msra.mxu0 0
    %4189 = vmatprep.subr.bf16.mxu0 0
    %4190 = vmatpush1.bf16.msra.mxu0 0
    %4191 = vmatprep.subr.bf16.mxu0 0
    %4192 = vmatpush1.bf16.msra.mxu0 0
    %4193 = vmatprep.subr.bf16.mxu0 0
    %4194 = vmatpush1.bf16.msra.mxu0 0
    %4195 = vmatprep.subr.bf16.mxu0 0
    %4196 = vmatpush1.bf16.msra.mxu0 0
    %4197 = vmatprep.subr.bf16.mxu0 0
    %4198 = vmatpush1.bf16.msra.mxu0 0
    %4199 = vmatprep.subr.bf16.mxu0 0
    %4200 = vmatpush1.bf16.msra.mxu0 %v4175
    %4201 = vmatprep.subr.bf16.mxu0 0
    %4202 = vmatpush1.bf16.msra.mxu0 %v4174
    %4203 = vmatprep.subr.bf16.mxu0 0
    %4204 = vmatpush2.bf16.msra.mxu0 0
    %4205 = vmatprep.subr.bf16.mxu0 0
    %4206 = vmatpush2.bf16.msra.mxu0 0
    %4207 = vmatprep.subr.bf16.mxu0 0
    %4208 = vmatpush2.bf16.msra.mxu0 0
    %4209 = vmatprep.subr.bf16.mxu0 0
    %4210 = vmatpush2.bf16.msra.mxu0 0
    %4211 = vmatprep.subr.bf16.mxu0 0
    %4212 = vmatpush2.bf16.msra.mxu0 0
    %4213 = vmatprep.subr.bf16.mxu0 0
    %4214 = vmatpush2.bf16.msra.mxu0 0
    %4215 = vmatprep.subr.bf16.mxu0 0
    %4216 = vmatpush2.bf16.msra.mxu0 0
    %4217 = vmatprep.subr.bf16.mxu0 0
    %4218 = vmatpush2.bf16.msra.mxu0 0
    %4219 = vmatprep.mubr.bf16.mxu0 0
    %4220 = vmatmul.mubr.bf16.gmra.mxu0 %v4179
    %v4221 = vpop.f32.mrf.mxu0
    %v4222 = vadd.f32 0.0, %v4221
    %v4223 = vpop.f32.mrf.mxu0
    %v4224 = vpop.f32.mrf.mxu0
    %v4225 = vadd.f32 0.0, %v4224
    %v4226 = vpop.f32.mrf.mxu0
    %4227 = vmatprep.mubr.bf16.mxu0 0
    %4228 = vmatmul.mubr.bf16.gmra.mxu0 %v4182
    %v4229 = vpop.f32.mrf.mxu0
    %v4230 = vadd.f32 0.0, %v4229
    %v4231 = vpop.f32.mrf.mxu0
    %v4232 = vpop.f32.mrf.mxu0
    %v4233 = vadd.f32 0.0, %v4232
    %v4234 = vpop.f32.mrf.mxu0
    %4235 = vmatprep.mubr.bf16.mxu0 0
    %4236 = vmatmul.mubr.bf16.gmra.mxu0 %v4185
    %v4237 = vpop.f32.mrf.mxu0
    %v4238 = vadd.f32 0.0, %v4237
    %v4239 = vpop.f32.mrf.mxu0
    %v4240 = vpop.f32.mrf.mxu0
    %v4241 = vadd.f32 0.0, %v4240
    %v4242 = vpop.f32.mrf.mxu0
    %4243 = vdwg.mxu0
    %v4244 = vadd.f32 %v4150, %v4222
    %v4245 = vadd.f32 %v4151, %v4225
    %v4246 = vadd.f32 %v4152, %v4230
    %v4247 = vadd.f32 %v4153, %v4233
    %v4248 = vadd.f32 %v4154, %v4238
    %v4249 = vadd.f32 %v4155, %v4241
    %v4250 = vld [vmem:[#allocation3 + $0x10] sm:$0xe]
    %v4251 = vld [vmem:[#allocation3 + $0x14] sm:$0xf]
    %v4252 = vld [vmem:[#allocation3 + $0x18] sm:$0xf]
    %v4253 = vld [vmem:[#allocation3 + $0x1c] sm:$0xf]
    %v4254 = vld [vmem:[#allocation3 + $0x20] sm:$0xf]
    %v4255 = vld [vmem:[#allocation3 + $0x24] sm:$0xf]
    %v4256 = vld [vmem:[#allocation3 + $0x28] sm:$0x1]
    %v4257 = vld [vmem:[%s5 + $0x110] sm:$0xf]
    %v4258 = vld [vmem:[%s5 + $0x114] sm:$0xf]
    %v4259 = vld [vmem:[%s5 + $0x118] sm:$0xf]
    %v4260 = vld [vmem:[%s5 + $0x11c] sm:$0xf]
    %v4268 = vunpack.c.l.b16 %v4250
    %v4269 = vunpack.c.l.b16 %v4251
    %v4270 = vunpack.c.l.b16 %v4252
    %v4271 = vunpack.c.l.b16 %v4253
    %v4272 = vunpack.c.l.b16 %v4254
    %v4273 = vunpack.c.l.b16 %v4255
    %v4274 = vunpack.c.l.b16 %v4256
    %v4275 = vpack.c.b16 %v4269, %v4268
    %v4276 = vpack.c.b16 %v4271, %v4270
    %v4277 = vpack.c.b16 %v4273, %v4272
    %v4278 = vpack.c.b16 %v4274, %v4274
    %v4279 = vrot.slane %v4275, 1
    %v4280 = vrot.slane %v4276, 1
    %v4281 = vsel %vm2521, %v4279, %v4280
    %v4282 = vrot.slane %v4277, 1
    %v4283 = vsel %vm2521, %v4280, %v4282
    %v4284 = vrot.slane %v4278, 1
    %v4285 = vsel %vm2521, %v4282, %v4284
    %v4290 = vunpack.c.l.b16 %v4257
    %v4291 = vunpack.c.l.b16 %v4258
    %v4292 = vunpack.c.l.b16 %v4259
    %v4293 = vunpack.c.l.b16 %v4260
    %v4294 = vpack.c.b16 %v4291, %v4290
    %v4295 = vpack.c.b16 %v4293, %v4292
    %v4299 = vsel %vm429, %v4281, 0
    %v4302 = vsel %vm429, %v4283, 0
    %v4305 = vsel %vm429, %v4285, 0
    %4307 = vmatprep.subr.bf16.mxu0 0
    %4308 = vmatpush1.bf16.msra.mxu0 0
    %4309 = vmatprep.subr.bf16.mxu0 0
    %4310 = vmatpush1.bf16.msra.mxu0 0
    %4311 = vmatprep.subr.bf16.mxu0 0
    %4312 = vmatpush1.bf16.msra.mxu0 0
    %4313 = vmatprep.subr.bf16.mxu0 0
    %4314 = vmatpush1.bf16.msra.mxu0 0
    %4315 = vmatprep.subr.bf16.mxu0 0
    %4316 = vmatpush1.bf16.msra.mxu0 0
    %4317 = vmatprep.subr.bf16.mxu0 0
    %4318 = vmatpush1.bf16.msra.mxu0 0
    %4319 = vmatprep.subr.bf16.mxu0 0
    %4320 = vmatpush1.bf16.msra.mxu0 %v4295
    %4321 = vmatprep.subr.bf16.mxu0 0
    %4322 = vmatpush1.bf16.msra.mxu0 %v4294
    %4323 = vmatprep.subr.bf16.mxu0 0
    %4324 = vmatpush2.bf16.msra.mxu0 0
    %4325 = vmatprep.subr.bf16.mxu0 0
    %4326 = vmatpush2.bf16.msra.mxu0 0
    %4327 = vmatprep.subr.bf16.mxu0 0
    %4328 = vmatpush2.bf16.msra.mxu0 0
    %4329 = vmatprep.subr.bf16.mxu0 0
    %4330 = vmatpush2.bf16.msra.mxu0 0
    %4331 = vmatprep.subr.bf16.mxu0 0
    %4332 = vmatpush2.bf16.msra.mxu0 0
    %4333 = vmatprep.subr.bf16.mxu0 0
    %4334 = vmatpush2.bf16.msra.mxu0 0
    %4335 = vmatprep.subr.bf16.mxu0 0
    %4336 = vmatpush2.bf16.msra.mxu0 0
    %4337 = vmatprep.subr.bf16.mxu0 0
    %4338 = vmatpush2.bf16.msra.mxu0 0
    %4339 = vmatprep.mubr.bf16.mxu0 0
    %4340 = vmatmul.mubr.bf16.gmra.mxu0 %v4299
    %v4341 = vpop.f32.mrf.mxu0
    %v4342 = vadd.f32 0.0, %v4341
    %v4343 = vpop.f32.mrf.mxu0
    %v4344 = vpop.f32.mrf.mxu0
    %v4345 = vadd.f32 0.0, %v4344
    %v4346 = vpop.f32.mrf.mxu0
    %4347 = vmatprep.mubr.bf16.mxu0 0
    %4348 = vmatmul.mubr.bf16.gmra.mxu0 %v4302
    %v4349 = vpop.f32.mrf.mxu0
    %v4350 = vadd.f32 0.0, %v4349
    %v4351 = vpop.f32.mrf.mxu0
    %v4352 = vpop.f32.mrf.mxu0
    %v4353 = vadd.f32 0.0, %v4352
    %v4354 = vpop.f32.mrf.mxu0
    %4355 = vmatprep.mubr.bf16.mxu0 0
    %4356 = vmatmul.mubr.bf16.gmra.mxu0 %v4305
    %v4357 = vpop.f32.mrf.mxu0
    %v4358 = vadd.f32 0.0, %v4357
    %v4359 = vpop.f32.mrf.mxu0
    %v4360 = vpop.f32.mrf.mxu0
    %v4361 = vadd.f32 0.0, %v4360
    %v4362 = vpop.f32.mrf.mxu0
    %4363 = vdwg.mxu0
    %v4364 = vadd.f32 %v4244, %v4342
    %v4365 = vadd.f32 %v4245, %v4345
    %v4366 = vadd.f32 %v4246, %v4350
    %v4367 = vadd.f32 %v4247, %v4353
    %v4368 = vadd.f32 %v4248, %v4358
    %v4369 = vadd.f32 %v4249, %v4361
    %v4370 = vld [vmem:[#allocation3 + $0x10] sm:$0xc]
    %v4371 = vld [vmem:[#allocation3 + $0x28] sm:$0x3]
    %v4372 = vld [vmem:[%s5 + $0x120] sm:$0xf]
    %v4373 = vld [vmem:[%s5 + $0x124] sm:$0xf]
    %v4374 = vld [vmem:[%s5 + $0x128] sm:$0xf]
    %v4375 = vld [vmem:[%s5 + $0x12c] sm:$0xf]
    %v4378 = vunpack.c.l.b16 %v4370
    %v4379 = vunpack.c.l.b16 %v4371
    %v4380 = vpack.c.b16 %v4269, %v4378
    %v4381 = vpack.c.b16 %v4379, %v4379
    %v4382 = vrot.slane %v4380, 2
    %v4383 = vrot.slane %v4276, 2
    %v4384 = vsel %vm2700, %v4382, %v4383
    %v4385 = vrot.slane %v4277, 2
    %v4386 = vsel %vm2700, %v4383, %v4385
    %v4387 = vrot.slane %v4381, 2
    %v4388 = vsel %vm2700, %v4385, %v4387
    %v4393 = vunpack.c.l.b16 %v4372
    %v4394 = vunpack.c.l.b16 %v4373
    %v4395 = vunpack.c.l.b16 %v4374
    %v4396 = vunpack.c.l.b16 %v4375
    %v4397 = vpack.c.b16 %v4394, %v4393
    %v4398 = vpack.c.b16 %v4396, %v4395
    %v4402 = vsel %vm429, %v4384, 0
    %v4405 = vsel %vm429, %v4386, 0
    %v4408 = vsel %vm429, %v4388, 0
    %4410 = vmatprep.subr.bf16.mxu0 0
    %4411 = vmatpush1.bf16.msra.mxu0 0
    %4412 = vmatprep.subr.bf16.mxu0 0
    %4413 = vmatpush1.bf16.msra.mxu0 0
    %4414 = vmatprep.subr.bf16.mxu0 0
    %4415 = vmatpush1.bf16.msra.mxu0 0
    %4416 = vmatprep.subr.bf16.mxu0 0
    %4417 = vmatpush1.bf16.msra.mxu0 0
    %4418 = vmatprep.subr.bf16.mxu0 0
    %4419 = vmatpush1.bf16.msra.mxu0 0
    %4420 = vmatprep.subr.bf16.mxu0 0
    %4421 = vmatpush1.bf16.msra.mxu0 0
    %4422 = vmatprep.subr.bf16.mxu0 0
    %4423 = vmatpush1.bf16.msra.mxu0 %v4398
    %4424 = vmatprep.subr.bf16.mxu0 0
    %4425 = vmatpush1.bf16.msra.mxu0 %v4397
    %4426 = vmatprep.subr.bf16.mxu0 0
    %4427 = vmatpush2.bf16.msra.mxu0 0
    %4428 = vmatprep.subr.bf16.mxu0 0
    %4429 = vmatpush2.bf16.msra.mxu0 0
    %4430 = vmatprep.subr.bf16.mxu0 0
    %4431 = vmatpush2.bf16.msra.mxu0 0
    %4432 = vmatprep.subr.bf16.mxu0 0
    %4433 = vmatpush2.bf16.msra.mxu0 0
    %4434 = vmatprep.subr.bf16.mxu0 0
    %4435 = vmatpush2.bf16.msra.mxu0 0
    %4436 = vmatprep.subr.bf16.mxu0 0
    %4437 = vmatpush2.bf16.msra.mxu0 0
    %4438 = vmatprep.subr.bf16.mxu0 0
    %4439 = vmatpush2.bf16.msra.mxu0 0
    %4440 = vmatprep.subr.bf16.mxu0 0
    %4441 = vmatpush2.bf16.msra.mxu0 0
    %4442 = vmatprep.mubr.bf16.mxu0 0
    %4443 = vmatmul.mubr.bf16.gmra.mxu0 %v4402
    %v4444 = vpop.f32.mrf.mxu0
    %v4445 = vadd.f32 0.0, %v4444
    %v4446 = vpop.f32.mrf.mxu0
    %v4447 = vpop.f32.mrf.mxu0
    %v4448 = vadd.f32 0.0, %v4447
    %v4449 = vpop.f32.mrf.mxu0
    %4450 = vmatprep.mubr.bf16.mxu0 0
    %4451 = vmatmul.mubr.bf16.gmra.mxu0 %v4405
    %v4452 = vpop.f32.mrf.mxu0
    %v4453 = vadd.f32 0.0, %v4452
    %v4454 = vpop.f32.mrf.mxu0
    %v4455 = vpop.f32.mrf.mxu0
    %v4456 = vadd.f32 0.0, %v4455
    %v4457 = vpop.f32.mrf.mxu0
    %4458 = vmatprep.mubr.bf16.mxu0 0
    %4459 = vmatmul.mubr.bf16.gmra.mxu0 %v4408
    %v4460 = vpop.f32.mrf.mxu0
    %v4461 = vadd.f32 0.0, %v4460
    %v4462 = vpop.f32.mrf.mxu0
    %v4463 = vpop.f32.mrf.mxu0
    %v4464 = vadd.f32 0.0, %v4463
    %v4465 = vpop.f32.mrf.mxu0
    %4466 = vdwg.mxu0
    %v4467 = vadd.f32 %v4364, %v4445
    %v4468 = vadd.f32 %v4365, %v4448
    %v4469 = vadd.f32 %v4366, %v4453
    %v4470 = vadd.f32 %v4367, %v4456
    %v4471 = vadd.f32 %v4368, %v4461
    %v4472 = vadd.f32 %v4369, %v4464
    %v4473 = vld [vmem:[#allocation3 + $0x10] sm:$0x8]
    %v4474 = vld [vmem:[#allocation3 + $0x28] sm:$0x7]
    %v4475 = vld [vmem:[%s5 + $0x130] sm:$0xf]
    %v4476 = vld [vmem:[%s5 + $0x134] sm:$0xf]
    %v4477 = vld [vmem:[%s5 + $0x138] sm:$0xf]
    %v4478 = vld [vmem:[%s5 + $0x13c] sm:$0xf]
    %v4481 = vunpack.c.l.b16 %v4473
    %v4482 = vunpack.c.l.b16 %v4474
    %v4483 = vpack.c.b16 %v4269, %v4481
    %v4484 = vpack.c.b16 %v4482, %v4482
    %v4485 = vrot.slane %v4483, 3
    %v4486 = vrot.slane %v4276, 3
    %v4487 = vsel %vm2804, %v4485, %v4486
    %v4488 = vrot.slane %v4277, 3
    %v4489 = vsel %vm2804, %v4486, %v4488
    %v4490 = vrot.slane %v4484, 3
    %v4491 = vsel %vm2804, %v4488, %v4490
    %v4496 = vunpack.c.l.b16 %v4475
    %v4497 = vunpack.c.l.b16 %v4476
    %v4498 = vunpack.c.l.b16 %v4477
    %v4499 = vunpack.c.l.b16 %v4478
    %v4500 = vpack.c.b16 %v4497, %v4496
    %v4501 = vpack.c.b16 %v4499, %v4498
    %v4505 = vsel %vm429, %v4487, 0
    %v4508 = vsel %vm429, %v4489, 0
    %v4511 = vsel %vm429, %v4491, 0
    %4513 = vmatprep.subr.bf16.mxu0 0
    %4514 = vmatpush1.bf16.msra.mxu0 0
    %4515 = vmatprep.subr.bf16.mxu0 0
    %4516 = vmatpush1.bf16.msra.mxu0 0
    %4517 = vmatprep.subr.bf16.mxu0 0
    %4518 = vmatpush1.bf16.msra.mxu0 0
    %4519 = vmatprep.subr.bf16.mxu0 0
    %4520 = vmatpush1.bf16.msra.mxu0 0
    %4521 = vmatprep.subr.bf16.mxu0 0
    %4522 = vmatpush1.bf16.msra.mxu0 0
    %4523 = vmatprep.subr.bf16.mxu0 0
    %4524 = vmatpush1.bf16.msra.mxu0 0
    %4525 = vmatprep.subr.bf16.mxu0 0
    %4526 = vmatpush1.bf16.msra.mxu0 %v4501
    %4527 = vmatprep.subr.bf16.mxu0 0
    %4528 = vmatpush1.bf16.msra.mxu0 %v4500
    %4529 = vmatprep.subr.bf16.mxu0 0
    %4530 = vmatpush2.bf16.msra.mxu0 0
    %4531 = vmatprep.subr.bf16.mxu0 0
    %4532 = vmatpush2.bf16.msra.mxu0 0
    %4533 = vmatprep.subr.bf16.mxu0 0
    %4534 = vmatpush2.bf16.msra.mxu0 0
    %4535 = vmatprep.subr.bf16.mxu0 0
    %4536 = vmatpush2.bf16.msra.mxu0 0
    %4537 = vmatprep.subr.bf16.mxu0 0
    %4538 = vmatpush2.bf16.msra.mxu0 0
    %4539 = vmatprep.subr.bf16.mxu0 0
    %4540 = vmatpush2.bf16.msra.mxu0 0
    %4541 = vmatprep.subr.bf16.mxu0 0
    %4542 = vmatpush2.bf16.msra.mxu0 0
    %4543 = vmatprep.subr.bf16.mxu0 0
    %4544 = vmatpush2.bf16.msra.mxu0 0
    %4545 = vmatprep.mubr.bf16.mxu0 0
    %4546 = vmatmul.mubr.bf16.gmra.mxu0 %v4505
    %v4547 = vpop.f32.mrf.mxu0
    %v4548 = vadd.f32 0.0, %v4547
    %v4549 = vpop.f32.mrf.mxu0
    %v4550 = vpop.f32.mrf.mxu0
    %v4551 = vadd.f32 0.0, %v4550
    %v4552 = vpop.f32.mrf.mxu0
    %4553 = vmatprep.mubr.bf16.mxu0 0
    %4554 = vmatmul.mubr.bf16.gmra.mxu0 %v4508
    %v4555 = vpop.f32.mrf.mxu0
    %v4556 = vadd.f32 0.0, %v4555
    %v4557 = vpop.f32.mrf.mxu0
    %v4558 = vpop.f32.mrf.mxu0
    %v4559 = vadd.f32 0.0, %v4558
    %v4560 = vpop.f32.mrf.mxu0
    %4561 = vmatprep.mubr.bf16.mxu0 0
    %4562 = vmatmul.mubr.bf16.gmra.mxu0 %v4511
    %v4563 = vpop.f32.mrf.mxu0
    %v4564 = vadd.f32 0.0, %v4563
    %v4565 = vpop.f32.mrf.mxu0
    %v4566 = vpop.f32.mrf.mxu0
    %v4567 = vadd.f32 0.0, %v4566
    %v4568 = vpop.f32.mrf.mxu0
    %4569 = vdwg.mxu0
    %v4570 = vadd.f32 %v4467, %v4548
    %v4571 = vadd.f32 %v4468, %v4551
    %v4572 = vadd.f32 %v4469, %v4556
    %v4573 = vadd.f32 %v4470, %v4559
    %v4574 = vadd.f32 %v4471, %v4564
    %v4575 = vadd.f32 %v4472, %v4567
    %v4576 = vld [vmem:[%s6] sm:$0x1]
    %v4578 = vlaneseq
    %v4579 = vshrl.u32 %v4578, 7
    %v4580 = vsub.s32 0, %v4579
    %v4581 = vrot.slane %v4576, %v4580
    %v4583 = vadd.f32 %v4570, %v4581
    %v4584 = vadd.f32 %v4571, %v4581
    %v4585 = vadd.f32 %v4572, %v4581
    %v4586 = vadd.f32 %v4573, %v4581
    %v4587 = vadd.f32 %v4574, %v4581
    %v4588 = vadd.f32 %v4575, %v4581
    %v4589 = vmax.f32 %v4583, 0.0
    %v4590 = vmax.f32 %v4584, 0.0
    %v4591 = vmax.f32 %v4585, 0.0
    %v4592 = vmax.f32 %v4586, 0.0
    %v4593 = vmax.f32 %v4587, 0.0
    %v4594 = vmax.f32 %v4588, 0.0
    %v4595 = vlaneseq
    %v4596 = vshrl.u32 %v4595, 7
    %v4597 = vadd.s32 %v4596, 8
    %v4598 = vadd.s32 %v4596, 16
    %v4599 = vadd.s32 %v4596, 24
    %v4600 = vadd.s32 %v4596, 32
    %v4601 = vadd.s32 %v4596, 40
    %v4602 = vld [vmem:[%s7] sm:$0x1]
    %v4603 = vsub.s32 25, %v4602
    %v4604 = vmul.u32 %v4603, 2
    %v4605 = vlaneseq
    %v4606 = vshrl.u32 %v4605, 7
    %v4607 = vsub.s32 0, %v4606
    %v4608 = vrot.slane %v4604, %v4607
    %vm4609 = vcmp.lt.s32.totalorder %v4596, %v4608
    %vm4610 = vcmp.lt.s32.totalorder %v4597, %v4608
    %vm4611 = vcmp.lt.s32.totalorder %v4598, %v4608
    %vm4612 = vcmp.lt.s32.totalorder %v4599, %v4608
    %vm4613 = vcmp.lt.s32.totalorder %v4600, %v4608
    %vm4614 = vcmp.lt.s32.totalorder %v4601, %v4608
    %v4615 = vsel %vm4609, %v4589, 0.0
    %v4616 = vsel %vm4610, %v4590, 0.0
    %v4617 = vsel %vm4611, %v4591, 0.0
    %v4618 = vsel %vm4612, %v4592, 0.0
    %v4619 = vsel %vm4613, %v4593, 0.0
    %v4620 = vsel %vm4614, %v4594, 0.0
    %v4622 = vrot.slane %v4615, 2
    %v4624 = vmax.f32 %v4615, %v4622
    %v4625 = vrot.slane %v4615, 4
    %v4627 = vmax.f32 %v4624, %v4625
    %v4628 = vrot.slane %v4615, 6
    %v4630 = vmax.f32 %v4627, %v4628
    %v4631 = vmax.f32 %v4630, %v4616
    %v4633 = vrot.slane %v4616, 2
    %v4635 = vmax.f32 %v4631, %v4633
    %v4636 = vrot.slane %v4616, 4
    %v4638 = vmax.f32 %v4635, %v4636
    %v4639 = vrot.slane %v4616, 6
    %v4641 = vmax.f32 %v4638, %v4639
    %v4642 = vmax.f32 %v4641, %v4617
    %v4644 = vrot.slane %v4617, 2
    %v4646 = vmax.f32 %v4642, %v4644
    %v4647 = vrot.slane %v4617, 4
    %v4649 = vmax.f32 %v4646, %v4647
    %v4650 = vrot.slane %v4617, 6
    %v4652 = vmax.f32 %v4649, %v4650
    %v4653 = vmax.f32 %v4652, %v4618
    %v4655 = vrot.slane %v4618, 2
    %v4657 = vmax.f32 %v4653, %v4655
    %v4658 = vrot.slane %v4618, 4
    %v4660 = vmax.f32 %v4657, %v4658
    %v4661 = vrot.slane %v4618, 6
    %v4663 = vmax.f32 %v4660, %v4661
    %v4664 = vmax.f32 %v4663, %v4619
    %v4666 = vrot.slane %v4619, 2
    %v4668 = vmax.f32 %v4664, %v4666
    %v4669 = vrot.slane %v4619, 4
    %v4671 = vmax.f32 %v4668, %v4669
    %v4672 = vrot.slane %v4619, 6
    %v4674 = vmax.f32 %v4671, %v4672
    %v4675 = vmax.f32 %v4674, %v4620
    %v4677 = vrot.slane %v4620, 2
    %v4679 = vmax.f32 %v4675, %v4677
    %v4680 = vrot.slane %v4620, 4
    %v4682 = vmax.f32 %v4679, %v4680
    %v4683 = vrot.slane %v4620, 6
    %v4685 = vmax.f32 %v4682, %v4683
    %v4686 = vld [vmem:[%s8] sm:$0xff]
    %v4687 = vld [vmem:[%s8 + $0x8] sm:$0xff]
    %v4688 = vld [vmem:[%s8 + $0x10] sm:$0xff]
    %v4689 = vld [vmem:[%s8 + $0x18] sm:$0xff]
    %v4690 = vld [vmem:[%s8 + $0x20] sm:$0xff]
    %v4691 = vld [vmem:[%s8 + $0x28] sm:$0xff]
    %v4692 = vld [vmem:[%s8 + $0x30] sm:$0xff]
    %v4693 = vld [vmem:[%s8 + $0x38] sm:$0xff]
    %v4694 = vld [vmem:[%s8 + $0x40] sm:$0xff]
    %v4695 = vld [vmem:[%s8 + $0x48] sm:$0xff]
    %v4696 = vld [vmem:[%s8 + $0x50] sm:$0xff]
    %v4697 = vld [vmem:[%s8 + $0x58] sm:$0xff]
    %v4698 = vld [vmem:[%s8 + $0x60] sm:$0xff]
    %v4699 = vld [vmem:[%s8 + $0x68] sm:$0xff]
    %v4700 = vld [vmem:[%s8 + $0x70] sm:$0xff]
    %v4701 = vld [vmem:[%s8 + $0x78] sm:$0xff]
    %v4702 = vld [vmem:[%s9] sm:$0x1]
    %v4704 = vlaneseq
    %v4705 = vshrl.u32 %v4704, 7
    %v4706 = vsub.s32 0, %v4705
    %v4707 = vrot.slane %v4702, %v4706
    %4709 = vmatprep.subr.mxu0 0.0
    %4710 = vmatpush1.msra.mxu0 %v4701
    %4711 = vmatprep.subr.mxu0 0.0
    %4712 = vmatpush1.msra.mxu0 %v4700
    %4713 = vmatprep.subr.mxu0 0.0
    %4714 = vmatpush1.msra.mxu0 %v4699
    %4715 = vmatprep.subr.mxu0 0.0
    %4716 = vmatpush1.msra.mxu0 %v4698
    %4717 = vmatprep.subr.mxu0 0.0
    %4718 = vmatpush1.msra.mxu0 %v4697
    %4719 = vmatprep.subr.mxu0 0.0
    %4720 = vmatpush1.msra.mxu0 %v4696
    %4721 = vmatprep.subr.mxu0 0.0
    %4722 = vmatpush1.msra.mxu0 %v4695
    %4723 = vmatprep.subr.mxu0 0.0
    %4724 = vmatpush1.msra.mxu0 %v4694
    %4725 = vmatprep.subr.mxu0 0.0
    %4726 = vmatpush1.msra.mxu0 %v4693
    %4727 = vmatprep.subr.mxu0 0.0
    %4728 = vmatpush1.msra.mxu0 %v4692
    %4729 = vmatprep.subr.mxu0 0.0
    %4730 = vmatpush1.msra.mxu0 %v4691
    %4731 = vmatprep.subr.mxu0 0.0
    %4732 = vmatpush1.msra.mxu0 %v4690
    %4733 = vmatprep.subr.mxu0 0.0
    %4734 = vmatpush1.msra.mxu0 %v4689
    %4735 = vmatprep.subr.mxu0 0.0
    %4736 = vmatpush1.msra.mxu0 %v4688
    %4737 = vmatprep.subr.mxu0 0.0
    %4738 = vmatpush1.msra.mxu0 %v4687
    %4739 = vmatprep.subr.mxu0 0.0
    %4740 = vmatpush1.msra.mxu0 %v4686
    %4741 = vmatprep.subr.mxu0 0.0
    %4742 = vmatpush2.msra.mxu0 0.0
    %4743 = vmatprep.subr.mxu0 0.0
    %4744 = vmatpush2.msra.mxu0 0.0
    %4745 = vmatprep.subr.mxu0 0.0
    %4746 = vmatpush2.msra.mxu0 0.0
    %4747 = vmatprep.subr.mxu0 0.0
    %4748 = vmatpush2.msra.mxu0 0.0
    %4749 = vmatprep.subr.mxu0 0.0
    %4750 = vmatpush2.msra.mxu0 0.0
    %4751 = vmatprep.subr.mxu0 0.0
    %4752 = vmatpush2.msra.mxu0 0.0
    %4753 = vmatprep.subr.mxu0 0.0
    %4754 = vmatpush2.msra.mxu0 0.0
    %4755 = vmatprep.subr.mxu0 0.0
    %4756 = vmatpush2.msra.mxu0 0.0
    %4757 = vmatprep.subr.mxu0 0.0
    %4758 = vmatpush2.msra.mxu0 0.0
    %4759 = vmatprep.subr.mxu0 0.0
    %4760 = vmatpush2.msra.mxu0 0.0
    %4761 = vmatprep.subr.mxu0 0.0
    %4762 = vmatpush2.msra.mxu0 0.0
    %4763 = vmatprep.subr.mxu0 0.0
    %4764 = vmatpush2.msra.mxu0 0.0
    %4765 = vmatprep.subr.mxu0 0.0
    %4766 = vmatpush2.msra.mxu0 0.0
    %4767 = vmatprep.subr.mxu0 0.0
    %4768 = vmatpush2.msra.mxu0 0.0
    %4769 = vmatprep.subr.mxu0 0.0
    %4770 = vmatpush2.msra.mxu0 0.0
    %4771 = vmatprep.subr.mxu0 0.0
    %4772 = vmatpush2.msra.mxu0 0.0
    %4773 = vmatprep.mubr.f32.mxu0 0.0
    %4774 = vmatmul.mubr.f32.gmra.mxu0 %v4685
    %v4775 = vpop.f32.mrf.mxu0
    %v4776 = vadd.f32 %v4707, %v4775
    %v4777 = vpop.f32.mrf.mxu0
    %4778 = vdwg.mxu0
    %vm4779 = vcmask 9216
    %4780 = vst.msk [vmem:[#allocation4] sm:$0x3] %vm4779, %v4776
    // Predicated region
    $region42: #{con_bigru_cnn_forward.1} parent=1 // pred_check
      _
    $region43: #{con_bigru_cnn_forward.1} parent=1 // pred_check_branch
      %4782 = sbr.rel (0) target = $region45
    $region44: #{con_bigru_cnn_forward.1} parent=1 // pred_region
      %s4784 = ssub.s32 32, 32
      %4785 = vsyncadd [#allocation5], %s4784
      %s4787 = sshll.u32 [#allocation4], 4
      %s4788 = int_to_ptr.vmem [resolvable:$true] %s4787
      %4790 = dma.vmem_to_hbm [thread:$0]  %s4788, 32, %s10, [#allocation5]
    $region45: #{con_bigru_cnn_forward.1} parent=1 // pred_fallthru
      _
    // Predicated region
    $region46: #{con_bigru_cnn_forward.1} parent=1 // pred_check
      _
    $region47: #{con_bigru_cnn_forward.1} parent=1 // pred_check_branch
      %4792 = sbr.rel (0) target = $region49
    $region48: #{con_bigru_cnn_forward.1} parent=1 // pred_region
      %4793 = dma.done [#allocation5], 32
    $region49: #{con_bigru_cnn_forward.1} parent=1 // pred_fallthru
      _
    %4794 = vsyncpa [#allocation5], 1

</llo_original>
